<compile_context>
chip_gen: v7x
topology: tpu7x:2x2x1
jax: 0.10.0
libtpu: 0.0.40
codegen_flags: <defaults>
</compile_context>

<pallas_src>
import jax
import jax.numpy as jnp
import numpy as np
from jax import lax
from jax.experimental import pallas as pl
from jax.experimental.pallas import tpu as pltpu

_EPS = 1e-5  # nn.BatchNorm2d default


# --------------------------------------------------------------------------------------
# in-kernel helpers
# --------------------------------------------------------------------------------------
def _conv_bias(x_ref, w_ref, bias_ref):
    """Transposed conv (k=4, s=2, p=1) + bias for one batch tile.

    Returns (TN*H*W, 4*Cout) float32 with the four sub-pixel phases stacked along lanes
    in order p = 2*a + b (a = output-row parity, b = output-col parity).
    """
    TN, H, W, Cin = x_ref.shape
    C4 = w_ref.shape[-1]
    x = x_ref[...]
    w = w_ref[...]

    # 1-pixel zero halo built in VMEM (no padded copy of the input in HBM).
    zr = jnp.zeros((TN, 1, W, Cin), x.dtype)
    xp = jnp.concatenate([zr, x, zr], axis=1)              # (TN, H+2, W,   Cin)
    zc = jnp.zeros((TN, H + 2, 1, Cin), x.dtype)
    xp = jnp.concatenate([zc, xp, zc], axis=2)             # (TN, H+2, W+2, Cin)

    acc = jnp.zeros((TN * H * W, C4), jnp.float32)
    for d in (-1, 0, 1):            # input row offset
        for e in (-1, 0, 1):        # input col offset
            xs = xp[:, 1 + d:1 + d + H, 1 + e:1 + e + W, :]
            # Collapses only leading (sublane-major) dims -> layout-preserving for W % 8 == 0.
            xs2 = xs.reshape(TN * H * W, Cin)
            # DEFAULT precision (single bf16 MXU pass, f32 accumulate).
            acc = acc + jnp.dot(xs2, w[d + 1, e + 1],
                                preferred_element_type=jnp.float32)
    return acc + bias_ref[...]


def _stats_kernel(x_ref, w_ref, bias_ref, stats_ref):
    """Pass 1: per-tile partial BN statistics of the conv+bias output."""
    acc = _conv_bias(x_ref, w_ref, bias_ref)               # (M, 4*Cout)
    ssum = jnp.sum(acc, axis=0, keepdims=True)             # (1, 4*Cout)
    ssq = jnp.sum(acc * acc, axis=0, keepdims=True)        # (1, 4*Cout)
    stats_ref[0] = jnp.concatenate([ssum, ssq], axis=0)    # (2, 4*Cout)


def _apply_kernel(x_ref, w_ref, bias_ref, scale_ref, shift_ref, out_ref):
    """Pass 2: recompute conv+bias, apply BN affine + SiLU, write phase-interleaved."""
    TN, H, W, _ = x_ref.shape
    C2 = out_ref.shape[-1]                                 # 2 * Cout
    acc = _conv_bias(x_ref, w_ref, bias_ref)               # (M, 4*Cout)
    y = acc * scale_ref[...] + shift_ref[...]              # BatchNorm affine
    y = y * pl.reciprocal(1.0 + jnp.exp(-y), approx=True)  # SiLU; exp + rcp on the EUP
    # lanes of y: [ (a=0,b=0) | (a=0,b=1) | (a=1,b=0) | (a=1,b=1) ], each Cout wide
    y0 = y[:, :C2].reshape(TN, H, 1, W, C2)                # even output rows (a = 0)
    y1 = y[:, C2:].reshape(TN, H, 1, W, C2)                # odd  output rows (a = 1)
    out_ref[:, :, 0:1, :, :] = y0
    out_ref[:, :, 1:2, :, :] = y1


# --------------------------------------------------------------------------------------
# wrapper
# --------------------------------------------------------------------------------------
def _offset_weights(w_pt):
    """(Cin, Cout, 4, 4) ConvTranspose2d weight -> (3, 3, Cin, 4*Cout) offset-grouped weight.

    Block [d+1, e+1, :, (2a+b)*Cout : (2a+b+1)*Cout] is the (Cin, Cout) tap applied to
    input offset (d, e) for output phase (a, b); zero where that phase has no tap.
    """
    Cin, Cout = w_pt.shape[0], w_pt.shape[1]
    w_hwio = jnp.transpose(w_pt, (2, 3, 0, 1))             # (4, 4, Cin, Cout)
    # (output parity, input offset) -> kernel index, from k = parity - 2*offset + 1
    tap = {(0, 0): 1, (0, -1): 3, (1, 0): 2, (1, 1): 0}
    zeros = jnp.zeros((Cin, Cout), w_pt.dtype)
    rows = []
    for d in (-1, 0, 1):
        cols = []
        for e in (-1, 0, 1):
            blocks = []
            for a in (0, 1):
                for b in (0, 1):
                    kh = tap.get((a, d))
                    kw = tap.get((b, e))
                    blocks.append(zeros if (kh is None or kw is None) else w_hwio[kh, kw])
            cols.append(jnp.concatenate(blocks, axis=1))   # (Cin, 4*Cout)
        rows.append(jnp.stack(cols, axis=0))               # (3, Cin, 4*Cout)
    return jnp.stack(rows, axis=0)                         # (3, 3, Cin, 4*Cout)


@jax.jit
def upsample2x(x_nchw, w_pt, bias, gamma, beta):
    """x_nchw: (N, Cin, H, W); w_pt: (Cin, Cout, 4, 4) (PyTorch ConvTranspose2d layout)."""
    N, Cin, H, W = x_nchw.shape
    Cout = w_pt.shape[1]
    C4, C2 = 4 * Cout, 2 * Cout

    x = jnp.transpose(x_nchw, (0, 2, 3, 1)).astype(jnp.float32)      # NHWC (lanes = channels)
    w_off = _offset_weights(w_pt.astype(jnp.float32))                # (3, 3, Cin, 4*Cout)
    bias4 = jnp.tile(bias.astype(jnp.float32), 4).reshape(1, C4)

    cparams = pltpu.CompilerParams(
        dimension_semantics=("parallel",),     # batch tiles shard across v7x's 2 TensorCores
        vmem_limit_bytes=32 * 1024 * 1024,     # explicit budget (v5e default is only 16 MiB)
    )

    conv_flops = 2 * N * H * W * 9 * Cin * C4
    x_bytes = 4 * N * H * W * Cin
    w_bytes = 4 * 9 * Cin * C4
    out_bytes = 4 * N * H * 2 * W * C2

    # ---- pass 1: per-tile partial BN statistics (sum, sum of squares) -----------------
    stats = pl.pallas_call(
        _stats_kernel,
        out_shape=jax.ShapeDtypeStruct((N, 2, C4), jnp.float32),
        grid=(N,),
        in_specs=[
            pl.BlockSpec((1, H, W, Cin), lambda i: (i, 0, 0, 0)),
            pl.BlockSpec((3, 3, Cin, C4), lambda i: (0, 0, 0, 0)),
            pl.BlockSpec((1, C4), lambda i: (0, 0)),
        ],
        out_specs=pl.BlockSpec((1, 2, C4), lambda i: (i, 0, 0)),
        compiler_params=cparams,
        cost_estimate=pl.CostEstimate(flops=conv_flops, transcendentals=0,
                                      bytes_accessed=x_bytes + w_bytes + 4 * N * 2 * C4),
    )(x, w_off, bias4)

    # fold batch tiles and the 4 phases -> per-channel batch stats (tiny, plain XLA)
    tot = jnp.sum(stats, axis=0)                                      # (2, 4*Cout)
    s = jnp.sum(tot[0].reshape(4, Cout), axis=0)
    sq = jnp.sum(tot[1].reshape(4, Cout), axis=0)
    count = jnp.float32(4 * N * H * W)                                # = N * 2H * 2W
    mean = s / count
    # TODO(synk): E[x^2] - mean^2 loses precision when |mean| >> std; use a centered
    #             second stats pass if production magnitudes require it.
    var = sq / count - mean * mean                                    # biased (BN training mode)
    inv = lax.rsqrt(var + _EPS)
    scale = gamma.astype(jnp.float32) * inv
    shift = beta.astype(jnp.float32) - mean * scale
    scale4 = jnp.tile(scale, 4).reshape(1, C4)
    shift4 = jnp.tile(shift, 4).reshape(1, C4)

    # ---- pass 2: conv (recomputed) + BN affine + SiLU, phase-interleaved output -------
    out = pl.pallas_call(
        _apply_kernel,
        out_shape=jax.ShapeDtypeStruct((N, H, 2, W, C2), jnp.float32),
        grid=(N,),
        in_specs=[
            pl.BlockSpec((1, H, W, Cin), lambda i: (i, 0, 0, 0)),
            pl.BlockSpec((3, 3, Cin, C4), lambda i: (0, 0, 0, 0)),
            pl.BlockSpec((1, C4), lambda i: (0, 0)),
            pl.BlockSpec((1, C4), lambda i: (0, 0)),
            pl.BlockSpec((1, C4), lambda i: (0, 0)),
        ],
        out_specs=pl.BlockSpec((1, H, 2, W, C2), lambda i: (i, 0, 0, 0, 0)),
        compiler_params=cparams,
        cost_estimate=pl.CostEstimate(flops=conv_flops + 5 * N * H * W * C4,
                                      transcendentals=N * H * W * C4,
                                      bytes_accessed=x_bytes + w_bytes + out_bytes),
    )(x, w_off, bias4, scale4, shift4)

    # (N, H, 2, W, 2*Cout) -> (N, 2H, 2W, Cout) is a pure reshape (no HBM transpose).
    # Only the NHWC -> NCHW boundary conversion for the PyTorch contract remains.
    y = out.reshape(N, 2 * H, 2 * W, Cout)
    return jnp.transpose(y, (0, 3, 1, 2))


# --------------------------------------------------------------------------------------
# pure-JAX reference (PyTorch semantics, highest precision) — verification only
# --------------------------------------------------------------------------------------
def upsample2x_ref(x_nchw, w_pt, bias, gamma, beta):
    w_oihw = jnp.transpose(w_pt[:, :, ::-1, ::-1], (1, 0, 2, 3))      # flipped, OIHW
    y = lax.conv_general_dilated(
        x_nchw, w_oihw, window_strides=(1, 1), padding=((2, 2), (2, 2)),
        lhs_dilation=(2, 2), dimension_numbers=('NCHW', 'OIHW', 'NCHW'),
        precision=lax.Precision.HIGHEST)
    y = y + bias[None, :, None, None]
    mean = jnp.mean(y, axis=(0, 2, 3), keepdims=True)
    var = jnp.mean((y - mean) ** 2, axis=(0, 2, 3), keepdims=True)
    yn = (y - mean) * lax.rsqrt(var + _EPS)
    yn = yn * gamma[None, :, None, None] + beta[None, :, None, None]
    return yn * jax.nn.sigmoid(yn)


if __name__ == "__main__":
    N, Cin, Cout, H, W = 2, 4, 8, 16, 16

    key = jax.random.PRNGKey(0)
    k_x, k_w, k_b = jax.random.split(key, 3)
    x = jax.random.normal(k_x, (N, Cin, H, W), jnp.float32)
    # ConvTranspose2d weight shape: (in_channels, out_channels, kH, kW)
    w = 0.1 * jax.random.normal(k_w, (Cin, Cout, 4, 4), jnp.float32)
    bias = 0.05 * jax.random.normal(k_b, (Cout,), jnp.float32)
    gamma = jnp.linspace(0.5, 1.5, Cout, dtype=jnp.float32)
    beta = jnp.linspace(-0.2, 0.2, Cout, dtype=jnp.float32)

    out = jax.block_until_ready(upsample2x(x, w, bias, gamma, beta))
    assert out.shape == (N, Cout, 2 * H, 2 * W)

    ref = upsample2x_ref(x, w, bias, gamma, beta)
    # Tolerance covers single-pass bf16 MXU (DEFAULT precision) + approx reciprocal in
    # the kernel vs the f32 HIGHEST-precision reference; use precision=HIGH in the
    # kernel matmuls (~2-3x MXU cost) if tighter agreement is required.
    np.testing.assert_allclose(np.asarray(out), np.asarray(ref), atol=3e-2, rtol=3e-2)

    print("KERNEL_OK")
</pallas_src>

<mosaic_0001>
module attributes {stable_mosaic.version = 11 : i64} {
  func.func @_stats_kernel(%arg0: i32, %arg1: memref<1x16x16x4xf32, #tpu.memory_space<vmem>>, %arg2: memref<3x3x4x32xf32, #tpu.memory_space<vmem>>, %arg3: memref<1x32xf32, #tpu.memory_space<vmem>>, %arg4: memref<1x2x32xf32, #tpu.memory_space<vmem>>) attributes {dimension_semantics = [#tpu.dimension_semantics<parallel>], iteration_bounds = array<i64: 2>, scalar_prefetch = 0 : i64, scratch_operands = 0 : i64, tpu.core_type = #tpu.core_type<tc>, window_params = [{transform_indices = @transform_0, window_bounds = array<i64: 1, 16, 16, 4>}, {pipeline_mode = #tpu.pipeline_mode<synchronous>, transform_indices = @transform_1, window_bounds = array<i64: 3, 3, 4, 32>}, {pipeline_mode = #tpu.pipeline_mode<synchronous>, transform_indices = @transform_2, window_bounds = array<i64: 1, 32>}, {transform_indices = @transform_3, window_bounds = array<i64: 1, 2, 32>}]} {
    %c0 = arith.constant 0 : index
    %c0_0 = arith.constant 0 : index
    %c0_1 = arith.constant 0 : index
    %c0_2 = arith.constant 0 : index
    %0 = vector.load %arg1[%c0, %c0_0, %c0_1, %c0_2] : memref<1x16x16x4xf32, #tpu.memory_space<vmem>>, vector<1x16x16x4xf32>
    %c0_3 = arith.constant 0 : index
    %c0_4 = arith.constant 0 : index
    %c0_5 = arith.constant 0 : index
    %c0_6 = arith.constant 0 : index
    %1 = vector.load %arg2[%c0_3, %c0_4, %c0_5, %c0_6] : memref<3x3x4x32xf32, #tpu.memory_space<vmem>>, vector<3x3x4x32xf32>
    %cst = arith.constant 0.000000e+00 : f32
    %2 = vector.broadcast %cst : f32 to vector<1x1x16x4xf32>
    %3 = tpu.concatenate %2, %0, %2 in 1 : vector<1x1x16x4xf32>, vector<1x16x16x4xf32>, vector<1x1x16x4xf32> -> vector<1x18x16x4xf32>
    %cst_7 = arith.constant 0.000000e+00 : f32
    %4 = vector.broadcast %cst_7 : f32 to vector<1x18x1x4xf32>
    %5 = tpu.concatenate %4, %3, %4 in 2 : vector<1x18x1x4xf32>, vector<1x18x16x4xf32>, vector<1x18x1x4xf32> -> vector<1x18x18x4xf32>
    %cst_8 = arith.constant 0.000000e+00 : f32
    %6 = vector.broadcast %cst_8 : f32 to vector<256x32xf32>
    %7 = vector.extract_strided_slice %5 {offsets = [0, 0, 0, 0], sizes = [1, 16, 16, 4], strides = [1, 1, 1, 1]} : vector<1x18x18x4xf32> to vector<1x16x16x4xf32>
    %8 = vector.shape_cast %7 : vector<1x16x16x4xf32> to vector<256x4xf32>
    %9 = vector.extract_strided_slice %1 {offsets = [0, 0, 0, 0], sizes = [1, 1, 4, 32], strides = [1, 1, 1, 1]} : vector<3x3x4x32xf32> to vector<1x1x4x32xf32>
    %10 = vector.shape_cast %9 : vector<1x1x4x32xf32> to vector<4x32xf32>
    %cst_9 = arith.constant dense<0.000000e+00> : vector<256x32xf32>
    %11 = tpu.matmul %8, %10, %cst_9 {dimension_numbers = #tpu.dot_dimension_numbers<[1], [0], [0], [1], [0, 0, 1, 1], [], []>} : vector<256x4xf32>, vector<4x32xf32>, vector<256x32xf32> -> vector<256x32xf32>
    %12 = arith.addf %6, %11 : vector<256x32xf32>
    %13 = vector.extract_strided_slice %5 {offsets = [0, 0, 1, 0], sizes = [1, 16, 16, 4], strides = [1, 1, 1, 1]} : vector<1x18x18x4xf32> to vector<1x16x16x4xf32>
    %14 = vector.shape_cast %13 : vector<1x16x16x4xf32> to vector<256x4xf32>
    %15 = vector.extract_strided_slice %1 {offsets = [0, 1, 0, 0], sizes = [1, 1, 4, 32], strides = [1, 1, 1, 1]} : vector<3x3x4x32xf32> to vector<1x1x4x32xf32>
    %16 = vector.shape_cast %15 : vector<1x1x4x32xf32> to vector<4x32xf32>
    %cst_10 = arith.constant dense<0.000000e+00> : vector<256x32xf32>
    %17 = tpu.matmul %14, %16, %cst_10 {dimension_numbers = #tpu.dot_dimension_numbers<[1], [0], [0], [1], [0, 0, 1, 1], [], []>} : vector<256x4xf32>, vector<4x32xf32>, vector<256x32xf32> -> vector<256x32xf32>
    %18 = arith.addf %12, %17 : vector<256x32xf32>
    %19 = vector.extract_strided_slice %5 {offsets = [0, 0, 2, 0], sizes = [1, 16, 16, 4], strides = [1, 1, 1, 1]} : vector<1x18x18x4xf32> to vector<1x16x16x4xf32>
    %20 = vector.shape_cast %19 : vector<1x16x16x4xf32> to vector<256x4xf32>
    %21 = vector.extract_strided_slice %1 {offsets = [0, 2, 0, 0], sizes = [1, 1, 4, 32], strides = [1, 1, 1, 1]} : vector<3x3x4x32xf32> to vector<1x1x4x32xf32>
    %22 = vector.shape_cast %21 : vector<1x1x4x32xf32> to vector<4x32xf32>
    %cst_11 = arith.constant dense<0.000000e+00> : vector<256x32xf32>
    %23 = tpu.matmul %20, %22, %cst_11 {dimension_numbers = #tpu.dot_dimension_numbers<[1], [0], [0], [1], [0, 0, 1, 1], [], []>} : vector<256x4xf32>, vector<4x32xf32>, vector<256x32xf32> -> vector<256x32xf32>
    %24 = arith.addf %18, %23 : vector<256x32xf32>
    %25 = vector.extract_strided_slice %5 {offsets = [0, 1, 0, 0], sizes = [1, 16, 16, 4], strides = [1, 1, 1, 1]} : vector<1x18x18x4xf32> to vector<1x16x16x4xf32>
    %26 = vector.shape_cast %25 : vector<1x16x16x4xf32> to vector<256x4xf32>
    %27 = vector.extract_strided_slice %1 {offsets = [1, 0, 0, 0], sizes = [1, 1, 4, 32], strides = [1, 1, 1, 1]} : vector<3x3x4x32xf32> to vector<1x1x4x32xf32>
    %28 = vector.shape_cast %27 : vector<1x1x4x32xf32> to vector<4x32xf32>
    %cst_12 = arith.constant dense<0.000000e+00> : vector<256x32xf32>
    %29 = tpu.matmul %26, %28, %cst_12 {dimension_numbers = #tpu.dot_dimension_numbers<[1], [0], [0], [1], [0, 0, 1, 1], [], []>} : vector<256x4xf32>, vector<4x32xf32>, vector<256x32xf32> -> vector<256x32xf32>
    %30 = arith.addf %24, %29 : vector<256x32xf32>
    %31 = vector.extract_strided_slice %5 {offsets = [0, 1, 1, 0], sizes = [1, 16, 16, 4], strides = [1, 1, 1, 1]} : vector<1x18x18x4xf32> to vector<1x16x16x4xf32>
    %32 = vector.shape_cast %31 : vector<1x16x16x4xf32> to vector<256x4xf32>
    %33 = vector.extract_strided_slice %1 {offsets = [1, 1, 0, 0], sizes = [1, 1, 4, 32], strides = [1, 1, 1, 1]} : vector<3x3x4x32xf32> to vector<1x1x4x32xf32>
    %34 = vector.shape_cast %33 : vector<1x1x4x32xf32> to vector<4x32xf32>
    %cst_13 = arith.constant dense<0.000000e+00> : vector<256x32xf32>
    %35 = tpu.matmul %32, %34, %cst_13 {dimension_numbers = #tpu.dot_dimension_numbers<[1], [0], [0], [1], [0, 0, 1, 1], [], []>} : vector<256x4xf32>, vector<4x32xf32>, vector<256x32xf32> -> vector<256x32xf32>
    %36 = arith.addf %30, %35 : vector<256x32xf32>
    %37 = vector.extract_strided_slice %5 {offsets = [0, 1, 2, 0], sizes = [1, 16, 16, 4], strides = [1, 1, 1, 1]} : vector<1x18x18x4xf32> to vector<1x16x16x4xf32>
    %38 = vector.shape_cast %37 : vector<1x16x16x4xf32> to vector<256x4xf32>
    %39 = vector.extract_strided_slice %1 {offsets = [1, 2, 0, 0], sizes = [1, 1, 4, 32], strides = [1, 1, 1, 1]} : vector<3x3x4x32xf32> to vector<1x1x4x32xf32>
    %40 = vector.shape_cast %39 : vector<1x1x4x32xf32> to vector<4x32xf32>
    %cst_14 = arith.constant dense<0.000000e+00> : vector<256x32xf32>
    %41 = tpu.matmul %38, %40, %cst_14 {dimension_numbers = #tpu.dot_dimension_numbers<[1], [0], [0], [1], [0, 0, 1, 1], [], []>} : vector<256x4xf32>, vector<4x32xf32>, vector<256x32xf32> -> vector<256x32xf32>
    %42 = arith.addf %36, %41 : vector<256x32xf32>
    %43 = vector.extract_strided_slice %5 {offsets = [0, 2, 0, 0], sizes = [1, 16, 16, 4], strides = [1, 1, 1, 1]} : vector<1x18x18x4xf32> to vector<1x16x16x4xf32>
    %44 = vector.shape_cast %43 : vector<1x16x16x4xf32> to vector<256x4xf32>
    %45 = vector.extract_strided_slice %1 {offsets = [2, 0, 0, 0], sizes = [1, 1, 4, 32], strides = [1, 1, 1, 1]} : vector<3x3x4x32xf32> to vector<1x1x4x32xf32>
    %46 = vector.shape_cast %45 : vector<1x1x4x32xf32> to vector<4x32xf32>
    %cst_15 = arith.constant dense<0.000000e+00> : vector<256x32xf32>
    %47 = tpu.matmul %44, %46, %cst_15 {dimension_numbers = #tpu.dot_dimension_numbers<[1], [0], [0], [1], [0, 0, 1, 1], [], []>} : vector<256x4xf32>, vector<4x32xf32>, vector<256x32xf32> -> vector<256x32xf32>
    %48 = arith.addf %42, %47 : vector<256x32xf32>
    %49 = vector.extract_strided_slice %5 {offsets = [0, 2, 1, 0], sizes = [1, 16, 16, 4], strides = [1, 1, 1, 1]} : vector<1x18x18x4xf32> to vector<1x16x16x4xf32>
    %50 = vector.shape_cast %49 : vector<1x16x16x4xf32> to vector<256x4xf32>
    %51 = vector.extract_strided_slice %1 {offsets = [2, 1, 0, 0], sizes = [1, 1, 4, 32], strides = [1, 1, 1, 1]} : vector<3x3x4x32xf32> to vector<1x1x4x32xf32>
    %52 = vector.shape_cast %51 : vector<1x1x4x32xf32> to vector<4x32xf32>
    %cst_16 = arith.constant dense<0.000000e+00> : vector<256x32xf32>
    %53 = tpu.matmul %50, %52, %cst_16 {dimension_numbers = #tpu.dot_dimension_numbers<[1], [0], [0], [1], [0, 0, 1, 1], [], []>} : vector<256x4xf32>, vector<4x32xf32>, vector<256x32xf32> -> vector<256x32xf32>
    %54 = arith.addf %48, %53 : vector<256x32xf32>
    %55 = vector.extract_strided_slice %5 {offsets = [0, 2, 2, 0], sizes = [1, 16, 16, 4], strides = [1, 1, 1, 1]} : vector<1x18x18x4xf32> to vector<1x16x16x4xf32>
    %56 = vector.shape_cast %55 : vector<1x16x16x4xf32> to vector<256x4xf32>
    %57 = vector.extract_strided_slice %1 {offsets = [2, 2, 0, 0], sizes = [1, 1, 4, 32], strides = [1, 1, 1, 1]} : vector<3x3x4x32xf32> to vector<1x1x4x32xf32>
    %58 = vector.shape_cast %57 : vector<1x1x4x32xf32> to vector<4x32xf32>
    %cst_17 = arith.constant dense<0.000000e+00> : vector<256x32xf32>
    %59 = tpu.matmul %56, %58, %cst_17 {dimension_numbers = #tpu.dot_dimension_numbers<[1], [0], [0], [1], [0, 0, 1, 1], [], []>} : vector<256x4xf32>, vector<4x32xf32>, vector<256x32xf32> -> vector<256x32xf32>
    %60 = arith.addf %54, %59 : vector<256x32xf32>
    %c0_18 = arith.constant 0 : index
    %c0_19 = arith.constant 0 : index
    %61 = vector.load %arg3[%c0_18, %c0_19] : memref<1x32xf32, #tpu.memory_space<vmem>>, vector<1x32xf32>
    %62 = vector.broadcast %61 : vector<1x32xf32> to vector<256x32xf32>
    %63 = arith.addf %60, %62 : vector<256x32xf32>
    %cst_20 = arith.constant dense<0.000000e+00> : vector<32xf32>
    %64 = vector.multi_reduction <add>, %63, %cst_20 [0] : vector<256x32xf32> to vector<32xf32>
    %65 = vector.shape_cast %64 : vector<32xf32> to vector<1x32xf32>
    %66 = arith.mulf %63, %63 : vector<256x32xf32>
    %cst_21 = arith.constant dense<0.000000e+00> : vector<32xf32>
    %67 = vector.multi_reduction <add>, %66, %cst_21 [0] : vector<256x32xf32> to vector<32xf32>
    %68 = vector.shape_cast %67 : vector<32xf32> to vector<1x32xf32>
    %69 = tpu.concatenate %65, %68 in 0 : vector<1x32xf32>, vector<1x32xf32> -> vector<2x32xf32>
    %c0_22 = arith.constant 0 : index
    %c0_23 = arith.constant 0 : index
    %c0_24 = arith.constant 0 : index
    %70 = vector.load %arg4[%c0_22, %c0_23, %c0_24] : memref<1x2x32xf32, #tpu.memory_space<vmem>>, vector<1x2x32xf32>
    %71 = vector.shape_cast %70 : vector<1x2x32xf32> to vector<2x32xf32>
    %72 = vector.shape_cast %69 : vector<2x32xf32> to vector<1x2x32xf32>
    tpu.vector_store %arg4[%c0_22, %c0_23, %c0_24], %72 {strides = array<i32>} : memref<1x2x32xf32, #tpu.memory_space<vmem>>, vector<1x2x32xf32>,
    return
  }
  func.func @transform_0(%arg0: i32) -> (i32, i32, i32, i32) {
    %c0_i32 = arith.constant 0 : i32
    %c0_i32_0 = arith.constant 0 : i32
    %c0_i32_1 = arith.constant 0 : i32
    %c0_i32_2 = arith.constant 0 : i32
    return %arg0, %c0_i32, %c0_i32_0, %c0_i32_1 : i32, i32, i32, i32
  }
  func.func @transform_1(%arg0: i32) -> (i32, i32, i32, i32) {
    %c0_i32 = arith.constant 0 : i32
    %c0_i32_0 = arith.constant 0 : i32
    %c0_i32_1 = arith.constant 0 : i32
    %c0_i32_2 = arith.constant 0 : i32
    %c0_i32_3 = arith.constant 0 : i32
    return %c0_i32, %c0_i32_0, %c0_i32_1, %c0_i32_2 : i32, i32, i32, i32
  }
  func.func @transform_2(%arg0: i32) -> (i32, i32) {
    %c0_i32 = arith.constant 0 : i32
    %c0_i32_0 = arith.constant 0 : i32
    %c0_i32_1 = arith.constant 0 : i32
    return %c0_i32, %c0_i32_0 : i32, i32
  }
  func.func @transform_3(%arg0: i32) -> (i32, i32, i32) {
    %c0_i32 = arith.constant 0 : i32
    %c0_i32_0 = arith.constant 0 : i32
    %c0_i32_1 = arith.constant 0 : i32
    return %arg0, %c0_i32, %c0_i32_0 : i32, i32, i32
  }
}

module attributes {stable_mosaic.version = 11 : i64} {
  func.func @_apply_kernel(%arg0: i32, %arg1: memref<1x16x16x4xf32, #tpu.memory_space<vmem>>, %arg2: memref<3x3x4x32xf32, #tpu.memory_space<vmem>>, %arg3: memref<1x32xf32, #tpu.memory_space<vmem>>, %arg4: memref<1x32xf32, #tpu.memory_space<vmem>>, %arg5: memref<1x32xf32, #tpu.memory_space<vmem>>, %arg6: memref<1x16x2x16x16xf32, #tpu.memory_space<vmem>>) attributes {dimension_semantics = [#tpu.dimension_semantics<parallel>], iteration_bounds = array<i64: 2>, scalar_prefetch = 0 : i64, scratch_operands = 0 : i64, tpu.core_type = #tpu.core_type<tc>, window_params = [{transform_indices = @transform_0, window_bounds = array<i64: 1, 16, 16, 4>}, {pipeline_mode = #tpu.pipeline_mode<synchronous>, transform_indices = @transform_1, window_bounds = array<i64: 3, 3, 4, 32>}, {pipeline_mode = #tpu.pipeline_mode<synchronous>, transform_indices = @transform_2, window_bounds = array<i64: 1, 32>}, {pipeline_mode = #tpu.pipeline_mode<synchronous>, transform_indices = @transform_3, window_bounds = array<i64: 1, 32>}, {pipeline_mode = #tpu.pipeline_mode<synchronous>, transform_indices = @transform_4, window_bounds = array<i64: 1, 32>}, {transform_indices = @transform_5, window_bounds = array<i64: 1, 16, 2, 16, 16>}]} {
    %c0 = arith.constant 0 : index
    %c0_0 = arith.constant 0 : index
    %c0_1 = arith.constant 0 : index
    %c0_2 = arith.constant 0 : index
    %0 = vector.load %arg1[%c0, %c0_0, %c0_1, %c0_2] : memref<1x16x16x4xf32, #tpu.memory_space<vmem>>, vector<1x16x16x4xf32>
    %c0_3 = arith.constant 0 : index
    %c0_4 = arith.constant 0 : index
    %c0_5 = arith.constant 0 : index
    %c0_6 = arith.constant 0 : index
    %1 = vector.load %arg2[%c0_3, %c0_4, %c0_5, %c0_6] : memref<3x3x4x32xf32, #tpu.memory_space<vmem>>, vector<3x3x4x32xf32>
    %cst = arith.constant 0.000000e+00 : f32
    %2 = vector.broadcast %cst : f32 to vector<1x1x16x4xf32>
    %3 = tpu.concatenate %2, %0, %2 in 1 : vector<1x1x16x4xf32>, vector<1x16x16x4xf32>, vector<1x1x16x4xf32> -> vector<1x18x16x4xf32>
    %cst_7 = arith.constant 0.000000e+00 : f32
    %4 = vector.broadcast %cst_7 : f32 to vector<1x18x1x4xf32>
    %5 = tpu.concatenate %4, %3, %4 in 2 : vector<1x18x1x4xf32>, vector<1x18x16x4xf32>, vector<1x18x1x4xf32> -> vector<1x18x18x4xf32>
    %cst_8 = arith.constant 0.000000e+00 : f32
    %6 = vector.broadcast %cst_8 : f32 to vector<256x32xf32>
    %7 = vector.extract_strided_slice %5 {offsets = [0, 0, 0, 0], sizes = [1, 16, 16, 4], strides = [1, 1, 1, 1]} : vector<1x18x18x4xf32> to vector<1x16x16x4xf32>
    %8 = vector.shape_cast %7 : vector<1x16x16x4xf32> to vector<256x4xf32>
    %9 = vector.extract_strided_slice %1 {offsets = [0, 0, 0, 0], sizes = [1, 1, 4, 32], strides = [1, 1, 1, 1]} : vector<3x3x4x32xf32> to vector<1x1x4x32xf32>
    %10 = vector.shape_cast %9 : vector<1x1x4x32xf32> to vector<4x32xf32>
    %cst_9 = arith.constant dense<0.000000e+00> : vector<256x32xf32>
    %11 = tpu.matmul %8, %10, %cst_9 {dimension_numbers = #tpu.dot_dimension_numbers<[1], [0], [0], [1], [0, 0, 1, 1], [], []>} : vector<256x4xf32>, vector<4x32xf32>, vector<256x32xf32> -> vector<256x32xf32>
    %12 = arith.addf %6, %11 : vector<256x32xf32>
    %13 = vector.extract_strided_slice %5 {offsets = [0, 0, 1, 0], sizes = [1, 16, 16, 4], strides = [1, 1, 1, 1]} : vector<1x18x18x4xf32> to vector<1x16x16x4xf32>
    %14 = vector.shape_cast %13 : vector<1x16x16x4xf32> to vector<256x4xf32>
    %15 = vector.extract_strided_slice %1 {offsets = [0, 1, 0, 0], sizes = [1, 1, 4, 32], strides = [1, 1, 1, 1]} : vector<3x3x4x32xf32> to vector<1x1x4x32xf32>
    %16 = vector.shape_cast %15 : vector<1x1x4x32xf32> to vector<4x32xf32>
    %cst_10 = arith.constant dense<0.000000e+00> : vector<256x32xf32>
    %17 = tpu.matmul %14, %16, %cst_10 {dimension_numbers = #tpu.dot_dimension_numbers<[1], [0], [0], [1], [0, 0, 1, 1], [], []>} : vector<256x4xf32>, vector<4x32xf32>, vector<256x32xf32> -> vector<256x32xf32>
    %18 = arith.addf %12, %17 : vector<256x32xf32>
    %19 = vector.extract_strided_slice %5 {offsets = [0, 0, 2, 0], sizes = [1, 16, 16, 4], strides = [1, 1, 1, 1]} : vector<1x18x18x4xf32> to vector<1x16x16x4xf32>
    %20 = vector.shape_cast %19 : vector<1x16x16x4xf32> to vector<256x4xf32>
    %21 = vector.extract_strided_slice %1 {offsets = [0, 2, 0, 0], sizes = [1, 1, 4, 32], strides = [1, 1, 1, 1]} : vector<3x3x4x32xf32> to vector<1x1x4x32xf32>
    %22 = vector.shape_cast %21 : vector<1x1x4x32xf32> to vector<4x32xf32>
    %cst_11 = arith.constant dense<0.000000e+00> : vector<256x32xf32>
    %23 = tpu.matmul %20, %22, %cst_11 {dimension_numbers = #tpu.dot_dimension_numbers<[1], [0], [0], [1], [0, 0, 1, 1], [], []>} : vector<256x4xf32>, vector<4x32xf32>, vector<256x32xf32> -> vector<256x32xf32>
    %24 = arith.addf %18, %23 : vector<256x32xf32>
    %25 = vector.extract_strided_slice %5 {offsets = [0, 1, 0, 0], sizes = [1, 16, 16, 4], strides = [1, 1, 1, 1]} : vector<1x18x18x4xf32> to vector<1x16x16x4xf32>
    %26 = vector.shape_cast %25 : vector<1x16x16x4xf32> to vector<256x4xf32>
    %27 = vector.extract_strided_slice %1 {offsets = [1, 0, 0, 0], sizes = [1, 1, 4, 32], strides = [1, 1, 1, 1]} : vector<3x3x4x32xf32> to vector<1x1x4x32xf32>
    %28 = vector.shape_cast %27 : vector<1x1x4x32xf32> to vector<4x32xf32>
    %cst_12 = arith.constant dense<0.000000e+00> : vector<256x32xf32>
    %29 = tpu.matmul %26, %28, %cst_12 {dimension_numbers = #tpu.dot_dimension_numbers<[1], [0], [0], [1], [0, 0, 1, 1], [], []>} : vector<256x4xf32>, vector<4x32xf32>, vector<256x32xf32> -> vector<256x32xf32>
    %30 = arith.addf %24, %29 : vector<256x32xf32>
    %31 = vector.extract_strided_slice %5 {offsets = [0, 1, 1, 0], sizes = [1, 16, 16, 4], strides = [1, 1, 1, 1]} : vector<1x18x18x4xf32> to vector<1x16x16x4xf32>
    %32 = vector.shape_cast %31 : vector<1x16x16x4xf32> to vector<256x4xf32>
    %33 = vector.extract_strided_slice %1 {offsets = [1, 1, 0, 0], sizes = [1, 1, 4, 32], strides = [1, 1, 1, 1]} : vector<3x3x4x32xf32> to vector<1x1x4x32xf32>
    %34 = vector.shape_cast %33 : vector<1x1x4x32xf32> to vector<4x32xf32>
    %cst_13 = arith.constant dense<0.000000e+00> : vector<256x32xf32>
    %35 = tpu.matmul %32, %34, %cst_13 {dimension_numbers = #tpu.dot_dimension_numbers<[1], [0], [0], [1], [0, 0, 1, 1], [], []>} : vector<256x4xf32>, vector<4x32xf32>, vector<256x32xf32> -> vector<256x32xf32>
    %36 = arith.addf %30, %35 : vector<256x32xf32>
    %37 = vector.extract_strided_slice %5 {offsets = [0, 1, 2, 0], sizes = [1, 16, 16, 4], strides = [1, 1, 1, 1]} : vector<1x18x18x4xf32> to vector<1x16x16x4xf32>
    %38 = vector.shape_cast %37 : vector<1x16x16x4xf32> to vector<256x4xf32>
    %39 = vector.extract_strided_slice %1 {offsets = [1, 2, 0, 0], sizes = [1, 1, 4, 32], strides = [1, 1, 1, 1]} : vector<3x3x4x32xf32> to vector<1x1x4x32xf32>
    %40 = vector.shape_cast %39 : vector<1x1x4x32xf32> to vector<4x32xf32>
    %cst_14 = arith.constant dense<0.000000e+00> : vector<256x32xf32>
    %41 = tpu.matmul %38, %40, %cst_14 {dimension_numbers = #tpu.dot_dimension_numbers<[1], [0], [0], [1], [0, 0, 1, 1], [], []>} : vector<256x4xf32>, vector<4x32xf32>, vector<256x32xf32> -> vector<256x32xf32>
    %42 = arith.addf %36, %41 : vector<256x32xf32>
    %43 = vector.extract_strided_slice %5 {offsets = [0, 2, 0, 0], sizes = [1, 16, 16, 4], strides = [1, 1, 1, 1]} : vector<1x18x18x4xf32> to vector<1x16x16x4xf32>
    %44 = vector.shape_cast %43 : vector<1x16x16x4xf32> to vector<256x4xf32>
    %45 = vector.extract_strided_slice %1 {offsets = [2, 0, 0, 0], sizes = [1, 1, 4, 32], strides = [1, 1, 1, 1]} : vector<3x3x4x32xf32> to vector<1x1x4x32xf32>
    %46 = vector.shape_cast %45 : vector<1x1x4x32xf32> to vector<4x32xf32>
    %cst_15 = arith.constant dense<0.000000e+00> : vector<256x32xf32>
    %47 = tpu.matmul %44, %46, %cst_15 {dimension_numbers = #tpu.dot_dimension_numbers<[1], [0], [0], [1], [0, 0, 1, 1], [], []>} : vector<256x4xf32>, vector<4x32xf32>, vector<256x32xf32> -> vector<256x32xf32>
    %48 = arith.addf %42, %47 : vector<256x32xf32>
    %49 = vector.extract_strided_slice %5 {offsets = [0, 2, 1, 0], sizes = [1, 16, 16, 4], strides = [1, 1, 1, 1]} : vector<1x18x18x4xf32> to vector<1x16x16x4xf32>
    %50 = vector.shape_cast %49 : vector<1x16x16x4xf32> to vector<256x4xf32>
    %51 = vector.extract_strided_slice %1 {offsets = [2, 1, 0, 0], sizes = [1, 1, 4, 32], strides = [1, 1, 1, 1]} : vector<3x3x4x32xf32> to vector<1x1x4x32xf32>
    %52 = vector.shape_cast %51 : vector<1x1x4x32xf32> to vector<4x32xf32>
    %cst_16 = arith.constant dense<0.000000e+00> : vector<256x32xf32>
    %53 = tpu.matmul %50, %52, %cst_16 {dimension_numbers = #tpu.dot_dimension_numbers<[1], [0], [0], [1], [0, 0, 1, 1], [], []>} : vector<256x4xf32>, vector<4x32xf32>, vector<256x32xf32> -> vector<256x32xf32>
    %54 = arith.addf %48, %53 : vector<256x32xf32>
    %55 = vector.extract_strided_slice %5 {offsets = [0, 2, 2, 0], sizes = [1, 16, 16, 4], strides = [1, 1, 1, 1]} : vector<1x18x18x4xf32> to vector<1x16x16x4xf32>
    %56 = vector.shape_cast %55 : vector<1x16x16x4xf32> to vector<256x4xf32>
    %57 = vector.extract_strided_slice %1 {offsets = [2, 2, 0, 0], sizes = [1, 1, 4, 32], strides = [1, 1, 1, 1]} : vector<3x3x4x32xf32> to vector<1x1x4x32xf32>
    %58 = vector.shape_cast %57 : vector<1x1x4x32xf32> to vector<4x32xf32>
    %cst_17 = arith.constant dense<0.000000e+00> : vector<256x32xf32>
    %59 = tpu.matmul %56, %58, %cst_17 {dimension_numbers = #tpu.dot_dimension_numbers<[1], [0], [0], [1], [0, 0, 1, 1], [], []>} : vector<256x4xf32>, vector<4x32xf32>, vector<256x32xf32> -> vector<256x32xf32>
    %60 = arith.addf %54, %59 : vector<256x32xf32>
    %c0_18 = arith.constant 0 : index
    %c0_19 = arith.constant 0 : index
    %61 = vector.load %arg3[%c0_18, %c0_19] : memref<1x32xf32, #tpu.memory_space<vmem>>, vector<1x32xf32>
    %62 = vector.broadcast %61 : vector<1x32xf32> to vector<256x32xf32>
    %63 = arith.addf %60, %62 : vector<256x32xf32>
    %c0_20 = arith.constant 0 : index
    %c0_21 = arith.constant 0 : index
    %64 = vector.load %arg4[%c0_20, %c0_21] : memref<1x32xf32, #tpu.memory_space<vmem>>, vector<1x32xf32>
    %65 = vector.broadcast %64 : vector<1x32xf32> to vector<256x32xf32>
    %66 = arith.mulf %63, %65 : vector<256x32xf32>
    %c0_22 = arith.constant 0 : index
    %c0_23 = arith.constant 0 : index
    %67 = vector.load %arg5[%c0_22, %c0_23] : memref<1x32xf32, #tpu.memory_space<vmem>>, vector<1x32xf32>
    %68 = vector.broadcast %67 : vector<1x32xf32> to vector<256x32xf32>
    %69 = arith.addf %66, %68 : vector<256x32xf32>
    %cst_24 = arith.constant 0.000000e+00 : f32
    %70 = vector.broadcast %cst_24 : f32 to vector<256x32xf32>
    %71 = arith.subf %70, %69 : vector<256x32xf32>
    %72 = math.exp %71 : vector<256x32xf32>
    %cst_25 = arith.constant 1.000000e+00 : f32
    %73 = vector.broadcast %cst_25 : f32 to vector<256x32xf32>
    %74 = arith.addf %73, %72 : vector<256x32xf32>
    %75 = tpu.reciprocal %74 {approx = true} : vector<256x32xf32> -> vector<256x32xf32>
    %76 = arith.mulf %69, %75 : vector<256x32xf32>
    %77 = vector.extract_strided_slice %76 {offsets = [0, 0], sizes = [256, 16], strides = [1, 1]} : vector<256x32xf32> to vector<256x16xf32>
    %78 = vector.shape_cast %77 : vector<256x16xf32> to vector<1x16x1x16x16xf32>
    %79 = vector.extract_strided_slice %76 {offsets = [0, 16], sizes = [256, 16], strides = [1, 1]} : vector<256x32xf32> to vector<256x16xf32>
    %80 = vector.shape_cast %79 : vector<256x16xf32> to vector<1x16x1x16x16xf32>
    %c0_26 = arith.constant 0 : index
    %c0_27 = arith.constant 0 : index
    %c0_28 = arith.constant 0 : index
    %c0_29 = arith.constant 0 : index
    %c0_30 = arith.constant 0 : index
    %81 = vector.load %arg6[%c0_26, %c0_27, %c0_28, %c0_29, %c0_30] : memref<1x16x2x16x16xf32, #tpu.memory_space<vmem>>, vector<1x16x1x16x16xf32>
    tpu.vector_store %arg6[%c0_26, %c0_27, %c0_28, %c0_29, %c0_30], %78 {strides = array<i32>} : memref<1x16x2x16x16xf32, #tpu.memory_space<vmem>>, vector<1x16x1x16x16xf32>,
    %c0_31 = arith.constant 0 : index
    %c0_32 = arith.constant 0 : index
    %c1 = arith.constant 1 : index
    %c0_33 = arith.constant 0 : index
    %c0_34 = arith.constant 0 : index
    %82 = vector.load %arg6[%c0_31, %c0_32, %c1, %c0_33, %c0_34] : memref<1x16x2x16x16xf32, #tpu.memory_space<vmem>>, vector<1x16x1x16x16xf32>
    tpu.vector_store %arg6[%c0_31, %c0_32, %c1, %c0_33, %c0_34], %80 {strides = array<i32>} : memref<1x16x2x16x16xf32, #tpu.memory_space<vmem>>, vector<1x16x1x16x16xf32>,
    return
  }
  func.func @transform_0(%arg0: i32) -> (i32, i32, i32, i32) {
    %c0_i32 = arith.constant 0 : i32
    %c0_i32_0 = arith.constant 0 : i32
    %c0_i32_1 = arith.constant 0 : i32
    %c0_i32_2 = arith.constant 0 : i32
    return %arg0, %c0_i32, %c0_i32_0, %c0_i32_1 : i32, i32, i32, i32
  }
  func.func @transform_1(%arg0: i32) -> (i32, i32, i32, i32) {
    %c0_i32 = arith.constant 0 : i32
    %c0_i32_0 = arith.constant 0 : i32
    %c0_i32_1 = arith.constant 0 : i32
    %c0_i32_2 = arith.constant 0 : i32
    %c0_i32_3 = arith.constant 0 : i32
    return %c0_i32, %c0_i32_0, %c0_i32_1, %c0_i32_2 : i32, i32, i32, i32
  }
  func.func @transform_2(%arg0: i32) -> (i32, i32) {
    %c0_i32 = arith.constant 0 : i32
    %c0_i32_0 = arith.constant 0 : i32
    %c0_i32_1 = arith.constant 0 : i32
    return %c0_i32, %c0_i32_0 : i32, i32
  }
  func.func @transform_3(%arg0: i32) -> (i32, i32) {
    %c0_i32 = arith.constant 0 : i32
    %c0_i32_0 = arith.constant 0 : i32
    %c0_i32_1 = arith.constant 0 : i32
    return %c0_i32, %c0_i32_0 : i32, i32
  }
  func.func @transform_4(%arg0: i32) -> (i32, i32) {
    %c0_i32 = arith.constant 0 : i32
    %c0_i32_0 = arith.constant 0 : i32
    %c0_i32_1 = arith.constant 0 : i32
    return %c0_i32, %c0_i32_0 : i32, i32
  }
  func.func @transform_5(%arg0: i32) -> (i32, i32, i32, i32, i32) {
    %c0_i32 = arith.constant 0 : i32
    %c0_i32_0 = arith.constant 0 : i32
    %c0_i32_1 = arith.constant 0 : i32
    %c0_i32_2 = arith.constant 0 : i32
    %c0_i32_3 = arith.constant 0 : i32
    return %arg0, %c0_i32, %c0_i32_0, %c0_i32_1, %c0_i32_2 : i32, i32, i32, i32, i32
  }
}

</mosaic_0001>

<llo_original>
// kernel: tile.18
$region0: #{tile.18}
  #allocation0 [shape = 's32[1]{0}', space=sflag, size = 0x4, scoped, tag = 'scoped memory for tile.18']
  %s0 = inlined_call_operand.vmem [shape: f32[8], index: 0, kind: input, shape index: {}]
  %s1 = inlined_call_operand.vmem [shape: f32[4,8], index: 1, kind: output, shape index: {}]
  // Predicated region
  $region2: #{tile.18} parent=0 // pred_check
    _
  $region3: #{tile.18} parent=0 // pred_check_branch
    %3 = sbr.rel (0) target = $region5
  $region4: #{tile.18} parent=0 // pred_region
    _
  $region5: #{tile.18} parent=0 // pred_fallthru
    _
  %v4 = vld [vmem:[%s0] ss:$0 sm:$0xff]
  %5 = vst [vmem:[%s1] sm:$0xf] %v4

// kernel: tile.19
$region0: #{tile.19}
  %s0 = inlined_call_operand.vmem [shape: f32[4,8], index: 0, kind: input, shape index: {}]
  %s1 = inlined_call_operand.vmem [shape: f32[1,32], index: 1, kind: output, shape index: {}]
  $region1: #{tile.19} parent=0
    #allocation0 [shape = 'u8[4096]{0}', space=vmem, size = 0x1000, scoped, tag = 'scoped mem for output reshape']
    #allocation1 [shape = 'u8[4096]{0}', space=vmem, size = 0x1000, scoped, tag = 'scoped mem for input reshape']
    %s3 = sshllo.u32 0, 4
    %v4 = vld [vmem:[%s0] sm:%s3]
    %5 = vst [vmem:[#allocation1] sm:%s3] %v4
    %v6 = vld [vmem:[#allocation1] sm:$0x1]
    %vm7 = vcmask 64512
    %8 = vst.msk [vmem:[#allocation0] sm:$0x1] %vm7, %v6
    %s9 = scalar_lea.vmem [#allocation1], 3
    %v10 = vld [vmem:[%s9] sm:$0x1]
    %11 = vrot.lane.b32.xlu0 %v10, 24
    %v12 = vpop.permute.xlu0 %11
    %vm13 = vcmask 261312
    %14 = vst.msk [vmem:[#allocation0] sm:$0x1] %vm13, %v12
    %s15 = scalar_lea.vmem [#allocation1], 2
    %v16 = vld [vmem:[%s15] sm:$0x1]
    %17 = vrot.lane.b32.xlu0 %v16, 16
    %v18 = vpop.permute.xlu0 %17
    %vm19 = vcmask 195712
    %20 = vst.msk [vmem:[#allocation0] sm:$0x1] %vm19, %v18
    %s21 = scalar_lea.vmem [#allocation1], 1
    %v22 = vld [vmem:[%s21] sm:$0x1]
    %23 = vrot.lane.b32.xlu0 %v22, 8
    %v24 = vpop.permute.xlu0 %23
    %vm25 = vcmask 130112
    %26 = vst.msk [vmem:[#allocation0] sm:$0x1] %vm25, %v24
    %s28 = sshllo.u32 0, 1
    %v30 = vld [vmem:[#allocation0] sm:%s28]
    %s31 = sshllo.u32 0, 1
    %32 = vst [vmem:[%s1] sm:%s31] %v30

// kernel: squeeze.34
$region0: #{squeeze.34}
  %s0 = inlined_call_operand.vmem [shape: f32[32], index: 0, kind: input, shape index: {}]
  %s1 = inlined_call_operand.vmem [shape: f32[4,8], index: 1, kind: output, shape index: {}]
  $region1: #{squeeze.34} parent=0
    #allocation0 [shape = 'u8[4096]{0}', space=vmem, size = 0x1000, scoped, tag = 'scoped mem for output reshape']
    #allocation1 [shape = 'u8[4096]{0}', space=vmem, size = 0x1000, scoped, tag = 'scoped mem for input reshape']
    %s3 = sshllo.u32 0, 1
    %v4 = vld [vmem:[%s0] sm:%s3]
    %5 = vst [vmem:[#allocation1] sm:%s3] %v4
    %v6 = vld [vmem:[#allocation1] sm:$0x1]
    %vm7 = vcmask 64512
    %8 = vst.msk [vmem:[#allocation0] sm:$0x1] %vm7, %v6
    %v9 = vld [vmem:[#allocation1] sm:$0x1]
    %10 = vrot.lane.b32.xlu0 %v9, 120
    %v11 = vpop.permute.xlu0 %10
    %vm12 = vcmask 64512
    %s13 = scalar_lea.vmem [#allocation0], 1
    %14 = vst.msk [vmem:[%s13] sm:$0x1] %vm12, %v11
    %v15 = vld [vmem:[#allocation1] sm:$0x1]
    %16 = vrot.lane.b32.xlu0 %v15, 112
    %v17 = vpop.permute.xlu0 %16
    %vm18 = vcmask 64512
    %s19 = scalar_lea.vmem [#allocation0], 2
    %20 = vst.msk [vmem:[%s19] sm:$0x1] %vm18, %v17
    %v21 = vld [vmem:[#allocation1] sm:$0x1]
    %22 = vrot.lane.b32.xlu0 %v21, 104
    %v23 = vpop.permute.xlu0 %22
    %vm24 = vcmask 64512
    %s25 = scalar_lea.vmem [#allocation0], 3
    %26 = vst.msk [vmem:[%s25] sm:$0x1] %vm24, %v23
    %s28 = sshllo.u32 0, 4
    %v30 = vld [vmem:[#allocation0] sm:%s28]
    %s31 = sshllo.u32 0, 4
    %32 = vst [vmem:[%s1] sm:%s31] %v30

// kernel: upsample2x.2
$region0: #{upsample2x.2}
  #allocation0 [shape = 'u32[]', space=smem, size = 0x4, offset = 0x4, fixed_abs, tag = 'smem constant byte address 0x4 - core index']
  #allocation1 [shape = 'u32[144,128]{1,0:T(1,128)}', space=vmem, size = 0x12000, scoped, tag = 'internal scratch']
  %s0 = inlined_call_operand.vmem [shape: f32[2,16,16,4], index: 0, kind: input, shape index: {}]
  %s1 = inlined_call_operand.vmem [shape: f32[3,3,4,32], index: 1, kind: input, shape index: {}]
  %s2 = inlined_call_operand.vmem [shape: f32[1,32], index: 2, kind: input, shape index: {}]
  %s3 = inlined_call_operand.vmem [shape: f32[2,2,32], index: 3, kind: output, shape index: {}]
  %s4 = sld [smem:[#allocation0]]
  $region45: #{upsample2x.2} parent=0
    _
  %s6 = ssub.s32 1, %s4
  %s7 = scalar_select 0, %s6, %s4
  loop: start=0, step=1, limit=4
  $region2: #{upsample2x.2} parent=0 // loop_pre_header
    _
  $region3: #{upsample2x.2} parent=0 // loop_header
    %s9 = sphi 0, %s13
    %p10 = scmp.ge.s32.totalorder %s9, 4
    %s19 = sphi 0, %s21
    %s22 = sphi 0, %s19
    %s23 = sphi 0, %s22
    %s39 = sphi 0, %s23
    %s43 = sphi 0, %s43
    %s45 = sphi 0, %s43
    %s46 = sphi 0, %s45
    %s60 = sphi 0, %s46
    %s64 = sphi 0, %s64
    %s66 = sphi 0, %s64
    %s67 = sphi 0, %s66
    %s81 = sphi 0, %s67
    %s87 = sphi 0, %s89
    %s90 = sphi 0, %s87
    %s91 = sphi 0, %s90
    %s107 = sphi 0, %s91
  $region4: #{upsample2x.2} parent=0 // loop_header_branch
    %12 = sbr.rel (%p10) target = $region8
  $region5: #{upsample2x.2} parent=0 // loop_body
    %s14 = ssub.s32 %s9, 1
    %s15 = ssub.s32 %s9, 2
    %s16 = sadd.s32 %s9, 1
    %s17 = ssub.s32 %s9, %s16
    %p18 = scmp.eq.s32.totalorder %s17, 0
    %s20 = sadd.s32 %s19, 1
    %s21 = scalar_select %p18, %s19, %s20
    %p24 = pneg %p18
    %p25 = scmp.eq.s32.totalorder %s9, 1
    %p26 = por %p24, %p25
    %p27 = scmp.ne.s32.totalorder %s19, %s22
    %p28 = scmp.eq.s32.totalorder %s9, 0
    %p29 = por %p27, %p28
    %p30 = scmp.ne.s32.totalorder %s19, %s22
    %p31 = scmp.eq.s32.totalorder %s14, 1
    %p32 = por %p30, %p31
    %p33 = scmp.ne.s32.totalorder %s22, %s23
    %p34 = scmp.eq.s32.totalorder %s14, 0
    %p35 = por %p33, %p34
    %p36 = scmp.ne.s32.totalorder %s22, %s23
    %p37 = scmp.eq.s32.totalorder %s15, 1
    %p38 = por %p36, %p37
    %p40 = scmp.ne.s32.totalorder %s23, %s39
    %p41 = scmp.eq.s32.totalorder %s15, 0
    %p42 = por %p40, %p41
    %s44 = sadd.s32 %s43, 1
    %p47 = scmp.eq.s32.totalorder %s9, 1
    %p48 = scmp.ne.s32.totalorder %s43, %s45
    %p49 = scmp.eq.s32.totalorder %s9, 0
    %p50 = por %p48, %p49
    %p51 = scmp.ne.s32.totalorder %s43, %s45
    %p52 = scmp.eq.s32.totalorder %s14, 1
    %p53 = por %p51, %p52
    %p54 = scmp.ne.s32.totalorder %s45, %s46
    %p55 = scmp.eq.s32.totalorder %s14, 0
    %p56 = por %p54, %p55
    %p57 = scmp.ne.s32.totalorder %s45, %s46
    %p58 = scmp.eq.s32.totalorder %s15, 1
    %p59 = por %p57, %p58
    %p61 = scmp.ne.s32.totalorder %s46, %s60
    %p62 = scmp.eq.s32.totalorder %s15, 0
    %p63 = por %p61, %p62
    %s65 = sadd.s32 %s64, 1
    %p68 = scmp.eq.s32.totalorder %s9, 1
    %p69 = scmp.ne.s32.totalorder %s64, %s66
    %p70 = scmp.eq.s32.totalorder %s9, 0
    %p71 = por %p69, %p70
    %p72 = scmp.ne.s32.totalorder %s64, %s66
    %p73 = scmp.eq.s32.totalorder %s14, 1
    %p74 = por %p72, %p73
    %p75 = scmp.ne.s32.totalorder %s66, %s67
    %p76 = scmp.eq.s32.totalorder %s14, 0
    %p77 = por %p75, %p76
    %p78 = scmp.ne.s32.totalorder %s66, %s67
    %p79 = scmp.eq.s32.totalorder %s15, 1
    %p80 = por %p78, %p79
    %p82 = scmp.ne.s32.totalorder %s67, %s81
    %p83 = scmp.eq.s32.totalorder %s15, 0
    %p84 = por %p82, %p83
    %s85 = ssub.s32 %s9, %s16
    %p86 = scmp.eq.s32.totalorder %s85, 0
    %s88 = sadd.s32 %s87, 1
    %s89 = scalar_select %p86, %s87, %s88
    %p92 = pneg %p86
    %p93 = scmp.eq.s32.totalorder %s9, 1
    %p94 = por %p92, %p93
    %p95 = scmp.ne.s32.totalorder %s87, %s90
    %p96 = scmp.eq.s32.totalorder %s9, 0
    %p97 = por %p95, %p96
    %p98 = scmp.ne.s32.totalorder %s87, %s90
    %p99 = scmp.eq.s32.totalorder %s14, 1
    %p100 = por %p98, %p99
    %p101 = scmp.ne.s32.totalorder %s90, %s91
    %p102 = scmp.eq.s32.totalorder %s14, 0
    %p103 = por %p101, %p102
    %p104 = scmp.ne.s32.totalorder %s90, %s91
    %p105 = scmp.eq.s32.totalorder %s15, 1
    %p106 = por %p104, %p105
    %p108 = scmp.ne.s32.totalorder %s91, %s107
    %p109 = scmp.eq.s32.totalorder %s15, 0
    %p110 = por %p108, %p109
    %p111 = scmp.le.s32.totalorder 1, %s9
    %p112 = scmp.lt.s32.totalorder %s9, 3
    %p113 = pnand %p111, %p112
    %p114 = pneg %p113
    // Predicated region
    $region9: #{upsample2x.2} parent=5 // pred_check
      _
    $region10: #{upsample2x.2} parent=5 // pred_check_branch
      %116 = sbr.rel (%p113) target = $region12
    $region11: #{upsample2x.2} parent=5 // pred_region
      %s117 = ssub.s32 %s9, 1
      // Predicated region
      $region13: #{upsample2x.2} parent=11 // pred_check
        %p118 = pneg %p56
      $region14: #{upsample2x.2} parent=11 // pred_check_branch
        %120 = sbr.rel (%p118) target = $region16
      $region15: #{upsample2x.2} parent=11 // pred_region
        _
      $region16: #{upsample2x.2} parent=11 // pred_fallthru
        _
      // Predicated region
      $region17: #{upsample2x.2} parent=11 // pred_check
        %p121 = pneg %p77
      $region18: #{upsample2x.2} parent=11 // pred_check_branch
        %123 = sbr.rel (%p121) target = $region20
      $region19: #{upsample2x.2} parent=11 // pred_region
        _
      $region20: #{upsample2x.2} parent=11 // pred_fallthru
        _
    $region12: #{upsample2x.2} parent=5 // pred_fallthru
      _
    %p124 = scmp.lt.s32.totalorder %s9, 2
    // Predicated region
    $region21: #{upsample2x.2} parent=5 // pred_check
      %p125 = pneg %p124
    $region22: #{upsample2x.2} parent=5 // pred_check_branch
      %127 = sbr.rel (%p125) target = $region24
    $region23: #{upsample2x.2} parent=5 // pred_region
      // Predicated region
      $region25: #{upsample2x.2} parent=23 // pred_check
        %p128 = pneg %p29
      $region26: #{upsample2x.2} parent=23 // pred_check_branch
        %130 = sbr.rel (%p128) target = $region28
      $region27: #{upsample2x.2} parent=23 // pred_region
        %p131 = scmp.lt.s32.totalorder %s9, 1
        %s132 = scalar_select %p131, %s9, 1
        %s133 = smul.addr %s132, 32
        %s134 = smul.addr %s133, 8
        %s135 = scalar_lea.vmem %s0, %s134
      $region28: #{upsample2x.2} parent=23 // pred_fallthru
        _
    $region24: #{upsample2x.2} parent=5 // pred_fallthru
      _
    %p136 = scmp.le.s32.totalorder 1, %s9
    %p137 = scmp.lt.s32.totalorder %s9, 3
    %p138 = pnand %p136, %p137
    %p139 = pneg %p138
    // Predicated region
    $region29: #{upsample2x.2} parent=5 // pred_check
      _
    $region30: #{upsample2x.2} parent=5 // pred_check_branch
      %141 = sbr.rel (%p138) target = $region32
    $region31: #{upsample2x.2} parent=5 // pred_region
      %s142 = ssub.s32 %s9, 1
      %p143 = scmp.lt.s32.totalorder %s14, 1
      %s144 = scalar_select %p143, %s14, 1
      %s145 = smul.addr %s144, 32
      %s146 = smul.addr %s145, 8
      %s147 = scalar_lea.vmem %s0, %s146
      %p148 = pneg %p35
      %p149 = pneg %p32
      %p150 = pneg %p56
      %p151 = pneg %p53
      %p152 = pneg %p77
      %p153 = pneg %p74
      %p154 = pneg %p103
      %p155 = pneg %p100
      %p156 = scmp.lt.s32.totalorder %s14, 1
      %s157 = scalar_select %p156, %s14, 1
      %s158 = smul.addr %s157, 2
      %s159 = scalar_lea.vmem %s3, %s158
      %p160 = scmp.lt.s32.totalorder %s14, 1
      %s161 = scalar_select %p160, %s14, 1
      %s162 = smul.addr %s161, 32
      %s163 = smul.addr %s162, 8
      %s164 = scalar_lea.vmem %s0, %s163
      %p165 = scmp.lt.s32.totalorder %s14, 1
      %s166 = scalar_select %p165, %s14, 1
      %s167 = smul.addr %s166, 2
      %s168 = scalar_lea.vmem %s3, %s167
      %v169 = vld [vmem:[%s164] sm:$0xff]
      %v170 = vld [vmem:[%s164 + $0x8] sm:$0xff]
      %v171 = vld [vmem:[%s164 + $0x10] sm:$0xff]
      %v172 = vld [vmem:[%s164 + $0x18] sm:$0xff]
      %v173 = vld [vmem:[%s164 + $0x20] sm:$0xff]
      %v174 = vld [vmem:[%s164 + $0x28] sm:$0xff]
      %v175 = vld [vmem:[%s164 + $0x30] sm:$0xff]
      %v176 = vld [vmem:[%s164 + $0x38] sm:$0xff]
      %v177 = vld [vmem:[%s164 + $0x40] sm:$0xff]
      %v178 = vld [vmem:[%s164 + $0x48] sm:$0xff]
      %v179 = vld [vmem:[%s164 + $0x50] sm:$0xff]
      %v180 = vld [vmem:[%s164 + $0x58] sm:$0xff]
      %v181 = vld [vmem:[%s164 + $0x60] sm:$0xff]
      %v182 = vld [vmem:[%s164 + $0x68] sm:$0xff]
      %v183 = vld [vmem:[%s164 + $0x70] sm:$0xff]
      %v184 = vld [vmem:[%s164 + $0x78] sm:$0xff]
      %v185 = vld [vmem:[%s164 + $0x80] sm:$0xff]
      %v186 = vld [vmem:[%s164 + $0x88] sm:$0xff]
      %v187 = vld [vmem:[%s164 + $0x90] sm:$0xff]
      %v188 = vld [vmem:[%s164 + $0x98] sm:$0xff]
      %v189 = vld [vmem:[%s164 + $0xa0] sm:$0xff]
      %v190 = vld [vmem:[%s164 + $0xa8] sm:$0xff]
      %v191 = vld [vmem:[%s164 + $0xb0] sm:$0xff]
      %v192 = vld [vmem:[%s164 + $0xb8] sm:$0xff]
      %v193 = vld [vmem:[%s164 + $0xc0] sm:$0xff]
      %v194 = vld [vmem:[%s164 + $0xc8] sm:$0xff]
      %v195 = vld [vmem:[%s164 + $0xd0] sm:$0xff]
      %v196 = vld [vmem:[%s164 + $0xd8] sm:$0xff]
      %v197 = vld [vmem:[%s164 + $0xe0] sm:$0xff]
      %v198 = vld [vmem:[%s164 + $0xe8] sm:$0xff]
      %v199 = vld [vmem:[%s164 + $0xf0] sm:$0xff]
      %v200 = vld [vmem:[%s164 + $0xf8] sm:$0xff]
      %v201 = vld [vmem:[%s1] sm:$0xf]
      %v202 = vld [vmem:[%s1 + $0x4] sm:$0xf]
      %v203 = vld [vmem:[%s1 + $0x8] sm:$0xf]
      %v204 = vld [vmem:[%s1 + $0xc] sm:$0xf]
      %v205 = vld [vmem:[%s1 + $0x10] sm:$0xf]
      %v206 = vld [vmem:[%s1 + $0x14] sm:$0xf]
      %v207 = vld [vmem:[%s1 + $0x18] sm:$0xf]
      %v208 = vld [vmem:[%s1 + $0x1c] sm:$0xf]
      %v209 = vld [vmem:[%s1 + $0x20] sm:$0xf]
      %vm243 = vcmask 1040384
      %v244 = vrot.slane 0.0, 7
      %v245 = vsel %vm243, %v244, %v244
      %v246 = vrot.slane %v169, 7
      %v247 = vrot.slane %v170, 7
      %v248 = vsel %vm243, %v246, %v247
      %v249 = vrot.slane %v171, 7
      %v250 = vrot.slane %v172, 7
      %v251 = vsel %vm243, %v249, %v250
      %v252 = vrot.slane %v173, 7
      %v253 = vrot.slane %v174, 7
      %v254 = vsel %vm243, %v252, %v253
      %v255 = vrot.slane %v175, 7
      %v256 = vrot.slane %v176, 7
      %v257 = vsel %vm243, %v255, %v256
      %v258 = vrot.slane %v177, 7
      %v259 = vrot.slane %v178, 7
      %v260 = vsel %vm243, %v258, %v259
      %v261 = vrot.slane %v179, 7
      %v262 = vrot.slane %v180, 7
      %v263 = vsel %vm243, %v261, %v262
      %v264 = vrot.slane %v181, 7
      %v265 = vrot.slane %v182, 7
      %v266 = vsel %vm243, %v264, %v265
      %v267 = vrot.slane %v183, 7
      %v268 = vrot.slane %v184, 7
      %v269 = vsel %vm243, %v267, %v268
      %v270 = vrot.slane %v185, 7
      %v271 = vrot.slane %v186, 7
      %v272 = vsel %vm243, %v270, %v271
      %v273 = vrot.slane %v187, 7
      %v274 = vrot.slane %v188, 7
      %v275 = vsel %vm243, %v273, %v274
      %v276 = vrot.slane %v189, 7
      %v277 = vrot.slane %v190, 7
      %v278 = vsel %vm243, %v276, %v277
      %v279 = vrot.slane %v191, 7
      %v280 = vrot.slane %v192, 7
      %v281 = vsel %vm243, %v279, %v280
      %v282 = vrot.slane %v193, 7
      %v283 = vrot.slane %v194, 7
      %v284 = vsel %vm243, %v282, %v283
      %v285 = vrot.slane %v195, 7
      %v286 = vrot.slane %v196, 7
      %v287 = vsel %vm243, %v285, %v286
      %v288 = vrot.slane %v197, 7
      %v289 = vrot.slane %v198, 7
      %v290 = vsel %vm243, %v288, %v289
      %v291 = vrot.slane %v199, 7
      %v292 = vrot.slane %v200, 7
      %v293 = vsel %vm243, %v291, %v292
      %v327 = vsel %vm243, 0.0, %v244
      %v328 = vsel %vm243, 0.0, %v246
      %v329 = vsel %vm243, 0.0, %v249
      %v330 = vsel %vm243, 0.0, %v252
      %v331 = vsel %vm243, 0.0, %v255
      %v332 = vsel %vm243, 0.0, %v258
      %v333 = vsel %vm243, 0.0, %v261
      %v334 = vsel %vm243, 0.0, %v264
      %v335 = vsel %vm243, 0.0, %v267
      %v336 = vsel %vm243, 0.0, %v270
      %v337 = vsel %vm243, 0.0, %v273
      %v338 = vsel %vm243, 0.0, %v276
      %v339 = vsel %vm243, 0.0, %v279
      %v340 = vsel %vm243, 0.0, %v282
      %v341 = vsel %vm243, 0.0, %v285
      %v342 = vsel %vm243, 0.0, %v288
      %v343 = vsel %vm243, 0.0, %v291
      %v344 = vsel %vm243, %v244, 0.0
      %v345 = vsel %vm243, %v247, 0.0
      %v346 = vsel %vm243, %v250, 0.0
      %v347 = vsel %vm243, %v253, 0.0
      %v348 = vsel %vm243, %v256, 0.0
      %v349 = vsel %vm243, %v259, 0.0
      %v350 = vsel %vm243, %v262, 0.0
      %v351 = vsel %vm243, %v265, 0.0
      %v352 = vsel %vm243, %v268, 0.0
      %v353 = vsel %vm243, %v271, 0.0
      %v354 = vsel %vm243, %v274, 0.0
      %v355 = vsel %vm243, %v277, 0.0
      %v356 = vsel %vm243, %v280, 0.0
      %v357 = vsel %vm243, %v283, 0.0
      %v358 = vsel %vm243, %v286, 0.0
      %v359 = vsel %vm243, %v289, 0.0
      %v360 = vsel %vm243, %v292, 0.0
      %vm393 = vcmask 1046528
      %v394 = vrot.slane %v327, 1
      %v395 = vrot.slane %v245, 1
      %v396 = vsel %vm393, %v394, %v395
      %v397 = vrot.slane %v344, 1
      %v398 = vsel %vm393, %v395, %v397
      %v399 = vrot.slane %v328, 1
      %v400 = vrot.slane %v248, 1
      %v401 = vsel %vm393, %v399, %v400
      %v402 = vrot.slane %v345, 1
      %v403 = vsel %vm393, %v400, %v402
      %v404 = vrot.slane %v329, 1
      %v405 = vrot.slane %v251, 1
      %v406 = vsel %vm393, %v404, %v405
      %v407 = vrot.slane %v346, 1
      %v408 = vsel %vm393, %v405, %v407
      %v409 = vrot.slane %v330, 1
      %v410 = vrot.slane %v254, 1
      %v411 = vsel %vm393, %v409, %v410
      %v412 = vrot.slane %v347, 1
      %v413 = vsel %vm393, %v410, %v412
      %v414 = vrot.slane %v331, 1
      %v415 = vrot.slane %v257, 1
      %v416 = vsel %vm393, %v414, %v415
      %v417 = vrot.slane %v348, 1
      %v418 = vsel %vm393, %v415, %v417
      %v419 = vrot.slane %v332, 1
      %v420 = vrot.slane %v260, 1
      %v421 = vsel %vm393, %v419, %v420
      %v422 = vrot.slane %v349, 1
      %v423 = vsel %vm393, %v420, %v422
      %v424 = vrot.slane %v333, 1
      %v425 = vrot.slane %v263, 1
      %v426 = vsel %vm393, %v424, %v425
      %v427 = vrot.slane %v350, 1
      %v428 = vsel %vm393, %v425, %v427
      %v429 = vrot.slane %v334, 1
      %v430 = vrot.slane %v266, 1
      %v431 = vsel %vm393, %v429, %v430
      %v432 = vrot.slane %v351, 1
      %v433 = vsel %vm393, %v430, %v432
      %v434 = vrot.slane %v335, 1
      %v435 = vrot.slane %v269, 1
      %v436 = vsel %vm393, %v434, %v435
      %v437 = vrot.slane %v352, 1
      %v438 = vsel %vm393, %v435, %v437
      %v439 = vrot.slane %v336, 1
      %v440 = vrot.slane %v272, 1
      %v441 = vsel %vm393, %v439, %v440
      %v442 = vrot.slane %v353, 1
      %v443 = vsel %vm393, %v440, %v442
      %v444 = vrot.slane %v337, 1
      %v445 = vrot.slane %v275, 1
      %v446 = vsel %vm393, %v444, %v445
      %v447 = vrot.slane %v354, 1
      %v448 = vsel %vm393, %v445, %v447
      %v449 = vrot.slane %v338, 1
      %v450 = vrot.slane %v278, 1
      %v451 = vsel %vm393, %v449, %v450
      %v452 = vrot.slane %v355, 1
      %v453 = vsel %vm393, %v450, %v452
      %v454 = vrot.slane %v339, 1
      %v455 = vrot.slane %v281, 1
      %v456 = vsel %vm393, %v454, %v455
      %v457 = vrot.slane %v356, 1
      %v458 = vsel %vm393, %v455, %v457
      %v459 = vrot.slane %v340, 1
      %v460 = vrot.slane %v284, 1
      %v461 = vsel %vm393, %v459, %v460
      %v462 = vrot.slane %v357, 1
      %v463 = vsel %vm393, %v460, %v462
      %v464 = vrot.slane %v341, 1
      %v465 = vrot.slane %v287, 1
      %v466 = vsel %vm393, %v464, %v465
      %v467 = vrot.slane %v358, 1
      %v468 = vsel %vm393, %v465, %v467
      %v469 = vrot.slane %v342, 1
      %v470 = vrot.slane %v290, 1
      %v471 = vsel %vm393, %v469, %v470
      %v472 = vrot.slane %v359, 1
      %v473 = vsel %vm393, %v470, %v472
      %vm474 = vcmask 31744
      %v475 = vsel %vm474, %v396, 0
      %v477 = vsel %vm474, %v398, 0
      %v479 = vsel %vm474, %v401, 0
      %v481 = vsel %vm474, %v403, 0
      %v483 = vsel %vm474, %v406, 0
      %v485 = vsel %vm474, %v408, 0
      %v487 = vsel %vm474, %v411, 0
      %v489 = vsel %vm474, %v413, 0
      %v491 = vsel %vm474, %v416, 0
      %v493 = vsel %vm474, %v418, 0
      %v495 = vsel %vm474, %v421, 0
      %v497 = vsel %vm474, %v423, 0
      %v499 = vsel %vm474, %v426, 0
      %v501 = vsel %vm474, %v428, 0
      %v503 = vsel %vm474, %v431, 0
      %v505 = vsel %vm474, %v433, 0
      %v507 = vsel %vm474, %v436, 0
      %v509 = vsel %vm474, %v438, 0
      %v511 = vsel %vm474, %v441, 0
      %v513 = vsel %vm474, %v443, 0
      %v515 = vsel %vm474, %v446, 0
      %v517 = vsel %vm474, %v448, 0
      %v519 = vsel %vm474, %v451, 0
      %v521 = vsel %vm474, %v453, 0
      %v523 = vsel %vm474, %v456, 0
      %v525 = vsel %vm474, %v458, 0
      %v527 = vsel %vm474, %v461, 0
      %v529 = vsel %vm474, %v463, 0
      %v531 = vsel %vm474, %v466, 0
      %v533 = vsel %vm474, %v468, 0
      %v535 = vsel %vm474, %v471, 0
      %v537 = vsel %vm474, %v473, 0
      %vm539 = vcmask 1043456
      %v541 = vsel %vm539, %v202, 0
      %543 = vmatprep.subr.mxu0 0.0
      %544 = vmatpush1.msra.mxu0 %v541
      %545 = vmatprep.subr.mxu0 0.0
      %546 = vmatpush1.msra.mxu0 0.0
      %547 = vmatprep.subr.mxu0 0.0
      %548 = vmatpush1.msra.mxu0 0.0
      %549 = vmatprep.subr.mxu0 0.0
      %550 = vmatpush1.msra.mxu0 0.0
      %551 = vmatprep.subr.mxu0 0.0
      %552 = vmatpush1.msra.mxu0 0.0
      %553 = vmatprep.subr.mxu0 0.0
      %554 = vmatpush1.msra.mxu0 0.0
      %555 = vmatprep.subr.mxu0 0.0
      %556 = vmatpush1.msra.mxu0 0.0
      %557 = vmatprep.subr.mxu0 0.0
      %558 = vmatpush1.msra.mxu0 0.0
      %559 = vmatprep.subr.mxu0 0.0
      %560 = vmatpush1.msra.mxu0 0.0
      %561 = vmatprep.subr.mxu0 0.0
      %562 = vmatpush1.msra.mxu0 0.0
      %563 = vmatprep.subr.mxu0 0.0
      %564 = vmatpush1.msra.mxu0 0.0
      %565 = vmatprep.subr.mxu0 0.0
      %566 = vmatpush1.msra.mxu0 0.0
      %567 = vmatprep.subr.mxu0 0.0
      %568 = vmatpush1.msra.mxu0 0.0
      %569 = vmatprep.subr.mxu0 0.0
      %570 = vmatpush1.msra.mxu0 0.0
      %571 = vmatprep.subr.mxu0 0.0
      %572 = vmatpush1.msra.mxu0 0.0
      %573 = vmatprep.subr.mxu0 0.0
      %574 = vmatpush1.msra.mxu0 0.0
      %575 = vmatprep.subr.mxu0 0.0
      %576 = vmatpush1.msra.mxu0 0.0
      %577 = vmatprep.subr.mxu0 0.0
      %578 = vmatpush1.msra.mxu0 0.0
      %579 = vmatprep.subr.mxu0 0.0
      %580 = vmatpush1.msra.mxu0 0.0
      %581 = vmatprep.subr.mxu0 0.0
      %582 = vmatpush1.msra.mxu0 0.0
      %583 = vmatprep.subr.mxu0 0.0
      %584 = vmatpush1.msra.mxu0 0.0
      %585 = vmatprep.subr.mxu0 0.0
      %586 = vmatpush1.msra.mxu0 0.0
      %587 = vmatprep.subr.mxu0 0.0
      %588 = vmatpush1.msra.mxu0 0.0
      %589 = vmatprep.subr.mxu0 0.0
      %590 = vmatpush1.msra.mxu0 0.0
      %591 = vmatprep.subr.mxu0 0.0
      %592 = vmatpush1.msra.mxu0 0.0
      %593 = vmatprep.subr.mxu0 0.0
      %594 = vmatpush1.msra.mxu0 0.0
      %595 = vmatprep.subr.mxu0 0.0
      %596 = vmatpush1.msra.mxu0 0.0
      %597 = vmatprep.subr.mxu0 0.0
      %598 = vmatpush1.msra.mxu0 0.0
      %599 = vmatprep.subr.mxu0 0.0
      %600 = vmatpush1.msra.mxu0 0.0
      %601 = vmatprep.subr.mxu0 0.0
      %602 = vmatpush1.msra.mxu0 0.0
      %603 = vmatprep.subr.mxu0 0.0
      %604 = vmatpush1.msra.mxu0 0.0
      %605 = vmatprep.subr.mxu0 0.0
      %606 = vmatpush1.msra.mxu0 0.0
      %607 = vmatprep.mubr.f32.mxu0 0.0
      %608 = vmatmul.mubr.f32.gmra.mrb[0].mxu0 %v475
      %v609 = vpop.f32.mrb[0].mxu0
      %v610 = vadd.f32 0.0, %v609
      %v611 = vpop.f32.mrb[0].mxu0
      %612 = vmatprep.mubr.f32.mxu0 0.0
      %613 = vmatmul.mubr.f32.gmra.mrb[0].mxu0 %v477
      %v614 = vpop.f32.mrb[0].mxu0
      %v615 = vadd.f32 0.0, %v614
      %v616 = vpop.f32.mrb[0].mxu0
      %617 = vmatprep.mubr.f32.mxu0 0.0
      %618 = vmatmul.mubr.f32.gmra.mrb[0].mxu0 %v479
      %v619 = vpop.f32.mrb[0].mxu0
      %v620 = vadd.f32 0.0, %v619
      %v621 = vpop.f32.mrb[0].mxu0
      %622 = vmatprep.mubr.f32.mxu0 0.0
      %623 = vmatmul.mubr.f32.gmra.mrb[0].mxu0 %v481
      %v624 = vpop.f32.mrb[0].mxu0
      %v625 = vadd.f32 0.0, %v624
      %v626 = vpop.f32.mrb[0].mxu0
      %627 = vmatprep.mubr.f32.mxu0 0.0
      %628 = vmatmul.mubr.f32.gmra.mrb[0].mxu0 %v483
      %v629 = vpop.f32.mrb[0].mxu0
      %v630 = vadd.f32 0.0, %v629
      %v631 = vpop.f32.mrb[0].mxu0
      %632 = vmatprep.mubr.f32.mxu0 0.0
      %633 = vmatmul.mubr.f32.gmra.mrb[0].mxu0 %v485
      %v634 = vpop.f32.mrb[0].mxu0
      %v635 = vadd.f32 0.0, %v634
      %v636 = vpop.f32.mrb[0].mxu0
      %637 = vmatprep.mubr.f32.mxu0 0.0
      %638 = vmatmul.mubr.f32.gmra.mrb[0].mxu0 %v487
      %v639 = vpop.f32.mrb[0].mxu0
      %v640 = vadd.f32 0.0, %v639
      %v641 = vpop.f32.mrb[0].mxu0
      %642 = vmatprep.mubr.f32.mxu0 0.0
      %643 = vmatmul.mubr.f32.gmra.mrb[0].mxu0 %v489
      %v644 = vpop.f32.mrb[0].mxu0
      %v645 = vadd.f32 0.0, %v644
      %v646 = vpop.f32.mrb[0].mxu0
      %647 = vmatprep.mubr.f32.mxu0 0.0
      %648 = vmatmul.mubr.f32.gmra.mrb[0].mxu0 %v491
      %v649 = vpop.f32.mrb[0].mxu0
      %v650 = vadd.f32 0.0, %v649
      %v651 = vpop.f32.mrb[0].mxu0
      %652 = vmatprep.mubr.f32.mxu0 0.0
      %653 = vmatmul.mubr.f32.gmra.mrb[0].mxu0 %v493
      %v654 = vpop.f32.mrb[0].mxu0
      %v655 = vadd.f32 0.0, %v654
      %v656 = vpop.f32.mrb[0].mxu0
      %657 = vmatprep.mubr.f32.mxu0 0.0
      %658 = vmatmul.mubr.f32.gmra.mrb[0].mxu0 %v495
      %v659 = vpop.f32.mrb[0].mxu0
      %v660 = vadd.f32 0.0, %v659
      %v661 = vpop.f32.mrb[0].mxu0
      %662 = vmatprep.mubr.f32.mxu0 0.0
      %663 = vmatmul.mubr.f32.gmra.mrb[0].mxu0 %v497
      %v664 = vpop.f32.mrb[0].mxu0
      %v665 = vadd.f32 0.0, %v664
      %v666 = vpop.f32.mrb[0].mxu0
      %667 = vmatprep.mubr.f32.mxu0 0.0
      %668 = vmatmul.mubr.f32.gmra.mrb[0].mxu0 %v499
      %v669 = vpop.f32.mrb[0].mxu0
      %v670 = vadd.f32 0.0, %v669
      %v671 = vpop.f32.mrb[0].mxu0
      %672 = vmatprep.mubr.f32.mxu0 0.0
      %673 = vmatmul.mubr.f32.gmra.mrb[0].mxu0 %v501
      %v674 = vpop.f32.mrb[0].mxu0
      %v675 = vadd.f32 0.0, %v674
      %v676 = vpop.f32.mrb[0].mxu0
      %677 = vmatprep.mubr.f32.mxu0 0.0
      %678 = vmatmul.mubr.f32.gmra.mrb[0].mxu0 %v503
      %v679 = vpop.f32.mrb[0].mxu0
      %v680 = vadd.f32 0.0, %v679
      %v681 = vpop.f32.mrb[0].mxu0
      %682 = vmatprep.mubr.f32.mxu0 0.0
      %683 = vmatmul.mubr.f32.gmra.mrb[0].mxu0 %v505
      %v684 = vpop.f32.mrb[0].mxu0
      %v685 = vadd.f32 0.0, %v684
      %v686 = vpop.f32.mrb[0].mxu0
      %687 = vmatprep.mubr.f32.mxu0 0.0
      %688 = vmatmul.mubr.f32.gmra.mrb[0].mxu0 %v507
      %v689 = vpop.f32.mrb[0].mxu0
      %v690 = vadd.f32 0.0, %v689
      %v691 = vpop.f32.mrb[0].mxu0
      %692 = vmatprep.mubr.f32.mxu0 0.0
      %693 = vmatmul.mubr.f32.gmra.mrb[0].mxu0 %v509
      %v694 = vpop.f32.mrb[0].mxu0
      %v695 = vadd.f32 0.0, %v694
      %v696 = vpop.f32.mrb[0].mxu0
      %697 = vmatprep.mubr.f32.mxu0 0.0
      %698 = vmatmul.mubr.f32.gmra.mrb[0].mxu0 %v511
      %v699 = vpop.f32.mrb[0].mxu0
      %v700 = vadd.f32 0.0, %v699
      %v701 = vpop.f32.mrb[0].mxu0
      %702 = vmatprep.mubr.f32.mxu0 0.0
      %703 = vmatmul.mubr.f32.gmra.mrb[0].mxu0 %v513
      %v704 = vpop.f32.mrb[0].mxu0
      %v705 = vadd.f32 0.0, %v704
      %v706 = vpop.f32.mrb[0].mxu0
      %707 = vmatprep.mubr.f32.mxu0 0.0
      %708 = vmatmul.mubr.f32.gmra.mrb[0].mxu0 %v515
      %v709 = vpop.f32.mrb[0].mxu0
      %v710 = vadd.f32 0.0, %v709
      %v711 = vpop.f32.mrb[0].mxu0
      %712 = vmatprep.mubr.f32.mxu0 0.0
      %713 = vmatmul.mubr.f32.gmra.mrb[0].mxu0 %v517
      %v714 = vpop.f32.mrb[0].mxu0
      %v715 = vadd.f32 0.0, %v714
      %v716 = vpop.f32.mrb[0].mxu0
      %717 = vmatprep.mubr.f32.mxu0 0.0
      %718 = vmatmul.mubr.f32.gmra.mrb[0].mxu0 %v519
      %v719 = vpop.f32.mrb[0].mxu0
      %v720 = vadd.f32 0.0, %v719
      %v721 = vpop.f32.mrb[0].mxu0
      %722 = vmatprep.mubr.f32.mxu0 0.0
      %723 = vmatmul.mubr.f32.gmra.mrb[0].mxu0 %v521
      %v724 = vpop.f32.mrb[0].mxu0
      %v725 = vadd.f32 0.0, %v724
      %v726 = vpop.f32.mrb[0].mxu0
      %727 = vmatprep.mubr.f32.mxu0 0.0
      %728 = vmatmul.mubr.f32.gmra.mrb[0].mxu0 %v523
      %v729 = vpop.f32.mrb[0].mxu0
      %v730 = vadd.f32 0.0, %v729
      %v731 = vpop.f32.mrb[0].mxu0
      %732 = vmatprep.mubr.f32.mxu0 0.0
      %733 = vmatmul.mubr.f32.gmra.mrb[0].mxu0 %v525
      %v734 = vpop.f32.mrb[0].mxu0
      %v735 = vadd.f32 0.0, %v734
      %v736 = vpop.f32.mrb[0].mxu0
      %737 = vmatprep.mubr.f32.mxu0 0.0
      %738 = vmatmul.mubr.f32.gmra.mrb[0].mxu0 %v527
      %v739 = vpop.f32.mrb[0].mxu0
      %v740 = vadd.f32 0.0, %v739
      %v741 = vpop.f32.mrb[0].mxu0
      %742 = vmatprep.mubr.f32.mxu0 0.0
      %743 = vmatmul.mubr.f32.gmra.mrb[0].mxu0 %v529
      %v744 = vpop.f32.mrb[0].mxu0
      %v745 = vadd.f32 0.0, %v744
      %v746 = vpop.f32.mrb[0].mxu0
      %747 = vmatprep.mubr.f32.mxu0 0.0
      %748 = vmatmul.mubr.f32.gmra.mrb[0].mxu0 %v531
      %v749 = vpop.f32.mrb[0].mxu0
      %v750 = vadd.f32 0.0, %v749
      %v751 = vpop.f32.mrb[0].mxu0
      %752 = vmatprep.mubr.f32.mxu0 0.0
      %753 = vmatmul.mubr.f32.gmra.mrb[0].mxu0 %v533
      %v754 = vpop.f32.mrb[0].mxu0
      %v755 = vadd.f32 0.0, %v754
      %v756 = vpop.f32.mrb[0].mxu0
      %757 = vmatprep.mubr.f32.mxu0 0.0
      %758 = vmatmul.mubr.f32.gmra.mrb[0].mxu0 %v535
      %v759 = vpop.f32.mrb[0].mxu0
      %v760 = vadd.f32 0.0, %v759
      %v761 = vpop.f32.mrb[0].mxu0
      %762 = vmatprep.mubr.f32.mxu0 0.0
      %763 = vmatmul.mubr.f32.gmra.mrb[0].mxu0 %v537
      %v764 = vpop.f32.mrb[0].mxu0
      %v765 = vadd.f32 0.0, %v764
      %v766 = vpop.f32.mrb[0].mxu0
      %767 = vdwg.mxu0
      %v768 = vsel %vm474, %v327, 0
      %v770 = vsel %vm474, %v245, 0
      %v772 = vsel %vm474, %v328, 0
      %v774 = vsel %vm474, %v248, 0
      %v776 = vsel %vm474, %v329, 0
      %v778 = vsel %vm474, %v251, 0
      %v780 = vsel %vm474, %v330, 0
      %v782 = vsel %vm474, %v254, 0
      %v784 = vsel %vm474, %v331, 0
      %v786 = vsel %vm474, %v257, 0
      %v788 = vsel %vm474, %v332, 0
      %v790 = vsel %vm474, %v260, 0
      %v792 = vsel %vm474, %v333, 0
      %v794 = vsel %vm474, %v263, 0
      %v796 = vsel %vm474, %v334, 0
      %v798 = vsel %vm474, %v266, 0
      %v800 = vsel %vm474, %v335, 0
      %v802 = vsel %vm474, %v269, 0
      %v804 = vsel %vm474, %v336, 0
      %v806 = vsel %vm474, %v272, 0
      %v808 = vsel %vm474, %v337, 0
      %v810 = vsel %vm474, %v275, 0
      %v812 = vsel %vm474, %v338, 0
      %v814 = vsel %vm474, %v278, 0
      %v816 = vsel %vm474, %v339, 0
      %v818 = vsel %vm474, %v281, 0
      %v820 = vsel %vm474, %v340, 0
      %v822 = vsel %vm474, %v284, 0
      %v824 = vsel %vm474, %v341, 0
      %v826 = vsel %vm474, %v287, 0
      %v828 = vsel %vm474, %v342, 0
      %v830 = vsel %vm474, %v290, 0
      %v833 = vsel %vm539, %v201, 0
      %835 = vmatprep.subr.mxu0 0.0
      %836 = vmatpush1.msra.mxu0 %v833
      %837 = vmatprep.subr.mxu0 0.0
      %838 = vmatpush1.msra.mxu0 0.0
      %839 = vmatprep.subr.mxu0 0.0
      %840 = vmatpush1.msra.mxu0 0.0
      %841 = vmatprep.subr.mxu0 0.0
      %842 = vmatpush1.msra.mxu0 0.0
      %843 = vmatprep.subr.mxu0 0.0
      %844 = vmatpush1.msra.mxu0 0.0
      %845 = vmatprep.subr.mxu0 0.0
      %846 = vmatpush1.msra.mxu0 0.0
      %847 = vmatprep.subr.mxu0 0.0
      %848 = vmatpush1.msra.mxu0 0.0
      %849 = vmatprep.subr.mxu0 0.0
      %850 = vmatpush1.msra.mxu0 0.0
      %851 = vmatprep.subr.mxu0 0.0
      %852 = vmatpush1.msra.mxu0 0.0
      %853 = vmatprep.subr.mxu0 0.0
      %854 = vmatpush1.msra.mxu0 0.0
      %855 = vmatprep.subr.mxu0 0.0
      %856 = vmatpush1.msra.mxu0 0.0
      %857 = vmatprep.subr.mxu0 0.0
      %858 = vmatpush1.msra.mxu0 0.0
      %859 = vmatprep.subr.mxu0 0.0
      %860 = vmatpush1.msra.mxu0 0.0
      %861 = vmatprep.subr.mxu0 0.0
      %862 = vmatpush1.msra.mxu0 0.0
      %863 = vmatprep.subr.mxu0 0.0
      %864 = vmatpush1.msra.mxu0 0.0
      %865 = vmatprep.subr.mxu0 0.0
      %866 = vmatpush1.msra.mxu0 0.0
      %867 = vmatprep.subr.mxu0 0.0
      %868 = vmatpush1.msra.mxu0 0.0
      %869 = vmatprep.subr.mxu0 0.0
      %870 = vmatpush1.msra.mxu0 0.0
      %871 = vmatprep.subr.mxu0 0.0
      %872 = vmatpush1.msra.mxu0 0.0
      %873 = vmatprep.subr.mxu0 0.0
      %874 = vmatpush1.msra.mxu0 0.0
      %875 = vmatprep.subr.mxu0 0.0
      %876 = vmatpush1.msra.mxu0 0.0
      %877 = vmatprep.subr.mxu0 0.0
      %878 = vmatpush1.msra.mxu0 0.0
      %879 = vmatprep.subr.mxu0 0.0
      %880 = vmatpush1.msra.mxu0 0.0
      %881 = vmatprep.subr.mxu0 0.0
      %882 = vmatpush1.msra.mxu0 0.0
      %883 = vmatprep.subr.mxu0 0.0
      %884 = vmatpush1.msra.mxu0 0.0
      %885 = vmatprep.subr.mxu0 0.0
      %886 = vmatpush1.msra.mxu0 0.0
      %887 = vmatprep.subr.mxu0 0.0
      %888 = vmatpush1.msra.mxu0 0.0
      %889 = vmatprep.subr.mxu0 0.0
      %890 = vmatpush1.msra.mxu0 0.0
      %891 = vmatprep.subr.mxu0 0.0
      %892 = vmatpush1.msra.mxu0 0.0
      %893 = vmatprep.subr.mxu0 0.0
      %894 = vmatpush1.msra.mxu0 0.0
      %895 = vmatprep.subr.mxu0 0.0
      %896 = vmatpush1.msra.mxu0 0.0
      %897 = vmatprep.subr.mxu0 0.0
      %898 = vmatpush1.msra.mxu0 0.0
      %899 = vmatprep.mubr.f32.mxu0 0.0
      %900 = vmatmul.mubr.f32.gmra.mrb[0].mxu0 %v768
      %v901 = vpop.f32.mrb[0].mxu0
      %v902 = vadd.f32 %v610, %v901
      %v903 = vpop.f32.mrb[0].mxu0
      %904 = vmatprep.mubr.f32.mxu0 0.0
      %905 = vmatmul.mubr.f32.gmra.mrb[0].mxu0 %v770
      %v906 = vpop.f32.mrb[0].mxu0
      %v907 = vadd.f32 %v615, %v906
      %v908 = vpop.f32.mrb[0].mxu0
      %909 = vmatprep.mubr.f32.mxu0 0.0
      %910 = vmatmul.mubr.f32.gmra.mrb[0].mxu0 %v772
      %v911 = vpop.f32.mrb[0].mxu0
      %v912 = vadd.f32 %v620, %v911
      %v913 = vpop.f32.mrb[0].mxu0
      %914 = vmatprep.mubr.f32.mxu0 0.0
      %915 = vmatmul.mubr.f32.gmra.mrb[0].mxu0 %v774
      %v916 = vpop.f32.mrb[0].mxu0
      %v917 = vadd.f32 %v625, %v916
      %v918 = vpop.f32.mrb[0].mxu0
      %919 = vmatprep.mubr.f32.mxu0 0.0
      %920 = vmatmul.mubr.f32.gmra.mrb[0].mxu0 %v776
      %v921 = vpop.f32.mrb[0].mxu0
      %v922 = vadd.f32 %v630, %v921
      %v923 = vpop.f32.mrb[0].mxu0
      %924 = vmatprep.mubr.f32.mxu0 0.0
      %925 = vmatmul.mubr.f32.gmra.mrb[0].mxu0 %v778
      %v926 = vpop.f32.mrb[0].mxu0
      %v927 = vadd.f32 %v635, %v926
      %v928 = vpop.f32.mrb[0].mxu0
      %929 = vmatprep.mubr.f32.mxu0 0.0
      %930 = vmatmul.mubr.f32.gmra.mrb[0].mxu0 %v780
      %v931 = vpop.f32.mrb[0].mxu0
      %v932 = vadd.f32 %v640, %v931
      %v933 = vpop.f32.mrb[0].mxu0
      %934 = vmatprep.mubr.f32.mxu0 0.0
      %935 = vmatmul.mubr.f32.gmra.mrb[0].mxu0 %v782
      %v936 = vpop.f32.mrb[0].mxu0
      %v937 = vadd.f32 %v645, %v936
      %v938 = vpop.f32.mrb[0].mxu0
      %939 = vmatprep.mubr.f32.mxu0 0.0
      %940 = vmatmul.mubr.f32.gmra.mrb[0].mxu0 %v784
      %v941 = vpop.f32.mrb[0].mxu0
      %v942 = vadd.f32 %v650, %v941
      %v943 = vpop.f32.mrb[0].mxu0
      %944 = vmatprep.mubr.f32.mxu0 0.0
      %945 = vmatmul.mubr.f32.gmra.mrb[0].mxu0 %v786
      %v946 = vpop.f32.mrb[0].mxu0
      %v947 = vadd.f32 %v655, %v946
      %v948 = vpop.f32.mrb[0].mxu0
      %949 = vmatprep.mubr.f32.mxu0 0.0
      %950 = vmatmul.mubr.f32.gmra.mrb[0].mxu0 %v788
      %v951 = vpop.f32.mrb[0].mxu0
      %v952 = vadd.f32 %v660, %v951
      %v953 = vpop.f32.mrb[0].mxu0
      %954 = vmatprep.mubr.f32.mxu0 0.0
      %955 = vmatmul.mubr.f32.gmra.mrb[0].mxu0 %v790
      %v956 = vpop.f32.mrb[0].mxu0
      %v957 = vadd.f32 %v665, %v956
      %v958 = vpop.f32.mrb[0].mxu0
      %959 = vmatprep.mubr.f32.mxu0 0.0
      %960 = vmatmul.mubr.f32.gmra.mrb[0].mxu0 %v792
      %v961 = vpop.f32.mrb[0].mxu0
      %v962 = vadd.f32 %v670, %v961
      %v963 = vpop.f32.mrb[0].mxu0
      %964 = vmatprep.mubr.f32.mxu0 0.0
      %965 = vmatmul.mubr.f32.gmra.mrb[0].mxu0 %v794
      %v966 = vpop.f32.mrb[0].mxu0
      %v967 = vadd.f32 %v675, %v966
      %v968 = vpop.f32.mrb[0].mxu0
      %969 = vmatprep.mubr.f32.mxu0 0.0
      %970 = vmatmul.mubr.f32.gmra.mrb[0].mxu0 %v796
      %v971 = vpop.f32.mrb[0].mxu0
      %v972 = vadd.f32 %v680, %v971
      %v973 = vpop.f32.mrb[0].mxu0
      %974 = vmatprep.mubr.f32.mxu0 0.0
      %975 = vmatmul.mubr.f32.gmra.mrb[0].mxu0 %v798
      %v976 = vpop.f32.mrb[0].mxu0
      %v977 = vadd.f32 %v685, %v976
      %v978 = vpop.f32.mrb[0].mxu0
      %979 = vmatprep.mubr.f32.mxu0 0.0
      %980 = vmatmul.mubr.f32.gmra.mrb[0].mxu0 %v800
      %v981 = vpop.f32.mrb[0].mxu0
      %v982 = vadd.f32 %v690, %v981
      %v983 = vpop.f32.mrb[0].mxu0
      %984 = vmatprep.mubr.f32.mxu0 0.0
      %985 = vmatmul.mubr.f32.gmra.mrb[0].mxu0 %v802
      %v986 = vpop.f32.mrb[0].mxu0
      %v987 = vadd.f32 %v695, %v986
      %v988 = vpop.f32.mrb[0].mxu0
      %989 = vmatprep.mubr.f32.mxu0 0.0
      %990 = vmatmul.mubr.f32.gmra.mrb[0].mxu0 %v804
      %v991 = vpop.f32.mrb[0].mxu0
      %v992 = vadd.f32 %v700, %v991
      %v993 = vpop.f32.mrb[0].mxu0
      %994 = vmatprep.mubr.f32.mxu0 0.0
      %995 = vmatmul.mubr.f32.gmra.mrb[0].mxu0 %v806
      %v996 = vpop.f32.mrb[0].mxu0
      %v997 = vadd.f32 %v705, %v996
      %v998 = vpop.f32.mrb[0].mxu0
      %999 = vmatprep.mubr.f32.mxu0 0.0
      %1000 = vmatmul.mubr.f32.gmra.mrb[0].mxu0 %v808
      %v1001 = vpop.f32.mrb[0].mxu0
      %v1002 = vadd.f32 %v710, %v1001
      %v1003 = vpop.f32.mrb[0].mxu0
      %1004 = vmatprep.mubr.f32.mxu0 0.0
      %1005 = vmatmul.mubr.f32.gmra.mrb[0].mxu0 %v810
      %v1006 = vpop.f32.mrb[0].mxu0
      %v1007 = vadd.f32 %v715, %v1006
      %v1008 = vpop.f32.mrb[0].mxu0
      %1009 = vmatprep.mubr.f32.mxu0 0.0
      %1010 = vmatmul.mubr.f32.gmra.mrb[0].mxu0 %v812
      %v1011 = vpop.f32.mrb[0].mxu0
      %v1012 = vadd.f32 %v720, %v1011
      %v1013 = vpop.f32.mrb[0].mxu0
      %1014 = vmatprep.mubr.f32.mxu0 0.0
      %1015 = vmatmul.mubr.f32.gmra.mrb[0].mxu0 %v814
      %v1016 = vpop.f32.mrb[0].mxu0
      %v1017 = vadd.f32 %v725, %v1016
      %v1018 = vpop.f32.mrb[0].mxu0
      %1019 = vmatprep.mubr.f32.mxu0 0.0
      %1020 = vmatmul.mubr.f32.gmra.mrb[0].mxu0 %v816
      %v1021 = vpop.f32.mrb[0].mxu0
      %v1022 = vadd.f32 %v730, %v1021
      %v1023 = vpop.f32.mrb[0].mxu0
      %1024 = vmatprep.mubr.f32.mxu0 0.0
      %1025 = vmatmul.mubr.f32.gmra.mrb[0].mxu0 %v818
      %v1026 = vpop.f32.mrb[0].mxu0
      %v1027 = vadd.f32 %v735, %v1026
      %v1028 = vpop.f32.mrb[0].mxu0
      %1029 = vmatprep.mubr.f32.mxu0 0.0
      %1030 = vmatmul.mubr.f32.gmra.mrb[0].mxu0 %v820
      %v1031 = vpop.f32.mrb[0].mxu0
      %v1032 = vadd.f32 %v740, %v1031
      %v1033 = vpop.f32.mrb[0].mxu0
      %1034 = vmatprep.mubr.f32.mxu0 0.0
      %1035 = vmatmul.mubr.f32.gmra.mrb[0].mxu0 %v822
      %v1036 = vpop.f32.mrb[0].mxu0
      %v1037 = vadd.f32 %v745, %v1036
      %v1038 = vpop.f32.mrb[0].mxu0
      %1039 = vmatprep.mubr.f32.mxu0 0.0
      %1040 = vmatmul.mubr.f32.gmra.mrb[0].mxu0 %v824
      %v1041 = vpop.f32.mrb[0].mxu0
      %v1042 = vadd.f32 %v750, %v1041
      %v1043 = vpop.f32.mrb[0].mxu0
      %1044 = vmatprep.mubr.f32.mxu0 0.0
      %1045 = vmatmul.mubr.f32.gmra.mrb[0].mxu0 %v826
      %v1046 = vpop.f32.mrb[0].mxu0
      %v1047 = vadd.f32 %v755, %v1046
      %v1048 = vpop.f32.mrb[0].mxu0
      %1049 = vmatprep.mubr.f32.mxu0 0.0
      %1050 = vmatmul.mubr.f32.gmra.mrb[0].mxu0 %v828
      %v1051 = vpop.f32.mrb[0].mxu0
      %v1052 = vadd.f32 %v760, %v1051
      %v1053 = vpop.f32.mrb[0].mxu0
      %1054 = vmatprep.mubr.f32.mxu0 0.0
      %1055 = vmatmul.mubr.f32.gmra.mrb[0].mxu0 %v830
      %v1056 = vpop.f32.mrb[0].mxu0
      %v1057 = vadd.f32 %v765, %v1056
      %v1058 = vpop.f32.mrb[0].mxu0
      %1059 = vdwg.mxu0
      %vm1060 = vcmask 1045504
      %v1061 = vrot.slane %v327, 2
      %v1062 = vrot.slane %v245, 2
      %v1063 = vsel %vm1060, %v1061, %v1062
      %v1064 = vrot.slane %v344, 2
      %v1065 = vsel %vm1060, %v1062, %v1064
      %v1066 = vrot.slane %v328, 2
      %v1067 = vrot.slane %v248, 2
      %v1068 = vsel %vm1060, %v1066, %v1067
      %v1069 = vrot.slane %v345, 2
      %v1070 = vsel %vm1060, %v1067, %v1069
      %v1071 = vrot.slane %v329, 2
      %v1072 = vrot.slane %v251, 2
      %v1073 = vsel %vm1060, %v1071, %v1072
      %v1074 = vrot.slane %v346, 2
      %v1075 = vsel %vm1060, %v1072, %v1074
      %v1076 = vrot.slane %v330, 2
      %v1077 = vrot.slane %v254, 2
      %v1078 = vsel %vm1060, %v1076, %v1077
      %v1079 = vrot.slane %v347, 2
      %v1080 = vsel %vm1060, %v1077, %v1079
      %v1081 = vrot.slane %v331, 2
      %v1082 = vrot.slane %v257, 2
      %v1083 = vsel %vm1060, %v1081, %v1082
      %v1084 = vrot.slane %v348, 2
      %v1085 = vsel %vm1060, %v1082, %v1084
      %v1086 = vrot.slane %v332, 2
      %v1087 = vrot.slane %v260, 2
      %v1088 = vsel %vm1060, %v1086, %v1087
      %v1089 = vrot.slane %v349, 2
      %v1090 = vsel %vm1060, %v1087, %v1089
      %v1091 = vrot.slane %v333, 2
      %v1092 = vrot.slane %v263, 2
      %v1093 = vsel %vm1060, %v1091, %v1092
      %v1094 = vrot.slane %v350, 2
      %v1095 = vsel %vm1060, %v1092, %v1094
      %v1096 = vrot.slane %v334, 2
      %v1097 = vrot.slane %v266, 2
      %v1098 = vsel %vm1060, %v1096, %v1097
      %v1099 = vrot.slane %v351, 2
      %v1100 = vsel %vm1060, %v1097, %v1099
      %v1101 = vrot.slane %v335, 2
      %v1102 = vrot.slane %v269, 2
      %v1103 = vsel %vm1060, %v1101, %v1102
      %v1104 = vrot.slane %v352, 2
      %v1105 = vsel %vm1060, %v1102, %v1104
      %v1106 = vrot.slane %v336, 2
      %v1107 = vrot.slane %v272, 2
      %v1108 = vsel %vm1060, %v1106, %v1107
      %v1109 = vrot.slane %v353, 2
      %v1110 = vsel %vm1060, %v1107, %v1109
      %v1111 = vrot.slane %v337, 2
      %v1112 = vrot.slane %v275, 2
      %v1113 = vsel %vm1060, %v1111, %v1112
      %v1114 = vrot.slane %v354, 2
      %v1115 = vsel %vm1060, %v1112, %v1114
      %v1116 = vrot.slane %v338, 2
      %v1117 = vrot.slane %v278, 2
      %v1118 = vsel %vm1060, %v1116, %v1117
      %v1119 = vrot.slane %v355, 2
      %v1120 = vsel %vm1060, %v1117, %v1119
      %v1121 = vrot.slane %v339, 2
      %v1122 = vrot.slane %v281, 2
      %v1123 = vsel %vm1060, %v1121, %v1122
      %v1124 = vrot.slane %v356, 2
      %v1125 = vsel %vm1060, %v1122, %v1124
      %v1126 = vrot.slane %v340, 2
      %v1127 = vrot.slane %v284, 2
      %v1128 = vsel %vm1060, %v1126, %v1127
      %v1129 = vrot.slane %v357, 2
      %v1130 = vsel %vm1060, %v1127, %v1129
      %v1131 = vrot.slane %v341, 2
      %v1132 = vrot.slane %v287, 2
      %v1133 = vsel %vm1060, %v1131, %v1132
      %v1134 = vrot.slane %v358, 2
      %v1135 = vsel %vm1060, %v1132, %v1134
      %v1136 = vrot.slane %v342, 2
      %v1137 = vrot.slane %v290, 2
      %v1138 = vsel %vm1060, %v1136, %v1137
      %v1139 = vrot.slane %v359, 2
      %v1140 = vsel %vm1060, %v1137, %v1139
      %v1141 = vsel %vm474, %v1063, 0
      %v1143 = vsel %vm474, %v1065, 0
      %v1145 = vsel %vm474, %v1068, 0
      %v1147 = vsel %vm474, %v1070, 0
      %v1149 = vsel %vm474, %v1073, 0
      %v1151 = vsel %vm474, %v1075, 0
      %v1153 = vsel %vm474, %v1078, 0
      %v1155 = vsel %vm474, %v1080, 0
      %v1157 = vsel %vm474, %v1083, 0
      %v1159 = vsel %vm474, %v1085, 0
      %v1161 = vsel %vm474, %v1088, 0
      %v1163 = vsel %vm474, %v1090, 0
      %v1165 = vsel %vm474, %v1093, 0
      %v1167 = vsel %vm474, %v1095, 0
      %v1169 = vsel %vm474, %v1098, 0
      %v1171 = vsel %vm474, %v1100, 0
      %v1173 = vsel %vm474, %v1103, 0
      %v1175 = vsel %vm474, %v1105, 0
      %v1177 = vsel %vm474, %v1108, 0
      %v1179 = vsel %vm474, %v1110, 0
      %v1181 = vsel %vm474, %v1113, 0
      %v1183 = vsel %vm474, %v1115, 0
      %v1185 = vsel %vm474, %v1118, 0
      %v1187 = vsel %vm474, %v1120, 0
      %v1189 = vsel %vm474, %v1123, 0
      %v1191 = vsel %vm474, %v1125, 0
      %v1193 = vsel %vm474, %v1128, 0
      %v1195 = vsel %vm474, %v1130, 0
      %v1197 = vsel %vm474, %v1133, 0
      %v1199 = vsel %vm474, %v1135, 0
      %v1201 = vsel %vm474, %v1138, 0
      %v1203 = vsel %vm474, %v1140, 0
      %v1206 = vsel %vm539, %v203, 0
      %1208 = vmatprep.subr.mxu0 0.0
      %1209 = vmatpush1.msra.mxu0 %v1206
      %1210 = vmatprep.subr.mxu0 0.0
      %1211 = vmatpush1.msra.mxu0 0.0
      %1212 = vmatprep.subr.mxu0 0.0
      %1213 = vmatpush1.msra.mxu0 0.0
      %1214 = vmatprep.subr.mxu0 0.0
      %1215 = vmatpush1.msra.mxu0 0.0
      %1216 = vmatprep.subr.mxu0 0.0
      %1217 = vmatpush1.msra.mxu0 0.0
      %1218 = vmatprep.subr.mxu0 0.0
      %1219 = vmatpush1.msra.mxu0 0.0
      %1220 = vmatprep.subr.mxu0 0.0
      %1221 = vmatpush1.msra.mxu0 0.0
      %1222 = vmatprep.subr.mxu0 0.0
      %1223 = vmatpush1.msra.mxu0 0.0
      %1224 = vmatprep.subr.mxu0 0.0
      %1225 = vmatpush1.msra.mxu0 0.0
      %1226 = vmatprep.subr.mxu0 0.0
      %1227 = vmatpush1.msra.mxu0 0.0
      %1228 = vmatprep.subr.mxu0 0.0
      %1229 = vmatpush1.msra.mxu0 0.0
      %1230 = vmatprep.subr.mxu0 0.0
      %1231 = vmatpush1.msra.mxu0 0.0
      %1232 = vmatprep.subr.mxu0 0.0
      %1233 = vmatpush1.msra.mxu0 0.0
      %1234 = vmatprep.subr.mxu0 0.0
      %1235 = vmatpush1.msra.mxu0 0.0
      %1236 = vmatprep.subr.mxu0 0.0
      %1237 = vmatpush1.msra.mxu0 0.0
      %1238 = vmatprep.subr.mxu0 0.0
      %1239 = vmatpush1.msra.mxu0 0.0
      %1240 = vmatprep.subr.mxu0 0.0
      %1241 = vmatpush1.msra.mxu0 0.0
      %1242 = vmatprep.subr.mxu0 0.0
      %1243 = vmatpush1.msra.mxu0 0.0
      %1244 = vmatprep.subr.mxu0 0.0
      %1245 = vmatpush1.msra.mxu0 0.0
      %1246 = vmatprep.subr.mxu0 0.0
      %1247 = vmatpush1.msra.mxu0 0.0
      %1248 = vmatprep.subr.mxu0 0.0
      %1249 = vmatpush1.msra.mxu0 0.0
      %1250 = vmatprep.subr.mxu0 0.0
      %1251 = vmatpush1.msra.mxu0 0.0
      %1252 = vmatprep.subr.mxu0 0.0
      %1253 = vmatpush1.msra.mxu0 0.0
      %1254 = vmatprep.subr.mxu0 0.0
      %1255 = vmatpush1.msra.mxu0 0.0
      %1256 = vmatprep.subr.mxu0 0.0
      %1257 = vmatpush1.msra.mxu0 0.0
      %1258 = vmatprep.subr.mxu0 0.0
      %1259 = vmatpush1.msra.mxu0 0.0
      %1260 = vmatprep.subr.mxu0 0.0
      %1261 = vmatpush1.msra.mxu0 0.0
      %1262 = vmatprep.subr.mxu0 0.0
      %1263 = vmatpush1.msra.mxu0 0.0
      %1264 = vmatprep.subr.mxu0 0.0
      %1265 = vmatpush1.msra.mxu0 0.0
      %1266 = vmatprep.subr.mxu0 0.0
      %1267 = vmatpush1.msra.mxu0 0.0
      %1268 = vmatprep.subr.mxu0 0.0
      %1269 = vmatpush1.msra.mxu0 0.0
      %1270 = vmatprep.subr.mxu0 0.0
      %1271 = vmatpush1.msra.mxu0 0.0
      %1272 = vmatprep.mubr.f32.mxu0 0.0
      %1273 = vmatmul.mubr.f32.gmra.mrb[0].mxu0 %v1141
      %v1274 = vpop.f32.mrb[0].mxu0
      %v1275 = vadd.f32 0.0, %v1274
      %v1276 = vpop.f32.mrb[0].mxu0
      %1277 = vmatprep.mubr.f32.mxu0 0.0
      %1278 = vmatmul.mubr.f32.gmra.mrb[0].mxu0 %v1143
      %v1279 = vpop.f32.mrb[0].mxu0
      %v1280 = vadd.f32 0.0, %v1279
      %v1281 = vpop.f32.mrb[0].mxu0
      %1282 = vmatprep.mubr.f32.mxu0 0.0
      %1283 = vmatmul.mubr.f32.gmra.mrb[0].mxu0 %v1145
      %v1284 = vpop.f32.mrb[0].mxu0
      %v1285 = vadd.f32 0.0, %v1284
      %v1286 = vpop.f32.mrb[0].mxu0
      %1287 = vmatprep.mubr.f32.mxu0 0.0
      %1288 = vmatmul.mubr.f32.gmra.mrb[0].mxu0 %v1147
      %v1289 = vpop.f32.mrb[0].mxu0
      %v1290 = vadd.f32 0.0, %v1289
      %v1291 = vpop.f32.mrb[0].mxu0
      %1292 = vmatprep.mubr.f32.mxu0 0.0
      %1293 = vmatmul.mubr.f32.gmra.mrb[0].mxu0 %v1149
      %v1294 = vpop.f32.mrb[0].mxu0
      %v1295 = vadd.f32 0.0, %v1294
      %v1296 = vpop.f32.mrb[0].mxu0
      %1297 = vmatprep.mubr.f32.mxu0 0.0
      %1298 = vmatmul.mubr.f32.gmra.mrb[0].mxu0 %v1151
      %v1299 = vpop.f32.mrb[0].mxu0
      %v1300 = vadd.f32 0.0, %v1299
      %v1301 = vpop.f32.mrb[0].mxu0
      %1302 = vmatprep.mubr.f32.mxu0 0.0
      %1303 = vmatmul.mubr.f32.gmra.mrb[0].mxu0 %v1153
      %v1304 = vpop.f32.mrb[0].mxu0
      %v1305 = vadd.f32 0.0, %v1304
      %v1306 = vpop.f32.mrb[0].mxu0
      %1307 = vmatprep.mubr.f32.mxu0 0.0
      %1308 = vmatmul.mubr.f32.gmra.mrb[0].mxu0 %v1155
      %v1309 = vpop.f32.mrb[0].mxu0
      %v1310 = vadd.f32 0.0, %v1309
      %v1311 = vpop.f32.mrb[0].mxu0
      %1312 = vmatprep.mubr.f32.mxu0 0.0
      %1313 = vmatmul.mubr.f32.gmra.mrb[0].mxu0 %v1157
      %v1314 = vpop.f32.mrb[0].mxu0
      %v1315 = vadd.f32 0.0, %v1314
      %v1316 = vpop.f32.mrb[0].mxu0
      %1317 = vmatprep.mubr.f32.mxu0 0.0
      %1318 = vmatmul.mubr.f32.gmra.mrb[0].mxu0 %v1159
      %v1319 = vpop.f32.mrb[0].mxu0
      %v1320 = vadd.f32 0.0, %v1319
      %v1321 = vpop.f32.mrb[0].mxu0
      %1322 = vmatprep.mubr.f32.mxu0 0.0
      %1323 = vmatmul.mubr.f32.gmra.mrb[0].mxu0 %v1161
      %v1324 = vpop.f32.mrb[0].mxu0
      %v1325 = vadd.f32 0.0, %v1324
      %v1326 = vpop.f32.mrb[0].mxu0
      %1327 = vmatprep.mubr.f32.mxu0 0.0
      %1328 = vmatmul.mubr.f32.gmra.mrb[0].mxu0 %v1163
      %v1329 = vpop.f32.mrb[0].mxu0
      %v1330 = vadd.f32 0.0, %v1329
      %v1331 = vpop.f32.mrb[0].mxu0
      %1332 = vmatprep.mubr.f32.mxu0 0.0
      %1333 = vmatmul.mubr.f32.gmra.mrb[0].mxu0 %v1165
      %v1334 = vpop.f32.mrb[0].mxu0
      %v1335 = vadd.f32 0.0, %v1334
      %v1336 = vpop.f32.mrb[0].mxu0
      %1337 = vmatprep.mubr.f32.mxu0 0.0
      %1338 = vmatmul.mubr.f32.gmra.mrb[0].mxu0 %v1167
      %v1339 = vpop.f32.mrb[0].mxu0
      %v1340 = vadd.f32 0.0, %v1339
      %v1341 = vpop.f32.mrb[0].mxu0
      %1342 = vmatprep.mubr.f32.mxu0 0.0
      %1343 = vmatmul.mubr.f32.gmra.mrb[0].mxu0 %v1169
      %v1344 = vpop.f32.mrb[0].mxu0
      %v1345 = vadd.f32 0.0, %v1344
      %v1346 = vpop.f32.mrb[0].mxu0
      %1347 = vmatprep.mubr.f32.mxu0 0.0
      %1348 = vmatmul.mubr.f32.gmra.mrb[0].mxu0 %v1171
      %v1349 = vpop.f32.mrb[0].mxu0
      %v1350 = vadd.f32 0.0, %v1349
      %v1351 = vpop.f32.mrb[0].mxu0
      %1352 = vmatprep.mubr.f32.mxu0 0.0
      %1353 = vmatmul.mubr.f32.gmra.mrb[0].mxu0 %v1173
      %v1354 = vpop.f32.mrb[0].mxu0
      %v1355 = vadd.f32 0.0, %v1354
      %v1356 = vpop.f32.mrb[0].mxu0
      %1357 = vmatprep.mubr.f32.mxu0 0.0
      %1358 = vmatmul.mubr.f32.gmra.mrb[0].mxu0 %v1175
      %v1359 = vpop.f32.mrb[0].mxu0
      %v1360 = vadd.f32 0.0, %v1359
      %v1361 = vpop.f32.mrb[0].mxu0
      %1362 = vmatprep.mubr.f32.mxu0 0.0
      %1363 = vmatmul.mubr.f32.gmra.mrb[0].mxu0 %v1177
      %v1364 = vpop.f32.mrb[0].mxu0
      %v1365 = vadd.f32 0.0, %v1364
      %v1366 = vpop.f32.mrb[0].mxu0
      %1367 = vmatprep.mubr.f32.mxu0 0.0
      %1368 = vmatmul.mubr.f32.gmra.mrb[0].mxu0 %v1179
      %v1369 = vpop.f32.mrb[0].mxu0
      %v1370 = vadd.f32 0.0, %v1369
      %v1371 = vpop.f32.mrb[0].mxu0
      %1372 = vmatprep.mubr.f32.mxu0 0.0
      %1373 = vmatmul.mubr.f32.gmra.mrb[0].mxu0 %v1181
      %v1374 = vpop.f32.mrb[0].mxu0
      %v1375 = vadd.f32 0.0, %v1374
      %v1376 = vpop.f32.mrb[0].mxu0
      %1377 = vmatprep.mubr.f32.mxu0 0.0
      %1378 = vmatmul.mubr.f32.gmra.mrb[0].mxu0 %v1183
      %v1379 = vpop.f32.mrb[0].mxu0
      %v1380 = vadd.f32 0.0, %v1379
      %v1381 = vpop.f32.mrb[0].mxu0
      %1382 = vmatprep.mubr.f32.mxu0 0.0
      %1383 = vmatmul.mubr.f32.gmra.mrb[0].mxu0 %v1185
      %v1384 = vpop.f32.mrb[0].mxu0
      %v1385 = vadd.f32 0.0, %v1384
      %v1386 = vpop.f32.mrb[0].mxu0
      %1387 = vmatprep.mubr.f32.mxu0 0.0
      %1388 = vmatmul.mubr.f32.gmra.mrb[0].mxu0 %v1187
      %v1389 = vpop.f32.mrb[0].mxu0
      %v1390 = vadd.f32 0.0, %v1389
      %v1391 = vpop.f32.mrb[0].mxu0
      %1392 = vmatprep.mubr.f32.mxu0 0.0
      %1393 = vmatmul.mubr.f32.gmra.mrb[0].mxu0 %v1189
      %v1394 = vpop.f32.mrb[0].mxu0
      %v1395 = vadd.f32 0.0, %v1394
      %v1396 = vpop.f32.mrb[0].mxu0
      %1397 = vmatprep.mubr.f32.mxu0 0.0
      %1398 = vmatmul.mubr.f32.gmra.mrb[0].mxu0 %v1191
      %v1399 = vpop.f32.mrb[0].mxu0
      %v1400 = vadd.f32 0.0, %v1399
      %v1401 = vpop.f32.mrb[0].mxu0
      %1402 = vmatprep.mubr.f32.mxu0 0.0
      %1403 = vmatmul.mubr.f32.gmra.mrb[0].mxu0 %v1193
      %v1404 = vpop.f32.mrb[0].mxu0
      %v1405 = vadd.f32 0.0, %v1404
      %v1406 = vpop.f32.mrb[0].mxu0
      %1407 = vmatprep.mubr.f32.mxu0 0.0
      %1408 = vmatmul.mubr.f32.gmra.mrb[0].mxu0 %v1195
      %v1409 = vpop.f32.mrb[0].mxu0
      %v1410 = vadd.f32 0.0, %v1409
      %v1411 = vpop.f32.mrb[0].mxu0
      %1412 = vmatprep.mubr.f32.mxu0 0.0
      %1413 = vmatmul.mubr.f32.gmra.mrb[0].mxu0 %v1197
      %v1414 = vpop.f32.mrb[0].mxu0
      %v1415 = vadd.f32 0.0, %v1414
      %v1416 = vpop.f32.mrb[0].mxu0
      %1417 = vmatprep.mubr.f32.mxu0 0.0
      %1418 = vmatmul.mubr.f32.gmra.mrb[0].mxu0 %v1199
      %v1419 = vpop.f32.mrb[0].mxu0
      %v1420 = vadd.f32 0.0, %v1419
      %v1421 = vpop.f32.mrb[0].mxu0
      %1422 = vmatprep.mubr.f32.mxu0 0.0
      %1423 = vmatmul.mubr.f32.gmra.mrb[0].mxu0 %v1201
      %v1424 = vpop.f32.mrb[0].mxu0
      %v1425 = vadd.f32 0.0, %v1424
      %v1426 = vpop.f32.mrb[0].mxu0
      %1427 = vmatprep.mubr.f32.mxu0 0.0
      %1428 = vmatmul.mubr.f32.gmra.mrb[0].mxu0 %v1203
      %v1429 = vpop.f32.mrb[0].mxu0
      %v1430 = vadd.f32 0.0, %v1429
      %v1431 = vpop.f32.mrb[0].mxu0
      %1432 = vdwg.mxu0
      %v1433 = vadd.f32 %v902, %v1275
      %v1434 = vadd.f32 %v907, %v1280
      %v1435 = vadd.f32 %v912, %v1285
      %v1436 = vadd.f32 %v917, %v1290
      %v1437 = vadd.f32 %v922, %v1295
      %v1438 = vadd.f32 %v927, %v1300
      %v1439 = vadd.f32 %v932, %v1305
      %v1440 = vadd.f32 %v937, %v1310
      %v1441 = vadd.f32 %v942, %v1315
      %v1442 = vadd.f32 %v947, %v1320
      %v1443 = vadd.f32 %v952, %v1325
      %v1444 = vadd.f32 %v957, %v1330
      %v1445 = vadd.f32 %v962, %v1335
      %v1446 = vadd.f32 %v967, %v1340
      %v1447 = vadd.f32 %v972, %v1345
      %v1448 = vadd.f32 %v977, %v1350
      %v1449 = vadd.f32 %v982, %v1355
      %v1450 = vadd.f32 %v987, %v1360
      %v1451 = vadd.f32 %v992, %v1365
      %v1452 = vadd.f32 %v997, %v1370
      %v1453 = vadd.f32 %v1002, %v1375
      %v1454 = vadd.f32 %v1007, %v1380
      %v1455 = vadd.f32 %v1012, %v1385
      %v1456 = vadd.f32 %v1017, %v1390
      %v1457 = vadd.f32 %v1022, %v1395
      %v1458 = vadd.f32 %v1027, %v1400
      %v1459 = vadd.f32 %v1032, %v1405
      %v1460 = vadd.f32 %v1037, %v1410
      %v1461 = vadd.f32 %v1042, %v1415
      %v1462 = vadd.f32 %v1047, %v1420
      %v1463 = vadd.f32 %v1052, %v1425
      %v1464 = vadd.f32 %v1057, %v1430
      %v1466 = vsel %vm474, %v343, 0
      %v1468 = vsel %vm474, %v293, 0
      %v1471 = vsel %vm539, %v204, 0
      %1473 = vmatprep.subr.mxu0 0.0
      %1474 = vmatpush1.msra.mxu0 %v1471
      %1475 = vmatprep.subr.mxu0 0.0
      %1476 = vmatpush1.msra.mxu0 0.0
      %1477 = vmatprep.subr.mxu0 0.0
      %1478 = vmatpush1.msra.mxu0 0.0
      %1479 = vmatprep.subr.mxu0 0.0
      %1480 = vmatpush1.msra.mxu0 0.0
      %1481 = vmatprep.subr.mxu0 0.0
      %1482 = vmatpush1.msra.mxu0 0.0
      %1483 = vmatprep.subr.mxu0 0.0
      %1484 = vmatpush1.msra.mxu0 0.0
      %1485 = vmatprep.subr.mxu0 0.0
      %1486 = vmatpush1.msra.mxu0 0.0
      %1487 = vmatprep.subr.mxu0 0.0
      %1488 = vmatpush1.msra.mxu0 0.0
      %1489 = vmatprep.subr.mxu0 0.0
      %1490 = vmatpush1.msra.mxu0 0.0
      %1491 = vmatprep.subr.mxu0 0.0
      %1492 = vmatpush1.msra.mxu0 0.0
      %1493 = vmatprep.subr.mxu0 0.0
      %1494 = vmatpush1.msra.mxu0 0.0
      %1495 = vmatprep.subr.mxu0 0.0
      %1496 = vmatpush1.msra.mxu0 0.0
      %1497 = vmatprep.subr.mxu0 0.0
      %1498 = vmatpush1.msra.mxu0 0.0
      %1499 = vmatprep.subr.mxu0 0.0
      %1500 = vmatpush1.msra.mxu0 0.0
      %1501 = vmatprep.subr.mxu0 0.0
      %1502 = vmatpush1.msra.mxu0 0.0
      %1503 = vmatprep.subr.mxu0 0.0
      %1504 = vmatpush1.msra.mxu0 0.0
      %1505 = vmatprep.subr.mxu0 0.0
      %1506 = vmatpush1.msra.mxu0 0.0
      %1507 = vmatprep.subr.mxu0 0.0
      %1508 = vmatpush1.msra.mxu0 0.0
      %1509 = vmatprep.subr.mxu0 0.0
      %1510 = vmatpush1.msra.mxu0 0.0
      %1511 = vmatprep.subr.mxu0 0.0
      %1512 = vmatpush1.msra.mxu0 0.0
      %1513 = vmatprep.subr.mxu0 0.0
      %1514 = vmatpush1.msra.mxu0 0.0
      %1515 = vmatprep.subr.mxu0 0.0
      %1516 = vmatpush1.msra.mxu0 0.0
      %1517 = vmatprep.subr.mxu0 0.0
      %1518 = vmatpush1.msra.mxu0 0.0
      %1519 = vmatprep.subr.mxu0 0.0
      %1520 = vmatpush1.msra.mxu0 0.0
      %1521 = vmatprep.subr.mxu0 0.0
      %1522 = vmatpush1.msra.mxu0 0.0
      %1523 = vmatprep.subr.mxu0 0.0
      %1524 = vmatpush1.msra.mxu0 0.0
      %1525 = vmatprep.subr.mxu0 0.0
      %1526 = vmatpush1.msra.mxu0 0.0
      %1527 = vmatprep.subr.mxu0 0.0
      %1528 = vmatpush1.msra.mxu0 0.0
      %1529 = vmatprep.subr.mxu0 0.0
      %1530 = vmatpush1.msra.mxu0 0.0
      %1531 = vmatprep.subr.mxu0 0.0
      %1532 = vmatpush1.msra.mxu0 0.0
      %1533 = vmatprep.subr.mxu0 0.0
      %1534 = vmatpush1.msra.mxu0 0.0
      %1535 = vmatprep.subr.mxu0 0.0
      %1536 = vmatpush1.msra.mxu0 0.0
      %1537 = vmatprep.mubr.f32.mxu0 0.0
      %1538 = vmatmul.mubr.f32.gmra.mrb[0].mxu0 %v772
      %v1539 = vpop.f32.mrb[0].mxu0
      %v1540 = vadd.f32 0.0, %v1539
      %v1541 = vpop.f32.mrb[0].mxu0
      %1542 = vmatprep.mubr.f32.mxu0 0.0
      %1543 = vmatmul.mubr.f32.gmra.mrb[0].mxu0 %v774
      %v1544 = vpop.f32.mrb[0].mxu0
      %v1545 = vadd.f32 0.0, %v1544
      %v1546 = vpop.f32.mrb[0].mxu0
      %1547 = vmatprep.mubr.f32.mxu0 0.0
      %1548 = vmatmul.mubr.f32.gmra.mrb[0].mxu0 %v776
      %v1549 = vpop.f32.mrb[0].mxu0
      %v1550 = vadd.f32 0.0, %v1549
      %v1551 = vpop.f32.mrb[0].mxu0
      %1552 = vmatprep.mubr.f32.mxu0 0.0
      %1553 = vmatmul.mubr.f32.gmra.mrb[0].mxu0 %v778
      %v1554 = vpop.f32.mrb[0].mxu0
      %v1555 = vadd.f32 0.0, %v1554
      %v1556 = vpop.f32.mrb[0].mxu0
      %1557 = vmatprep.mubr.f32.mxu0 0.0
      %1558 = vmatmul.mubr.f32.gmra.mrb[0].mxu0 %v780
      %v1559 = vpop.f32.mrb[0].mxu0
      %v1560 = vadd.f32 0.0, %v1559
      %v1561 = vpop.f32.mrb[0].mxu0
      %1562 = vmatprep.mubr.f32.mxu0 0.0
      %1563 = vmatmul.mubr.f32.gmra.mrb[0].mxu0 %v782
      %v1564 = vpop.f32.mrb[0].mxu0
      %v1565 = vadd.f32 0.0, %v1564
      %v1566 = vpop.f32.mrb[0].mxu0
      %1567 = vmatprep.mubr.f32.mxu0 0.0
      %1568 = vmatmul.mubr.f32.gmra.mrb[0].mxu0 %v784
      %v1569 = vpop.f32.mrb[0].mxu0
      %v1570 = vadd.f32 0.0, %v1569
      %v1571 = vpop.f32.mrb[0].mxu0
      %1572 = vmatprep.mubr.f32.mxu0 0.0
      %1573 = vmatmul.mubr.f32.gmra.mrb[0].mxu0 %v786
      %v1574 = vpop.f32.mrb[0].mxu0
      %v1575 = vadd.f32 0.0, %v1574
      %v1576 = vpop.f32.mrb[0].mxu0
      %1577 = vmatprep.mubr.f32.mxu0 0.0
      %1578 = vmatmul.mubr.f32.gmra.mrb[0].mxu0 %v788
      %v1579 = vpop.f32.mrb[0].mxu0
      %v1580 = vadd.f32 0.0, %v1579
      %v1581 = vpop.f32.mrb[0].mxu0
      %1582 = vmatprep.mubr.f32.mxu0 0.0
      %1583 = vmatmul.mubr.f32.gmra.mrb[0].mxu0 %v790
      %v1584 = vpop.f32.mrb[0].mxu0
      %v1585 = vadd.f32 0.0, %v1584
      %v1586 = vpop.f32.mrb[0].mxu0
      %1587 = vmatprep.mubr.f32.mxu0 0.0
      %1588 = vmatmul.mubr.f32.gmra.mrb[0].mxu0 %v792
      %v1589 = vpop.f32.mrb[0].mxu0
      %v1590 = vadd.f32 0.0, %v1589
      %v1591 = vpop.f32.mrb[0].mxu0
      %1592 = vmatprep.mubr.f32.mxu0 0.0
      %1593 = vmatmul.mubr.f32.gmra.mrb[0].mxu0 %v794
      %v1594 = vpop.f32.mrb[0].mxu0
      %v1595 = vadd.f32 0.0, %v1594
      %v1596 = vpop.f32.mrb[0].mxu0
      %1597 = vmatprep.mubr.f32.mxu0 0.0
      %1598 = vmatmul.mubr.f32.gmra.mrb[0].mxu0 %v796
      %v1599 = vpop.f32.mrb[0].mxu0
      %v1600 = vadd.f32 0.0, %v1599
      %v1601 = vpop.f32.mrb[0].mxu0
      %1602 = vmatprep.mubr.f32.mxu0 0.0
      %1603 = vmatmul.mubr.f32.gmra.mrb[0].mxu0 %v798
      %v1604 = vpop.f32.mrb[0].mxu0
      %v1605 = vadd.f32 0.0, %v1604
      %v1606 = vpop.f32.mrb[0].mxu0
      %1607 = vmatprep.mubr.f32.mxu0 0.0
      %1608 = vmatmul.mubr.f32.gmra.mrb[0].mxu0 %v800
      %v1609 = vpop.f32.mrb[0].mxu0
      %v1610 = vadd.f32 0.0, %v1609
      %v1611 = vpop.f32.mrb[0].mxu0
      %1612 = vmatprep.mubr.f32.mxu0 0.0
      %1613 = vmatmul.mubr.f32.gmra.mrb[0].mxu0 %v802
      %v1614 = vpop.f32.mrb[0].mxu0
      %v1615 = vadd.f32 0.0, %v1614
      %v1616 = vpop.f32.mrb[0].mxu0
      %1617 = vmatprep.mubr.f32.mxu0 0.0
      %1618 = vmatmul.mubr.f32.gmra.mrb[0].mxu0 %v804
      %v1619 = vpop.f32.mrb[0].mxu0
      %v1620 = vadd.f32 0.0, %v1619
      %v1621 = vpop.f32.mrb[0].mxu0
      %1622 = vmatprep.mubr.f32.mxu0 0.0
      %1623 = vmatmul.mubr.f32.gmra.mrb[0].mxu0 %v806
      %v1624 = vpop.f32.mrb[0].mxu0
      %v1625 = vadd.f32 0.0, %v1624
      %v1626 = vpop.f32.mrb[0].mxu0
      %1627 = vmatprep.mubr.f32.mxu0 0.0
      %1628 = vmatmul.mubr.f32.gmra.mrb[0].mxu0 %v808
      %v1629 = vpop.f32.mrb[0].mxu0
      %v1630 = vadd.f32 0.0, %v1629
      %v1631 = vpop.f32.mrb[0].mxu0
      %1632 = vmatprep.mubr.f32.mxu0 0.0
      %1633 = vmatmul.mubr.f32.gmra.mrb[0].mxu0 %v810
      %v1634 = vpop.f32.mrb[0].mxu0
      %v1635 = vadd.f32 0.0, %v1634
      %v1636 = vpop.f32.mrb[0].mxu0
      %1637 = vmatprep.mubr.f32.mxu0 0.0
      %1638 = vmatmul.mubr.f32.gmra.mrb[0].mxu0 %v812
      %v1639 = vpop.f32.mrb[0].mxu0
      %v1640 = vadd.f32 0.0, %v1639
      %v1641 = vpop.f32.mrb[0].mxu0
      %1642 = vmatprep.mubr.f32.mxu0 0.0
      %1643 = vmatmul.mubr.f32.gmra.mrb[0].mxu0 %v814
      %v1644 = vpop.f32.mrb[0].mxu0
      %v1645 = vadd.f32 0.0, %v1644
      %v1646 = vpop.f32.mrb[0].mxu0
      %1647 = vmatprep.mubr.f32.mxu0 0.0
      %1648 = vmatmul.mubr.f32.gmra.mrb[0].mxu0 %v816
      %v1649 = vpop.f32.mrb[0].mxu0
      %v1650 = vadd.f32 0.0, %v1649
      %v1651 = vpop.f32.mrb[0].mxu0
      %1652 = vmatprep.mubr.f32.mxu0 0.0
      %1653 = vmatmul.mubr.f32.gmra.mrb[0].mxu0 %v818
      %v1654 = vpop.f32.mrb[0].mxu0
      %v1655 = vadd.f32 0.0, %v1654
      %v1656 = vpop.f32.mrb[0].mxu0
      %1657 = vmatprep.mubr.f32.mxu0 0.0
      %1658 = vmatmul.mubr.f32.gmra.mrb[0].mxu0 %v820
      %v1659 = vpop.f32.mrb[0].mxu0
      %v1660 = vadd.f32 0.0, %v1659
      %v1661 = vpop.f32.mrb[0].mxu0
      %1662 = vmatprep.mubr.f32.mxu0 0.0
      %1663 = vmatmul.mubr.f32.gmra.mrb[0].mxu0 %v822
      %v1664 = vpop.f32.mrb[0].mxu0
      %v1665 = vadd.f32 0.0, %v1664
      %v1666 = vpop.f32.mrb[0].mxu0
      %1667 = vmatprep.mubr.f32.mxu0 0.0
      %1668 = vmatmul.mubr.f32.gmra.mrb[0].mxu0 %v824
      %v1669 = vpop.f32.mrb[0].mxu0
      %v1670 = vadd.f32 0.0, %v1669
      %v1671 = vpop.f32.mrb[0].mxu0
      %1672 = vmatprep.mubr.f32.mxu0 0.0
      %1673 = vmatmul.mubr.f32.gmra.mrb[0].mxu0 %v826
      %v1674 = vpop.f32.mrb[0].mxu0
      %v1675 = vadd.f32 0.0, %v1674
      %v1676 = vpop.f32.mrb[0].mxu0
      %1677 = vmatprep.mubr.f32.mxu0 0.0
      %1678 = vmatmul.mubr.f32.gmra.mrb[0].mxu0 %v828
      %v1679 = vpop.f32.mrb[0].mxu0
      %v1680 = vadd.f32 0.0, %v1679
      %v1681 = vpop.f32.mrb[0].mxu0
      %1682 = vmatprep.mubr.f32.mxu0 0.0
      %1683 = vmatmul.mubr.f32.gmra.mrb[0].mxu0 %v830
      %v1684 = vpop.f32.mrb[0].mxu0
      %v1685 = vadd.f32 0.0, %v1684
      %v1686 = vpop.f32.mrb[0].mxu0
      %1687 = vmatprep.mubr.f32.mxu0 0.0
      %1688 = vmatmul.mubr.f32.gmra.mrb[0].mxu0 %v1466
      %v1689 = vpop.f32.mrb[0].mxu0
      %v1690 = vadd.f32 0.0, %v1689
      %v1691 = vpop.f32.mrb[0].mxu0
      %1692 = vmatprep.mubr.f32.mxu0 0.0
      %1693 = vmatmul.mubr.f32.gmra.mrb[0].mxu0 %v1468
      %v1694 = vpop.f32.mrb[0].mxu0
      %v1695 = vadd.f32 0.0, %v1694
      %v1696 = vpop.f32.mrb[0].mxu0
      %1697 = vdwg.mxu0
      %v1698 = vadd.f32 %v1433, %v1540
      %v1699 = vadd.f32 %v1434, %v1545
      %v1700 = vadd.f32 %v1435, %v1550
      %v1701 = vadd.f32 %v1436, %v1555
      %v1702 = vadd.f32 %v1437, %v1560
      %v1703 = vadd.f32 %v1438, %v1565
      %v1704 = vadd.f32 %v1439, %v1570
      %v1705 = vadd.f32 %v1440, %v1575
      %v1706 = vadd.f32 %v1441, %v1580
      %v1707 = vadd.f32 %v1442, %v1585
      %v1708 = vadd.f32 %v1443, %v1590
      %v1709 = vadd.f32 %v1444, %v1595
      %v1710 = vadd.f32 %v1445, %v1600
      %v1711 = vadd.f32 %v1446, %v1605
      %v1712 = vadd.f32 %v1447, %v1610
      %v1713 = vadd.f32 %v1448, %v1615
      %v1714 = vadd.f32 %v1449, %v1620
      %v1715 = vadd.f32 %v1450, %v1625
      %v1716 = vadd.f32 %v1451, %v1630
      %v1717 = vadd.f32 %v1452, %v1635
      %v1718 = vadd.f32 %v1453, %v1640
      %v1719 = vadd.f32 %v1454, %v1645
      %v1720 = vadd.f32 %v1455, %v1650
      %v1721 = vadd.f32 %v1456, %v1655
      %v1722 = vadd.f32 %v1457, %v1660
      %v1723 = vadd.f32 %v1458, %v1665
      %v1724 = vadd.f32 %v1459, %v1670
      %v1725 = vadd.f32 %v1460, %v1675
      %v1726 = vadd.f32 %v1461, %v1680
      %v1727 = vadd.f32 %v1462, %v1685
      %v1728 = vadd.f32 %v1463, %v1690
      %v1729 = vadd.f32 %v1464, %v1695
      %v1731 = vrot.slane %v343, 1
      %v1732 = vrot.slane %v293, 1
      %v1733 = vsel %vm393, %v1731, %v1732
      %v1734 = vrot.slane %v360, 1
      %v1735 = vsel %vm393, %v1732, %v1734
      %v1736 = vsel %vm474, %v1733, 0
      %v1738 = vsel %vm474, %v1735, 0
      %v1741 = vsel %vm539, %v205, 0
      %1743 = vmatprep.subr.mxu0 0.0
      %1744 = vmatpush1.msra.mxu0 %v1741
      %1745 = vmatprep.subr.mxu0 0.0
      %1746 = vmatpush1.msra.mxu0 0.0
      %1747 = vmatprep.subr.mxu0 0.0
      %1748 = vmatpush1.msra.mxu0 0.0
      %1749 = vmatprep.subr.mxu0 0.0
      %1750 = vmatpush1.msra.mxu0 0.0
      %1751 = vmatprep.subr.mxu0 0.0
      %1752 = vmatpush1.msra.mxu0 0.0
      %1753 = vmatprep.subr.mxu0 0.0
      %1754 = vmatpush1.msra.mxu0 0.0
      %1755 = vmatprep.subr.mxu0 0.0
      %1756 = vmatpush1.msra.mxu0 0.0
      %1757 = vmatprep.subr.mxu0 0.0
      %1758 = vmatpush1.msra.mxu0 0.0
      %1759 = vmatprep.subr.mxu0 0.0
      %1760 = vmatpush1.msra.mxu0 0.0
      %1761 = vmatprep.subr.mxu0 0.0
      %1762 = vmatpush1.msra.mxu0 0.0
      %1763 = vmatprep.subr.mxu0 0.0
      %1764 = vmatpush1.msra.mxu0 0.0
      %1765 = vmatprep.subr.mxu0 0.0
      %1766 = vmatpush1.msra.mxu0 0.0
      %1767 = vmatprep.subr.mxu0 0.0
      %1768 = vmatpush1.msra.mxu0 0.0
      %1769 = vmatprep.subr.mxu0 0.0
      %1770 = vmatpush1.msra.mxu0 0.0
      %1771 = vmatprep.subr.mxu0 0.0
      %1772 = vmatpush1.msra.mxu0 0.0
      %1773 = vmatprep.subr.mxu0 0.0
      %1774 = vmatpush1.msra.mxu0 0.0
      %1775 = vmatprep.subr.mxu0 0.0
      %1776 = vmatpush1.msra.mxu0 0.0
      %1777 = vmatprep.subr.mxu0 0.0
      %1778 = vmatpush1.msra.mxu0 0.0
      %1779 = vmatprep.subr.mxu0 0.0
      %1780 = vmatpush1.msra.mxu0 0.0
      %1781 = vmatprep.subr.mxu0 0.0
      %1782 = vmatpush1.msra.mxu0 0.0
      %1783 = vmatprep.subr.mxu0 0.0
      %1784 = vmatpush1.msra.mxu0 0.0
      %1785 = vmatprep.subr.mxu0 0.0
      %1786 = vmatpush1.msra.mxu0 0.0
      %1787 = vmatprep.subr.mxu0 0.0
      %1788 = vmatpush1.msra.mxu0 0.0
      %1789 = vmatprep.subr.mxu0 0.0
      %1790 = vmatpush1.msra.mxu0 0.0
      %1791 = vmatprep.subr.mxu0 0.0
      %1792 = vmatpush1.msra.mxu0 0.0
      %1793 = vmatprep.subr.mxu0 0.0
      %1794 = vmatpush1.msra.mxu0 0.0
      %1795 = vmatprep.subr.mxu0 0.0
      %1796 = vmatpush1.msra.mxu0 0.0
      %1797 = vmatprep.subr.mxu0 0.0
      %1798 = vmatpush1.msra.mxu0 0.0
      %1799 = vmatprep.subr.mxu0 0.0
      %1800 = vmatpush1.msra.mxu0 0.0
      %1801 = vmatprep.subr.mxu0 0.0
      %1802 = vmatpush1.msra.mxu0 0.0
      %1803 = vmatprep.subr.mxu0 0.0
      %1804 = vmatpush1.msra.mxu0 0.0
      %1805 = vmatprep.subr.mxu0 0.0
      %1806 = vmatpush1.msra.mxu0 0.0
      %1807 = vmatprep.mubr.f32.mxu0 0.0
      %1808 = vmatmul.mubr.f32.gmra.mrb[0].mxu0 %v479
      %v1809 = vpop.f32.mrb[0].mxu0
      %v1810 = vadd.f32 0.0, %v1809
      %v1811 = vpop.f32.mrb[0].mxu0
      %1812 = vmatprep.mubr.f32.mxu0 0.0
      %1813 = vmatmul.mubr.f32.gmra.mrb[0].mxu0 %v481
      %v1814 = vpop.f32.mrb[0].mxu0
      %v1815 = vadd.f32 0.0, %v1814
      %v1816 = vpop.f32.mrb[0].mxu0
      %1817 = vmatprep.mubr.f32.mxu0 0.0
      %1818 = vmatmul.mubr.f32.gmra.mrb[0].mxu0 %v483
      %v1819 = vpop.f32.mrb[0].mxu0
      %v1820 = vadd.f32 0.0, %v1819
      %v1821 = vpop.f32.mrb[0].mxu0
      %1822 = vmatprep.mubr.f32.mxu0 0.0
      %1823 = vmatmul.mubr.f32.gmra.mrb[0].mxu0 %v485
      %v1824 = vpop.f32.mrb[0].mxu0
      %v1825 = vadd.f32 0.0, %v1824
      %v1826 = vpop.f32.mrb[0].mxu0
      %1827 = vmatprep.mubr.f32.mxu0 0.0
      %1828 = vmatmul.mubr.f32.gmra.mrb[0].mxu0 %v487
      %v1829 = vpop.f32.mrb[0].mxu0
      %v1830 = vadd.f32 0.0, %v1829
      %v1831 = vpop.f32.mrb[0].mxu0
      %1832 = vmatprep.mubr.f32.mxu0 0.0
      %1833 = vmatmul.mubr.f32.gmra.mrb[0].mxu0 %v489
      %v1834 = vpop.f32.mrb[0].mxu0
      %v1835 = vadd.f32 0.0, %v1834
      %v1836 = vpop.f32.mrb[0].mxu0
      %1837 = vmatprep.mubr.f32.mxu0 0.0
      %1838 = vmatmul.mubr.f32.gmra.mrb[0].mxu0 %v491
      %v1839 = vpop.f32.mrb[0].mxu0
      %v1840 = vadd.f32 0.0, %v1839
      %v1841 = vpop.f32.mrb[0].mxu0
      %1842 = vmatprep.mubr.f32.mxu0 0.0
      %1843 = vmatmul.mubr.f32.gmra.mrb[0].mxu0 %v493
      %v1844 = vpop.f32.mrb[0].mxu0
      %v1845 = vadd.f32 0.0, %v1844
      %v1846 = vpop.f32.mrb[0].mxu0
      %1847 = vmatprep.mubr.f32.mxu0 0.0
      %1848 = vmatmul.mubr.f32.gmra.mrb[0].mxu0 %v495
      %v1849 = vpop.f32.mrb[0].mxu0
      %v1850 = vadd.f32 0.0, %v1849
      %v1851 = vpop.f32.mrb[0].mxu0
      %1852 = vmatprep.mubr.f32.mxu0 0.0
      %1853 = vmatmul.mubr.f32.gmra.mrb[0].mxu0 %v497
      %v1854 = vpop.f32.mrb[0].mxu0
      %v1855 = vadd.f32 0.0, %v1854
      %v1856 = vpop.f32.mrb[0].mxu0
      %1857 = vmatprep.mubr.f32.mxu0 0.0
      %1858 = vmatmul.mubr.f32.gmra.mrb[0].mxu0 %v499
      %v1859 = vpop.f32.mrb[0].mxu0
      %v1860 = vadd.f32 0.0, %v1859
      %v1861 = vpop.f32.mrb[0].mxu0
      %1862 = vmatprep.mubr.f32.mxu0 0.0
      %1863 = vmatmul.mubr.f32.gmra.mrb[0].mxu0 %v501
      %v1864 = vpop.f32.mrb[0].mxu0
      %v1865 = vadd.f32 0.0, %v1864
      %v1866 = vpop.f32.mrb[0].mxu0
      %1867 = vmatprep.mubr.f32.mxu0 0.0
      %1868 = vmatmul.mubr.f32.gmra.mrb[0].mxu0 %v503
      %v1869 = vpop.f32.mrb[0].mxu0
      %v1870 = vadd.f32 0.0, %v1869
      %v1871 = vpop.f32.mrb[0].mxu0
      %1872 = vmatprep.mubr.f32.mxu0 0.0
      %1873 = vmatmul.mubr.f32.gmra.mrb[0].mxu0 %v505
      %v1874 = vpop.f32.mrb[0].mxu0
      %v1875 = vadd.f32 0.0, %v1874
      %v1876 = vpop.f32.mrb[0].mxu0
      %1877 = vmatprep.mubr.f32.mxu0 0.0
      %1878 = vmatmul.mubr.f32.gmra.mrb[0].mxu0 %v507
      %v1879 = vpop.f32.mrb[0].mxu0
      %v1880 = vadd.f32 0.0, %v1879
      %v1881 = vpop.f32.mrb[0].mxu0
      %1882 = vmatprep.mubr.f32.mxu0 0.0
      %1883 = vmatmul.mubr.f32.gmra.mrb[0].mxu0 %v509
      %v1884 = vpop.f32.mrb[0].mxu0
      %v1885 = vadd.f32 0.0, %v1884
      %v1886 = vpop.f32.mrb[0].mxu0
      %1887 = vmatprep.mubr.f32.mxu0 0.0
      %1888 = vmatmul.mubr.f32.gmra.mrb[0].mxu0 %v511
      %v1889 = vpop.f32.mrb[0].mxu0
      %v1890 = vadd.f32 0.0, %v1889
      %v1891 = vpop.f32.mrb[0].mxu0
      %1892 = vmatprep.mubr.f32.mxu0 0.0
      %1893 = vmatmul.mubr.f32.gmra.mrb[0].mxu0 %v513
      %v1894 = vpop.f32.mrb[0].mxu0
      %v1895 = vadd.f32 0.0, %v1894
      %v1896 = vpop.f32.mrb[0].mxu0
      %1897 = vmatprep.mubr.f32.mxu0 0.0
      %1898 = vmatmul.mubr.f32.gmra.mrb[0].mxu0 %v515
      %v1899 = vpop.f32.mrb[0].mxu0
      %v1900 = vadd.f32 0.0, %v1899
      %v1901 = vpop.f32.mrb[0].mxu0
      %1902 = vmatprep.mubr.f32.mxu0 0.0
      %1903 = vmatmul.mubr.f32.gmra.mrb[0].mxu0 %v517
      %v1904 = vpop.f32.mrb[0].mxu0
      %v1905 = vadd.f32 0.0, %v1904
      %v1906 = vpop.f32.mrb[0].mxu0
      %1907 = vmatprep.mubr.f32.mxu0 0.0
      %1908 = vmatmul.mubr.f32.gmra.mrb[0].mxu0 %v519
      %v1909 = vpop.f32.mrb[0].mxu0
      %v1910 = vadd.f32 0.0, %v1909
      %v1911 = vpop.f32.mrb[0].mxu0
      %1912 = vmatprep.mubr.f32.mxu0 0.0
      %1913 = vmatmul.mubr.f32.gmra.mrb[0].mxu0 %v521
      %v1914 = vpop.f32.mrb[0].mxu0
      %v1915 = vadd.f32 0.0, %v1914
      %v1916 = vpop.f32.mrb[0].mxu0
      %1917 = vmatprep.mubr.f32.mxu0 0.0
      %1918 = vmatmul.mubr.f32.gmra.mrb[0].mxu0 %v523
      %v1919 = vpop.f32.mrb[0].mxu0
      %v1920 = vadd.f32 0.0, %v1919
      %v1921 = vpop.f32.mrb[0].mxu0
      %1922 = vmatprep.mubr.f32.mxu0 0.0
      %1923 = vmatmul.mubr.f32.gmra.mrb[0].mxu0 %v525
      %v1924 = vpop.f32.mrb[0].mxu0
      %v1925 = vadd.f32 0.0, %v1924
      %v1926 = vpop.f32.mrb[0].mxu0
      %1927 = vmatprep.mubr.f32.mxu0 0.0
      %1928 = vmatmul.mubr.f32.gmra.mrb[0].mxu0 %v527
      %v1929 = vpop.f32.mrb[0].mxu0
      %v1930 = vadd.f32 0.0, %v1929
      %v1931 = vpop.f32.mrb[0].mxu0
      %1932 = vmatprep.mubr.f32.mxu0 0.0
      %1933 = vmatmul.mubr.f32.gmra.mrb[0].mxu0 %v529
      %v1934 = vpop.f32.mrb[0].mxu0
      %v1935 = vadd.f32 0.0, %v1934
      %v1936 = vpop.f32.mrb[0].mxu0
      %1937 = vmatprep.mubr.f32.mxu0 0.0
      %1938 = vmatmul.mubr.f32.gmra.mrb[0].mxu0 %v531
      %v1939 = vpop.f32.mrb[0].mxu0
      %v1940 = vadd.f32 0.0, %v1939
      %v1941 = vpop.f32.mrb[0].mxu0
      %1942 = vmatprep.mubr.f32.mxu0 0.0
      %1943 = vmatmul.mubr.f32.gmra.mrb[0].mxu0 %v533
      %v1944 = vpop.f32.mrb[0].mxu0
      %v1945 = vadd.f32 0.0, %v1944
      %v1946 = vpop.f32.mrb[0].mxu0
      %1947 = vmatprep.mubr.f32.mxu0 0.0
      %1948 = vmatmul.mubr.f32.gmra.mrb[0].mxu0 %v535
      %v1949 = vpop.f32.mrb[0].mxu0
      %v1950 = vadd.f32 0.0, %v1949
      %v1951 = vpop.f32.mrb[0].mxu0
      %1952 = vmatprep.mubr.f32.mxu0 0.0
      %1953 = vmatmul.mubr.f32.gmra.mrb[0].mxu0 %v537
      %v1954 = vpop.f32.mrb[0].mxu0
      %v1955 = vadd.f32 0.0, %v1954
      %v1956 = vpop.f32.mrb[0].mxu0
      %1957 = vmatprep.mubr.f32.mxu0 0.0
      %1958 = vmatmul.mubr.f32.gmra.mrb[0].mxu0 %v1736
      %v1959 = vpop.f32.mrb[0].mxu0
      %v1960 = vadd.f32 0.0, %v1959
      %v1961 = vpop.f32.mrb[0].mxu0
      %1962 = vmatprep.mubr.f32.mxu0 0.0
      %1963 = vmatmul.mubr.f32.gmra.mrb[0].mxu0 %v1738
      %v1964 = vpop.f32.mrb[0].mxu0
      %v1965 = vadd.f32 0.0, %v1964
      %v1966 = vpop.f32.mrb[0].mxu0
      %1967 = vdwg.mxu0
      %v1968 = vadd.f32 %v1698, %v1810
      %v1969 = vadd.f32 %v1699, %v1815
      %v1970 = vadd.f32 %v1700, %v1820
      %v1971 = vadd.f32 %v1701, %v1825
      %v1972 = vadd.f32 %v1702, %v1830
      %v1973 = vadd.f32 %v1703, %v1835
      %v1974 = vadd.f32 %v1704, %v1840
      %v1975 = vadd.f32 %v1705, %v1845
      %v1976 = vadd.f32 %v1706, %v1850
      %v1977 = vadd.f32 %v1707, %v1855
      %v1978 = vadd.f32 %v1708, %v1860
      %v1979 = vadd.f32 %v1709, %v1865
      %v1980 = vadd.f32 %v1710, %v1870
      %v1981 = vadd.f32 %v1711, %v1875
      %v1982 = vadd.f32 %v1712, %v1880
      %v1983 = vadd.f32 %v1713, %v1885
      %v1984 = vadd.f32 %v1714, %v1890
      %v1985 = vadd.f32 %v1715, %v1895
      %v1986 = vadd.f32 %v1716, %v1900
      %v1987 = vadd.f32 %v1717, %v1905
      %v1988 = vadd.f32 %v1718, %v1910
      %v1989 = vadd.f32 %v1719, %v1915
      %v1990 = vadd.f32 %v1720, %v1920
      %v1991 = vadd.f32 %v1721, %v1925
      %v1992 = vadd.f32 %v1722, %v1930
      %v1993 = vadd.f32 %v1723, %v1935
      %v1994 = vadd.f32 %v1724, %v1940
      %v1995 = vadd.f32 %v1725, %v1945
      %v1996 = vadd.f32 %v1726, %v1950
      %v1997 = vadd.f32 %v1727, %v1955
      %v1998 = vadd.f32 %v1728, %v1960
      %v1999 = vadd.f32 %v1729, %v1965
      %v2000 = vrot.slane %v343, 2
      %v2001 = vrot.slane %v293, 2
      %v2002 = vsel %vm1060, %v2000, %v2001
      %v2003 = vrot.slane %v360, 2
      %v2004 = vsel %vm1060, %v2001, %v2003
      %v2005 = vsel %vm474, %v2002, 0
      %v2007 = vsel %vm474, %v2004, 0
      %v2010 = vsel %vm539, %v206, 0
      %2012 = vmatprep.subr.mxu0 0.0
      %2013 = vmatpush1.msra.mxu0 %v2010
      %2014 = vmatprep.subr.mxu0 0.0
      %2015 = vmatpush1.msra.mxu0 0.0
      %2016 = vmatprep.subr.mxu0 0.0
      %2017 = vmatpush1.msra.mxu0 0.0
      %2018 = vmatprep.subr.mxu0 0.0
      %2019 = vmatpush1.msra.mxu0 0.0
      %2020 = vmatprep.subr.mxu0 0.0
      %2021 = vmatpush1.msra.mxu0 0.0
      %2022 = vmatprep.subr.mxu0 0.0
      %2023 = vmatpush1.msra.mxu0 0.0
      %2024 = vmatprep.subr.mxu0 0.0
      %2025 = vmatpush1.msra.mxu0 0.0
      %2026 = vmatprep.subr.mxu0 0.0
      %2027 = vmatpush1.msra.mxu0 0.0
      %2028 = vmatprep.subr.mxu0 0.0
      %2029 = vmatpush1.msra.mxu0 0.0
      %2030 = vmatprep.subr.mxu0 0.0
      %2031 = vmatpush1.msra.mxu0 0.0
      %2032 = vmatprep.subr.mxu0 0.0
      %2033 = vmatpush1.msra.mxu0 0.0
      %2034 = vmatprep.subr.mxu0 0.0
      %2035 = vmatpush1.msra.mxu0 0.0
      %2036 = vmatprep.subr.mxu0 0.0
      %2037 = vmatpush1.msra.mxu0 0.0
      %2038 = vmatprep.subr.mxu0 0.0
      %2039 = vmatpush1.msra.mxu0 0.0
      %2040 = vmatprep.subr.mxu0 0.0
      %2041 = vmatpush1.msra.mxu0 0.0
      %2042 = vmatprep.subr.mxu0 0.0
      %2043 = vmatpush1.msra.mxu0 0.0
      %2044 = vmatprep.subr.mxu0 0.0
      %2045 = vmatpush1.msra.mxu0 0.0
      %2046 = vmatprep.subr.mxu0 0.0
      %2047 = vmatpush1.msra.mxu0 0.0
      %2048 = vmatprep.subr.mxu0 0.0
      %2049 = vmatpush1.msra.mxu0 0.0
      %2050 = vmatprep.subr.mxu0 0.0
      %2051 = vmatpush1.msra.mxu0 0.0
      %2052 = vmatprep.subr.mxu0 0.0
      %2053 = vmatpush1.msra.mxu0 0.0
      %2054 = vmatprep.subr.mxu0 0.0
      %2055 = vmatpush1.msra.mxu0 0.0
      %2056 = vmatprep.subr.mxu0 0.0
      %2057 = vmatpush1.msra.mxu0 0.0
      %2058 = vmatprep.subr.mxu0 0.0
      %2059 = vmatpush1.msra.mxu0 0.0
      %2060 = vmatprep.subr.mxu0 0.0
      %2061 = vmatpush1.msra.mxu0 0.0
      %2062 = vmatprep.subr.mxu0 0.0
      %2063 = vmatpush1.msra.mxu0 0.0
      %2064 = vmatprep.subr.mxu0 0.0
      %2065 = vmatpush1.msra.mxu0 0.0
      %2066 = vmatprep.subr.mxu0 0.0
      %2067 = vmatpush1.msra.mxu0 0.0
      %2068 = vmatprep.subr.mxu0 0.0
      %2069 = vmatpush1.msra.mxu0 0.0
      %2070 = vmatprep.subr.mxu0 0.0
      %2071 = vmatpush1.msra.mxu0 0.0
      %2072 = vmatprep.subr.mxu0 0.0
      %2073 = vmatpush1.msra.mxu0 0.0
      %2074 = vmatprep.subr.mxu0 0.0
      %2075 = vmatpush1.msra.mxu0 0.0
      %2076 = vmatprep.mubr.f32.mxu0 0.0
      %2077 = vmatmul.mubr.f32.gmra.mrb[0].mxu0 %v1145
      %v2078 = vpop.f32.mrb[0].mxu0
      %v2079 = vadd.f32 0.0, %v2078
      %v2080 = vpop.f32.mrb[0].mxu0
      %2081 = vmatprep.mubr.f32.mxu0 0.0
      %2082 = vmatmul.mubr.f32.gmra.mrb[0].mxu0 %v1147
      %v2083 = vpop.f32.mrb[0].mxu0
      %v2084 = vadd.f32 0.0, %v2083
      %v2085 = vpop.f32.mrb[0].mxu0
      %2086 = vmatprep.mubr.f32.mxu0 0.0
      %2087 = vmatmul.mubr.f32.gmra.mrb[0].mxu0 %v1149
      %v2088 = vpop.f32.mrb[0].mxu0
      %v2089 = vadd.f32 0.0, %v2088
      %v2090 = vpop.f32.mrb[0].mxu0
      %2091 = vmatprep.mubr.f32.mxu0 0.0
      %2092 = vmatmul.mubr.f32.gmra.mrb[0].mxu0 %v1151
      %v2093 = vpop.f32.mrb[0].mxu0
      %v2094 = vadd.f32 0.0, %v2093
      %v2095 = vpop.f32.mrb[0].mxu0
      %2096 = vmatprep.mubr.f32.mxu0 0.0
      %2097 = vmatmul.mubr.f32.gmra.mrb[0].mxu0 %v1153
      %v2098 = vpop.f32.mrb[0].mxu0
      %v2099 = vadd.f32 0.0, %v2098
      %v2100 = vpop.f32.mrb[0].mxu0
      %2101 = vmatprep.mubr.f32.mxu0 0.0
      %2102 = vmatmul.mubr.f32.gmra.mrb[0].mxu0 %v1155
      %v2103 = vpop.f32.mrb[0].mxu0
      %v2104 = vadd.f32 0.0, %v2103
      %v2105 = vpop.f32.mrb[0].mxu0
      %2106 = vmatprep.mubr.f32.mxu0 0.0
      %2107 = vmatmul.mubr.f32.gmra.mrb[0].mxu0 %v1157
      %v2108 = vpop.f32.mrb[0].mxu0
      %v2109 = vadd.f32 0.0, %v2108
      %v2110 = vpop.f32.mrb[0].mxu0
      %2111 = vmatprep.mubr.f32.mxu0 0.0
      %2112 = vmatmul.mubr.f32.gmra.mrb[0].mxu0 %v1159
      %v2113 = vpop.f32.mrb[0].mxu0
      %v2114 = vadd.f32 0.0, %v2113
      %v2115 = vpop.f32.mrb[0].mxu0
      %2116 = vmatprep.mubr.f32.mxu0 0.0
      %2117 = vmatmul.mubr.f32.gmra.mrb[0].mxu0 %v1161
      %v2118 = vpop.f32.mrb[0].mxu0
      %v2119 = vadd.f32 0.0, %v2118
      %v2120 = vpop.f32.mrb[0].mxu0
      %2121 = vmatprep.mubr.f32.mxu0 0.0
      %2122 = vmatmul.mubr.f32.gmra.mrb[0].mxu0 %v1163
      %v2123 = vpop.f32.mrb[0].mxu0
      %v2124 = vadd.f32 0.0, %v2123
      %v2125 = vpop.f32.mrb[0].mxu0
      %2126 = vmatprep.mubr.f32.mxu0 0.0
      %2127 = vmatmul.mubr.f32.gmra.mrb[0].mxu0 %v1165
      %v2128 = vpop.f32.mrb[0].mxu0
      %v2129 = vadd.f32 0.0, %v2128
      %v2130 = vpop.f32.mrb[0].mxu0
      %2131 = vmatprep.mubr.f32.mxu0 0.0
      %2132 = vmatmul.mubr.f32.gmra.mrb[0].mxu0 %v1167
      %v2133 = vpop.f32.mrb[0].mxu0
      %v2134 = vadd.f32 0.0, %v2133
      %v2135 = vpop.f32.mrb[0].mxu0
      %2136 = vmatprep.mubr.f32.mxu0 0.0
      %2137 = vmatmul.mubr.f32.gmra.mrb[0].mxu0 %v1169
      %v2138 = vpop.f32.mrb[0].mxu0
      %v2139 = vadd.f32 0.0, %v2138
      %v2140 = vpop.f32.mrb[0].mxu0
      %2141 = vmatprep.mubr.f32.mxu0 0.0
      %2142 = vmatmul.mubr.f32.gmra.mrb[0].mxu0 %v1171
      %v2143 = vpop.f32.mrb[0].mxu0
      %v2144 = vadd.f32 0.0, %v2143
      %v2145 = vpop.f32.mrb[0].mxu0
      %2146 = vmatprep.mubr.f32.mxu0 0.0
      %2147 = vmatmul.mubr.f32.gmra.mrb[0].mxu0 %v1173
      %v2148 = vpop.f32.mrb[0].mxu0
      %v2149 = vadd.f32 0.0, %v2148
      %v2150 = vpop.f32.mrb[0].mxu0
      %2151 = vmatprep.mubr.f32.mxu0 0.0
      %2152 = vmatmul.mubr.f32.gmra.mrb[0].mxu0 %v1175
      %v2153 = vpop.f32.mrb[0].mxu0
      %v2154 = vadd.f32 0.0, %v2153
      %v2155 = vpop.f32.mrb[0].mxu0
      %2156 = vmatprep.mubr.f32.mxu0 0.0
      %2157 = vmatmul.mubr.f32.gmra.mrb[0].mxu0 %v1177
      %v2158 = vpop.f32.mrb[0].mxu0
      %v2159 = vadd.f32 0.0, %v2158
      %v2160 = vpop.f32.mrb[0].mxu0
      %2161 = vmatprep.mubr.f32.mxu0 0.0
      %2162 = vmatmul.mubr.f32.gmra.mrb[0].mxu0 %v1179
      %v2163 = vpop.f32.mrb[0].mxu0
      %v2164 = vadd.f32 0.0, %v2163
      %v2165 = vpop.f32.mrb[0].mxu0
      %2166 = vmatprep.mubr.f32.mxu0 0.0
      %2167 = vmatmul.mubr.f32.gmra.mrb[0].mxu0 %v1181
      %v2168 = vpop.f32.mrb[0].mxu0
      %v2169 = vadd.f32 0.0, %v2168
      %v2170 = vpop.f32.mrb[0].mxu0
      %2171 = vmatprep.mubr.f32.mxu0 0.0
      %2172 = vmatmul.mubr.f32.gmra.mrb[0].mxu0 %v1183
      %v2173 = vpop.f32.mrb[0].mxu0
      %v2174 = vadd.f32 0.0, %v2173
      %v2175 = vpop.f32.mrb[0].mxu0
      %2176 = vmatprep.mubr.f32.mxu0 0.0
      %2177 = vmatmul.mubr.f32.gmra.mrb[0].mxu0 %v1185
      %v2178 = vpop.f32.mrb[0].mxu0
      %v2179 = vadd.f32 0.0, %v2178
      %v2180 = vpop.f32.mrb[0].mxu0
      %2181 = vmatprep.mubr.f32.mxu0 0.0
      %2182 = vmatmul.mubr.f32.gmra.mrb[0].mxu0 %v1187
      %v2183 = vpop.f32.mrb[0].mxu0
      %v2184 = vadd.f32 0.0, %v2183
      %v2185 = vpop.f32.mrb[0].mxu0
      %2186 = vmatprep.mubr.f32.mxu0 0.0
      %2187 = vmatmul.mubr.f32.gmra.mrb[0].mxu0 %v1189
      %v2188 = vpop.f32.mrb[0].mxu0
      %v2189 = vadd.f32 0.0, %v2188
      %v2190 = vpop.f32.mrb[0].mxu0
      %2191 = vmatprep.mubr.f32.mxu0 0.0
      %2192 = vmatmul.mubr.f32.gmra.mrb[0].mxu0 %v1191
      %v2193 = vpop.f32.mrb[0].mxu0
      %v2194 = vadd.f32 0.0, %v2193
      %v2195 = vpop.f32.mrb[0].mxu0
      %2196 = vmatprep.mubr.f32.mxu0 0.0
      %2197 = vmatmul.mubr.f32.gmra.mrb[0].mxu0 %v1193
      %v2198 = vpop.f32.mrb[0].mxu0
      %v2199 = vadd.f32 0.0, %v2198
      %v2200 = vpop.f32.mrb[0].mxu0
      %2201 = vmatprep.mubr.f32.mxu0 0.0
      %2202 = vmatmul.mubr.f32.gmra.mrb[0].mxu0 %v1195
      %v2203 = vpop.f32.mrb[0].mxu0
      %v2204 = vadd.f32 0.0, %v2203
      %v2205 = vpop.f32.mrb[0].mxu0
      %2206 = vmatprep.mubr.f32.mxu0 0.0
      %2207 = vmatmul.mubr.f32.gmra.mrb[0].mxu0 %v1197
      %v2208 = vpop.f32.mrb[0].mxu0
      %v2209 = vadd.f32 0.0, %v2208
      %v2210 = vpop.f32.mrb[0].mxu0
      %2211 = vmatprep.mubr.f32.mxu0 0.0
      %2212 = vmatmul.mubr.f32.gmra.mrb[0].mxu0 %v1199
      %v2213 = vpop.f32.mrb[0].mxu0
      %v2214 = vadd.f32 0.0, %v2213
      %v2215 = vpop.f32.mrb[0].mxu0
      %2216 = vmatprep.mubr.f32.mxu0 0.0
      %2217 = vmatmul.mubr.f32.gmra.mrb[0].mxu0 %v1201
      %v2218 = vpop.f32.mrb[0].mxu0
      %v2219 = vadd.f32 0.0, %v2218
      %v2220 = vpop.f32.mrb[0].mxu0
      %2221 = vmatprep.mubr.f32.mxu0 0.0
      %2222 = vmatmul.mubr.f32.gmra.mrb[0].mxu0 %v1203
      %v2223 = vpop.f32.mrb[0].mxu0
      %v2224 = vadd.f32 0.0, %v2223
      %v2225 = vpop.f32.mrb[0].mxu0
      %2226 = vmatprep.mubr.f32.mxu0 0.0
      %2227 = vmatmul.mubr.f32.gmra.mrb[0].mxu0 %v2005
      %v2228 = vpop.f32.mrb[0].mxu0
      %v2229 = vadd.f32 0.0, %v2228
      %v2230 = vpop.f32.mrb[0].mxu0
      %2231 = vmatprep.mubr.f32.mxu0 0.0
      %2232 = vmatmul.mubr.f32.gmra.mrb[0].mxu0 %v2007
      %v2233 = vpop.f32.mrb[0].mxu0
      %v2234 = vadd.f32 0.0, %v2233
      %v2235 = vpop.f32.mrb[0].mxu0
      %2236 = vdwg.mxu0
      %v2237 = vadd.f32 %v1968, %v2079
      %v2238 = vadd.f32 %v1969, %v2084
      %v2239 = vadd.f32 %v1970, %v2089
      %v2240 = vadd.f32 %v1971, %v2094
      %v2241 = vadd.f32 %v1972, %v2099
      %v2242 = vadd.f32 %v1973, %v2104
      %v2243 = vadd.f32 %v1974, %v2109
      %v2244 = vadd.f32 %v1975, %v2114
      %v2245 = vadd.f32 %v1976, %v2119
      %v2246 = vadd.f32 %v1977, %v2124
      %v2247 = vadd.f32 %v1978, %v2129
      %v2248 = vadd.f32 %v1979, %v2134
      %v2249 = vadd.f32 %v1980, %v2139
      %v2250 = vadd.f32 %v1981, %v2144
      %v2251 = vadd.f32 %v1982, %v2149
      %v2252 = vadd.f32 %v1983, %v2154
      %v2253 = vadd.f32 %v1984, %v2159
      %v2254 = vadd.f32 %v1985, %v2164
      %v2255 = vadd.f32 %v1986, %v2169
      %v2256 = vadd.f32 %v1987, %v2174
      %v2257 = vadd.f32 %v1988, %v2179
      %v2258 = vadd.f32 %v1989, %v2184
      %v2259 = vadd.f32 %v1990, %v2189
      %v2260 = vadd.f32 %v1991, %v2194
      %v2261 = vadd.f32 %v1992, %v2199
      %v2262 = vadd.f32 %v1993, %v2204
      %v2263 = vadd.f32 %v1994, %v2209
      %v2264 = vadd.f32 %v1995, %v2214
      %v2265 = vadd.f32 %v1996, %v2219
      %v2266 = vadd.f32 %v1997, %v2224
      %v2267 = vadd.f32 %v1998, %v2229
      %v2268 = vadd.f32 %v1999, %v2234
      %v2270 = vsel %vm539, %v207, 0
      %2272 = vmatprep.subr.mxu0 0.0
      %2273 = vmatpush1.msra.mxu0 %v2270
      %2274 = vmatprep.subr.mxu0 0.0
      %2275 = vmatpush1.msra.mxu0 0.0
      %2276 = vmatprep.subr.mxu0 0.0
      %2277 = vmatpush1.msra.mxu0 0.0
      %2278 = vmatprep.subr.mxu0 0.0
      %2279 = vmatpush1.msra.mxu0 0.0
      %2280 = vmatprep.subr.mxu0 0.0
      %2281 = vmatpush1.msra.mxu0 0.0
      %2282 = vmatprep.subr.mxu0 0.0
      %2283 = vmatpush1.msra.mxu0 0.0
      %2284 = vmatprep.subr.mxu0 0.0
      %2285 = vmatpush1.msra.mxu0 0.0
      %2286 = vmatprep.subr.mxu0 0.0
      %2287 = vmatpush1.msra.mxu0 0.0
      %2288 = vmatprep.subr.mxu0 0.0
      %2289 = vmatpush1.msra.mxu0 0.0
      %2290 = vmatprep.subr.mxu0 0.0
      %2291 = vmatpush1.msra.mxu0 0.0
      %2292 = vmatprep.subr.mxu0 0.0
      %2293 = vmatpush1.msra.mxu0 0.0
      %2294 = vmatprep.subr.mxu0 0.0
      %2295 = vmatpush1.msra.mxu0 0.0
      %2296 = vmatprep.subr.mxu0 0.0
      %2297 = vmatpush1.msra.mxu0 0.0
      %2298 = vmatprep.subr.mxu0 0.0
      %2299 = vmatpush1.msra.mxu0 0.0
      %2300 = vmatprep.subr.mxu0 0.0
      %2301 = vmatpush1.msra.mxu0 0.0
      %2302 = vmatprep.subr.mxu0 0.0
      %2303 = vmatpush1.msra.mxu0 0.0
      %2304 = vmatprep.subr.mxu0 0.0
      %2305 = vmatpush1.msra.mxu0 0.0
      %2306 = vmatprep.subr.mxu0 0.0
      %2307 = vmatpush1.msra.mxu0 0.0
      %2308 = vmatprep.subr.mxu0 0.0
      %2309 = vmatpush1.msra.mxu0 0.0
      %2310 = vmatprep.subr.mxu0 0.0
      %2311 = vmatpush1.msra.mxu0 0.0
      %2312 = vmatprep.subr.mxu0 0.0
      %2313 = vmatpush1.msra.mxu0 0.0
      %2314 = vmatprep.subr.mxu0 0.0
      %2315 = vmatpush1.msra.mxu0 0.0
      %2316 = vmatprep.subr.mxu0 0.0
      %2317 = vmatpush1.msra.mxu0 0.0
      %2318 = vmatprep.subr.mxu0 0.0
      %2319 = vmatpush1.msra.mxu0 0.0
      %2320 = vmatprep.subr.mxu0 0.0
      %2321 = vmatpush1.msra.mxu0 0.0
      %2322 = vmatprep.subr.mxu0 0.0
      %2323 = vmatpush1.msra.mxu0 0.0
      %2324 = vmatprep.subr.mxu0 0.0
      %2325 = vmatpush1.msra.mxu0 0.0
      %2326 = vmatprep.subr.mxu0 0.0
      %2327 = vmatpush1.msra.mxu0 0.0
      %2328 = vmatprep.subr.mxu0 0.0
      %2329 = vmatpush1.msra.mxu0 0.0
      %2330 = vmatprep.subr.mxu0 0.0
      %2331 = vmatpush1.msra.mxu0 0.0
      %2332 = vmatprep.subr.mxu0 0.0
      %2333 = vmatpush1.msra.mxu0 0.0
      %2334 = vmatprep.subr.mxu0 0.0
      %2335 = vmatpush1.msra.mxu0 0.0
      %2336 = vmatprep.mubr.f32.mxu0 0.0
      %2337 = vmatmul.mubr.f32.gmra.mrb[0].mxu0 %v776
      %v2338 = vpop.f32.mrb[0].mxu0
      %v2339 = vadd.f32 0.0, %v2338
      %v2340 = vpop.f32.mrb[0].mxu0
      %2341 = vmatprep.mubr.f32.mxu0 0.0
      %2342 = vmatmul.mubr.f32.gmra.mrb[0].mxu0 %v778
      %v2343 = vpop.f32.mrb[0].mxu0
      %v2344 = vadd.f32 0.0, %v2343
      %v2345 = vpop.f32.mrb[0].mxu0
      %2346 = vmatprep.mubr.f32.mxu0 0.0
      %2347 = vmatmul.mubr.f32.gmra.mrb[0].mxu0 %v780
      %v2348 = vpop.f32.mrb[0].mxu0
      %v2349 = vadd.f32 0.0, %v2348
      %v2350 = vpop.f32.mrb[0].mxu0
      %2351 = vmatprep.mubr.f32.mxu0 0.0
      %2352 = vmatmul.mubr.f32.gmra.mrb[0].mxu0 %v782
      %v2353 = vpop.f32.mrb[0].mxu0
      %v2354 = vadd.f32 0.0, %v2353
      %v2355 = vpop.f32.mrb[0].mxu0
      %2356 = vmatprep.mubr.f32.mxu0 0.0
      %2357 = vmatmul.mubr.f32.gmra.mrb[0].mxu0 %v784
      %v2358 = vpop.f32.mrb[0].mxu0
      %v2359 = vadd.f32 0.0, %v2358
      %v2360 = vpop.f32.mrb[0].mxu0
      %2361 = vmatprep.mubr.f32.mxu0 0.0
      %2362 = vmatmul.mubr.f32.gmra.mrb[0].mxu0 %v786
      %v2363 = vpop.f32.mrb[0].mxu0
      %v2364 = vadd.f32 0.0, %v2363
      %v2365 = vpop.f32.mrb[0].mxu0
      %2366 = vmatprep.mubr.f32.mxu0 0.0
      %2367 = vmatmul.mubr.f32.gmra.mrb[0].mxu0 %v788
      %v2368 = vpop.f32.mrb[0].mxu0
      %v2369 = vadd.f32 0.0, %v2368
      %v2370 = vpop.f32.mrb[0].mxu0
      %2371 = vmatprep.mubr.f32.mxu0 0.0
      %2372 = vmatmul.mubr.f32.gmra.mrb[0].mxu0 %v790
      %v2373 = vpop.f32.mrb[0].mxu0
      %v2374 = vadd.f32 0.0, %v2373
      %v2375 = vpop.f32.mrb[0].mxu0
      %2376 = vmatprep.mubr.f32.mxu0 0.0
      %2377 = vmatmul.mubr.f32.gmra.mrb[0].mxu0 %v792
      %v2378 = vpop.f32.mrb[0].mxu0
      %v2379 = vadd.f32 0.0, %v2378
      %v2380 = vpop.f32.mrb[0].mxu0
      %2381 = vmatprep.mubr.f32.mxu0 0.0
      %2382 = vmatmul.mubr.f32.gmra.mrb[0].mxu0 %v794
      %v2383 = vpop.f32.mrb[0].mxu0
      %v2384 = vadd.f32 0.0, %v2383
      %v2385 = vpop.f32.mrb[0].mxu0
      %2386 = vmatprep.mubr.f32.mxu0 0.0
      %2387 = vmatmul.mubr.f32.gmra.mrb[0].mxu0 %v796
      %v2388 = vpop.f32.mrb[0].mxu0
      %v2389 = vadd.f32 0.0, %v2388
      %v2390 = vpop.f32.mrb[0].mxu0
      %2391 = vmatprep.mubr.f32.mxu0 0.0
      %2392 = vmatmul.mubr.f32.gmra.mrb[0].mxu0 %v798
      %v2393 = vpop.f32.mrb[0].mxu0
      %v2394 = vadd.f32 0.0, %v2393
      %v2395 = vpop.f32.mrb[0].mxu0
      %2396 = vmatprep.mubr.f32.mxu0 0.0
      %2397 = vmatmul.mubr.f32.gmra.mrb[0].mxu0 %v800
      %v2398 = vpop.f32.mrb[0].mxu0
      %v2399 = vadd.f32 0.0, %v2398
      %v2400 = vpop.f32.mrb[0].mxu0
      %2401 = vmatprep.mubr.f32.mxu0 0.0
      %2402 = vmatmul.mubr.f32.gmra.mrb[0].mxu0 %v802
      %v2403 = vpop.f32.mrb[0].mxu0
      %v2404 = vadd.f32 0.0, %v2403
      %v2405 = vpop.f32.mrb[0].mxu0
      %2406 = vmatprep.mubr.f32.mxu0 0.0
      %2407 = vmatmul.mubr.f32.gmra.mrb[0].mxu0 %v804
      %v2408 = vpop.f32.mrb[0].mxu0
      %v2409 = vadd.f32 0.0, %v2408
      %v2410 = vpop.f32.mrb[0].mxu0
      %2411 = vmatprep.mubr.f32.mxu0 0.0
      %2412 = vmatmul.mubr.f32.gmra.mrb[0].mxu0 %v806
      %v2413 = vpop.f32.mrb[0].mxu0
      %v2414 = vadd.f32 0.0, %v2413
      %v2415 = vpop.f32.mrb[0].mxu0
      %2416 = vmatprep.mubr.f32.mxu0 0.0
      %2417 = vmatmul.mubr.f32.gmra.mrb[0].mxu0 %v808
      %v2418 = vpop.f32.mrb[0].mxu0
      %v2419 = vadd.f32 0.0, %v2418
      %v2420 = vpop.f32.mrb[0].mxu0
      %2421 = vmatprep.mubr.f32.mxu0 0.0
      %2422 = vmatmul.mubr.f32.gmra.mrb[0].mxu0 %v810
      %v2423 = vpop.f32.mrb[0].mxu0
      %v2424 = vadd.f32 0.0, %v2423
      %v2425 = vpop.f32.mrb[0].mxu0
      %2426 = vmatprep.mubr.f32.mxu0 0.0
      %2427 = vmatmul.mubr.f32.gmra.mrb[0].mxu0 %v812
      %v2428 = vpop.f32.mrb[0].mxu0
      %v2429 = vadd.f32 0.0, %v2428
      %v2430 = vpop.f32.mrb[0].mxu0
      %2431 = vmatprep.mubr.f32.mxu0 0.0
      %2432 = vmatmul.mubr.f32.gmra.mrb[0].mxu0 %v814
      %v2433 = vpop.f32.mrb[0].mxu0
      %v2434 = vadd.f32 0.0, %v2433
      %v2435 = vpop.f32.mrb[0].mxu0
      %2436 = vmatprep.mubr.f32.mxu0 0.0
      %2437 = vmatmul.mubr.f32.gmra.mrb[0].mxu0 %v816
      %v2438 = vpop.f32.mrb[0].mxu0
      %v2439 = vadd.f32 0.0, %v2438
      %v2440 = vpop.f32.mrb[0].mxu0
      %2441 = vmatprep.mubr.f32.mxu0 0.0
      %2442 = vmatmul.mubr.f32.gmra.mrb[0].mxu0 %v818
      %v2443 = vpop.f32.mrb[0].mxu0
      %v2444 = vadd.f32 0.0, %v2443
      %v2445 = vpop.f32.mrb[0].mxu0
      %2446 = vmatprep.mubr.f32.mxu0 0.0
      %2447 = vmatmul.mubr.f32.gmra.mrb[0].mxu0 %v820
      %v2448 = vpop.f32.mrb[0].mxu0
      %v2449 = vadd.f32 0.0, %v2448
      %v2450 = vpop.f32.mrb[0].mxu0
      %2451 = vmatprep.mubr.f32.mxu0 0.0
      %2452 = vmatmul.mubr.f32.gmra.mrb[0].mxu0 %v822
      %v2453 = vpop.f32.mrb[0].mxu0
      %v2454 = vadd.f32 0.0, %v2453
      %v2455 = vpop.f32.mrb[0].mxu0
      %2456 = vmatprep.mubr.f32.mxu0 0.0
      %2457 = vmatmul.mubr.f32.gmra.mrb[0].mxu0 %v824
      %v2458 = vpop.f32.mrb[0].mxu0
      %v2459 = vadd.f32 0.0, %v2458
      %v2460 = vpop.f32.mrb[0].mxu0
      %2461 = vmatprep.mubr.f32.mxu0 0.0
      %2462 = vmatmul.mubr.f32.gmra.mrb[0].mxu0 %v826
      %v2463 = vpop.f32.mrb[0].mxu0
      %v2464 = vadd.f32 0.0, %v2463
      %v2465 = vpop.f32.mrb[0].mxu0
      %2466 = vmatprep.mubr.f32.mxu0 0.0
      %2467 = vmatmul.mubr.f32.gmra.mrb[0].mxu0 %v828
      %v2468 = vpop.f32.mrb[0].mxu0
      %v2469 = vadd.f32 0.0, %v2468
      %v2470 = vpop.f32.mrb[0].mxu0
      %2471 = vmatprep.mubr.f32.mxu0 0.0
      %2472 = vmatmul.mubr.f32.gmra.mrb[0].mxu0 %v830
      %v2473 = vpop.f32.mrb[0].mxu0
      %v2474 = vadd.f32 0.0, %v2473
      %v2475 = vpop.f32.mrb[0].mxu0
      %2476 = vmatprep.mubr.f32.mxu0 0.0
      %2477 = vmatmul.mubr.f32.gmra.mrb[0].mxu0 %v1466
      %v2478 = vpop.f32.mrb[0].mxu0
      %v2479 = vadd.f32 0.0, %v2478
      %v2480 = vpop.f32.mrb[0].mxu0
      %2481 = vmatprep.mubr.f32.mxu0 0.0
      %2482 = vmatmul.mubr.f32.gmra.mrb[0].mxu0 %v1468
      %v2483 = vpop.f32.mrb[0].mxu0
      %v2484 = vadd.f32 0.0, %v2483
      %v2485 = vpop.f32.mrb[0].mxu0
      %2486 = vmatprep.mubr.f32.mxu0 0.0
      %2487 = vmatmul.mubr.f32.gmra.mrb[0].mxu0 %v768
      %v2488 = vpop.f32.mrb[0].mxu0
      %v2489 = vadd.f32 0.0, %v2488
      %v2490 = vpop.f32.mrb[0].mxu0
      %2491 = vmatprep.mubr.f32.mxu0 0.0
      %2492 = vmatmul.mubr.f32.gmra.mrb[0].mxu0 %v770
      %v2493 = vpop.f32.mrb[0].mxu0
      %v2494 = vadd.f32 0.0, %v2493
      %v2495 = vpop.f32.mrb[0].mxu0
      %2496 = vdwg.mxu0
      %v2497 = vadd.f32 %v2237, %v2339
      %v2498 = vadd.f32 %v2238, %v2344
      %v2499 = vadd.f32 %v2239, %v2349
      %v2500 = vadd.f32 %v2240, %v2354
      %v2501 = vadd.f32 %v2241, %v2359
      %v2502 = vadd.f32 %v2242, %v2364
      %v2503 = vadd.f32 %v2243, %v2369
      %v2504 = vadd.f32 %v2244, %v2374
      %v2505 = vadd.f32 %v2245, %v2379
      %v2506 = vadd.f32 %v2246, %v2384
      %v2507 = vadd.f32 %v2247, %v2389
      %v2508 = vadd.f32 %v2248, %v2394
      %v2509 = vadd.f32 %v2249, %v2399
      %v2510 = vadd.f32 %v2250, %v2404
      %v2511 = vadd.f32 %v2251, %v2409
      %v2512 = vadd.f32 %v2252, %v2414
      %v2513 = vadd.f32 %v2253, %v2419
      %v2514 = vadd.f32 %v2254, %v2424
      %v2515 = vadd.f32 %v2255, %v2429
      %v2516 = vadd.f32 %v2256, %v2434
      %v2517 = vadd.f32 %v2257, %v2439
      %v2518 = vadd.f32 %v2258, %v2444
      %v2519 = vadd.f32 %v2259, %v2449
      %v2520 = vadd.f32 %v2260, %v2454
      %v2521 = vadd.f32 %v2261, %v2459
      %v2522 = vadd.f32 %v2262, %v2464
      %v2523 = vadd.f32 %v2263, %v2469
      %v2524 = vadd.f32 %v2264, %v2474
      %v2525 = vadd.f32 %v2265, %v2479
      %v2526 = vadd.f32 %v2266, %v2484
      %v2527 = vadd.f32 %v2267, %v2489
      %v2528 = vadd.f32 %v2268, %v2494
      %v2530 = vsel %vm539, %v208, 0
      %2532 = vmatprep.subr.mxu0 0.0
      %2533 = vmatpush1.msra.mxu0 %v2530
      %2534 = vmatprep.subr.mxu0 0.0
      %2535 = vmatpush1.msra.mxu0 0.0
      %2536 = vmatprep.subr.mxu0 0.0
      %2537 = vmatpush1.msra.mxu0 0.0
      %2538 = vmatprep.subr.mxu0 0.0
      %2539 = vmatpush1.msra.mxu0 0.0
      %2540 = vmatprep.subr.mxu0 0.0
      %2541 = vmatpush1.msra.mxu0 0.0
      %2542 = vmatprep.subr.mxu0 0.0
      %2543 = vmatpush1.msra.mxu0 0.0
      %2544 = vmatprep.subr.mxu0 0.0
      %2545 = vmatpush1.msra.mxu0 0.0
      %2546 = vmatprep.subr.mxu0 0.0
      %2547 = vmatpush1.msra.mxu0 0.0
      %2548 = vmatprep.subr.mxu0 0.0
      %2549 = vmatpush1.msra.mxu0 0.0
      %2550 = vmatprep.subr.mxu0 0.0
      %2551 = vmatpush1.msra.mxu0 0.0
      %2552 = vmatprep.subr.mxu0 0.0
      %2553 = vmatpush1.msra.mxu0 0.0
      %2554 = vmatprep.subr.mxu0 0.0
      %2555 = vmatpush1.msra.mxu0 0.0
      %2556 = vmatprep.subr.mxu0 0.0
      %2557 = vmatpush1.msra.mxu0 0.0
      %2558 = vmatprep.subr.mxu0 0.0
      %2559 = vmatpush1.msra.mxu0 0.0
      %2560 = vmatprep.subr.mxu0 0.0
      %2561 = vmatpush1.msra.mxu0 0.0
      %2562 = vmatprep.subr.mxu0 0.0
      %2563 = vmatpush1.msra.mxu0 0.0
      %2564 = vmatprep.subr.mxu0 0.0
      %2565 = vmatpush1.msra.mxu0 0.0
      %2566 = vmatprep.subr.mxu0 0.0
      %2567 = vmatpush1.msra.mxu0 0.0
      %2568 = vmatprep.subr.mxu0 0.0
      %2569 = vmatpush1.msra.mxu0 0.0
      %2570 = vmatprep.subr.mxu0 0.0
      %2571 = vmatpush1.msra.mxu0 0.0
      %2572 = vmatprep.subr.mxu0 0.0
      %2573 = vmatpush1.msra.mxu0 0.0
      %2574 = vmatprep.subr.mxu0 0.0
      %2575 = vmatpush1.msra.mxu0 0.0
      %2576 = vmatprep.subr.mxu0 0.0
      %2577 = vmatpush1.msra.mxu0 0.0
      %2578 = vmatprep.subr.mxu0 0.0
      %2579 = vmatpush1.msra.mxu0 0.0
      %2580 = vmatprep.subr.mxu0 0.0
      %2581 = vmatpush1.msra.mxu0 0.0
      %2582 = vmatprep.subr.mxu0 0.0
      %2583 = vmatpush1.msra.mxu0 0.0
      %2584 = vmatprep.subr.mxu0 0.0
      %2585 = vmatpush1.msra.mxu0 0.0
      %2586 = vmatprep.subr.mxu0 0.0
      %2587 = vmatpush1.msra.mxu0 0.0
      %2588 = vmatprep.subr.mxu0 0.0
      %2589 = vmatpush1.msra.mxu0 0.0
      %2590 = vmatprep.subr.mxu0 0.0
      %2591 = vmatpush1.msra.mxu0 0.0
      %2592 = vmatprep.subr.mxu0 0.0
      %2593 = vmatpush1.msra.mxu0 0.0
      %2594 = vmatprep.subr.mxu0 0.0
      %2595 = vmatpush1.msra.mxu0 0.0
      %2596 = vmatprep.mubr.f32.mxu0 0.0
      %2597 = vmatmul.mubr.f32.gmra.mrb[0].mxu0 %v483
      %v2598 = vpop.f32.mrb[0].mxu0
      %v2599 = vadd.f32 0.0, %v2598
      %v2600 = vpop.f32.mrb[0].mxu0
      %2601 = vmatprep.mubr.f32.mxu0 0.0
      %2602 = vmatmul.mubr.f32.gmra.mrb[0].mxu0 %v485
      %v2603 = vpop.f32.mrb[0].mxu0
      %v2604 = vadd.f32 0.0, %v2603
      %v2605 = vpop.f32.mrb[0].mxu0
      %2606 = vmatprep.mubr.f32.mxu0 0.0
      %2607 = vmatmul.mubr.f32.gmra.mrb[0].mxu0 %v487
      %v2608 = vpop.f32.mrb[0].mxu0
      %v2609 = vadd.f32 0.0, %v2608
      %v2610 = vpop.f32.mrb[0].mxu0
      %2611 = vmatprep.mubr.f32.mxu0 0.0
      %2612 = vmatmul.mubr.f32.gmra.mrb[0].mxu0 %v489
      %v2613 = vpop.f32.mrb[0].mxu0
      %v2614 = vadd.f32 0.0, %v2613
      %v2615 = vpop.f32.mrb[0].mxu0
      %2616 = vmatprep.mubr.f32.mxu0 0.0
      %2617 = vmatmul.mubr.f32.gmra.mrb[0].mxu0 %v491
      %v2618 = vpop.f32.mrb[0].mxu0
      %v2619 = vadd.f32 0.0, %v2618
      %v2620 = vpop.f32.mrb[0].mxu0
      %2621 = vmatprep.mubr.f32.mxu0 0.0
      %2622 = vmatmul.mubr.f32.gmra.mrb[0].mxu0 %v493
      %v2623 = vpop.f32.mrb[0].mxu0
      %v2624 = vadd.f32 0.0, %v2623
      %v2625 = vpop.f32.mrb[0].mxu0
      %2626 = vmatprep.mubr.f32.mxu0 0.0
      %2627 = vmatmul.mubr.f32.gmra.mrb[0].mxu0 %v495
      %v2628 = vpop.f32.mrb[0].mxu0
      %v2629 = vadd.f32 0.0, %v2628
      %v2630 = vpop.f32.mrb[0].mxu0
      %2631 = vmatprep.mubr.f32.mxu0 0.0
      %2632 = vmatmul.mubr.f32.gmra.mrb[0].mxu0 %v497
      %v2633 = vpop.f32.mrb[0].mxu0
      %v2634 = vadd.f32 0.0, %v2633
      %v2635 = vpop.f32.mrb[0].mxu0
      %2636 = vmatprep.mubr.f32.mxu0 0.0
      %2637 = vmatmul.mubr.f32.gmra.mrb[0].mxu0 %v499
      %v2638 = vpop.f32.mrb[0].mxu0
      %v2639 = vadd.f32 0.0, %v2638
      %v2640 = vpop.f32.mrb[0].mxu0
      %2641 = vmatprep.mubr.f32.mxu0 0.0
      %2642 = vmatmul.mubr.f32.gmra.mrb[0].mxu0 %v501
      %v2643 = vpop.f32.mrb[0].mxu0
      %v2644 = vadd.f32 0.0, %v2643
      %v2645 = vpop.f32.mrb[0].mxu0
      %2646 = vmatprep.mubr.f32.mxu0 0.0
      %2647 = vmatmul.mubr.f32.gmra.mrb[0].mxu0 %v503
      %v2648 = vpop.f32.mrb[0].mxu0
      %v2649 = vadd.f32 0.0, %v2648
      %v2650 = vpop.f32.mrb[0].mxu0
      %2651 = vmatprep.mubr.f32.mxu0 0.0
      %2652 = vmatmul.mubr.f32.gmra.mrb[0].mxu0 %v505
      %v2653 = vpop.f32.mrb[0].mxu0
      %v2654 = vadd.f32 0.0, %v2653
      %v2655 = vpop.f32.mrb[0].mxu0
      %2656 = vmatprep.mubr.f32.mxu0 0.0
      %2657 = vmatmul.mubr.f32.gmra.mrb[0].mxu0 %v507
      %v2658 = vpop.f32.mrb[0].mxu0
      %v2659 = vadd.f32 0.0, %v2658
      %v2660 = vpop.f32.mrb[0].mxu0
      %2661 = vmatprep.mubr.f32.mxu0 0.0
      %2662 = vmatmul.mubr.f32.gmra.mrb[0].mxu0 %v509
      %v2663 = vpop.f32.mrb[0].mxu0
      %v2664 = vadd.f32 0.0, %v2663
      %v2665 = vpop.f32.mrb[0].mxu0
      %2666 = vmatprep.mubr.f32.mxu0 0.0
      %2667 = vmatmul.mubr.f32.gmra.mrb[0].mxu0 %v511
      %v2668 = vpop.f32.mrb[0].mxu0
      %v2669 = vadd.f32 0.0, %v2668
      %v2670 = vpop.f32.mrb[0].mxu0
      %2671 = vmatprep.mubr.f32.mxu0 0.0
      %2672 = vmatmul.mubr.f32.gmra.mrb[0].mxu0 %v513
      %v2673 = vpop.f32.mrb[0].mxu0
      %v2674 = vadd.f32 0.0, %v2673
      %v2675 = vpop.f32.mrb[0].mxu0
      %2676 = vmatprep.mubr.f32.mxu0 0.0
      %2677 = vmatmul.mubr.f32.gmra.mrb[0].mxu0 %v515
      %v2678 = vpop.f32.mrb[0].mxu0
      %v2679 = vadd.f32 0.0, %v2678
      %v2680 = vpop.f32.mrb[0].mxu0
      %2681 = vmatprep.mubr.f32.mxu0 0.0
      %2682 = vmatmul.mubr.f32.gmra.mrb[0].mxu0 %v517
      %v2683 = vpop.f32.mrb[0].mxu0
      %v2684 = vadd.f32 0.0, %v2683
      %v2685 = vpop.f32.mrb[0].mxu0
      %2686 = vmatprep.mubr.f32.mxu0 0.0
      %2687 = vmatmul.mubr.f32.gmra.mrb[0].mxu0 %v519
      %v2688 = vpop.f32.mrb[0].mxu0
      %v2689 = vadd.f32 0.0, %v2688
      %v2690 = vpop.f32.mrb[0].mxu0
      %2691 = vmatprep.mubr.f32.mxu0 0.0
      %2692 = vmatmul.mubr.f32.gmra.mrb[0].mxu0 %v521
      %v2693 = vpop.f32.mrb[0].mxu0
      %v2694 = vadd.f32 0.0, %v2693
      %v2695 = vpop.f32.mrb[0].mxu0
      %2696 = vmatprep.mubr.f32.mxu0 0.0
      %2697 = vmatmul.mubr.f32.gmra.mrb[0].mxu0 %v523
      %v2698 = vpop.f32.mrb[0].mxu0
      %v2699 = vadd.f32 0.0, %v2698
      %v2700 = vpop.f32.mrb[0].mxu0
      %2701 = vmatprep.mubr.f32.mxu0 0.0
      %2702 = vmatmul.mubr.f32.gmra.mrb[0].mxu0 %v525
      %v2703 = vpop.f32.mrb[0].mxu0
      %v2704 = vadd.f32 0.0, %v2703
      %v2705 = vpop.f32.mrb[0].mxu0
      %2706 = vmatprep.mubr.f32.mxu0 0.0
      %2707 = vmatmul.mubr.f32.gmra.mrb[0].mxu0 %v527
      %v2708 = vpop.f32.mrb[0].mxu0
      %v2709 = vadd.f32 0.0, %v2708
      %v2710 = vpop.f32.mrb[0].mxu0
      %2711 = vmatprep.mubr.f32.mxu0 0.0
      %2712 = vmatmul.mubr.f32.gmra.mrb[0].mxu0 %v529
      %v2713 = vpop.f32.mrb[0].mxu0
      %v2714 = vadd.f32 0.0, %v2713
      %v2715 = vpop.f32.mrb[0].mxu0
      %2716 = vmatprep.mubr.f32.mxu0 0.0
      %2717 = vmatmul.mubr.f32.gmra.mrb[0].mxu0 %v531
      %v2718 = vpop.f32.mrb[0].mxu0
      %v2719 = vadd.f32 0.0, %v2718
      %v2720 = vpop.f32.mrb[0].mxu0
      %2721 = vmatprep.mubr.f32.mxu0 0.0
      %2722 = vmatmul.mubr.f32.gmra.mrb[0].mxu0 %v533
      %v2723 = vpop.f32.mrb[0].mxu0
      %v2724 = vadd.f32 0.0, %v2723
      %v2725 = vpop.f32.mrb[0].mxu0
      %2726 = vmatprep.mubr.f32.mxu0 0.0
      %2727 = vmatmul.mubr.f32.gmra.mrb[0].mxu0 %v535
      %v2728 = vpop.f32.mrb[0].mxu0
      %v2729 = vadd.f32 0.0, %v2728
      %v2730 = vpop.f32.mrb[0].mxu0
      %2731 = vmatprep.mubr.f32.mxu0 0.0
      %2732 = vmatmul.mubr.f32.gmra.mrb[0].mxu0 %v537
      %v2733 = vpop.f32.mrb[0].mxu0
      %v2734 = vadd.f32 0.0, %v2733
      %v2735 = vpop.f32.mrb[0].mxu0
      %2736 = vmatprep.mubr.f32.mxu0 0.0
      %2737 = vmatmul.mubr.f32.gmra.mrb[0].mxu0 %v1736
      %v2738 = vpop.f32.mrb[0].mxu0
      %v2739 = vadd.f32 0.0, %v2738
      %v2740 = vpop.f32.mrb[0].mxu0
      %2741 = vmatprep.mubr.f32.mxu0 0.0
      %2742 = vmatmul.mubr.f32.gmra.mrb[0].mxu0 %v1738
      %v2743 = vpop.f32.mrb[0].mxu0
      %v2744 = vadd.f32 0.0, %v2743
      %v2745 = vpop.f32.mrb[0].mxu0
      %2746 = vmatprep.mubr.f32.mxu0 0.0
      %2747 = vmatmul.mubr.f32.gmra.mrb[0].mxu0 %v475
      %v2748 = vpop.f32.mrb[0].mxu0
      %v2749 = vadd.f32 0.0, %v2748
      %v2750 = vpop.f32.mrb[0].mxu0
      %2751 = vmatprep.mubr.f32.mxu0 0.0
      %2752 = vmatmul.mubr.f32.gmra.mrb[0].mxu0 %v477
      %v2753 = vpop.f32.mrb[0].mxu0
      %v2754 = vadd.f32 0.0, %v2753
      %v2755 = vpop.f32.mrb[0].mxu0
      %2756 = vdwg.mxu0
      %v2757 = vadd.f32 %v2497, %v2599
      %v2758 = vadd.f32 %v2498, %v2604
      %v2759 = vadd.f32 %v2499, %v2609
      %v2760 = vadd.f32 %v2500, %v2614
      %v2761 = vadd.f32 %v2501, %v2619
      %v2762 = vadd.f32 %v2502, %v2624
      %v2763 = vadd.f32 %v2503, %v2629
      %v2764 = vadd.f32 %v2504, %v2634
      %v2765 = vadd.f32 %v2505, %v2639
      %v2766 = vadd.f32 %v2506, %v2644
      %v2767 = vadd.f32 %v2507, %v2649
      %v2768 = vadd.f32 %v2508, %v2654
      %v2769 = vadd.f32 %v2509, %v2659
      %v2770 = vadd.f32 %v2510, %v2664
      %v2771 = vadd.f32 %v2511, %v2669
      %v2772 = vadd.f32 %v2512, %v2674
      %v2773 = vadd.f32 %v2513, %v2679
      %v2774 = vadd.f32 %v2514, %v2684
      %v2775 = vadd.f32 %v2515, %v2689
      %v2776 = vadd.f32 %v2516, %v2694
      %v2777 = vadd.f32 %v2517, %v2699
      %v2778 = vadd.f32 %v2518, %v2704
      %v2779 = vadd.f32 %v2519, %v2709
      %v2780 = vadd.f32 %v2520, %v2714
      %v2781 = vadd.f32 %v2521, %v2719
      %v2782 = vadd.f32 %v2522, %v2724
      %v2783 = vadd.f32 %v2523, %v2729
      %v2784 = vadd.f32 %v2524, %v2734
      %v2785 = vadd.f32 %v2525, %v2739
      %v2786 = vadd.f32 %v2526, %v2744
      %v2787 = vadd.f32 %v2527, %v2749
      %v2788 = vadd.f32 %v2528, %v2754
      %v2790 = vsel %vm539, %v209, 0
      %2792 = vmatprep.subr.mxu0 0.0
      %2793 = vmatpush1.msra.mxu0 %v2790
      %2794 = vmatprep.subr.mxu0 0.0
      %2795 = vmatpush1.msra.mxu0 0.0
      %2796 = vmatprep.subr.mxu0 0.0
      %2797 = vmatpush1.msra.mxu0 0.0
      %2798 = vmatprep.subr.mxu0 0.0
      %2799 = vmatpush1.msra.mxu0 0.0
      %2800 = vmatprep.subr.mxu0 0.0
      %2801 = vmatpush1.msra.mxu0 0.0
      %2802 = vmatprep.subr.mxu0 0.0
      %2803 = vmatpush1.msra.mxu0 0.0
      %2804 = vmatprep.subr.mxu0 0.0
      %2805 = vmatpush1.msra.mxu0 0.0
      %2806 = vmatprep.subr.mxu0 0.0
      %2807 = vmatpush1.msra.mxu0 0.0
      %2808 = vmatprep.subr.mxu0 0.0
      %2809 = vmatpush1.msra.mxu0 0.0
      %2810 = vmatprep.subr.mxu0 0.0
      %2811 = vmatpush1.msra.mxu0 0.0
      %2812 = vmatprep.subr.mxu0 0.0
      %2813 = vmatpush1.msra.mxu0 0.0
      %2814 = vmatprep.subr.mxu0 0.0
      %2815 = vmatpush1.msra.mxu0 0.0
      %2816 = vmatprep.subr.mxu0 0.0
      %2817 = vmatpush1.msra.mxu0 0.0
      %2818 = vmatprep.subr.mxu0 0.0
      %2819 = vmatpush1.msra.mxu0 0.0
      %2820 = vmatprep.subr.mxu0 0.0
      %2821 = vmatpush1.msra.mxu0 0.0
      %2822 = vmatprep.subr.mxu0 0.0
      %2823 = vmatpush1.msra.mxu0 0.0
      %2824 = vmatprep.subr.mxu0 0.0
      %2825 = vmatpush1.msra.mxu0 0.0
      %2826 = vmatprep.subr.mxu0 0.0
      %2827 = vmatpush1.msra.mxu0 0.0
      %2828 = vmatprep.subr.mxu0 0.0
      %2829 = vmatpush1.msra.mxu0 0.0
      %2830 = vmatprep.subr.mxu0 0.0
      %2831 = vmatpush1.msra.mxu0 0.0
      %2832 = vmatprep.subr.mxu0 0.0
      %2833 = vmatpush1.msra.mxu0 0.0
      %2834 = vmatprep.subr.mxu0 0.0
      %2835 = vmatpush1.msra.mxu0 0.0
      %2836 = vmatprep.subr.mxu0 0.0
      %2837 = vmatpush1.msra.mxu0 0.0
      %2838 = vmatprep.subr.mxu0 0.0
      %2839 = vmatpush1.msra.mxu0 0.0
      %2840 = vmatprep.subr.mxu0 0.0
      %2841 = vmatpush1.msra.mxu0 0.0
      %2842 = vmatprep.subr.mxu0 0.0
      %2843 = vmatpush1.msra.mxu0 0.0
      %2844 = vmatprep.subr.mxu0 0.0
      %2845 = vmatpush1.msra.mxu0 0.0
      %2846 = vmatprep.subr.mxu0 0.0
      %2847 = vmatpush1.msra.mxu0 0.0
      %2848 = vmatprep.subr.mxu0 0.0
      %2849 = vmatpush1.msra.mxu0 0.0
      %2850 = vmatprep.subr.mxu0 0.0
      %2851 = vmatpush1.msra.mxu0 0.0
      %2852 = vmatprep.subr.mxu0 0.0
      %2853 = vmatpush1.msra.mxu0 0.0
      %2854 = vmatprep.subr.mxu0 0.0
      %2855 = vmatpush1.msra.mxu0 0.0
      %2856 = vmatprep.mubr.f32.mxu0 0.0
      %2857 = vmatmul.mubr.f32.gmra.mrb[0].mxu0 %v1149
      %v2858 = vpop.f32.mrb[0].mxu0
      %v2859 = vadd.f32 0.0, %v2858
      %v2860 = vpop.f32.mrb[0].mxu0
      %2861 = vmatprep.mubr.f32.mxu0 0.0
      %2862 = vmatmul.mubr.f32.gmra.mrb[0].mxu0 %v1151
      %v2863 = vpop.f32.mrb[0].mxu0
      %v2864 = vadd.f32 0.0, %v2863
      %v2865 = vpop.f32.mrb[0].mxu0
      %2866 = vmatprep.mubr.f32.mxu0 0.0
      %2867 = vmatmul.mubr.f32.gmra.mrb[0].mxu0 %v1153
      %v2868 = vpop.f32.mrb[0].mxu0
      %v2869 = vadd.f32 0.0, %v2868
      %v2870 = vpop.f32.mrb[0].mxu0
      %2871 = vmatprep.mubr.f32.mxu0 0.0
      %2872 = vmatmul.mubr.f32.gmra.mrb[0].mxu0 %v1155
      %v2873 = vpop.f32.mrb[0].mxu0
      %v2874 = vadd.f32 0.0, %v2873
      %v2875 = vpop.f32.mrb[0].mxu0
      %2876 = vmatprep.mubr.f32.mxu0 0.0
      %2877 = vmatmul.mubr.f32.gmra.mrb[0].mxu0 %v1157
      %v2878 = vpop.f32.mrb[0].mxu0
      %v2879 = vadd.f32 0.0, %v2878
      %v2880 = vpop.f32.mrb[0].mxu0
      %2881 = vmatprep.mubr.f32.mxu0 0.0
      %2882 = vmatmul.mubr.f32.gmra.mrb[0].mxu0 %v1159
      %v2883 = vpop.f32.mrb[0].mxu0
      %v2884 = vadd.f32 0.0, %v2883
      %v2885 = vpop.f32.mrb[0].mxu0
      %2886 = vmatprep.mubr.f32.mxu0 0.0
      %2887 = vmatmul.mubr.f32.gmra.mrb[0].mxu0 %v1161
      %v2888 = vpop.f32.mrb[0].mxu0
      %v2889 = vadd.f32 0.0, %v2888
      %v2890 = vpop.f32.mrb[0].mxu0
      %2891 = vmatprep.mubr.f32.mxu0 0.0
      %2892 = vmatmul.mubr.f32.gmra.mrb[0].mxu0 %v1163
      %v2893 = vpop.f32.mrb[0].mxu0
      %v2894 = vadd.f32 0.0, %v2893
      %v2895 = vpop.f32.mrb[0].mxu0
      %2896 = vmatprep.mubr.f32.mxu0 0.0
      %2897 = vmatmul.mubr.f32.gmra.mrb[0].mxu0 %v1165
      %v2898 = vpop.f32.mrb[0].mxu0
      %v2899 = vadd.f32 0.0, %v2898
      %v2900 = vpop.f32.mrb[0].mxu0
      %2901 = vmatprep.mubr.f32.mxu0 0.0
      %2902 = vmatmul.mubr.f32.gmra.mrb[0].mxu0 %v1167
      %v2903 = vpop.f32.mrb[0].mxu0
      %v2904 = vadd.f32 0.0, %v2903
      %v2905 = vpop.f32.mrb[0].mxu0
      %2906 = vmatprep.mubr.f32.mxu0 0.0
      %2907 = vmatmul.mubr.f32.gmra.mrb[0].mxu0 %v1169
      %v2908 = vpop.f32.mrb[0].mxu0
      %v2909 = vadd.f32 0.0, %v2908
      %v2910 = vpop.f32.mrb[0].mxu0
      %2911 = vmatprep.mubr.f32.mxu0 0.0
      %2912 = vmatmul.mubr.f32.gmra.mrb[0].mxu0 %v1171
      %v2913 = vpop.f32.mrb[0].mxu0
      %v2914 = vadd.f32 0.0, %v2913
      %v2915 = vpop.f32.mrb[0].mxu0
      %2916 = vmatprep.mubr.f32.mxu0 0.0
      %2917 = vmatmul.mubr.f32.gmra.mrb[0].mxu0 %v1173
      %v2918 = vpop.f32.mrb[0].mxu0
      %v2919 = vadd.f32 0.0, %v2918
      %v2920 = vpop.f32.mrb[0].mxu0
      %2921 = vmatprep.mubr.f32.mxu0 0.0
      %2922 = vmatmul.mubr.f32.gmra.mrb[0].mxu0 %v1175
      %v2923 = vpop.f32.mrb[0].mxu0
      %v2924 = vadd.f32 0.0, %v2923
      %v2925 = vpop.f32.mrb[0].mxu0
      %2926 = vmatprep.mubr.f32.mxu0 0.0
      %2927 = vmatmul.mubr.f32.gmra.mrb[0].mxu0 %v1177
      %v2928 = vpop.f32.mrb[0].mxu0
      %v2929 = vadd.f32 0.0, %v2928
      %v2930 = vpop.f32.mrb[0].mxu0
      %2931 = vmatprep.mubr.f32.mxu0 0.0
      %2932 = vmatmul.mubr.f32.gmra.mrb[0].mxu0 %v1179
      %v2933 = vpop.f32.mrb[0].mxu0
      %v2934 = vadd.f32 0.0, %v2933
      %v2935 = vpop.f32.mrb[0].mxu0
      %2936 = vmatprep.mubr.f32.mxu0 0.0
      %2937 = vmatmul.mubr.f32.gmra.mrb[0].mxu0 %v1181
      %v2938 = vpop.f32.mrb[0].mxu0
      %v2939 = vadd.f32 0.0, %v2938
      %v2940 = vpop.f32.mrb[0].mxu0
      %2941 = vmatprep.mubr.f32.mxu0 0.0
      %2942 = vmatmul.mubr.f32.gmra.mrb[0].mxu0 %v1183
      %v2943 = vpop.f32.mrb[0].mxu0
      %v2944 = vadd.f32 0.0, %v2943
      %v2945 = vpop.f32.mrb[0].mxu0
      %2946 = vmatprep.mubr.f32.mxu0 0.0
      %2947 = vmatmul.mubr.f32.gmra.mrb[0].mxu0 %v1185
      %v2948 = vpop.f32.mrb[0].mxu0
      %v2949 = vadd.f32 0.0, %v2948
      %v2950 = vpop.f32.mrb[0].mxu0
      %2951 = vmatprep.mubr.f32.mxu0 0.0
      %2952 = vmatmul.mubr.f32.gmra.mrb[0].mxu0 %v1187
      %v2953 = vpop.f32.mrb[0].mxu0
      %v2954 = vadd.f32 0.0, %v2953
      %v2955 = vpop.f32.mrb[0].mxu0
      %2956 = vmatprep.mubr.f32.mxu0 0.0
      %2957 = vmatmul.mubr.f32.gmra.mrb[0].mxu0 %v1189
      %v2958 = vpop.f32.mrb[0].mxu0
      %v2959 = vadd.f32 0.0, %v2958
      %v2960 = vpop.f32.mrb[0].mxu0
      %2961 = vmatprep.mubr.f32.mxu0 0.0
      %2962 = vmatmul.mubr.f32.gmra.mrb[0].mxu0 %v1191
      %v2963 = vpop.f32.mrb[0].mxu0
      %v2964 = vadd.f32 0.0, %v2963
      %v2965 = vpop.f32.mrb[0].mxu0
      %2966 = vmatprep.mubr.f32.mxu0 0.0
      %2967 = vmatmul.mubr.f32.gmra.mrb[0].mxu0 %v1193
      %v2968 = vpop.f32.mrb[0].mxu0
      %v2969 = vadd.f32 0.0, %v2968
      %v2970 = vpop.f32.mrb[0].mxu0
      %2971 = vmatprep.mubr.f32.mxu0 0.0
      %2972 = vmatmul.mubr.f32.gmra.mrb[0].mxu0 %v1195
      %v2973 = vpop.f32.mrb[0].mxu0
      %v2974 = vadd.f32 0.0, %v2973
      %v2975 = vpop.f32.mrb[0].mxu0
      %2976 = vmatprep.mubr.f32.mxu0 0.0
      %2977 = vmatmul.mubr.f32.gmra.mrb[0].mxu0 %v1197
      %v2978 = vpop.f32.mrb[0].mxu0
      %v2979 = vadd.f32 0.0, %v2978
      %v2980 = vpop.f32.mrb[0].mxu0
      %2981 = vmatprep.mubr.f32.mxu0 0.0
      %2982 = vmatmul.mubr.f32.gmra.mrb[0].mxu0 %v1199
      %v2983 = vpop.f32.mrb[0].mxu0
      %v2984 = vadd.f32 0.0, %v2983
      %v2985 = vpop.f32.mrb[0].mxu0
      %2986 = vmatprep.mubr.f32.mxu0 0.0
      %2987 = vmatmul.mubr.f32.gmra.mrb[0].mxu0 %v1201
      %v2988 = vpop.f32.mrb[0].mxu0
      %v2989 = vadd.f32 0.0, %v2988
      %v2990 = vpop.f32.mrb[0].mxu0
      %2991 = vmatprep.mubr.f32.mxu0 0.0
      %2992 = vmatmul.mubr.f32.gmra.mrb[0].mxu0 %v1203
      %v2993 = vpop.f32.mrb[0].mxu0
      %v2994 = vadd.f32 0.0, %v2993
      %v2995 = vpop.f32.mrb[0].mxu0
      %2996 = vmatprep.mubr.f32.mxu0 0.0
      %2997 = vmatmul.mubr.f32.gmra.mrb[0].mxu0 %v2005
      %v2998 = vpop.f32.mrb[0].mxu0
      %v2999 = vadd.f32 0.0, %v2998
      %v3000 = vpop.f32.mrb[0].mxu0
      %3001 = vmatprep.mubr.f32.mxu0 0.0
      %3002 = vmatmul.mubr.f32.gmra.mrb[0].mxu0 %v2007
      %v3003 = vpop.f32.mrb[0].mxu0
      %v3004 = vadd.f32 0.0, %v3003
      %v3005 = vpop.f32.mrb[0].mxu0
      %3006 = vmatprep.mubr.f32.mxu0 0.0
      %3007 = vmatmul.mubr.f32.gmra.mrb[0].mxu0 %v1141
      %v3008 = vpop.f32.mrb[0].mxu0
      %v3009 = vadd.f32 0.0, %v3008
      %v3010 = vpop.f32.mrb[0].mxu0
      %3011 = vmatprep.mubr.f32.mxu0 0.0
      %3012 = vmatmul.mubr.f32.gmra.mrb[0].mxu0 %v1143
      %v3013 = vpop.f32.mrb[0].mxu0
      %v3014 = vadd.f32 0.0, %v3013
      %v3015 = vpop.f32.mrb[0].mxu0
      %3016 = vdwg.mxu0
      %v3017 = vadd.f32 %v2757, %v2859
      %v3018 = vadd.f32 %v2758, %v2864
      %v3019 = vadd.f32 %v2759, %v2869
      %v3020 = vadd.f32 %v2760, %v2874
      %v3021 = vadd.f32 %v2761, %v2879
      %v3022 = vadd.f32 %v2762, %v2884
      %v3023 = vadd.f32 %v2763, %v2889
      %v3024 = vadd.f32 %v2764, %v2894
      %v3025 = vadd.f32 %v2765, %v2899
      %v3026 = vadd.f32 %v2766, %v2904
      %v3027 = vadd.f32 %v2767, %v2909
      %v3028 = vadd.f32 %v2768, %v2914
      %v3029 = vadd.f32 %v2769, %v2919
      %v3030 = vadd.f32 %v2770, %v2924
      %v3031 = vadd.f32 %v2771, %v2929
      %v3032 = vadd.f32 %v2772, %v2934
      %v3033 = vadd.f32 %v2773, %v2939
      %v3034 = vadd.f32 %v2774, %v2944
      %v3035 = vadd.f32 %v2775, %v2949
      %v3036 = vadd.f32 %v2776, %v2954
      %v3037 = vadd.f32 %v2777, %v2959
      %v3038 = vadd.f32 %v2778, %v2964
      %v3039 = vadd.f32 %v2779, %v2969
      %v3040 = vadd.f32 %v2780, %v2974
      %v3041 = vadd.f32 %v2781, %v2979
      %v3042 = vadd.f32 %v2782, %v2984
      %v3043 = vadd.f32 %v2783, %v2989
      %v3044 = vadd.f32 %v2784, %v2994
      %v3045 = vadd.f32 %v2785, %v2999
      %v3046 = vadd.f32 %v2786, %v3004
      %v3047 = vadd.f32 %v2787, %v3009
      %v3048 = vadd.f32 %v2788, %v3014
      %v3049 = vld [vmem:[%s2] sm:$0x1]
      %v3051 = vlaneseq
      %v3052 = vshrl.u32 %v3051, 7
      %v3053 = vsub.s32 0, %v3052
      %v3054 = vrot.slane %v3049, %v3053
      %v3056 = vadd.f32 %v3017, %v3054
      %v3057 = vadd.f32 %v3018, %v3054
      %v3058 = vadd.f32 %v3019, %v3054
      %v3059 = vadd.f32 %v3020, %v3054
      %v3060 = vadd.f32 %v3021, %v3054
      %v3061 = vadd.f32 %v3022, %v3054
      %v3062 = vadd.f32 %v3023, %v3054
      %v3063 = vadd.f32 %v3024, %v3054
      %v3064 = vadd.f32 %v3025, %v3054
      %v3065 = vadd.f32 %v3026, %v3054
      %v3066 = vadd.f32 %v3027, %v3054
      %v3067 = vadd.f32 %v3028, %v3054
      %v3068 = vadd.f32 %v3029, %v3054
      %v3069 = vadd.f32 %v3030, %v3054
      %v3070 = vadd.f32 %v3031, %v3054
      %v3071 = vadd.f32 %v3032, %v3054
      %v3072 = vadd.f32 %v3033, %v3054
      %v3073 = vadd.f32 %v3034, %v3054
      %v3074 = vadd.f32 %v3035, %v3054
      %v3075 = vadd.f32 %v3036, %v3054
      %v3076 = vadd.f32 %v3037, %v3054
      %v3077 = vadd.f32 %v3038, %v3054
      %v3078 = vadd.f32 %v3039, %v3054
      %v3079 = vadd.f32 %v3040, %v3054
      %v3080 = vadd.f32 %v3041, %v3054
      %v3081 = vadd.f32 %v3042, %v3054
      %v3082 = vadd.f32 %v3043, %v3054
      %v3083 = vadd.f32 %v3044, %v3054
      %v3084 = vadd.f32 %v3045, %v3054
      %v3085 = vadd.f32 %v3046, %v3054
      %v3086 = vadd.f32 %v3047, %v3054
      %v3087 = vadd.f32 %v3048, %v3054
      %vm3088 = vcmask 261120
      %v3089 = vsel %vm3088, %v3056, 0.0
      %v3090 = vsel %vm3088, %v3057, 0.0
      %v3091 = vadd.f32 %v3089, %v3090
      %v3092 = vsel %vm3088, %v3058, 0.0
      %v3093 = vadd.f32 %v3091, %v3092
      %v3094 = vsel %vm3088, %v3059, 0.0
      %v3095 = vadd.f32 %v3093, %v3094
      %v3096 = vsel %vm3088, %v3060, 0.0
      %v3097 = vadd.f32 %v3095, %v3096
      %v3098 = vsel %vm3088, %v3061, 0.0
      %v3099 = vadd.f32 %v3097, %v3098
      %v3100 = vsel %vm3088, %v3062, 0.0
      %v3101 = vadd.f32 %v3099, %v3100
      %v3102 = vsel %vm3088, %v3063, 0.0
      %v3103 = vadd.f32 %v3101, %v3102
      %v3104 = vsel %vm3088, %v3064, 0.0
      %v3105 = vadd.f32 %v3103, %v3104
      %v3106 = vsel %vm3088, %v3065, 0.0
      %v3107 = vadd.f32 %v3105, %v3106
      %v3108 = vsel %vm3088, %v3066, 0.0
      %v3109 = vadd.f32 %v3107, %v3108
      %v3110 = vsel %vm3088, %v3067, 0.0
      %v3111 = vadd.f32 %v3109, %v3110
      %v3112 = vsel %vm3088, %v3068, 0.0
      %v3113 = vadd.f32 %v3111, %v3112
      %v3114 = vsel %vm3088, %v3069, 0.0
      %v3115 = vadd.f32 %v3113, %v3114
      %v3116 = vsel %vm3088, %v3070, 0.0
      %v3117 = vadd.f32 %v3115, %v3116
      %v3118 = vsel %vm3088, %v3071, 0.0
      %v3119 = vadd.f32 %v3117, %v3118
      %v3120 = vsel %vm3088, %v3072, 0.0
      %v3121 = vadd.f32 %v3119, %v3120
      %v3122 = vsel %vm3088, %v3073, 0.0
      %v3123 = vadd.f32 %v3121, %v3122
      %v3124 = vsel %vm3088, %v3074, 0.0
      %v3125 = vadd.f32 %v3123, %v3124
      %v3126 = vsel %vm3088, %v3075, 0.0
      %v3127 = vadd.f32 %v3125, %v3126
      %v3128 = vsel %vm3088, %v3076, 0.0
      %v3129 = vadd.f32 %v3127, %v3128
      %v3130 = vsel %vm3088, %v3077, 0.0
      %v3131 = vadd.f32 %v3129, %v3130
      %v3132 = vsel %vm3088, %v3078, 0.0
      %v3133 = vadd.f32 %v3131, %v3132
      %v3134 = vsel %vm3088, %v3079, 0.0
      %v3135 = vadd.f32 %v3133, %v3134
      %v3136 = vsel %vm3088, %v3080, 0.0
      %v3137 = vadd.f32 %v3135, %v3136
      %v3138 = vsel %vm3088, %v3081, 0.0
      %v3139 = vadd.f32 %v3137, %v3138
      %v3140 = vsel %vm3088, %v3082, 0.0
      %v3141 = vadd.f32 %v3139, %v3140
      %v3142 = vsel %vm3088, %v3083, 0.0
      %v3143 = vadd.f32 %v3141, %v3142
      %v3144 = vsel %vm3088, %v3084, 0.0
      %v3145 = vadd.f32 %v3143, %v3144
      %v3146 = vsel %vm3088, %v3085, 0.0
      %v3147 = vadd.f32 %v3145, %v3146
      %v3148 = vsel %vm3088, %v3086, 0.0
      %v3149 = vadd.f32 %v3147, %v3148
      %v3150 = vsel %vm3088, %v3087, 0.0
      %v3151 = vadd.f32 %v3149, %v3150
      %v3152 = vrot.slane %v3151, 4
      %v3153 = vadd.f32 %v3151, %v3152
      %v3154 = vrot.slane %v3153, 2
      %v3155 = vadd.f32 %v3153, %v3154
      %v3156 = vrot.slane %v3155, 1
      %v3157 = vadd.f32 %v3155, %v3156
      %v3158 = vmul.f32 %v3056, %v3056
      %v3159 = vmul.f32 %v3057, %v3057
      %v3160 = vmul.f32 %v3058, %v3058
      %v3161 = vmul.f32 %v3059, %v3059
      %v3162 = vmul.f32 %v3060, %v3060
      %v3163 = vmul.f32 %v3061, %v3061
      %v3164 = vmul.f32 %v3062, %v3062
      %v3165 = vmul.f32 %v3063, %v3063
      %v3166 = vmul.f32 %v3064, %v3064
      %v3167 = vmul.f32 %v3065, %v3065
      %v3168 = vmul.f32 %v3066, %v3066
      %v3169 = vmul.f32 %v3067, %v3067
      %v3170 = vmul.f32 %v3068, %v3068
      %v3171 = vmul.f32 %v3069, %v3069
      %v3172 = vmul.f32 %v3070, %v3070
      %v3173 = vmul.f32 %v3071, %v3071
      %v3174 = vmul.f32 %v3072, %v3072
      %v3175 = vmul.f32 %v3073, %v3073
      %v3176 = vmul.f32 %v3074, %v3074
      %v3177 = vmul.f32 %v3075, %v3075
      %v3178 = vmul.f32 %v3076, %v3076
      %v3179 = vmul.f32 %v3077, %v3077
      %v3180 = vmul.f32 %v3078, %v3078
      %v3181 = vmul.f32 %v3079, %v3079
      %v3182 = vmul.f32 %v3080, %v3080
      %v3183 = vmul.f32 %v3081, %v3081
      %v3184 = vmul.f32 %v3082, %v3082
      %v3185 = vmul.f32 %v3083, %v3083
      %v3186 = vmul.f32 %v3084, %v3084
      %v3187 = vmul.f32 %v3085, %v3085
      %v3188 = vmul.f32 %v3086, %v3086
      %v3189 = vmul.f32 %v3087, %v3087
      %v3190 = vsel %vm3088, %v3158, 0.0
      %v3191 = vsel %vm3088, %v3159, 0.0
      %v3192 = vadd.f32 %v3190, %v3191
      %v3193 = vsel %vm3088, %v3160, 0.0
      %v3194 = vadd.f32 %v3192, %v3193
      %v3195 = vsel %vm3088, %v3161, 0.0
      %v3196 = vadd.f32 %v3194, %v3195
      %v3197 = vsel %vm3088, %v3162, 0.0
      %v3198 = vadd.f32 %v3196, %v3197
      %v3199 = vsel %vm3088, %v3163, 0.0
      %v3200 = vadd.f32 %v3198, %v3199
      %v3201 = vsel %vm3088, %v3164, 0.0
      %v3202 = vadd.f32 %v3200, %v3201
      %v3203 = vsel %vm3088, %v3165, 0.0
      %v3204 = vadd.f32 %v3202, %v3203
      %v3205 = vsel %vm3088, %v3166, 0.0
      %v3206 = vadd.f32 %v3204, %v3205
      %v3207 = vsel %vm3088, %v3167, 0.0
      %v3208 = vadd.f32 %v3206, %v3207
      %v3209 = vsel %vm3088, %v3168, 0.0
      %v3210 = vadd.f32 %v3208, %v3209
      %v3211 = vsel %vm3088, %v3169, 0.0
      %v3212 = vadd.f32 %v3210, %v3211
      %v3213 = vsel %vm3088, %v3170, 0.0
      %v3214 = vadd.f32 %v3212, %v3213
      %v3215 = vsel %vm3088, %v3171, 0.0
      %v3216 = vadd.f32 %v3214, %v3215
      %v3217 = vsel %vm3088, %v3172, 0.0
      %v3218 = vadd.f32 %v3216, %v3217
      %v3219 = vsel %vm3088, %v3173, 0.0
      %v3220 = vadd.f32 %v3218, %v3219
      %v3221 = vsel %vm3088, %v3174, 0.0
      %v3222 = vadd.f32 %v3220, %v3221
      %v3223 = vsel %vm3088, %v3175, 0.0
      %v3224 = vadd.f32 %v3222, %v3223
      %v3225 = vsel %vm3088, %v3176, 0.0
      %v3226 = vadd.f32 %v3224, %v3225
      %v3227 = vsel %vm3088, %v3177, 0.0
      %v3228 = vadd.f32 %v3226, %v3227
      %v3229 = vsel %vm3088, %v3178, 0.0
      %v3230 = vadd.f32 %v3228, %v3229
      %v3231 = vsel %vm3088, %v3179, 0.0
      %v3232 = vadd.f32 %v3230, %v3231
      %v3233 = vsel %vm3088, %v3180, 0.0
      %v3234 = vadd.f32 %v3232, %v3233
      %v3235 = vsel %vm3088, %v3181, 0.0
      %v3236 = vadd.f32 %v3234, %v3235
      %v3237 = vsel %vm3088, %v3182, 0.0
      %v3238 = vadd.f32 %v3236, %v3237
      %v3239 = vsel %vm3088, %v3183, 0.0
      %v3240 = vadd.f32 %v3238, %v3239
      %v3241 = vsel %vm3088, %v3184, 0.0
      %v3242 = vadd.f32 %v3240, %v3241
      %v3243 = vsel %vm3088, %v3185, 0.0
      %v3244 = vadd.f32 %v3242, %v3243
      %v3245 = vsel %vm3088, %v3186, 0.0
      %v3246 = vadd.f32 %v3244, %v3245
      %v3247 = vsel %vm3088, %v3187, 0.0
      %v3248 = vadd.f32 %v3246, %v3247
      %v3249 = vsel %vm3088, %v3188, 0.0
      %v3250 = vadd.f32 %v3248, %v3249
      %v3251 = vsel %vm3088, %v3189, 0.0
      %v3252 = vadd.f32 %v3250, %v3251
      %v3253 = vrot.slane %v3252, 4
      %v3254 = vadd.f32 %v3252, %v3253
      %v3255 = vrot.slane %v3254, 2
      %v3256 = vadd.f32 %v3254, %v3255
      %v3257 = vrot.slane %v3256, 1
      %v3258 = vadd.f32 %v3256, %v3257
      %v3259 = vsel %vm243, %v3157, %v3258
      %vm3260 = vcmask 254976
      %3261 = vst.msk [vmem:[%s168] sm:$0x3] %vm3260, %v3259
      %p3262 = scmp.lt.s32.totalorder %s14, 1
      %s3263 = scalar_select %p3262, %s14, 1
      %s3264 = smul.addr %s3263, 2
      %s3265 = scalar_lea.vmem %s3, %s3264
      // Predicated region
      $region33: #{upsample2x.2} parent=31 // pred_check
        %p3266 = pneg %p100
      $region34: #{upsample2x.2} parent=31 // pred_check_branch
        %3268 = sbr.rel (%p3266) target = $region36
      $region35: #{upsample2x.2} parent=31 // pred_region
        _
      $region36: #{upsample2x.2} parent=31 // pred_fallthru
        _
    $region32: #{upsample2x.2} parent=5 // pred_fallthru
      _
    %p3269 = scmp.le.s32.totalorder 2, %s9
    // Predicated region
    $region37: #{upsample2x.2} parent=5 // pred_check
      %p3270 = pneg %p3269
    $region38: #{upsample2x.2} parent=5 // pred_check_branch
      %3272 = sbr.rel (%p3270) target = $region40
    $region39: #{upsample2x.2} parent=5 // pred_region
      %s3273 = ssub.s32 %s9, 2
      // Predicated region
      $region41: #{upsample2x.2} parent=39 // pred_check
        %p3274 = pneg %p106
      $region42: #{upsample2x.2} parent=39 // pred_check_branch
        %3276 = sbr.rel (%p3274) target = $region44
      $region43: #{upsample2x.2} parent=39 // pred_region
        %p3277 = scmp.lt.s32.totalorder %s15, 1
        %s3278 = scalar_select %p3277, %s15, 1
        %s3279 = smul.addr %s3278, 2
        %s3280 = scalar_lea.vmem %s3, %s3279
      $region44: #{upsample2x.2} parent=39 // pred_fallthru
        _
    $region40: #{upsample2x.2} parent=5 // pred_fallthru
      _
  $region6: #{upsample2x.2} parent=0 // loop_footer
    %s13 = sadd.s32 1, %s9
  $region7: #{upsample2x.2} parent=0 // loop_footer_branch
    %8 = sbr.rel target = $region3
  $region8: #{upsample2x.2} parent=0 // loop_exit
    _

// kernel: upsample2x.3
$region0: #{upsample2x.3}
  #allocation0 [shape = 'u32[]', space=smem, size = 0x4, offset = 0x4, fixed_abs, tag = 'smem constant byte address 0x4 - core index']
  #allocation1 [shape = 'u32[144,128]{1,0:T(1,128)}', space=vmem, size = 0x12000, scoped, tag = 'internal scratch']
  %s0 = inlined_call_operand.vmem [shape: f32[2,16,16,4], index: 0, kind: input, shape index: {}]
  %s1 = inlined_call_operand.vmem [shape: f32[3,3,4,32], index: 1, kind: input, shape index: {}]
  %s2 = inlined_call_operand.vmem [shape: f32[1,32], index: 2, kind: input, shape index: {}]
  %s3 = inlined_call_operand.vmem [shape: f32[1,32], index: 3, kind: input, shape index: {}]
  %s4 = inlined_call_operand.vmem [shape: f32[1,32], index: 4, kind: input, shape index: {}]
  %s5 = inlined_call_operand.vmem [shape: f32[2,16,2,16,16], index: 5, kind: output, shape index: {}]
  %s6 = sld [smem:[#allocation0]]
  $region53: #{upsample2x.3} parent=0
    _
  %s8 = ssub.s32 1, %s6
  %s9 = scalar_select 0, %s8, %s6
  loop: start=0, step=1, limit=4
  $region2: #{upsample2x.3} parent=0 // loop_pre_header
    _
  $region3: #{upsample2x.3} parent=0 // loop_header
    %s11 = sphi 0, %s15
    %p12 = scmp.ge.s32.totalorder %s11, 4
    %s21 = sphi 0, %s23
    %s24 = sphi 0, %s21
    %s25 = sphi 0, %s24
    %s41 = sphi 0, %s25
    %s45 = sphi 0, %s45
    %s47 = sphi 0, %s45
    %s48 = sphi 0, %s47
    %s62 = sphi 0, %s48
    %s66 = sphi 0, %s66
    %s68 = sphi 0, %s66
    %s69 = sphi 0, %s68
    %s83 = sphi 0, %s69
    %s87 = sphi 0, %s87
    %s89 = sphi 0, %s87
    %s90 = sphi 0, %s89
    %s104 = sphi 0, %s90
    %s108 = sphi 0, %s108
    %s110 = sphi 0, %s108
    %s111 = sphi 0, %s110
    %s125 = sphi 0, %s111
    %s131 = sphi 0, %s133
    %s134 = sphi 0, %s131
    %s135 = sphi 0, %s134
    %s151 = sphi 0, %s135
  $region4: #{upsample2x.3} parent=0 // loop_header_branch
    %14 = sbr.rel (%p12) target = $region8
  $region5: #{upsample2x.3} parent=0 // loop_body
    %s16 = ssub.s32 %s11, 1
    %s17 = ssub.s32 %s11, 2
    %s18 = sadd.s32 %s11, 1
    %s19 = ssub.s32 %s11, %s18
    %p20 = scmp.eq.s32.totalorder %s19, 0
    %s22 = sadd.s32 %s21, 1
    %s23 = scalar_select %p20, %s21, %s22
    %p26 = pneg %p20
    %p27 = scmp.eq.s32.totalorder %s11, 1
    %p28 = por %p26, %p27
    %p29 = scmp.ne.s32.totalorder %s21, %s24
    %p30 = scmp.eq.s32.totalorder %s11, 0
    %p31 = por %p29, %p30
    %p32 = scmp.ne.s32.totalorder %s21, %s24
    %p33 = scmp.eq.s32.totalorder %s16, 1
    %p34 = por %p32, %p33
    %p35 = scmp.ne.s32.totalorder %s24, %s25
    %p36 = scmp.eq.s32.totalorder %s16, 0
    %p37 = por %p35, %p36
    %p38 = scmp.ne.s32.totalorder %s24, %s25
    %p39 = scmp.eq.s32.totalorder %s17, 1
    %p40 = por %p38, %p39
    %p42 = scmp.ne.s32.totalorder %s25, %s41
    %p43 = scmp.eq.s32.totalorder %s17, 0
    %p44 = por %p42, %p43
    %s46 = sadd.s32 %s45, 1
    %p49 = scmp.eq.s32.totalorder %s11, 1
    %p50 = scmp.ne.s32.totalorder %s45, %s47
    %p51 = scmp.eq.s32.totalorder %s11, 0
    %p52 = por %p50, %p51
    %p53 = scmp.ne.s32.totalorder %s45, %s47
    %p54 = scmp.eq.s32.totalorder %s16, 1
    %p55 = por %p53, %p54
    %p56 = scmp.ne.s32.totalorder %s47, %s48
    %p57 = scmp.eq.s32.totalorder %s16, 0
    %p58 = por %p56, %p57
    %p59 = scmp.ne.s32.totalorder %s47, %s48
    %p60 = scmp.eq.s32.totalorder %s17, 1
    %p61 = por %p59, %p60
    %p63 = scmp.ne.s32.totalorder %s48, %s62
    %p64 = scmp.eq.s32.totalorder %s17, 0
    %p65 = por %p63, %p64
    %s67 = sadd.s32 %s66, 1
    %p70 = scmp.eq.s32.totalorder %s11, 1
    %p71 = scmp.ne.s32.totalorder %s66, %s68
    %p72 = scmp.eq.s32.totalorder %s11, 0
    %p73 = por %p71, %p72
    %p74 = scmp.ne.s32.totalorder %s66, %s68
    %p75 = scmp.eq.s32.totalorder %s16, 1
    %p76 = por %p74, %p75
    %p77 = scmp.ne.s32.totalorder %s68, %s69
    %p78 = scmp.eq.s32.totalorder %s16, 0
    %p79 = por %p77, %p78
    %p80 = scmp.ne.s32.totalorder %s68, %s69
    %p81 = scmp.eq.s32.totalorder %s17, 1
    %p82 = por %p80, %p81
    %p84 = scmp.ne.s32.totalorder %s69, %s83
    %p85 = scmp.eq.s32.totalorder %s17, 0
    %p86 = por %p84, %p85
    %s88 = sadd.s32 %s87, 1
    %p91 = scmp.eq.s32.totalorder %s11, 1
    %p92 = scmp.ne.s32.totalorder %s87, %s89
    %p93 = scmp.eq.s32.totalorder %s11, 0
    %p94 = por %p92, %p93
    %p95 = scmp.ne.s32.totalorder %s87, %s89
    %p96 = scmp.eq.s32.totalorder %s16, 1
    %p97 = por %p95, %p96
    %p98 = scmp.ne.s32.totalorder %s89, %s90
    %p99 = scmp.eq.s32.totalorder %s16, 0
    %p100 = por %p98, %p99
    %p101 = scmp.ne.s32.totalorder %s89, %s90
    %p102 = scmp.eq.s32.totalorder %s17, 1
    %p103 = por %p101, %p102
    %p105 = scmp.ne.s32.totalorder %s90, %s104
    %p106 = scmp.eq.s32.totalorder %s17, 0
    %p107 = por %p105, %p106
    %s109 = sadd.s32 %s108, 1
    %p112 = scmp.eq.s32.totalorder %s11, 1
    %p113 = scmp.ne.s32.totalorder %s108, %s110
    %p114 = scmp.eq.s32.totalorder %s11, 0
    %p115 = por %p113, %p114
    %p116 = scmp.ne.s32.totalorder %s108, %s110
    %p117 = scmp.eq.s32.totalorder %s16, 1
    %p118 = por %p116, %p117
    %p119 = scmp.ne.s32.totalorder %s110, %s111
    %p120 = scmp.eq.s32.totalorder %s16, 0
    %p121 = por %p119, %p120
    %p122 = scmp.ne.s32.totalorder %s110, %s111
    %p123 = scmp.eq.s32.totalorder %s17, 1
    %p124 = por %p122, %p123
    %p126 = scmp.ne.s32.totalorder %s111, %s125
    %p127 = scmp.eq.s32.totalorder %s17, 0
    %p128 = por %p126, %p127
    %s129 = ssub.s32 %s11, %s18
    %p130 = scmp.eq.s32.totalorder %s129, 0
    %s132 = sadd.s32 %s131, 1
    %s133 = scalar_select %p130, %s131, %s132
    %p136 = pneg %p130
    %p137 = scmp.eq.s32.totalorder %s11, 1
    %p138 = por %p136, %p137
    %p139 = scmp.ne.s32.totalorder %s131, %s134
    %p140 = scmp.eq.s32.totalorder %s11, 0
    %p141 = por %p139, %p140
    %p142 = scmp.ne.s32.totalorder %s131, %s134
    %p143 = scmp.eq.s32.totalorder %s16, 1
    %p144 = por %p142, %p143
    %p145 = scmp.ne.s32.totalorder %s134, %s135
    %p146 = scmp.eq.s32.totalorder %s16, 0
    %p147 = por %p145, %p146
    %p148 = scmp.ne.s32.totalorder %s134, %s135
    %p149 = scmp.eq.s32.totalorder %s17, 1
    %p150 = por %p148, %p149
    %p152 = scmp.ne.s32.totalorder %s135, %s151
    %p153 = scmp.eq.s32.totalorder %s17, 0
    %p154 = por %p152, %p153
    %p155 = scmp.le.s32.totalorder 1, %s11
    %p156 = scmp.lt.s32.totalorder %s11, 3
    %p157 = pnand %p155, %p156
    %p158 = pneg %p157
    // Predicated region
    $region9: #{upsample2x.3} parent=5 // pred_check
      _
    $region10: #{upsample2x.3} parent=5 // pred_check_branch
      %160 = sbr.rel (%p157) target = $region12
    $region11: #{upsample2x.3} parent=5 // pred_region
      %s161 = ssub.s32 %s11, 1
      // Predicated region
      $region13: #{upsample2x.3} parent=11 // pred_check
        %p162 = pneg %p58
      $region14: #{upsample2x.3} parent=11 // pred_check_branch
        %164 = sbr.rel (%p162) target = $region16
      $region15: #{upsample2x.3} parent=11 // pred_region
        _
      $region16: #{upsample2x.3} parent=11 // pred_fallthru
        _
      // Predicated region
      $region17: #{upsample2x.3} parent=11 // pred_check
        %p165 = pneg %p79
      $region18: #{upsample2x.3} parent=11 // pred_check_branch
        %167 = sbr.rel (%p165) target = $region20
      $region19: #{upsample2x.3} parent=11 // pred_region
        _
      $region20: #{upsample2x.3} parent=11 // pred_fallthru
        _
      // Predicated region
      $region21: #{upsample2x.3} parent=11 // pred_check
        %p168 = pneg %p100
      $region22: #{upsample2x.3} parent=11 // pred_check_branch
        %170 = sbr.rel (%p168) target = $region24
      $region23: #{upsample2x.3} parent=11 // pred_region
        _
      $region24: #{upsample2x.3} parent=11 // pred_fallthru
        _
      // Predicated region
      $region25: #{upsample2x.3} parent=11 // pred_check
        %p171 = pneg %p121
      $region26: #{upsample2x.3} parent=11 // pred_check_branch
        %173 = sbr.rel (%p171) target = $region28
      $region27: #{upsample2x.3} parent=11 // pred_region
        _
      $region28: #{upsample2x.3} parent=11 // pred_fallthru
        _
    $region12: #{upsample2x.3} parent=5 // pred_fallthru
      _
    %p174 = scmp.lt.s32.totalorder %s11, 2
    // Predicated region
    $region29: #{upsample2x.3} parent=5 // pred_check
      %p175 = pneg %p174
    $region30: #{upsample2x.3} parent=5 // pred_check_branch
      %177 = sbr.rel (%p175) target = $region32
    $region31: #{upsample2x.3} parent=5 // pred_region
      // Predicated region
      $region33: #{upsample2x.3} parent=31 // pred_check
        %p178 = pneg %p31
      $region34: #{upsample2x.3} parent=31 // pred_check_branch
        %180 = sbr.rel (%p178) target = $region36
      $region35: #{upsample2x.3} parent=31 // pred_region
        %p181 = scmp.lt.s32.totalorder %s11, 1
        %s182 = scalar_select %p181, %s11, 1
        %s183 = smul.addr %s182, 32
        %s184 = smul.addr %s183, 8
        %s185 = scalar_lea.vmem %s0, %s184
      $region36: #{upsample2x.3} parent=31 // pred_fallthru
        _
    $region32: #{upsample2x.3} parent=5 // pred_fallthru
      _
    %p186 = scmp.le.s32.totalorder 1, %s11
    %p187 = scmp.lt.s32.totalorder %s11, 3
    %p188 = pnand %p186, %p187
    %p189 = pneg %p188
    // Predicated region
    $region37: #{upsample2x.3} parent=5 // pred_check
      _
    $region38: #{upsample2x.3} parent=5 // pred_check_branch
      %191 = sbr.rel (%p188) target = $region40
    $region39: #{upsample2x.3} parent=5 // pred_region
      %s192 = ssub.s32 %s11, 1
      %p193 = scmp.lt.s32.totalorder %s16, 1
      %s194 = scalar_select %p193, %s16, 1
      %s195 = smul.addr %s194, 32
      %s196 = smul.addr %s195, 8
      %s197 = scalar_lea.vmem %s0, %s196
      %p198 = pneg %p37
      %p199 = pneg %p34
      %p200 = pneg %p58
      %p201 = pneg %p55
      %p202 = pneg %p79
      %p203 = pneg %p76
      %p204 = pneg %p100
      %p205 = pneg %p97
      %p206 = pneg %p121
      %p207 = pneg %p118
      %p208 = pneg %p147
      %p209 = pneg %p144
      %p210 = scmp.lt.s32.totalorder %s16, 1
      %s211 = scalar_select %p210, %s16, 1
      %s212 = smul.addr %s211, 64
      %s213 = smul.addr %s212, 8
      %s214 = scalar_lea.vmem %s5, %s213
      %p215 = scmp.lt.s32.totalorder %s16, 1
      %s216 = scalar_select %p215, %s16, 1
      %s217 = smul.addr %s216, 32
      %s218 = smul.addr %s217, 8
      %s219 = scalar_lea.vmem %s0, %s218
      %p220 = scmp.lt.s32.totalorder %s16, 1
      %s221 = scalar_select %p220, %s16, 1
      %s222 = smul.addr %s221, 64
      %s223 = smul.addr %s222, 8
      %s224 = scalar_lea.vmem %s5, %s223
      %v225 = vld [vmem:[%s219] sm:$0xff]
      %v226 = vld [vmem:[%s219 + $0x8] sm:$0xff]
      %v227 = vld [vmem:[%s219 + $0x10] sm:$0xff]
      %v228 = vld [vmem:[%s219 + $0x18] sm:$0xff]
      %v229 = vld [vmem:[%s219 + $0x20] sm:$0xff]
      %v230 = vld [vmem:[%s219 + $0x28] sm:$0xff]
      %v231 = vld [vmem:[%s219 + $0x30] sm:$0xff]
      %v232 = vld [vmem:[%s219 + $0x38] sm:$0xff]
      %v233 = vld [vmem:[%s219 + $0x40] sm:$0xff]
      %v234 = vld [vmem:[%s219 + $0x48] sm:$0xff]
      %v235 = vld [vmem:[%s219 + $0x50] sm:$0xff]
      %v236 = vld [vmem:[%s219 + $0x58] sm:$0xff]
      %v237 = vld [vmem:[%s219 + $0x60] sm:$0xff]
      %v238 = vld [vmem:[%s219 + $0x68] sm:$0xff]
      %v239 = vld [vmem:[%s219 + $0x70] sm:$0xff]
      %v240 = vld [vmem:[%s219 + $0x78] sm:$0xff]
      %v241 = vld [vmem:[%s219 + $0x80] sm:$0xff]
      %v242 = vld [vmem:[%s219 + $0x88] sm:$0xff]
      %v243 = vld [vmem:[%s219 + $0x90] sm:$0xff]
      %v244 = vld [vmem:[%s219 + $0x98] sm:$0xff]
      %v245 = vld [vmem:[%s219 + $0xa0] sm:$0xff]
      %v246 = vld [vmem:[%s219 + $0xa8] sm:$0xff]
      %v247 = vld [vmem:[%s219 + $0xb0] sm:$0xff]
      %v248 = vld [vmem:[%s219 + $0xb8] sm:$0xff]
      %v249 = vld [vmem:[%s219 + $0xc0] sm:$0xff]
      %v250 = vld [vmem:[%s219 + $0xc8] sm:$0xff]
      %v251 = vld [vmem:[%s219 + $0xd0] sm:$0xff]
      %v252 = vld [vmem:[%s219 + $0xd8] sm:$0xff]
      %v253 = vld [vmem:[%s219 + $0xe0] sm:$0xff]
      %v254 = vld [vmem:[%s219 + $0xe8] sm:$0xff]
      %v255 = vld [vmem:[%s219 + $0xf0] sm:$0xff]
      %v256 = vld [vmem:[%s219 + $0xf8] sm:$0xff]
      %v257 = vld [vmem:[%s1] sm:$0xf]
      %v258 = vld [vmem:[%s1 + $0x4] sm:$0xf]
      %v259 = vld [vmem:[%s1 + $0x8] sm:$0xf]
      %v260 = vld [vmem:[%s1 + $0xc] sm:$0xf]
      %v261 = vld [vmem:[%s1 + $0x10] sm:$0xf]
      %v262 = vld [vmem:[%s1 + $0x14] sm:$0xf]
      %v263 = vld [vmem:[%s1 + $0x18] sm:$0xf]
      %v264 = vld [vmem:[%s1 + $0x1c] sm:$0xf]
      %v265 = vld [vmem:[%s1 + $0x20] sm:$0xf]
      %vm299 = vcmask 1040384
      %v300 = vrot.slane 0.0, 7
      %v301 = vsel %vm299, %v300, %v300
      %v302 = vrot.slane %v225, 7
      %v303 = vrot.slane %v226, 7
      %v304 = vsel %vm299, %v302, %v303
      %v305 = vrot.slane %v227, 7
      %v306 = vrot.slane %v228, 7
      %v307 = vsel %vm299, %v305, %v306
      %v308 = vrot.slane %v229, 7
      %v309 = vrot.slane %v230, 7
      %v310 = vsel %vm299, %v308, %v309
      %v311 = vrot.slane %v231, 7
      %v312 = vrot.slane %v232, 7
      %v313 = vsel %vm299, %v311, %v312
      %v314 = vrot.slane %v233, 7
      %v315 = vrot.slane %v234, 7
      %v316 = vsel %vm299, %v314, %v315
      %v317 = vrot.slane %v235, 7
      %v318 = vrot.slane %v236, 7
      %v319 = vsel %vm299, %v317, %v318
      %v320 = vrot.slane %v237, 7
      %v321 = vrot.slane %v238, 7
      %v322 = vsel %vm299, %v320, %v321
      %v323 = vrot.slane %v239, 7
      %v324 = vrot.slane %v240, 7
      %v325 = vsel %vm299, %v323, %v324
      %v326 = vrot.slane %v241, 7
      %v327 = vrot.slane %v242, 7
      %v328 = vsel %vm299, %v326, %v327
      %v329 = vrot.slane %v243, 7
      %v330 = vrot.slane %v244, 7
      %v331 = vsel %vm299, %v329, %v330
      %v332 = vrot.slane %v245, 7
      %v333 = vrot.slane %v246, 7
      %v334 = vsel %vm299, %v332, %v333
      %v335 = vrot.slane %v247, 7
      %v336 = vrot.slane %v248, 7
      %v337 = vsel %vm299, %v335, %v336
      %v338 = vrot.slane %v249, 7
      %v339 = vrot.slane %v250, 7
      %v340 = vsel %vm299, %v338, %v339
      %v341 = vrot.slane %v251, 7
      %v342 = vrot.slane %v252, 7
      %v343 = vsel %vm299, %v341, %v342
      %v344 = vrot.slane %v253, 7
      %v345 = vrot.slane %v254, 7
      %v346 = vsel %vm299, %v344, %v345
      %v347 = vrot.slane %v255, 7
      %v348 = vrot.slane %v256, 7
      %v349 = vsel %vm299, %v347, %v348
      %v383 = vsel %vm299, 0.0, %v300
      %v384 = vsel %vm299, 0.0, %v302
      %v385 = vsel %vm299, 0.0, %v305
      %v386 = vsel %vm299, 0.0, %v308
      %v387 = vsel %vm299, 0.0, %v311
      %v388 = vsel %vm299, 0.0, %v314
      %v389 = vsel %vm299, 0.0, %v317
      %v390 = vsel %vm299, 0.0, %v320
      %v391 = vsel %vm299, 0.0, %v323
      %v392 = vsel %vm299, 0.0, %v326
      %v393 = vsel %vm299, 0.0, %v329
      %v394 = vsel %vm299, 0.0, %v332
      %v395 = vsel %vm299, 0.0, %v335
      %v396 = vsel %vm299, 0.0, %v338
      %v397 = vsel %vm299, 0.0, %v341
      %v398 = vsel %vm299, 0.0, %v344
      %v399 = vsel %vm299, 0.0, %v347
      %v400 = vsel %vm299, %v300, 0.0
      %v401 = vsel %vm299, %v303, 0.0
      %v402 = vsel %vm299, %v306, 0.0
      %v403 = vsel %vm299, %v309, 0.0
      %v404 = vsel %vm299, %v312, 0.0
      %v405 = vsel %vm299, %v315, 0.0
      %v406 = vsel %vm299, %v318, 0.0
      %v407 = vsel %vm299, %v321, 0.0
      %v408 = vsel %vm299, %v324, 0.0
      %v409 = vsel %vm299, %v327, 0.0
      %v410 = vsel %vm299, %v330, 0.0
      %v411 = vsel %vm299, %v333, 0.0
      %v412 = vsel %vm299, %v336, 0.0
      %v413 = vsel %vm299, %v339, 0.0
      %v414 = vsel %vm299, %v342, 0.0
      %v415 = vsel %vm299, %v345, 0.0
      %v416 = vsel %vm299, %v348, 0.0
      %vm449 = vcmask 1046528
      %v450 = vrot.slane %v383, 1
      %v451 = vrot.slane %v301, 1
      %v452 = vsel %vm449, %v450, %v451
      %v453 = vrot.slane %v400, 1
      %v454 = vsel %vm449, %v451, %v453
      %v455 = vrot.slane %v384, 1
      %v456 = vrot.slane %v304, 1
      %v457 = vsel %vm449, %v455, %v456
      %v458 = vrot.slane %v401, 1
      %v459 = vsel %vm449, %v456, %v458
      %v460 = vrot.slane %v385, 1
      %v461 = vrot.slane %v307, 1
      %v462 = vsel %vm449, %v460, %v461
      %v463 = vrot.slane %v402, 1
      %v464 = vsel %vm449, %v461, %v463
      %v465 = vrot.slane %v386, 1
      %v466 = vrot.slane %v310, 1
      %v467 = vsel %vm449, %v465, %v466
      %v468 = vrot.slane %v403, 1
      %v469 = vsel %vm449, %v466, %v468
      %v470 = vrot.slane %v387, 1
      %v471 = vrot.slane %v313, 1
      %v472 = vsel %vm449, %v470, %v471
      %v473 = vrot.slane %v404, 1
      %v474 = vsel %vm449, %v471, %v473
      %v475 = vrot.slane %v388, 1
      %v476 = vrot.slane %v316, 1
      %v477 = vsel %vm449, %v475, %v476
      %v478 = vrot.slane %v405, 1
      %v479 = vsel %vm449, %v476, %v478
      %v480 = vrot.slane %v389, 1
      %v481 = vrot.slane %v319, 1
      %v482 = vsel %vm449, %v480, %v481
      %v483 = vrot.slane %v406, 1
      %v484 = vsel %vm449, %v481, %v483
      %v485 = vrot.slane %v390, 1
      %v486 = vrot.slane %v322, 1
      %v487 = vsel %vm449, %v485, %v486
      %v488 = vrot.slane %v407, 1
      %v489 = vsel %vm449, %v486, %v488
      %v490 = vrot.slane %v391, 1
      %v491 = vrot.slane %v325, 1
      %v492 = vsel %vm449, %v490, %v491
      %v493 = vrot.slane %v408, 1
      %v494 = vsel %vm449, %v491, %v493
      %v495 = vrot.slane %v392, 1
      %v496 = vrot.slane %v328, 1
      %v497 = vsel %vm449, %v495, %v496
      %v498 = vrot.slane %v409, 1
      %v499 = vsel %vm449, %v496, %v498
      %v500 = vrot.slane %v393, 1
      %v501 = vrot.slane %v331, 1
      %v502 = vsel %vm449, %v500, %v501
      %v503 = vrot.slane %v410, 1
      %v504 = vsel %vm449, %v501, %v503
      %v505 = vrot.slane %v394, 1
      %v506 = vrot.slane %v334, 1
      %v507 = vsel %vm449, %v505, %v506
      %v508 = vrot.slane %v411, 1
      %v509 = vsel %vm449, %v506, %v508
      %v510 = vrot.slane %v395, 1
      %v511 = vrot.slane %v337, 1
      %v512 = vsel %vm449, %v510, %v511
      %v513 = vrot.slane %v412, 1
      %v514 = vsel %vm449, %v511, %v513
      %v515 = vrot.slane %v396, 1
      %v516 = vrot.slane %v340, 1
      %v517 = vsel %vm449, %v515, %v516
      %v518 = vrot.slane %v413, 1
      %v519 = vsel %vm449, %v516, %v518
      %v520 = vrot.slane %v397, 1
      %v521 = vrot.slane %v343, 1
      %v522 = vsel %vm449, %v520, %v521
      %v523 = vrot.slane %v414, 1
      %v524 = vsel %vm449, %v521, %v523
      %v525 = vrot.slane %v398, 1
      %v526 = vrot.slane %v346, 1
      %v527 = vsel %vm449, %v525, %v526
      %v528 = vrot.slane %v415, 1
      %v529 = vsel %vm449, %v526, %v528
      %vm530 = vcmask 31744
      %v531 = vsel %vm530, %v452, 0
      %v533 = vsel %vm530, %v454, 0
      %v535 = vsel %vm530, %v457, 0
      %v537 = vsel %vm530, %v459, 0
      %v539 = vsel %vm530, %v462, 0
      %v541 = vsel %vm530, %v464, 0
      %v543 = vsel %vm530, %v467, 0
      %v545 = vsel %vm530, %v469, 0
      %v547 = vsel %vm530, %v472, 0
      %v549 = vsel %vm530, %v474, 0
      %v551 = vsel %vm530, %v477, 0
      %v553 = vsel %vm530, %v479, 0
      %v555 = vsel %vm530, %v482, 0
      %v557 = vsel %vm530, %v484, 0
      %v559 = vsel %vm530, %v487, 0
      %v561 = vsel %vm530, %v489, 0
      %v563 = vsel %vm530, %v492, 0
      %v565 = vsel %vm530, %v494, 0
      %v567 = vsel %vm530, %v497, 0
      %v569 = vsel %vm530, %v499, 0
      %v571 = vsel %vm530, %v502, 0
      %v573 = vsel %vm530, %v504, 0
      %v575 = vsel %vm530, %v507, 0
      %v577 = vsel %vm530, %v509, 0
      %v579 = vsel %vm530, %v512, 0
      %v581 = vsel %vm530, %v514, 0
      %v583 = vsel %vm530, %v517, 0
      %v585 = vsel %vm530, %v519, 0
      %v587 = vsel %vm530, %v522, 0
      %v589 = vsel %vm530, %v524, 0
      %v591 = vsel %vm530, %v527, 0
      %v593 = vsel %vm530, %v529, 0
      %vm595 = vcmask 1043456
      %v597 = vsel %vm595, %v258, 0
      %599 = vmatprep.subr.mxu0 0.0
      %600 = vmatpush1.msra.mxu0 %v597
      %601 = vmatprep.subr.mxu0 0.0
      %602 = vmatpush1.msra.mxu0 0.0
      %603 = vmatprep.subr.mxu0 0.0
      %604 = vmatpush1.msra.mxu0 0.0
      %605 = vmatprep.subr.mxu0 0.0
      %606 = vmatpush1.msra.mxu0 0.0
      %607 = vmatprep.subr.mxu0 0.0
      %608 = vmatpush1.msra.mxu0 0.0
      %609 = vmatprep.subr.mxu0 0.0
      %610 = vmatpush1.msra.mxu0 0.0
      %611 = vmatprep.subr.mxu0 0.0
      %612 = vmatpush1.msra.mxu0 0.0
      %613 = vmatprep.subr.mxu0 0.0
      %614 = vmatpush1.msra.mxu0 0.0
      %615 = vmatprep.subr.mxu0 0.0
      %616 = vmatpush1.msra.mxu0 0.0
      %617 = vmatprep.subr.mxu0 0.0
      %618 = vmatpush1.msra.mxu0 0.0
      %619 = vmatprep.subr.mxu0 0.0
      %620 = vmatpush1.msra.mxu0 0.0
      %621 = vmatprep.subr.mxu0 0.0
      %622 = vmatpush1.msra.mxu0 0.0
      %623 = vmatprep.subr.mxu0 0.0
      %624 = vmatpush1.msra.mxu0 0.0
      %625 = vmatprep.subr.mxu0 0.0
      %626 = vmatpush1.msra.mxu0 0.0
      %627 = vmatprep.subr.mxu0 0.0
      %628 = vmatpush1.msra.mxu0 0.0
      %629 = vmatprep.subr.mxu0 0.0
      %630 = vmatpush1.msra.mxu0 0.0
      %631 = vmatprep.subr.mxu0 0.0
      %632 = vmatpush1.msra.mxu0 0.0
      %633 = vmatprep.subr.mxu0 0.0
      %634 = vmatpush1.msra.mxu0 0.0
      %635 = vmatprep.subr.mxu0 0.0
      %636 = vmatpush1.msra.mxu0 0.0
      %637 = vmatprep.subr.mxu0 0.0
      %638 = vmatpush1.msra.mxu0 0.0
      %639 = vmatprep.subr.mxu0 0.0
      %640 = vmatpush1.msra.mxu0 0.0
      %641 = vmatprep.subr.mxu0 0.0
      %642 = vmatpush1.msra.mxu0 0.0
      %643 = vmatprep.subr.mxu0 0.0
      %644 = vmatpush1.msra.mxu0 0.0
      %645 = vmatprep.subr.mxu0 0.0
      %646 = vmatpush1.msra.mxu0 0.0
      %647 = vmatprep.subr.mxu0 0.0
      %648 = vmatpush1.msra.mxu0 0.0
      %649 = vmatprep.subr.mxu0 0.0
      %650 = vmatpush1.msra.mxu0 0.0
      %651 = vmatprep.subr.mxu0 0.0
      %652 = vmatpush1.msra.mxu0 0.0
      %653 = vmatprep.subr.mxu0 0.0
      %654 = vmatpush1.msra.mxu0 0.0
      %655 = vmatprep.subr.mxu0 0.0
      %656 = vmatpush1.msra.mxu0 0.0
      %657 = vmatprep.subr.mxu0 0.0
      %658 = vmatpush1.msra.mxu0 0.0
      %659 = vmatprep.subr.mxu0 0.0
      %660 = vmatpush1.msra.mxu0 0.0
      %661 = vmatprep.subr.mxu0 0.0
      %662 = vmatpush1.msra.mxu0 0.0
      %663 = vmatprep.mubr.f32.mxu0 0.0
      %664 = vmatmul.mubr.f32.gmra.mrb[0].mxu0 %v531
      %v665 = vpop.f32.mrb[0].mxu0
      %v666 = vadd.f32 0.0, %v665
      %v667 = vpop.f32.mrb[0].mxu0
      %668 = vmatprep.mubr.f32.mxu0 0.0
      %669 = vmatmul.mubr.f32.gmra.mrb[0].mxu0 %v533
      %v670 = vpop.f32.mrb[0].mxu0
      %v671 = vadd.f32 0.0, %v670
      %v672 = vpop.f32.mrb[0].mxu0
      %673 = vmatprep.mubr.f32.mxu0 0.0
      %674 = vmatmul.mubr.f32.gmra.mrb[0].mxu0 %v535
      %v675 = vpop.f32.mrb[0].mxu0
      %v676 = vadd.f32 0.0, %v675
      %v677 = vpop.f32.mrb[0].mxu0
      %678 = vmatprep.mubr.f32.mxu0 0.0
      %679 = vmatmul.mubr.f32.gmra.mrb[0].mxu0 %v537
      %v680 = vpop.f32.mrb[0].mxu0
      %v681 = vadd.f32 0.0, %v680
      %v682 = vpop.f32.mrb[0].mxu0
      %683 = vmatprep.mubr.f32.mxu0 0.0
      %684 = vmatmul.mubr.f32.gmra.mrb[0].mxu0 %v539
      %v685 = vpop.f32.mrb[0].mxu0
      %v686 = vadd.f32 0.0, %v685
      %v687 = vpop.f32.mrb[0].mxu0
      %688 = vmatprep.mubr.f32.mxu0 0.0
      %689 = vmatmul.mubr.f32.gmra.mrb[0].mxu0 %v541
      %v690 = vpop.f32.mrb[0].mxu0
      %v691 = vadd.f32 0.0, %v690
      %v692 = vpop.f32.mrb[0].mxu0
      %693 = vmatprep.mubr.f32.mxu0 0.0
      %694 = vmatmul.mubr.f32.gmra.mrb[0].mxu0 %v543
      %v695 = vpop.f32.mrb[0].mxu0
      %v696 = vadd.f32 0.0, %v695
      %v697 = vpop.f32.mrb[0].mxu0
      %698 = vmatprep.mubr.f32.mxu0 0.0
      %699 = vmatmul.mubr.f32.gmra.mrb[0].mxu0 %v545
      %v700 = vpop.f32.mrb[0].mxu0
      %v701 = vadd.f32 0.0, %v700
      %v702 = vpop.f32.mrb[0].mxu0
      %703 = vmatprep.mubr.f32.mxu0 0.0
      %704 = vmatmul.mubr.f32.gmra.mrb[0].mxu0 %v547
      %v705 = vpop.f32.mrb[0].mxu0
      %v706 = vadd.f32 0.0, %v705
      %v707 = vpop.f32.mrb[0].mxu0
      %708 = vmatprep.mubr.f32.mxu0 0.0
      %709 = vmatmul.mubr.f32.gmra.mrb[0].mxu0 %v549
      %v710 = vpop.f32.mrb[0].mxu0
      %v711 = vadd.f32 0.0, %v710
      %v712 = vpop.f32.mrb[0].mxu0
      %713 = vmatprep.mubr.f32.mxu0 0.0
      %714 = vmatmul.mubr.f32.gmra.mrb[0].mxu0 %v551
      %v715 = vpop.f32.mrb[0].mxu0
      %v716 = vadd.f32 0.0, %v715
      %v717 = vpop.f32.mrb[0].mxu0
      %718 = vmatprep.mubr.f32.mxu0 0.0
      %719 = vmatmul.mubr.f32.gmra.mrb[0].mxu0 %v553
      %v720 = vpop.f32.mrb[0].mxu0
      %v721 = vadd.f32 0.0, %v720
      %v722 = vpop.f32.mrb[0].mxu0
      %723 = vmatprep.mubr.f32.mxu0 0.0
      %724 = vmatmul.mubr.f32.gmra.mrb[0].mxu0 %v555
      %v725 = vpop.f32.mrb[0].mxu0
      %v726 = vadd.f32 0.0, %v725
      %v727 = vpop.f32.mrb[0].mxu0
      %728 = vmatprep.mubr.f32.mxu0 0.0
      %729 = vmatmul.mubr.f32.gmra.mrb[0].mxu0 %v557
      %v730 = vpop.f32.mrb[0].mxu0
      %v731 = vadd.f32 0.0, %v730
      %v732 = vpop.f32.mrb[0].mxu0
      %733 = vmatprep.mubr.f32.mxu0 0.0
      %734 = vmatmul.mubr.f32.gmra.mrb[0].mxu0 %v559
      %v735 = vpop.f32.mrb[0].mxu0
      %v736 = vadd.f32 0.0, %v735
      %v737 = vpop.f32.mrb[0].mxu0
      %738 = vmatprep.mubr.f32.mxu0 0.0
      %739 = vmatmul.mubr.f32.gmra.mrb[0].mxu0 %v561
      %v740 = vpop.f32.mrb[0].mxu0
      %v741 = vadd.f32 0.0, %v740
      %v742 = vpop.f32.mrb[0].mxu0
      %743 = vmatprep.mubr.f32.mxu0 0.0
      %744 = vmatmul.mubr.f32.gmra.mrb[0].mxu0 %v563
      %v745 = vpop.f32.mrb[0].mxu0
      %v746 = vadd.f32 0.0, %v745
      %v747 = vpop.f32.mrb[0].mxu0
      %748 = vmatprep.mubr.f32.mxu0 0.0
      %749 = vmatmul.mubr.f32.gmra.mrb[0].mxu0 %v565
      %v750 = vpop.f32.mrb[0].mxu0
      %v751 = vadd.f32 0.0, %v750
      %v752 = vpop.f32.mrb[0].mxu0
      %753 = vmatprep.mubr.f32.mxu0 0.0
      %754 = vmatmul.mubr.f32.gmra.mrb[0].mxu0 %v567
      %v755 = vpop.f32.mrb[0].mxu0
      %v756 = vadd.f32 0.0, %v755
      %v757 = vpop.f32.mrb[0].mxu0
      %758 = vmatprep.mubr.f32.mxu0 0.0
      %759 = vmatmul.mubr.f32.gmra.mrb[0].mxu0 %v569
      %v760 = vpop.f32.mrb[0].mxu0
      %v761 = vadd.f32 0.0, %v760
      %v762 = vpop.f32.mrb[0].mxu0
      %763 = vmatprep.mubr.f32.mxu0 0.0
      %764 = vmatmul.mubr.f32.gmra.mrb[0].mxu0 %v571
      %v765 = vpop.f32.mrb[0].mxu0
      %v766 = vadd.f32 0.0, %v765
      %v767 = vpop.f32.mrb[0].mxu0
      %768 = vmatprep.mubr.f32.mxu0 0.0
      %769 = vmatmul.mubr.f32.gmra.mrb[0].mxu0 %v573
      %v770 = vpop.f32.mrb[0].mxu0
      %v771 = vadd.f32 0.0, %v770
      %v772 = vpop.f32.mrb[0].mxu0
      %773 = vmatprep.mubr.f32.mxu0 0.0
      %774 = vmatmul.mubr.f32.gmra.mrb[0].mxu0 %v575
      %v775 = vpop.f32.mrb[0].mxu0
      %v776 = vadd.f32 0.0, %v775
      %v777 = vpop.f32.mrb[0].mxu0
      %778 = vmatprep.mubr.f32.mxu0 0.0
      %779 = vmatmul.mubr.f32.gmra.mrb[0].mxu0 %v577
      %v780 = vpop.f32.mrb[0].mxu0
      %v781 = vadd.f32 0.0, %v780
      %v782 = vpop.f32.mrb[0].mxu0
      %783 = vmatprep.mubr.f32.mxu0 0.0
      %784 = vmatmul.mubr.f32.gmra.mrb[0].mxu0 %v579
      %v785 = vpop.f32.mrb[0].mxu0
      %v786 = vadd.f32 0.0, %v785
      %v787 = vpop.f32.mrb[0].mxu0
      %788 = vmatprep.mubr.f32.mxu0 0.0
      %789 = vmatmul.mubr.f32.gmra.mrb[0].mxu0 %v581
      %v790 = vpop.f32.mrb[0].mxu0
      %v791 = vadd.f32 0.0, %v790
      %v792 = vpop.f32.mrb[0].mxu0
      %793 = vmatprep.mubr.f32.mxu0 0.0
      %794 = vmatmul.mubr.f32.gmra.mrb[0].mxu0 %v583
      %v795 = vpop.f32.mrb[0].mxu0
      %v796 = vadd.f32 0.0, %v795
      %v797 = vpop.f32.mrb[0].mxu0
      %798 = vmatprep.mubr.f32.mxu0 0.0
      %799 = vmatmul.mubr.f32.gmra.mrb[0].mxu0 %v585
      %v800 = vpop.f32.mrb[0].mxu0
      %v801 = vadd.f32 0.0, %v800
      %v802 = vpop.f32.mrb[0].mxu0
      %803 = vmatprep.mubr.f32.mxu0 0.0
      %804 = vmatmul.mubr.f32.gmra.mrb[0].mxu0 %v587
      %v805 = vpop.f32.mrb[0].mxu0
      %v806 = vadd.f32 0.0, %v805
      %v807 = vpop.f32.mrb[0].mxu0
      %808 = vmatprep.mubr.f32.mxu0 0.0
      %809 = vmatmul.mubr.f32.gmra.mrb[0].mxu0 %v589
      %v810 = vpop.f32.mrb[0].mxu0
      %v811 = vadd.f32 0.0, %v810
      %v812 = vpop.f32.mrb[0].mxu0
      %813 = vmatprep.mubr.f32.mxu0 0.0
      %814 = vmatmul.mubr.f32.gmra.mrb[0].mxu0 %v591
      %v815 = vpop.f32.mrb[0].mxu0
      %v816 = vadd.f32 0.0, %v815
      %v817 = vpop.f32.mrb[0].mxu0
      %818 = vmatprep.mubr.f32.mxu0 0.0
      %819 = vmatmul.mubr.f32.gmra.mrb[0].mxu0 %v593
      %v820 = vpop.f32.mrb[0].mxu0
      %v821 = vadd.f32 0.0, %v820
      %v822 = vpop.f32.mrb[0].mxu0
      %823 = vdwg.mxu0
      %v824 = vsel %vm530, %v383, 0
      %v826 = vsel %vm530, %v301, 0
      %v828 = vsel %vm530, %v384, 0
      %v830 = vsel %vm530, %v304, 0
      %v832 = vsel %vm530, %v385, 0
      %v834 = vsel %vm530, %v307, 0
      %v836 = vsel %vm530, %v386, 0
      %v838 = vsel %vm530, %v310, 0
      %v840 = vsel %vm530, %v387, 0
      %v842 = vsel %vm530, %v313, 0
      %v844 = vsel %vm530, %v388, 0
      %v846 = vsel %vm530, %v316, 0
      %v848 = vsel %vm530, %v389, 0
      %v850 = vsel %vm530, %v319, 0
      %v852 = vsel %vm530, %v390, 0
      %v854 = vsel %vm530, %v322, 0
      %v856 = vsel %vm530, %v391, 0
      %v858 = vsel %vm530, %v325, 0
      %v860 = vsel %vm530, %v392, 0
      %v862 = vsel %vm530, %v328, 0
      %v864 = vsel %vm530, %v393, 0
      %v866 = vsel %vm530, %v331, 0
      %v868 = vsel %vm530, %v394, 0
      %v870 = vsel %vm530, %v334, 0
      %v872 = vsel %vm530, %v395, 0
      %v874 = vsel %vm530, %v337, 0
      %v876 = vsel %vm530, %v396, 0
      %v878 = vsel %vm530, %v340, 0
      %v880 = vsel %vm530, %v397, 0
      %v882 = vsel %vm530, %v343, 0
      %v884 = vsel %vm530, %v398, 0
      %v886 = vsel %vm530, %v346, 0
      %v889 = vsel %vm595, %v257, 0
      %891 = vmatprep.subr.mxu0 0.0
      %892 = vmatpush1.msra.mxu0 %v889
      %893 = vmatprep.subr.mxu0 0.0
      %894 = vmatpush1.msra.mxu0 0.0
      %895 = vmatprep.subr.mxu0 0.0
      %896 = vmatpush1.msra.mxu0 0.0
      %897 = vmatprep.subr.mxu0 0.0
      %898 = vmatpush1.msra.mxu0 0.0
      %899 = vmatprep.subr.mxu0 0.0
      %900 = vmatpush1.msra.mxu0 0.0
      %901 = vmatprep.subr.mxu0 0.0
      %902 = vmatpush1.msra.mxu0 0.0
      %903 = vmatprep.subr.mxu0 0.0
      %904 = vmatpush1.msra.mxu0 0.0
      %905 = vmatprep.subr.mxu0 0.0
      %906 = vmatpush1.msra.mxu0 0.0
      %907 = vmatprep.subr.mxu0 0.0
      %908 = vmatpush1.msra.mxu0 0.0
      %909 = vmatprep.subr.mxu0 0.0
      %910 = vmatpush1.msra.mxu0 0.0
      %911 = vmatprep.subr.mxu0 0.0
      %912 = vmatpush1.msra.mxu0 0.0
      %913 = vmatprep.subr.mxu0 0.0
      %914 = vmatpush1.msra.mxu0 0.0
      %915 = vmatprep.subr.mxu0 0.0
      %916 = vmatpush1.msra.mxu0 0.0
      %917 = vmatprep.subr.mxu0 0.0
      %918 = vmatpush1.msra.mxu0 0.0
      %919 = vmatprep.subr.mxu0 0.0
      %920 = vmatpush1.msra.mxu0 0.0
      %921 = vmatprep.subr.mxu0 0.0
      %922 = vmatpush1.msra.mxu0 0.0
      %923 = vmatprep.subr.mxu0 0.0
      %924 = vmatpush1.msra.mxu0 0.0
      %925 = vmatprep.subr.mxu0 0.0
      %926 = vmatpush1.msra.mxu0 0.0
      %927 = vmatprep.subr.mxu0 0.0
      %928 = vmatpush1.msra.mxu0 0.0
      %929 = vmatprep.subr.mxu0 0.0
      %930 = vmatpush1.msra.mxu0 0.0
      %931 = vmatprep.subr.mxu0 0.0
      %932 = vmatpush1.msra.mxu0 0.0
      %933 = vmatprep.subr.mxu0 0.0
      %934 = vmatpush1.msra.mxu0 0.0
      %935 = vmatprep.subr.mxu0 0.0
      %936 = vmatpush1.msra.mxu0 0.0
      %937 = vmatprep.subr.mxu0 0.0
      %938 = vmatpush1.msra.mxu0 0.0
      %939 = vmatprep.subr.mxu0 0.0
      %940 = vmatpush1.msra.mxu0 0.0
      %941 = vmatprep.subr.mxu0 0.0
      %942 = vmatpush1.msra.mxu0 0.0
      %943 = vmatprep.subr.mxu0 0.0
      %944 = vmatpush1.msra.mxu0 0.0
      %945 = vmatprep.subr.mxu0 0.0
      %946 = vmatpush1.msra.mxu0 0.0
      %947 = vmatprep.subr.mxu0 0.0
      %948 = vmatpush1.msra.mxu0 0.0
      %949 = vmatprep.subr.mxu0 0.0
      %950 = vmatpush1.msra.mxu0 0.0
      %951 = vmatprep.subr.mxu0 0.0
      %952 = vmatpush1.msra.mxu0 0.0
      %953 = vmatprep.subr.mxu0 0.0
      %954 = vmatpush1.msra.mxu0 0.0
      %955 = vmatprep.mubr.f32.mxu0 0.0
      %956 = vmatmul.mubr.f32.gmra.mrb[0].mxu0 %v824
      %v957 = vpop.f32.mrb[0].mxu0
      %v958 = vadd.f32 %v666, %v957
      %v959 = vpop.f32.mrb[0].mxu0
      %960 = vmatprep.mubr.f32.mxu0 0.0
      %961 = vmatmul.mubr.f32.gmra.mrb[0].mxu0 %v826
      %v962 = vpop.f32.mrb[0].mxu0
      %v963 = vadd.f32 %v671, %v962
      %v964 = vpop.f32.mrb[0].mxu0
      %965 = vmatprep.mubr.f32.mxu0 0.0
      %966 = vmatmul.mubr.f32.gmra.mrb[0].mxu0 %v828
      %v967 = vpop.f32.mrb[0].mxu0
      %v968 = vadd.f32 %v676, %v967
      %v969 = vpop.f32.mrb[0].mxu0
      %970 = vmatprep.mubr.f32.mxu0 0.0
      %971 = vmatmul.mubr.f32.gmra.mrb[0].mxu0 %v830
      %v972 = vpop.f32.mrb[0].mxu0
      %v973 = vadd.f32 %v681, %v972
      %v974 = vpop.f32.mrb[0].mxu0
      %975 = vmatprep.mubr.f32.mxu0 0.0
      %976 = vmatmul.mubr.f32.gmra.mrb[0].mxu0 %v832
      %v977 = vpop.f32.mrb[0].mxu0
      %v978 = vadd.f32 %v686, %v977
      %v979 = vpop.f32.mrb[0].mxu0
      %980 = vmatprep.mubr.f32.mxu0 0.0
      %981 = vmatmul.mubr.f32.gmra.mrb[0].mxu0 %v834
      %v982 = vpop.f32.mrb[0].mxu0
      %v983 = vadd.f32 %v691, %v982
      %v984 = vpop.f32.mrb[0].mxu0
      %985 = vmatprep.mubr.f32.mxu0 0.0
      %986 = vmatmul.mubr.f32.gmra.mrb[0].mxu0 %v836
      %v987 = vpop.f32.mrb[0].mxu0
      %v988 = vadd.f32 %v696, %v987
      %v989 = vpop.f32.mrb[0].mxu0
      %990 = vmatprep.mubr.f32.mxu0 0.0
      %991 = vmatmul.mubr.f32.gmra.mrb[0].mxu0 %v838
      %v992 = vpop.f32.mrb[0].mxu0
      %v993 = vadd.f32 %v701, %v992
      %v994 = vpop.f32.mrb[0].mxu0
      %995 = vmatprep.mubr.f32.mxu0 0.0
      %996 = vmatmul.mubr.f32.gmra.mrb[0].mxu0 %v840
      %v997 = vpop.f32.mrb[0].mxu0
      %v998 = vadd.f32 %v706, %v997
      %v999 = vpop.f32.mrb[0].mxu0
      %1000 = vmatprep.mubr.f32.mxu0 0.0
      %1001 = vmatmul.mubr.f32.gmra.mrb[0].mxu0 %v842
      %v1002 = vpop.f32.mrb[0].mxu0
      %v1003 = vadd.f32 %v711, %v1002
      %v1004 = vpop.f32.mrb[0].mxu0
      %1005 = vmatprep.mubr.f32.mxu0 0.0
      %1006 = vmatmul.mubr.f32.gmra.mrb[0].mxu0 %v844
      %v1007 = vpop.f32.mrb[0].mxu0
      %v1008 = vadd.f32 %v716, %v1007
      %v1009 = vpop.f32.mrb[0].mxu0
      %1010 = vmatprep.mubr.f32.mxu0 0.0
      %1011 = vmatmul.mubr.f32.gmra.mrb[0].mxu0 %v846
      %v1012 = vpop.f32.mrb[0].mxu0
      %v1013 = vadd.f32 %v721, %v1012
      %v1014 = vpop.f32.mrb[0].mxu0
      %1015 = vmatprep.mubr.f32.mxu0 0.0
      %1016 = vmatmul.mubr.f32.gmra.mrb[0].mxu0 %v848
      %v1017 = vpop.f32.mrb[0].mxu0
      %v1018 = vadd.f32 %v726, %v1017
      %v1019 = vpop.f32.mrb[0].mxu0
      %1020 = vmatprep.mubr.f32.mxu0 0.0
      %1021 = vmatmul.mubr.f32.gmra.mrb[0].mxu0 %v850
      %v1022 = vpop.f32.mrb[0].mxu0
      %v1023 = vadd.f32 %v731, %v1022
      %v1024 = vpop.f32.mrb[0].mxu0
      %1025 = vmatprep.mubr.f32.mxu0 0.0
      %1026 = vmatmul.mubr.f32.gmra.mrb[0].mxu0 %v852
      %v1027 = vpop.f32.mrb[0].mxu0
      %v1028 = vadd.f32 %v736, %v1027
      %v1029 = vpop.f32.mrb[0].mxu0
      %1030 = vmatprep.mubr.f32.mxu0 0.0
      %1031 = vmatmul.mubr.f32.gmra.mrb[0].mxu0 %v854
      %v1032 = vpop.f32.mrb[0].mxu0
      %v1033 = vadd.f32 %v741, %v1032
      %v1034 = vpop.f32.mrb[0].mxu0
      %1035 = vmatprep.mubr.f32.mxu0 0.0
      %1036 = vmatmul.mubr.f32.gmra.mrb[0].mxu0 %v856
      %v1037 = vpop.f32.mrb[0].mxu0
      %v1038 = vadd.f32 %v746, %v1037
      %v1039 = vpop.f32.mrb[0].mxu0
      %1040 = vmatprep.mubr.f32.mxu0 0.0
      %1041 = vmatmul.mubr.f32.gmra.mrb[0].mxu0 %v858
      %v1042 = vpop.f32.mrb[0].mxu0
      %v1043 = vadd.f32 %v751, %v1042
      %v1044 = vpop.f32.mrb[0].mxu0
      %1045 = vmatprep.mubr.f32.mxu0 0.0
      %1046 = vmatmul.mubr.f32.gmra.mrb[0].mxu0 %v860
      %v1047 = vpop.f32.mrb[0].mxu0
      %v1048 = vadd.f32 %v756, %v1047
      %v1049 = vpop.f32.mrb[0].mxu0
      %1050 = vmatprep.mubr.f32.mxu0 0.0
      %1051 = vmatmul.mubr.f32.gmra.mrb[0].mxu0 %v862
      %v1052 = vpop.f32.mrb[0].mxu0
      %v1053 = vadd.f32 %v761, %v1052
      %v1054 = vpop.f32.mrb[0].mxu0
      %1055 = vmatprep.mubr.f32.mxu0 0.0
      %1056 = vmatmul.mubr.f32.gmra.mrb[0].mxu0 %v864
      %v1057 = vpop.f32.mrb[0].mxu0
      %v1058 = vadd.f32 %v766, %v1057
      %v1059 = vpop.f32.mrb[0].mxu0
      %1060 = vmatprep.mubr.f32.mxu0 0.0
      %1061 = vmatmul.mubr.f32.gmra.mrb[0].mxu0 %v866
      %v1062 = vpop.f32.mrb[0].mxu0
      %v1063 = vadd.f32 %v771, %v1062
      %v1064 = vpop.f32.mrb[0].mxu0
      %1065 = vmatprep.mubr.f32.mxu0 0.0
      %1066 = vmatmul.mubr.f32.gmra.mrb[0].mxu0 %v868
      %v1067 = vpop.f32.mrb[0].mxu0
      %v1068 = vadd.f32 %v776, %v1067
      %v1069 = vpop.f32.mrb[0].mxu0
      %1070 = vmatprep.mubr.f32.mxu0 0.0
      %1071 = vmatmul.mubr.f32.gmra.mrb[0].mxu0 %v870
      %v1072 = vpop.f32.mrb[0].mxu0
      %v1073 = vadd.f32 %v781, %v1072
      %v1074 = vpop.f32.mrb[0].mxu0
      %1075 = vmatprep.mubr.f32.mxu0 0.0
      %1076 = vmatmul.mubr.f32.gmra.mrb[0].mxu0 %v872
      %v1077 = vpop.f32.mrb[0].mxu0
      %v1078 = vadd.f32 %v786, %v1077
      %v1079 = vpop.f32.mrb[0].mxu0
      %1080 = vmatprep.mubr.f32.mxu0 0.0
      %1081 = vmatmul.mubr.f32.gmra.mrb[0].mxu0 %v874
      %v1082 = vpop.f32.mrb[0].mxu0
      %v1083 = vadd.f32 %v791, %v1082
      %v1084 = vpop.f32.mrb[0].mxu0
      %1085 = vmatprep.mubr.f32.mxu0 0.0
      %1086 = vmatmul.mubr.f32.gmra.mrb[0].mxu0 %v876
      %v1087 = vpop.f32.mrb[0].mxu0
      %v1088 = vadd.f32 %v796, %v1087
      %v1089 = vpop.f32.mrb[0].mxu0
      %1090 = vmatprep.mubr.f32.mxu0 0.0
      %1091 = vmatmul.mubr.f32.gmra.mrb[0].mxu0 %v878
      %v1092 = vpop.f32.mrb[0].mxu0
      %v1093 = vadd.f32 %v801, %v1092
      %v1094 = vpop.f32.mrb[0].mxu0
      %1095 = vmatprep.mubr.f32.mxu0 0.0
      %1096 = vmatmul.mubr.f32.gmra.mrb[0].mxu0 %v880
      %v1097 = vpop.f32.mrb[0].mxu0
      %v1098 = vadd.f32 %v806, %v1097
      %v1099 = vpop.f32.mrb[0].mxu0
      %1100 = vmatprep.mubr.f32.mxu0 0.0
      %1101 = vmatmul.mubr.f32.gmra.mrb[0].mxu0 %v882
      %v1102 = vpop.f32.mrb[0].mxu0
      %v1103 = vadd.f32 %v811, %v1102
      %v1104 = vpop.f32.mrb[0].mxu0
      %1105 = vmatprep.mubr.f32.mxu0 0.0
      %1106 = vmatmul.mubr.f32.gmra.mrb[0].mxu0 %v884
      %v1107 = vpop.f32.mrb[0].mxu0
      %v1108 = vadd.f32 %v816, %v1107
      %v1109 = vpop.f32.mrb[0].mxu0
      %1110 = vmatprep.mubr.f32.mxu0 0.0
      %1111 = vmatmul.mubr.f32.gmra.mrb[0].mxu0 %v886
      %v1112 = vpop.f32.mrb[0].mxu0
      %v1113 = vadd.f32 %v821, %v1112
      %v1114 = vpop.f32.mrb[0].mxu0
      %1115 = vdwg.mxu0
      %vm1116 = vcmask 1045504
      %v1117 = vrot.slane %v383, 2
      %v1118 = vrot.slane %v301, 2
      %v1119 = vsel %vm1116, %v1117, %v1118
      %v1120 = vrot.slane %v400, 2
      %v1121 = vsel %vm1116, %v1118, %v1120
      %v1122 = vrot.slane %v384, 2
      %v1123 = vrot.slane %v304, 2
      %v1124 = vsel %vm1116, %v1122, %v1123
      %v1125 = vrot.slane %v401, 2
      %v1126 = vsel %vm1116, %v1123, %v1125
      %v1127 = vrot.slane %v385, 2
      %v1128 = vrot.slane %v307, 2
      %v1129 = vsel %vm1116, %v1127, %v1128
      %v1130 = vrot.slane %v402, 2
      %v1131 = vsel %vm1116, %v1128, %v1130
      %v1132 = vrot.slane %v386, 2
      %v1133 = vrot.slane %v310, 2
      %v1134 = vsel %vm1116, %v1132, %v1133
      %v1135 = vrot.slane %v403, 2
      %v1136 = vsel %vm1116, %v1133, %v1135
      %v1137 = vrot.slane %v387, 2
      %v1138 = vrot.slane %v313, 2
      %v1139 = vsel %vm1116, %v1137, %v1138
      %v1140 = vrot.slane %v404, 2
      %v1141 = vsel %vm1116, %v1138, %v1140
      %v1142 = vrot.slane %v388, 2
      %v1143 = vrot.slane %v316, 2
      %v1144 = vsel %vm1116, %v1142, %v1143
      %v1145 = vrot.slane %v405, 2
      %v1146 = vsel %vm1116, %v1143, %v1145
      %v1147 = vrot.slane %v389, 2
      %v1148 = vrot.slane %v319, 2
      %v1149 = vsel %vm1116, %v1147, %v1148
      %v1150 = vrot.slane %v406, 2
      %v1151 = vsel %vm1116, %v1148, %v1150
      %v1152 = vrot.slane %v390, 2
      %v1153 = vrot.slane %v322, 2
      %v1154 = vsel %vm1116, %v1152, %v1153
      %v1155 = vrot.slane %v407, 2
      %v1156 = vsel %vm1116, %v1153, %v1155
      %v1157 = vrot.slane %v391, 2
      %v1158 = vrot.slane %v325, 2
      %v1159 = vsel %vm1116, %v1157, %v1158
      %v1160 = vrot.slane %v408, 2
      %v1161 = vsel %vm1116, %v1158, %v1160
      %v1162 = vrot.slane %v392, 2
      %v1163 = vrot.slane %v328, 2
      %v1164 = vsel %vm1116, %v1162, %v1163
      %v1165 = vrot.slane %v409, 2
      %v1166 = vsel %vm1116, %v1163, %v1165
      %v1167 = vrot.slane %v393, 2
      %v1168 = vrot.slane %v331, 2
      %v1169 = vsel %vm1116, %v1167, %v1168
      %v1170 = vrot.slane %v410, 2
      %v1171 = vsel %vm1116, %v1168, %v1170
      %v1172 = vrot.slane %v394, 2
      %v1173 = vrot.slane %v334, 2
      %v1174 = vsel %vm1116, %v1172, %v1173
      %v1175 = vrot.slane %v411, 2
      %v1176 = vsel %vm1116, %v1173, %v1175
      %v1177 = vrot.slane %v395, 2
      %v1178 = vrot.slane %v337, 2
      %v1179 = vsel %vm1116, %v1177, %v1178
      %v1180 = vrot.slane %v412, 2
      %v1181 = vsel %vm1116, %v1178, %v1180
      %v1182 = vrot.slane %v396, 2
      %v1183 = vrot.slane %v340, 2
      %v1184 = vsel %vm1116, %v1182, %v1183
      %v1185 = vrot.slane %v413, 2
      %v1186 = vsel %vm1116, %v1183, %v1185
      %v1187 = vrot.slane %v397, 2
      %v1188 = vrot.slane %v343, 2
      %v1189 = vsel %vm1116, %v1187, %v1188
      %v1190 = vrot.slane %v414, 2
      %v1191 = vsel %vm1116, %v1188, %v1190
      %v1192 = vrot.slane %v398, 2
      %v1193 = vrot.slane %v346, 2
      %v1194 = vsel %vm1116, %v1192, %v1193
      %v1195 = vrot.slane %v415, 2
      %v1196 = vsel %vm1116, %v1193, %v1195
      %v1197 = vsel %vm530, %v1119, 0
      %v1199 = vsel %vm530, %v1121, 0
      %v1201 = vsel %vm530, %v1124, 0
      %v1203 = vsel %vm530, %v1126, 0
      %v1205 = vsel %vm530, %v1129, 0
      %v1207 = vsel %vm530, %v1131, 0
      %v1209 = vsel %vm530, %v1134, 0
      %v1211 = vsel %vm530, %v1136, 0
      %v1213 = vsel %vm530, %v1139, 0
      %v1215 = vsel %vm530, %v1141, 0
      %v1217 = vsel %vm530, %v1144, 0
      %v1219 = vsel %vm530, %v1146, 0
      %v1221 = vsel %vm530, %v1149, 0
      %v1223 = vsel %vm530, %v1151, 0
      %v1225 = vsel %vm530, %v1154, 0
      %v1227 = vsel %vm530, %v1156, 0
      %v1229 = vsel %vm530, %v1159, 0
      %v1231 = vsel %vm530, %v1161, 0
      %v1233 = vsel %vm530, %v1164, 0
      %v1235 = vsel %vm530, %v1166, 0
      %v1237 = vsel %vm530, %v1169, 0
      %v1239 = vsel %vm530, %v1171, 0
      %v1241 = vsel %vm530, %v1174, 0
      %v1243 = vsel %vm530, %v1176, 0
      %v1245 = vsel %vm530, %v1179, 0
      %v1247 = vsel %vm530, %v1181, 0
      %v1249 = vsel %vm530, %v1184, 0
      %v1251 = vsel %vm530, %v1186, 0
      %v1253 = vsel %vm530, %v1189, 0
      %v1255 = vsel %vm530, %v1191, 0
      %v1257 = vsel %vm530, %v1194, 0
      %v1259 = vsel %vm530, %v1196, 0
      %v1262 = vsel %vm595, %v259, 0
      %1264 = vmatprep.subr.mxu0 0.0
      %1265 = vmatpush1.msra.mxu0 %v1262
      %1266 = vmatprep.subr.mxu0 0.0
      %1267 = vmatpush1.msra.mxu0 0.0
      %1268 = vmatprep.subr.mxu0 0.0
      %1269 = vmatpush1.msra.mxu0 0.0
      %1270 = vmatprep.subr.mxu0 0.0
      %1271 = vmatpush1.msra.mxu0 0.0
      %1272 = vmatprep.subr.mxu0 0.0
      %1273 = vmatpush1.msra.mxu0 0.0
      %1274 = vmatprep.subr.mxu0 0.0
      %1275 = vmatpush1.msra.mxu0 0.0
      %1276 = vmatprep.subr.mxu0 0.0
      %1277 = vmatpush1.msra.mxu0 0.0
      %1278 = vmatprep.subr.mxu0 0.0
      %1279 = vmatpush1.msra.mxu0 0.0
      %1280 = vmatprep.subr.mxu0 0.0
      %1281 = vmatpush1.msra.mxu0 0.0
      %1282 = vmatprep.subr.mxu0 0.0
      %1283 = vmatpush1.msra.mxu0 0.0
      %1284 = vmatprep.subr.mxu0 0.0
      %1285 = vmatpush1.msra.mxu0 0.0
      %1286 = vmatprep.subr.mxu0 0.0
      %1287 = vmatpush1.msra.mxu0 0.0
      %1288 = vmatprep.subr.mxu0 0.0
      %1289 = vmatpush1.msra.mxu0 0.0
      %1290 = vmatprep.subr.mxu0 0.0
      %1291 = vmatpush1.msra.mxu0 0.0
      %1292 = vmatprep.subr.mxu0 0.0
      %1293 = vmatpush1.msra.mxu0 0.0
      %1294 = vmatprep.subr.mxu0 0.0
      %1295 = vmatpush1.msra.mxu0 0.0
      %1296 = vmatprep.subr.mxu0 0.0
      %1297 = vmatpush1.msra.mxu0 0.0
      %1298 = vmatprep.subr.mxu0 0.0
      %1299 = vmatpush1.msra.mxu0 0.0
      %1300 = vmatprep.subr.mxu0 0.0
      %1301 = vmatpush1.msra.mxu0 0.0
      %1302 = vmatprep.subr.mxu0 0.0
      %1303 = vmatpush1.msra.mxu0 0.0
      %1304 = vmatprep.subr.mxu0 0.0
      %1305 = vmatpush1.msra.mxu0 0.0
      %1306 = vmatprep.subr.mxu0 0.0
      %1307 = vmatpush1.msra.mxu0 0.0
      %1308 = vmatprep.subr.mxu0 0.0
      %1309 = vmatpush1.msra.mxu0 0.0
      %1310 = vmatprep.subr.mxu0 0.0
      %1311 = vmatpush1.msra.mxu0 0.0
      %1312 = vmatprep.subr.mxu0 0.0
      %1313 = vmatpush1.msra.mxu0 0.0
      %1314 = vmatprep.subr.mxu0 0.0
      %1315 = vmatpush1.msra.mxu0 0.0
      %1316 = vmatprep.subr.mxu0 0.0
      %1317 = vmatpush1.msra.mxu0 0.0
      %1318 = vmatprep.subr.mxu0 0.0
      %1319 = vmatpush1.msra.mxu0 0.0
      %1320 = vmatprep.subr.mxu0 0.0
      %1321 = vmatpush1.msra.mxu0 0.0
      %1322 = vmatprep.subr.mxu0 0.0
      %1323 = vmatpush1.msra.mxu0 0.0
      %1324 = vmatprep.subr.mxu0 0.0
      %1325 = vmatpush1.msra.mxu0 0.0
      %1326 = vmatprep.subr.mxu0 0.0
      %1327 = vmatpush1.msra.mxu0 0.0
      %1328 = vmatprep.mubr.f32.mxu0 0.0
      %1329 = vmatmul.mubr.f32.gmra.mrb[0].mxu0 %v1197
      %v1330 = vpop.f32.mrb[0].mxu0
      %v1331 = vadd.f32 0.0, %v1330
      %v1332 = vpop.f32.mrb[0].mxu0
      %1333 = vmatprep.mubr.f32.mxu0 0.0
      %1334 = vmatmul.mubr.f32.gmra.mrb[0].mxu0 %v1199
      %v1335 = vpop.f32.mrb[0].mxu0
      %v1336 = vadd.f32 0.0, %v1335
      %v1337 = vpop.f32.mrb[0].mxu0
      %1338 = vmatprep.mubr.f32.mxu0 0.0
      %1339 = vmatmul.mubr.f32.gmra.mrb[0].mxu0 %v1201
      %v1340 = vpop.f32.mrb[0].mxu0
      %v1341 = vadd.f32 0.0, %v1340
      %v1342 = vpop.f32.mrb[0].mxu0
      %1343 = vmatprep.mubr.f32.mxu0 0.0
      %1344 = vmatmul.mubr.f32.gmra.mrb[0].mxu0 %v1203
      %v1345 = vpop.f32.mrb[0].mxu0
      %v1346 = vadd.f32 0.0, %v1345
      %v1347 = vpop.f32.mrb[0].mxu0
      %1348 = vmatprep.mubr.f32.mxu0 0.0
      %1349 = vmatmul.mubr.f32.gmra.mrb[0].mxu0 %v1205
      %v1350 = vpop.f32.mrb[0].mxu0
      %v1351 = vadd.f32 0.0, %v1350
      %v1352 = vpop.f32.mrb[0].mxu0
      %1353 = vmatprep.mubr.f32.mxu0 0.0
      %1354 = vmatmul.mubr.f32.gmra.mrb[0].mxu0 %v1207
      %v1355 = vpop.f32.mrb[0].mxu0
      %v1356 = vadd.f32 0.0, %v1355
      %v1357 = vpop.f32.mrb[0].mxu0
      %1358 = vmatprep.mubr.f32.mxu0 0.0
      %1359 = vmatmul.mubr.f32.gmra.mrb[0].mxu0 %v1209
      %v1360 = vpop.f32.mrb[0].mxu0
      %v1361 = vadd.f32 0.0, %v1360
      %v1362 = vpop.f32.mrb[0].mxu0
      %1363 = vmatprep.mubr.f32.mxu0 0.0
      %1364 = vmatmul.mubr.f32.gmra.mrb[0].mxu0 %v1211
      %v1365 = vpop.f32.mrb[0].mxu0
      %v1366 = vadd.f32 0.0, %v1365
      %v1367 = vpop.f32.mrb[0].mxu0
      %1368 = vmatprep.mubr.f32.mxu0 0.0
      %1369 = vmatmul.mubr.f32.gmra.mrb[0].mxu0 %v1213
      %v1370 = vpop.f32.mrb[0].mxu0
      %v1371 = vadd.f32 0.0, %v1370
      %v1372 = vpop.f32.mrb[0].mxu0
      %1373 = vmatprep.mubr.f32.mxu0 0.0
      %1374 = vmatmul.mubr.f32.gmra.mrb[0].mxu0 %v1215
      %v1375 = vpop.f32.mrb[0].mxu0
      %v1376 = vadd.f32 0.0, %v1375
      %v1377 = vpop.f32.mrb[0].mxu0
      %1378 = vmatprep.mubr.f32.mxu0 0.0
      %1379 = vmatmul.mubr.f32.gmra.mrb[0].mxu0 %v1217
      %v1380 = vpop.f32.mrb[0].mxu0
      %v1381 = vadd.f32 0.0, %v1380
      %v1382 = vpop.f32.mrb[0].mxu0
      %1383 = vmatprep.mubr.f32.mxu0 0.0
      %1384 = vmatmul.mubr.f32.gmra.mrb[0].mxu0 %v1219
      %v1385 = vpop.f32.mrb[0].mxu0
      %v1386 = vadd.f32 0.0, %v1385
      %v1387 = vpop.f32.mrb[0].mxu0
      %1388 = vmatprep.mubr.f32.mxu0 0.0
      %1389 = vmatmul.mubr.f32.gmra.mrb[0].mxu0 %v1221
      %v1390 = vpop.f32.mrb[0].mxu0
      %v1391 = vadd.f32 0.0, %v1390
      %v1392 = vpop.f32.mrb[0].mxu0
      %1393 = vmatprep.mubr.f32.mxu0 0.0
      %1394 = vmatmul.mubr.f32.gmra.mrb[0].mxu0 %v1223
      %v1395 = vpop.f32.mrb[0].mxu0
      %v1396 = vadd.f32 0.0, %v1395
      %v1397 = vpop.f32.mrb[0].mxu0
      %1398 = vmatprep.mubr.f32.mxu0 0.0
      %1399 = vmatmul.mubr.f32.gmra.mrb[0].mxu0 %v1225
      %v1400 = vpop.f32.mrb[0].mxu0
      %v1401 = vadd.f32 0.0, %v1400
      %v1402 = vpop.f32.mrb[0].mxu0
      %1403 = vmatprep.mubr.f32.mxu0 0.0
      %1404 = vmatmul.mubr.f32.gmra.mrb[0].mxu0 %v1227
      %v1405 = vpop.f32.mrb[0].mxu0
      %v1406 = vadd.f32 0.0, %v1405
      %v1407 = vpop.f32.mrb[0].mxu0
      %1408 = vmatprep.mubr.f32.mxu0 0.0
      %1409 = vmatmul.mubr.f32.gmra.mrb[0].mxu0 %v1229
      %v1410 = vpop.f32.mrb[0].mxu0
      %v1411 = vadd.f32 0.0, %v1410
      %v1412 = vpop.f32.mrb[0].mxu0
      %1413 = vmatprep.mubr.f32.mxu0 0.0
      %1414 = vmatmul.mubr.f32.gmra.mrb[0].mxu0 %v1231
      %v1415 = vpop.f32.mrb[0].mxu0
      %v1416 = vadd.f32 0.0, %v1415
      %v1417 = vpop.f32.mrb[0].mxu0
      %1418 = vmatprep.mubr.f32.mxu0 0.0
      %1419 = vmatmul.mubr.f32.gmra.mrb[0].mxu0 %v1233
      %v1420 = vpop.f32.mrb[0].mxu0
      %v1421 = vadd.f32 0.0, %v1420
      %v1422 = vpop.f32.mrb[0].mxu0
      %1423 = vmatprep.mubr.f32.mxu0 0.0
      %1424 = vmatmul.mubr.f32.gmra.mrb[0].mxu0 %v1235
      %v1425 = vpop.f32.mrb[0].mxu0
      %v1426 = vadd.f32 0.0, %v1425
      %v1427 = vpop.f32.mrb[0].mxu0
      %1428 = vmatprep.mubr.f32.mxu0 0.0
      %1429 = vmatmul.mubr.f32.gmra.mrb[0].mxu0 %v1237
      %v1430 = vpop.f32.mrb[0].mxu0
      %v1431 = vadd.f32 0.0, %v1430
      %v1432 = vpop.f32.mrb[0].mxu0
      %1433 = vmatprep.mubr.f32.mxu0 0.0
      %1434 = vmatmul.mubr.f32.gmra.mrb[0].mxu0 %v1239
      %v1435 = vpop.f32.mrb[0].mxu0
      %v1436 = vadd.f32 0.0, %v1435
      %v1437 = vpop.f32.mrb[0].mxu0
      %1438 = vmatprep.mubr.f32.mxu0 0.0
      %1439 = vmatmul.mubr.f32.gmra.mrb[0].mxu0 %v1241
      %v1440 = vpop.f32.mrb[0].mxu0
      %v1441 = vadd.f32 0.0, %v1440
      %v1442 = vpop.f32.mrb[0].mxu0
      %1443 = vmatprep.mubr.f32.mxu0 0.0
      %1444 = vmatmul.mubr.f32.gmra.mrb[0].mxu0 %v1243
      %v1445 = vpop.f32.mrb[0].mxu0
      %v1446 = vadd.f32 0.0, %v1445
      %v1447 = vpop.f32.mrb[0].mxu0
      %1448 = vmatprep.mubr.f32.mxu0 0.0
      %1449 = vmatmul.mubr.f32.gmra.mrb[0].mxu0 %v1245
      %v1450 = vpop.f32.mrb[0].mxu0
      %v1451 = vadd.f32 0.0, %v1450
      %v1452 = vpop.f32.mrb[0].mxu0
      %1453 = vmatprep.mubr.f32.mxu0 0.0
      %1454 = vmatmul.mubr.f32.gmra.mrb[0].mxu0 %v1247
      %v1455 = vpop.f32.mrb[0].mxu0
      %v1456 = vadd.f32 0.0, %v1455
      %v1457 = vpop.f32.mrb[0].mxu0
      %1458 = vmatprep.mubr.f32.mxu0 0.0
      %1459 = vmatmul.mubr.f32.gmra.mrb[0].mxu0 %v1249
      %v1460 = vpop.f32.mrb[0].mxu0
      %v1461 = vadd.f32 0.0, %v1460
      %v1462 = vpop.f32.mrb[0].mxu0
      %1463 = vmatprep.mubr.f32.mxu0 0.0
      %1464 = vmatmul.mubr.f32.gmra.mrb[0].mxu0 %v1251
      %v1465 = vpop.f32.mrb[0].mxu0
      %v1466 = vadd.f32 0.0, %v1465
      %v1467 = vpop.f32.mrb[0].mxu0
      %1468 = vmatprep.mubr.f32.mxu0 0.0
      %1469 = vmatmul.mubr.f32.gmra.mrb[0].mxu0 %v1253
      %v1470 = vpop.f32.mrb[0].mxu0
      %v1471 = vadd.f32 0.0, %v1470
      %v1472 = vpop.f32.mrb[0].mxu0
      %1473 = vmatprep.mubr.f32.mxu0 0.0
      %1474 = vmatmul.mubr.f32.gmra.mrb[0].mxu0 %v1255
      %v1475 = vpop.f32.mrb[0].mxu0
      %v1476 = vadd.f32 0.0, %v1475
      %v1477 = vpop.f32.mrb[0].mxu0
      %1478 = vmatprep.mubr.f32.mxu0 0.0
      %1479 = vmatmul.mubr.f32.gmra.mrb[0].mxu0 %v1257
      %v1480 = vpop.f32.mrb[0].mxu0
      %v1481 = vadd.f32 0.0, %v1480
      %v1482 = vpop.f32.mrb[0].mxu0
      %1483 = vmatprep.mubr.f32.mxu0 0.0
      %1484 = vmatmul.mubr.f32.gmra.mrb[0].mxu0 %v1259
      %v1485 = vpop.f32.mrb[0].mxu0
      %v1486 = vadd.f32 0.0, %v1485
      %v1487 = vpop.f32.mrb[0].mxu0
      %1488 = vdwg.mxu0
      %v1489 = vadd.f32 %v958, %v1331
      %v1490 = vadd.f32 %v963, %v1336
      %v1491 = vadd.f32 %v968, %v1341
      %v1492 = vadd.f32 %v973, %v1346
      %v1493 = vadd.f32 %v978, %v1351
      %v1494 = vadd.f32 %v983, %v1356
      %v1495 = vadd.f32 %v988, %v1361
      %v1496 = vadd.f32 %v993, %v1366
      %v1497 = vadd.f32 %v998, %v1371
      %v1498 = vadd.f32 %v1003, %v1376
      %v1499 = vadd.f32 %v1008, %v1381
      %v1500 = vadd.f32 %v1013, %v1386
      %v1501 = vadd.f32 %v1018, %v1391
      %v1502 = vadd.f32 %v1023, %v1396
      %v1503 = vadd.f32 %v1028, %v1401
      %v1504 = vadd.f32 %v1033, %v1406
      %v1505 = vadd.f32 %v1038, %v1411
      %v1506 = vadd.f32 %v1043, %v1416
      %v1507 = vadd.f32 %v1048, %v1421
      %v1508 = vadd.f32 %v1053, %v1426
      %v1509 = vadd.f32 %v1058, %v1431
      %v1510 = vadd.f32 %v1063, %v1436
      %v1511 = vadd.f32 %v1068, %v1441
      %v1512 = vadd.f32 %v1073, %v1446
      %v1513 = vadd.f32 %v1078, %v1451
      %v1514 = vadd.f32 %v1083, %v1456
      %v1515 = vadd.f32 %v1088, %v1461
      %v1516 = vadd.f32 %v1093, %v1466
      %v1517 = vadd.f32 %v1098, %v1471
      %v1518 = vadd.f32 %v1103, %v1476
      %v1519 = vadd.f32 %v1108, %v1481
      %v1520 = vadd.f32 %v1113, %v1486
      %v1522 = vsel %vm530, %v399, 0
      %v1524 = vsel %vm530, %v349, 0
      %v1527 = vsel %vm595, %v260, 0
      %1529 = vmatprep.subr.mxu0 0.0
      %1530 = vmatpush1.msra.mxu0 %v1527
      %1531 = vmatprep.subr.mxu0 0.0
      %1532 = vmatpush1.msra.mxu0 0.0
      %1533 = vmatprep.subr.mxu0 0.0
      %1534 = vmatpush1.msra.mxu0 0.0
      %1535 = vmatprep.subr.mxu0 0.0
      %1536 = vmatpush1.msra.mxu0 0.0
      %1537 = vmatprep.subr.mxu0 0.0
      %1538 = vmatpush1.msra.mxu0 0.0
      %1539 = vmatprep.subr.mxu0 0.0
      %1540 = vmatpush1.msra.mxu0 0.0
      %1541 = vmatprep.subr.mxu0 0.0
      %1542 = vmatpush1.msra.mxu0 0.0
      %1543 = vmatprep.subr.mxu0 0.0
      %1544 = vmatpush1.msra.mxu0 0.0
      %1545 = vmatprep.subr.mxu0 0.0
      %1546 = vmatpush1.msra.mxu0 0.0
      %1547 = vmatprep.subr.mxu0 0.0
      %1548 = vmatpush1.msra.mxu0 0.0
      %1549 = vmatprep.subr.mxu0 0.0
      %1550 = vmatpush1.msra.mxu0 0.0
      %1551 = vmatprep.subr.mxu0 0.0
      %1552 = vmatpush1.msra.mxu0 0.0
      %1553 = vmatprep.subr.mxu0 0.0
      %1554 = vmatpush1.msra.mxu0 0.0
      %1555 = vmatprep.subr.mxu0 0.0
      %1556 = vmatpush1.msra.mxu0 0.0
      %1557 = vmatprep.subr.mxu0 0.0
      %1558 = vmatpush1.msra.mxu0 0.0
      %1559 = vmatprep.subr.mxu0 0.0
      %1560 = vmatpush1.msra.mxu0 0.0
      %1561 = vmatprep.subr.mxu0 0.0
      %1562 = vmatpush1.msra.mxu0 0.0
      %1563 = vmatprep.subr.mxu0 0.0
      %1564 = vmatpush1.msra.mxu0 0.0
      %1565 = vmatprep.subr.mxu0 0.0
      %1566 = vmatpush1.msra.mxu0 0.0
      %1567 = vmatprep.subr.mxu0 0.0
      %1568 = vmatpush1.msra.mxu0 0.0
      %1569 = vmatprep.subr.mxu0 0.0
      %1570 = vmatpush1.msra.mxu0 0.0
      %1571 = vmatprep.subr.mxu0 0.0
      %1572 = vmatpush1.msra.mxu0 0.0
      %1573 = vmatprep.subr.mxu0 0.0
      %1574 = vmatpush1.msra.mxu0 0.0
      %1575 = vmatprep.subr.mxu0 0.0
      %1576 = vmatpush1.msra.mxu0 0.0
      %1577 = vmatprep.subr.mxu0 0.0
      %1578 = vmatpush1.msra.mxu0 0.0
      %1579 = vmatprep.subr.mxu0 0.0
      %1580 = vmatpush1.msra.mxu0 0.0
      %1581 = vmatprep.subr.mxu0 0.0
      %1582 = vmatpush1.msra.mxu0 0.0
      %1583 = vmatprep.subr.mxu0 0.0
      %1584 = vmatpush1.msra.mxu0 0.0
      %1585 = vmatprep.subr.mxu0 0.0
      %1586 = vmatpush1.msra.mxu0 0.0
      %1587 = vmatprep.subr.mxu0 0.0
      %1588 = vmatpush1.msra.mxu0 0.0
      %1589 = vmatprep.subr.mxu0 0.0
      %1590 = vmatpush1.msra.mxu0 0.0
      %1591 = vmatprep.subr.mxu0 0.0
      %1592 = vmatpush1.msra.mxu0 0.0
      %1593 = vmatprep.mubr.f32.mxu0 0.0
      %1594 = vmatmul.mubr.f32.gmra.mrb[0].mxu0 %v828
      %v1595 = vpop.f32.mrb[0].mxu0
      %v1596 = vadd.f32 0.0, %v1595
      %v1597 = vpop.f32.mrb[0].mxu0
      %1598 = vmatprep.mubr.f32.mxu0 0.0
      %1599 = vmatmul.mubr.f32.gmra.mrb[0].mxu0 %v830
      %v1600 = vpop.f32.mrb[0].mxu0
      %v1601 = vadd.f32 0.0, %v1600
      %v1602 = vpop.f32.mrb[0].mxu0
      %1603 = vmatprep.mubr.f32.mxu0 0.0
      %1604 = vmatmul.mubr.f32.gmra.mrb[0].mxu0 %v832
      %v1605 = vpop.f32.mrb[0].mxu0
      %v1606 = vadd.f32 0.0, %v1605
      %v1607 = vpop.f32.mrb[0].mxu0
      %1608 = vmatprep.mubr.f32.mxu0 0.0
      %1609 = vmatmul.mubr.f32.gmra.mrb[0].mxu0 %v834
      %v1610 = vpop.f32.mrb[0].mxu0
      %v1611 = vadd.f32 0.0, %v1610
      %v1612 = vpop.f32.mrb[0].mxu0
      %1613 = vmatprep.mubr.f32.mxu0 0.0
      %1614 = vmatmul.mubr.f32.gmra.mrb[0].mxu0 %v836
      %v1615 = vpop.f32.mrb[0].mxu0
      %v1616 = vadd.f32 0.0, %v1615
      %v1617 = vpop.f32.mrb[0].mxu0
      %1618 = vmatprep.mubr.f32.mxu0 0.0
      %1619 = vmatmul.mubr.f32.gmra.mrb[0].mxu0 %v838
      %v1620 = vpop.f32.mrb[0].mxu0
      %v1621 = vadd.f32 0.0, %v1620
      %v1622 = vpop.f32.mrb[0].mxu0
      %1623 = vmatprep.mubr.f32.mxu0 0.0
      %1624 = vmatmul.mubr.f32.gmra.mrb[0].mxu0 %v840
      %v1625 = vpop.f32.mrb[0].mxu0
      %v1626 = vadd.f32 0.0, %v1625
      %v1627 = vpop.f32.mrb[0].mxu0
      %1628 = vmatprep.mubr.f32.mxu0 0.0
      %1629 = vmatmul.mubr.f32.gmra.mrb[0].mxu0 %v842
      %v1630 = vpop.f32.mrb[0].mxu0
      %v1631 = vadd.f32 0.0, %v1630
      %v1632 = vpop.f32.mrb[0].mxu0
      %1633 = vmatprep.mubr.f32.mxu0 0.0
      %1634 = vmatmul.mubr.f32.gmra.mrb[0].mxu0 %v844
      %v1635 = vpop.f32.mrb[0].mxu0
      %v1636 = vadd.f32 0.0, %v1635
      %v1637 = vpop.f32.mrb[0].mxu0
      %1638 = vmatprep.mubr.f32.mxu0 0.0
      %1639 = vmatmul.mubr.f32.gmra.mrb[0].mxu0 %v846
      %v1640 = vpop.f32.mrb[0].mxu0
      %v1641 = vadd.f32 0.0, %v1640
      %v1642 = vpop.f32.mrb[0].mxu0
      %1643 = vmatprep.mubr.f32.mxu0 0.0
      %1644 = vmatmul.mubr.f32.gmra.mrb[0].mxu0 %v848
      %v1645 = vpop.f32.mrb[0].mxu0
      %v1646 = vadd.f32 0.0, %v1645
      %v1647 = vpop.f32.mrb[0].mxu0
      %1648 = vmatprep.mubr.f32.mxu0 0.0
      %1649 = vmatmul.mubr.f32.gmra.mrb[0].mxu0 %v850
      %v1650 = vpop.f32.mrb[0].mxu0
      %v1651 = vadd.f32 0.0, %v1650
      %v1652 = vpop.f32.mrb[0].mxu0
      %1653 = vmatprep.mubr.f32.mxu0 0.0
      %1654 = vmatmul.mubr.f32.gmra.mrb[0].mxu0 %v852
      %v1655 = vpop.f32.mrb[0].mxu0
      %v1656 = vadd.f32 0.0, %v1655
      %v1657 = vpop.f32.mrb[0].mxu0
      %1658 = vmatprep.mubr.f32.mxu0 0.0
      %1659 = vmatmul.mubr.f32.gmra.mrb[0].mxu0 %v854
      %v1660 = vpop.f32.mrb[0].mxu0
      %v1661 = vadd.f32 0.0, %v1660
      %v1662 = vpop.f32.mrb[0].mxu0
      %1663 = vmatprep.mubr.f32.mxu0 0.0
      %1664 = vmatmul.mubr.f32.gmra.mrb[0].mxu0 %v856
      %v1665 = vpop.f32.mrb[0].mxu0
      %v1666 = vadd.f32 0.0, %v1665
      %v1667 = vpop.f32.mrb[0].mxu0
      %1668 = vmatprep.mubr.f32.mxu0 0.0
      %1669 = vmatmul.mubr.f32.gmra.mrb[0].mxu0 %v858
      %v1670 = vpop.f32.mrb[0].mxu0
      %v1671 = vadd.f32 0.0, %v1670
      %v1672 = vpop.f32.mrb[0].mxu0
      %1673 = vmatprep.mubr.f32.mxu0 0.0
      %1674 = vmatmul.mubr.f32.gmra.mrb[0].mxu0 %v860
      %v1675 = vpop.f32.mrb[0].mxu0
      %v1676 = vadd.f32 0.0, %v1675
      %v1677 = vpop.f32.mrb[0].mxu0
      %1678 = vmatprep.mubr.f32.mxu0 0.0
      %1679 = vmatmul.mubr.f32.gmra.mrb[0].mxu0 %v862
      %v1680 = vpop.f32.mrb[0].mxu0
      %v1681 = vadd.f32 0.0, %v1680
      %v1682 = vpop.f32.mrb[0].mxu0
      %1683 = vmatprep.mubr.f32.mxu0 0.0
      %1684 = vmatmul.mubr.f32.gmra.mrb[0].mxu0 %v864
      %v1685 = vpop.f32.mrb[0].mxu0
      %v1686 = vadd.f32 0.0, %v1685
      %v1687 = vpop.f32.mrb[0].mxu0
      %1688 = vmatprep.mubr.f32.mxu0 0.0
      %1689 = vmatmul.mubr.f32.gmra.mrb[0].mxu0 %v866
      %v1690 = vpop.f32.mrb[0].mxu0
      %v1691 = vadd.f32 0.0, %v1690
      %v1692 = vpop.f32.mrb[0].mxu0
      %1693 = vmatprep.mubr.f32.mxu0 0.0
      %1694 = vmatmul.mubr.f32.gmra.mrb[0].mxu0 %v868
      %v1695 = vpop.f32.mrb[0].mxu0
      %v1696 = vadd.f32 0.0, %v1695
      %v1697 = vpop.f32.mrb[0].mxu0
      %1698 = vmatprep.mubr.f32.mxu0 0.0
      %1699 = vmatmul.mubr.f32.gmra.mrb[0].mxu0 %v870
      %v1700 = vpop.f32.mrb[0].mxu0
      %v1701 = vadd.f32 0.0, %v1700
      %v1702 = vpop.f32.mrb[0].mxu0
      %1703 = vmatprep.mubr.f32.mxu0 0.0
      %1704 = vmatmul.mubr.f32.gmra.mrb[0].mxu0 %v872
      %v1705 = vpop.f32.mrb[0].mxu0
      %v1706 = vadd.f32 0.0, %v1705
      %v1707 = vpop.f32.mrb[0].mxu0
      %1708 = vmatprep.mubr.f32.mxu0 0.0
      %1709 = vmatmul.mubr.f32.gmra.mrb[0].mxu0 %v874
      %v1710 = vpop.f32.mrb[0].mxu0
      %v1711 = vadd.f32 0.0, %v1710
      %v1712 = vpop.f32.mrb[0].mxu0
      %1713 = vmatprep.mubr.f32.mxu0 0.0
      %1714 = vmatmul.mubr.f32.gmra.mrb[0].mxu0 %v876
      %v1715 = vpop.f32.mrb[0].mxu0
      %v1716 = vadd.f32 0.0, %v1715
      %v1717 = vpop.f32.mrb[0].mxu0
      %1718 = vmatprep.mubr.f32.mxu0 0.0
      %1719 = vmatmul.mubr.f32.gmra.mrb[0].mxu0 %v878
      %v1720 = vpop.f32.mrb[0].mxu0
      %v1721 = vadd.f32 0.0, %v1720
      %v1722 = vpop.f32.mrb[0].mxu0
      %1723 = vmatprep.mubr.f32.mxu0 0.0
      %1724 = vmatmul.mubr.f32.gmra.mrb[0].mxu0 %v880
      %v1725 = vpop.f32.mrb[0].mxu0
      %v1726 = vadd.f32 0.0, %v1725
      %v1727 = vpop.f32.mrb[0].mxu0
      %1728 = vmatprep.mubr.f32.mxu0 0.0
      %1729 = vmatmul.mubr.f32.gmra.mrb[0].mxu0 %v882
      %v1730 = vpop.f32.mrb[0].mxu0
      %v1731 = vadd.f32 0.0, %v1730
      %v1732 = vpop.f32.mrb[0].mxu0
      %1733 = vmatprep.mubr.f32.mxu0 0.0
      %1734 = vmatmul.mubr.f32.gmra.mrb[0].mxu0 %v884
      %v1735 = vpop.f32.mrb[0].mxu0
      %v1736 = vadd.f32 0.0, %v1735
      %v1737 = vpop.f32.mrb[0].mxu0
      %1738 = vmatprep.mubr.f32.mxu0 0.0
      %1739 = vmatmul.mubr.f32.gmra.mrb[0].mxu0 %v886
      %v1740 = vpop.f32.mrb[0].mxu0
      %v1741 = vadd.f32 0.0, %v1740
      %v1742 = vpop.f32.mrb[0].mxu0
      %1743 = vmatprep.mubr.f32.mxu0 0.0
      %1744 = vmatmul.mubr.f32.gmra.mrb[0].mxu0 %v1522
      %v1745 = vpop.f32.mrb[0].mxu0
      %v1746 = vadd.f32 0.0, %v1745
      %v1747 = vpop.f32.mrb[0].mxu0
      %1748 = vmatprep.mubr.f32.mxu0 0.0
      %1749 = vmatmul.mubr.f32.gmra.mrb[0].mxu0 %v1524
      %v1750 = vpop.f32.mrb[0].mxu0
      %v1751 = vadd.f32 0.0, %v1750
      %v1752 = vpop.f32.mrb[0].mxu0
      %1753 = vdwg.mxu0
      %v1754 = vadd.f32 %v1489, %v1596
      %v1755 = vadd.f32 %v1490, %v1601
      %v1756 = vadd.f32 %v1491, %v1606
      %v1757 = vadd.f32 %v1492, %v1611
      %v1758 = vadd.f32 %v1493, %v1616
      %v1759 = vadd.f32 %v1494, %v1621
      %v1760 = vadd.f32 %v1495, %v1626
      %v1761 = vadd.f32 %v1496, %v1631
      %v1762 = vadd.f32 %v1497, %v1636
      %v1763 = vadd.f32 %v1498, %v1641
      %v1764 = vadd.f32 %v1499, %v1646
      %v1765 = vadd.f32 %v1500, %v1651
      %v1766 = vadd.f32 %v1501, %v1656
      %v1767 = vadd.f32 %v1502, %v1661
      %v1768 = vadd.f32 %v1503, %v1666
      %v1769 = vadd.f32 %v1504, %v1671
      %v1770 = vadd.f32 %v1505, %v1676
      %v1771 = vadd.f32 %v1506, %v1681
      %v1772 = vadd.f32 %v1507, %v1686
      %v1773 = vadd.f32 %v1508, %v1691
      %v1774 = vadd.f32 %v1509, %v1696
      %v1775 = vadd.f32 %v1510, %v1701
      %v1776 = vadd.f32 %v1511, %v1706
      %v1777 = vadd.f32 %v1512, %v1711
      %v1778 = vadd.f32 %v1513, %v1716
      %v1779 = vadd.f32 %v1514, %v1721
      %v1780 = vadd.f32 %v1515, %v1726
      %v1781 = vadd.f32 %v1516, %v1731
      %v1782 = vadd.f32 %v1517, %v1736
      %v1783 = vadd.f32 %v1518, %v1741
      %v1784 = vadd.f32 %v1519, %v1746
      %v1785 = vadd.f32 %v1520, %v1751
      %v1787 = vrot.slane %v399, 1
      %v1788 = vrot.slane %v349, 1
      %v1789 = vsel %vm449, %v1787, %v1788
      %v1790 = vrot.slane %v416, 1
      %v1791 = vsel %vm449, %v1788, %v1790
      %v1792 = vsel %vm530, %v1789, 0
      %v1794 = vsel %vm530, %v1791, 0
      %v1797 = vsel %vm595, %v261, 0
      %1799 = vmatprep.subr.mxu0 0.0
      %1800 = vmatpush1.msra.mxu0 %v1797
      %1801 = vmatprep.subr.mxu0 0.0
      %1802 = vmatpush1.msra.mxu0 0.0
      %1803 = vmatprep.subr.mxu0 0.0
      %1804 = vmatpush1.msra.mxu0 0.0
      %1805 = vmatprep.subr.mxu0 0.0
      %1806 = vmatpush1.msra.mxu0 0.0
      %1807 = vmatprep.subr.mxu0 0.0
      %1808 = vmatpush1.msra.mxu0 0.0
      %1809 = vmatprep.subr.mxu0 0.0
      %1810 = vmatpush1.msra.mxu0 0.0
      %1811 = vmatprep.subr.mxu0 0.0
      %1812 = vmatpush1.msra.mxu0 0.0
      %1813 = vmatprep.subr.mxu0 0.0
      %1814 = vmatpush1.msra.mxu0 0.0
      %1815 = vmatprep.subr.mxu0 0.0
      %1816 = vmatpush1.msra.mxu0 0.0
      %1817 = vmatprep.subr.mxu0 0.0
      %1818 = vmatpush1.msra.mxu0 0.0
      %1819 = vmatprep.subr.mxu0 0.0
      %1820 = vmatpush1.msra.mxu0 0.0
      %1821 = vmatprep.subr.mxu0 0.0
      %1822 = vmatpush1.msra.mxu0 0.0
      %1823 = vmatprep.subr.mxu0 0.0
      %1824 = vmatpush1.msra.mxu0 0.0
      %1825 = vmatprep.subr.mxu0 0.0
      %1826 = vmatpush1.msra.mxu0 0.0
      %1827 = vmatprep.subr.mxu0 0.0
      %1828 = vmatpush1.msra.mxu0 0.0
      %1829 = vmatprep.subr.mxu0 0.0
      %1830 = vmatpush1.msra.mxu0 0.0
      %1831 = vmatprep.subr.mxu0 0.0
      %1832 = vmatpush1.msra.mxu0 0.0
      %1833 = vmatprep.subr.mxu0 0.0
      %1834 = vmatpush1.msra.mxu0 0.0
      %1835 = vmatprep.subr.mxu0 0.0
      %1836 = vmatpush1.msra.mxu0 0.0
      %1837 = vmatprep.subr.mxu0 0.0
      %1838 = vmatpush1.msra.mxu0 0.0
      %1839 = vmatprep.subr.mxu0 0.0
      %1840 = vmatpush1.msra.mxu0 0.0
      %1841 = vmatprep.subr.mxu0 0.0
      %1842 = vmatpush1.msra.mxu0 0.0
      %1843 = vmatprep.subr.mxu0 0.0
      %1844 = vmatpush1.msra.mxu0 0.0
      %1845 = vmatprep.subr.mxu0 0.0
      %1846 = vmatpush1.msra.mxu0 0.0
      %1847 = vmatprep.subr.mxu0 0.0
      %1848 = vmatpush1.msra.mxu0 0.0
      %1849 = vmatprep.subr.mxu0 0.0
      %1850 = vmatpush1.msra.mxu0 0.0
      %1851 = vmatprep.subr.mxu0 0.0
      %1852 = vmatpush1.msra.mxu0 0.0
      %1853 = vmatprep.subr.mxu0 0.0
      %1854 = vmatpush1.msra.mxu0 0.0
      %1855 = vmatprep.subr.mxu0 0.0
      %1856 = vmatpush1.msra.mxu0 0.0
      %1857 = vmatprep.subr.mxu0 0.0
      %1858 = vmatpush1.msra.mxu0 0.0
      %1859 = vmatprep.subr.mxu0 0.0
      %1860 = vmatpush1.msra.mxu0 0.0
      %1861 = vmatprep.subr.mxu0 0.0
      %1862 = vmatpush1.msra.mxu0 0.0
      %1863 = vmatprep.mubr.f32.mxu0 0.0
      %1864 = vmatmul.mubr.f32.gmra.mrb[0].mxu0 %v535
      %v1865 = vpop.f32.mrb[0].mxu0
      %v1866 = vadd.f32 0.0, %v1865
      %v1867 = vpop.f32.mrb[0].mxu0
      %1868 = vmatprep.mubr.f32.mxu0 0.0
      %1869 = vmatmul.mubr.f32.gmra.mrb[0].mxu0 %v537
      %v1870 = vpop.f32.mrb[0].mxu0
      %v1871 = vadd.f32 0.0, %v1870
      %v1872 = vpop.f32.mrb[0].mxu0
      %1873 = vmatprep.mubr.f32.mxu0 0.0
      %1874 = vmatmul.mubr.f32.gmra.mrb[0].mxu0 %v539
      %v1875 = vpop.f32.mrb[0].mxu0
      %v1876 = vadd.f32 0.0, %v1875
      %v1877 = vpop.f32.mrb[0].mxu0
      %1878 = vmatprep.mubr.f32.mxu0 0.0
      %1879 = vmatmul.mubr.f32.gmra.mrb[0].mxu0 %v541
      %v1880 = vpop.f32.mrb[0].mxu0
      %v1881 = vadd.f32 0.0, %v1880
      %v1882 = vpop.f32.mrb[0].mxu0
      %1883 = vmatprep.mubr.f32.mxu0 0.0
      %1884 = vmatmul.mubr.f32.gmra.mrb[0].mxu0 %v543
      %v1885 = vpop.f32.mrb[0].mxu0
      %v1886 = vadd.f32 0.0, %v1885
      %v1887 = vpop.f32.mrb[0].mxu0
      %1888 = vmatprep.mubr.f32.mxu0 0.0
      %1889 = vmatmul.mubr.f32.gmra.mrb[0].mxu0 %v545
      %v1890 = vpop.f32.mrb[0].mxu0
      %v1891 = vadd.f32 0.0, %v1890
      %v1892 = vpop.f32.mrb[0].mxu0
      %1893 = vmatprep.mubr.f32.mxu0 0.0
      %1894 = vmatmul.mubr.f32.gmra.mrb[0].mxu0 %v547
      %v1895 = vpop.f32.mrb[0].mxu0
      %v1896 = vadd.f32 0.0, %v1895
      %v1897 = vpop.f32.mrb[0].mxu0
      %1898 = vmatprep.mubr.f32.mxu0 0.0
      %1899 = vmatmul.mubr.f32.gmra.mrb[0].mxu0 %v549
      %v1900 = vpop.f32.mrb[0].mxu0
      %v1901 = vadd.f32 0.0, %v1900
      %v1902 = vpop.f32.mrb[0].mxu0
      %1903 = vmatprep.mubr.f32.mxu0 0.0
      %1904 = vmatmul.mubr.f32.gmra.mrb[0].mxu0 %v551
      %v1905 = vpop.f32.mrb[0].mxu0
      %v1906 = vadd.f32 0.0, %v1905
      %v1907 = vpop.f32.mrb[0].mxu0
      %1908 = vmatprep.mubr.f32.mxu0 0.0
      %1909 = vmatmul.mubr.f32.gmra.mrb[0].mxu0 %v553
      %v1910 = vpop.f32.mrb[0].mxu0
      %v1911 = vadd.f32 0.0, %v1910
      %v1912 = vpop.f32.mrb[0].mxu0
      %1913 = vmatprep.mubr.f32.mxu0 0.0
      %1914 = vmatmul.mubr.f32.gmra.mrb[0].mxu0 %v555
      %v1915 = vpop.f32.mrb[0].mxu0
      %v1916 = vadd.f32 0.0, %v1915
      %v1917 = vpop.f32.mrb[0].mxu0
      %1918 = vmatprep.mubr.f32.mxu0 0.0
      %1919 = vmatmul.mubr.f32.gmra.mrb[0].mxu0 %v557
      %v1920 = vpop.f32.mrb[0].mxu0
      %v1921 = vadd.f32 0.0, %v1920
      %v1922 = vpop.f32.mrb[0].mxu0
      %1923 = vmatprep.mubr.f32.mxu0 0.0
      %1924 = vmatmul.mubr.f32.gmra.mrb[0].mxu0 %v559
      %v1925 = vpop.f32.mrb[0].mxu0
      %v1926 = vadd.f32 0.0, %v1925
      %v1927 = vpop.f32.mrb[0].mxu0
      %1928 = vmatprep.mubr.f32.mxu0 0.0
      %1929 = vmatmul.mubr.f32.gmra.mrb[0].mxu0 %v561
      %v1930 = vpop.f32.mrb[0].mxu0
      %v1931 = vadd.f32 0.0, %v1930
      %v1932 = vpop.f32.mrb[0].mxu0
      %1933 = vmatprep.mubr.f32.mxu0 0.0
      %1934 = vmatmul.mubr.f32.gmra.mrb[0].mxu0 %v563
      %v1935 = vpop.f32.mrb[0].mxu0
      %v1936 = vadd.f32 0.0, %v1935
      %v1937 = vpop.f32.mrb[0].mxu0
      %1938 = vmatprep.mubr.f32.mxu0 0.0
      %1939 = vmatmul.mubr.f32.gmra.mrb[0].mxu0 %v565
      %v1940 = vpop.f32.mrb[0].mxu0
      %v1941 = vadd.f32 0.0, %v1940
      %v1942 = vpop.f32.mrb[0].mxu0
      %1943 = vmatprep.mubr.f32.mxu0 0.0
      %1944 = vmatmul.mubr.f32.gmra.mrb[0].mxu0 %v567
      %v1945 = vpop.f32.mrb[0].mxu0
      %v1946 = vadd.f32 0.0, %v1945
      %v1947 = vpop.f32.mrb[0].mxu0
      %1948 = vmatprep.mubr.f32.mxu0 0.0
      %1949 = vmatmul.mubr.f32.gmra.mrb[0].mxu0 %v569
      %v1950 = vpop.f32.mrb[0].mxu0
      %v1951 = vadd.f32 0.0, %v1950
      %v1952 = vpop.f32.mrb[0].mxu0
      %1953 = vmatprep.mubr.f32.mxu0 0.0
      %1954 = vmatmul.mubr.f32.gmra.mrb[0].mxu0 %v571
      %v1955 = vpop.f32.mrb[0].mxu0
      %v1956 = vadd.f32 0.0, %v1955
      %v1957 = vpop.f32.mrb[0].mxu0
      %1958 = vmatprep.mubr.f32.mxu0 0.0
      %1959 = vmatmul.mubr.f32.gmra.mrb[0].mxu0 %v573
      %v1960 = vpop.f32.mrb[0].mxu0
      %v1961 = vadd.f32 0.0, %v1960
      %v1962 = vpop.f32.mrb[0].mxu0
      %1963 = vmatprep.mubr.f32.mxu0 0.0
      %1964 = vmatmul.mubr.f32.gmra.mrb[0].mxu0 %v575
      %v1965 = vpop.f32.mrb[0].mxu0
      %v1966 = vadd.f32 0.0, %v1965
      %v1967 = vpop.f32.mrb[0].mxu0
      %1968 = vmatprep.mubr.f32.mxu0 0.0
      %1969 = vmatmul.mubr.f32.gmra.mrb[0].mxu0 %v577
      %v1970 = vpop.f32.mrb[0].mxu0
      %v1971 = vadd.f32 0.0, %v1970
      %v1972 = vpop.f32.mrb[0].mxu0
      %1973 = vmatprep.mubr.f32.mxu0 0.0
      %1974 = vmatmul.mubr.f32.gmra.mrb[0].mxu0 %v579
      %v1975 = vpop.f32.mrb[0].mxu0
      %v1976 = vadd.f32 0.0, %v1975
      %v1977 = vpop.f32.mrb[0].mxu0
      %1978 = vmatprep.mubr.f32.mxu0 0.0
      %1979 = vmatmul.mubr.f32.gmra.mrb[0].mxu0 %v581
      %v1980 = vpop.f32.mrb[0].mxu0
      %v1981 = vadd.f32 0.0, %v1980
      %v1982 = vpop.f32.mrb[0].mxu0
      %1983 = vmatprep.mubr.f32.mxu0 0.0
      %1984 = vmatmul.mubr.f32.gmra.mrb[0].mxu0 %v583
      %v1985 = vpop.f32.mrb[0].mxu0
      %v1986 = vadd.f32 0.0, %v1985
      %v1987 = vpop.f32.mrb[0].mxu0
      %1988 = vmatprep.mubr.f32.mxu0 0.0
      %1989 = vmatmul.mubr.f32.gmra.mrb[0].mxu0 %v585
      %v1990 = vpop.f32.mrb[0].mxu0
      %v1991 = vadd.f32 0.0, %v1990
      %v1992 = vpop.f32.mrb[0].mxu0
      %1993 = vmatprep.mubr.f32.mxu0 0.0
      %1994 = vmatmul.mubr.f32.gmra.mrb[0].mxu0 %v587
      %v1995 = vpop.f32.mrb[0].mxu0
      %v1996 = vadd.f32 0.0, %v1995
      %v1997 = vpop.f32.mrb[0].mxu0
      %1998 = vmatprep.mubr.f32.mxu0 0.0
      %1999 = vmatmul.mubr.f32.gmra.mrb[0].mxu0 %v589
      %v2000 = vpop.f32.mrb[0].mxu0
      %v2001 = vadd.f32 0.0, %v2000
      %v2002 = vpop.f32.mrb[0].mxu0
      %2003 = vmatprep.mubr.f32.mxu0 0.0
      %2004 = vmatmul.mubr.f32.gmra.mrb[0].mxu0 %v591
      %v2005 = vpop.f32.mrb[0].mxu0
      %v2006 = vadd.f32 0.0, %v2005
      %v2007 = vpop.f32.mrb[0].mxu0
      %2008 = vmatprep.mubr.f32.mxu0 0.0
      %2009 = vmatmul.mubr.f32.gmra.mrb[0].mxu0 %v593
      %v2010 = vpop.f32.mrb[0].mxu0
      %v2011 = vadd.f32 0.0, %v2010
      %v2012 = vpop.f32.mrb[0].mxu0
      %2013 = vmatprep.mubr.f32.mxu0 0.0
      %2014 = vmatmul.mubr.f32.gmra.mrb[0].mxu0 %v1792
      %v2015 = vpop.f32.mrb[0].mxu0
      %v2016 = vadd.f32 0.0, %v2015
      %v2017 = vpop.f32.mrb[0].mxu0
      %2018 = vmatprep.mubr.f32.mxu0 0.0
      %2019 = vmatmul.mubr.f32.gmra.mrb[0].mxu0 %v1794
      %v2020 = vpop.f32.mrb[0].mxu0
      %v2021 = vadd.f32 0.0, %v2020
      %v2022 = vpop.f32.mrb[0].mxu0
      %2023 = vdwg.mxu0
      %v2024 = vadd.f32 %v1754, %v1866
      %v2025 = vadd.f32 %v1755, %v1871
      %v2026 = vadd.f32 %v1756, %v1876
      %v2027 = vadd.f32 %v1757, %v1881
      %v2028 = vadd.f32 %v1758, %v1886
      %v2029 = vadd.f32 %v1759, %v1891
      %v2030 = vadd.f32 %v1760, %v1896
      %v2031 = vadd.f32 %v1761, %v1901
      %v2032 = vadd.f32 %v1762, %v1906
      %v2033 = vadd.f32 %v1763, %v1911
      %v2034 = vadd.f32 %v1764, %v1916
      %v2035 = vadd.f32 %v1765, %v1921
      %v2036 = vadd.f32 %v1766, %v1926
      %v2037 = vadd.f32 %v1767, %v1931
      %v2038 = vadd.f32 %v1768, %v1936
      %v2039 = vadd.f32 %v1769, %v1941
      %v2040 = vadd.f32 %v1770, %v1946
      %v2041 = vadd.f32 %v1771, %v1951
      %v2042 = vadd.f32 %v1772, %v1956
      %v2043 = vadd.f32 %v1773, %v1961
      %v2044 = vadd.f32 %v1774, %v1966
      %v2045 = vadd.f32 %v1775, %v1971
      %v2046 = vadd.f32 %v1776, %v1976
      %v2047 = vadd.f32 %v1777, %v1981
      %v2048 = vadd.f32 %v1778, %v1986
      %v2049 = vadd.f32 %v1779, %v1991
      %v2050 = vadd.f32 %v1780, %v1996
      %v2051 = vadd.f32 %v1781, %v2001
      %v2052 = vadd.f32 %v1782, %v2006
      %v2053 = vadd.f32 %v1783, %v2011
      %v2054 = vadd.f32 %v1784, %v2016
      %v2055 = vadd.f32 %v1785, %v2021
      %v2056 = vrot.slane %v399, 2
      %v2057 = vrot.slane %v349, 2
      %v2058 = vsel %vm1116, %v2056, %v2057
      %v2059 = vrot.slane %v416, 2
      %v2060 = vsel %vm1116, %v2057, %v2059
      %v2061 = vsel %vm530, %v2058, 0
      %v2063 = vsel %vm530, %v2060, 0
      %v2066 = vsel %vm595, %v262, 0
      %2068 = vmatprep.subr.mxu0 0.0
      %2069 = vmatpush1.msra.mxu0 %v2066
      %2070 = vmatprep.subr.mxu0 0.0
      %2071 = vmatpush1.msra.mxu0 0.0
      %2072 = vmatprep.subr.mxu0 0.0
      %2073 = vmatpush1.msra.mxu0 0.0
      %2074 = vmatprep.subr.mxu0 0.0
      %2075 = vmatpush1.msra.mxu0 0.0
      %2076 = vmatprep.subr.mxu0 0.0
      %2077 = vmatpush1.msra.mxu0 0.0
      %2078 = vmatprep.subr.mxu0 0.0
      %2079 = vmatpush1.msra.mxu0 0.0
      %2080 = vmatprep.subr.mxu0 0.0
      %2081 = vmatpush1.msra.mxu0 0.0
      %2082 = vmatprep.subr.mxu0 0.0
      %2083 = vmatpush1.msra.mxu0 0.0
      %2084 = vmatprep.subr.mxu0 0.0
      %2085 = vmatpush1.msra.mxu0 0.0
      %2086 = vmatprep.subr.mxu0 0.0
      %2087 = vmatpush1.msra.mxu0 0.0
      %2088 = vmatprep.subr.mxu0 0.0
      %2089 = vmatpush1.msra.mxu0 0.0
      %2090 = vmatprep.subr.mxu0 0.0
      %2091 = vmatpush1.msra.mxu0 0.0
      %2092 = vmatprep.subr.mxu0 0.0
      %2093 = vmatpush1.msra.mxu0 0.0
      %2094 = vmatprep.subr.mxu0 0.0
      %2095 = vmatpush1.msra.mxu0 0.0
      %2096 = vmatprep.subr.mxu0 0.0
      %2097 = vmatpush1.msra.mxu0 0.0
      %2098 = vmatprep.subr.mxu0 0.0
      %2099 = vmatpush1.msra.mxu0 0.0
      %2100 = vmatprep.subr.mxu0 0.0
      %2101 = vmatpush1.msra.mxu0 0.0
      %2102 = vmatprep.subr.mxu0 0.0
      %2103 = vmatpush1.msra.mxu0 0.0
      %2104 = vmatprep.subr.mxu0 0.0
      %2105 = vmatpush1.msra.mxu0 0.0
      %2106 = vmatprep.subr.mxu0 0.0
      %2107 = vmatpush1.msra.mxu0 0.0
      %2108 = vmatprep.subr.mxu0 0.0
      %2109 = vmatpush1.msra.mxu0 0.0
      %2110 = vmatprep.subr.mxu0 0.0
      %2111 = vmatpush1.msra.mxu0 0.0
      %2112 = vmatprep.subr.mxu0 0.0
      %2113 = vmatpush1.msra.mxu0 0.0
      %2114 = vmatprep.subr.mxu0 0.0
      %2115 = vmatpush1.msra.mxu0 0.0
      %2116 = vmatprep.subr.mxu0 0.0
      %2117 = vmatpush1.msra.mxu0 0.0
      %2118 = vmatprep.subr.mxu0 0.0
      %2119 = vmatpush1.msra.mxu0 0.0
      %2120 = vmatprep.subr.mxu0 0.0
      %2121 = vmatpush1.msra.mxu0 0.0
      %2122 = vmatprep.subr.mxu0 0.0
      %2123 = vmatpush1.msra.mxu0 0.0
      %2124 = vmatprep.subr.mxu0 0.0
      %2125 = vmatpush1.msra.mxu0 0.0
      %2126 = vmatprep.subr.mxu0 0.0
      %2127 = vmatpush1.msra.mxu0 0.0
      %2128 = vmatprep.subr.mxu0 0.0
      %2129 = vmatpush1.msra.mxu0 0.0
      %2130 = vmatprep.subr.mxu0 0.0
      %2131 = vmatpush1.msra.mxu0 0.0
      %2132 = vmatprep.mubr.f32.mxu0 0.0
      %2133 = vmatmul.mubr.f32.gmra.mrb[0].mxu0 %v1201
      %v2134 = vpop.f32.mrb[0].mxu0
      %v2135 = vadd.f32 0.0, %v2134
      %v2136 = vpop.f32.mrb[0].mxu0
      %2137 = vmatprep.mubr.f32.mxu0 0.0
      %2138 = vmatmul.mubr.f32.gmra.mrb[0].mxu0 %v1203
      %v2139 = vpop.f32.mrb[0].mxu0
      %v2140 = vadd.f32 0.0, %v2139
      %v2141 = vpop.f32.mrb[0].mxu0
      %2142 = vmatprep.mubr.f32.mxu0 0.0
      %2143 = vmatmul.mubr.f32.gmra.mrb[0].mxu0 %v1205
      %v2144 = vpop.f32.mrb[0].mxu0
      %v2145 = vadd.f32 0.0, %v2144
      %v2146 = vpop.f32.mrb[0].mxu0
      %2147 = vmatprep.mubr.f32.mxu0 0.0
      %2148 = vmatmul.mubr.f32.gmra.mrb[0].mxu0 %v1207
      %v2149 = vpop.f32.mrb[0].mxu0
      %v2150 = vadd.f32 0.0, %v2149
      %v2151 = vpop.f32.mrb[0].mxu0
      %2152 = vmatprep.mubr.f32.mxu0 0.0
      %2153 = vmatmul.mubr.f32.gmra.mrb[0].mxu0 %v1209
      %v2154 = vpop.f32.mrb[0].mxu0
      %v2155 = vadd.f32 0.0, %v2154
      %v2156 = vpop.f32.mrb[0].mxu0
      %2157 = vmatprep.mubr.f32.mxu0 0.0
      %2158 = vmatmul.mubr.f32.gmra.mrb[0].mxu0 %v1211
      %v2159 = vpop.f32.mrb[0].mxu0
      %v2160 = vadd.f32 0.0, %v2159
      %v2161 = vpop.f32.mrb[0].mxu0
      %2162 = vmatprep.mubr.f32.mxu0 0.0
      %2163 = vmatmul.mubr.f32.gmra.mrb[0].mxu0 %v1213
      %v2164 = vpop.f32.mrb[0].mxu0
      %v2165 = vadd.f32 0.0, %v2164
      %v2166 = vpop.f32.mrb[0].mxu0
      %2167 = vmatprep.mubr.f32.mxu0 0.0
      %2168 = vmatmul.mubr.f32.gmra.mrb[0].mxu0 %v1215
      %v2169 = vpop.f32.mrb[0].mxu0
      %v2170 = vadd.f32 0.0, %v2169
      %v2171 = vpop.f32.mrb[0].mxu0
      %2172 = vmatprep.mubr.f32.mxu0 0.0
      %2173 = vmatmul.mubr.f32.gmra.mrb[0].mxu0 %v1217
      %v2174 = vpop.f32.mrb[0].mxu0
      %v2175 = vadd.f32 0.0, %v2174
      %v2176 = vpop.f32.mrb[0].mxu0
      %2177 = vmatprep.mubr.f32.mxu0 0.0
      %2178 = vmatmul.mubr.f32.gmra.mrb[0].mxu0 %v1219
      %v2179 = vpop.f32.mrb[0].mxu0
      %v2180 = vadd.f32 0.0, %v2179
      %v2181 = vpop.f32.mrb[0].mxu0
      %2182 = vmatprep.mubr.f32.mxu0 0.0
      %2183 = vmatmul.mubr.f32.gmra.mrb[0].mxu0 %v1221
      %v2184 = vpop.f32.mrb[0].mxu0
      %v2185 = vadd.f32 0.0, %v2184
      %v2186 = vpop.f32.mrb[0].mxu0
      %2187 = vmatprep.mubr.f32.mxu0 0.0
      %2188 = vmatmul.mubr.f32.gmra.mrb[0].mxu0 %v1223
      %v2189 = vpop.f32.mrb[0].mxu0
      %v2190 = vadd.f32 0.0, %v2189
      %v2191 = vpop.f32.mrb[0].mxu0
      %2192 = vmatprep.mubr.f32.mxu0 0.0
      %2193 = vmatmul.mubr.f32.gmra.mrb[0].mxu0 %v1225
      %v2194 = vpop.f32.mrb[0].mxu0
      %v2195 = vadd.f32 0.0, %v2194
      %v2196 = vpop.f32.mrb[0].mxu0
      %2197 = vmatprep.mubr.f32.mxu0 0.0
      %2198 = vmatmul.mubr.f32.gmra.mrb[0].mxu0 %v1227
      %v2199 = vpop.f32.mrb[0].mxu0
      %v2200 = vadd.f32 0.0, %v2199
      %v2201 = vpop.f32.mrb[0].mxu0
      %2202 = vmatprep.mubr.f32.mxu0 0.0
      %2203 = vmatmul.mubr.f32.gmra.mrb[0].mxu0 %v1229
      %v2204 = vpop.f32.mrb[0].mxu0
      %v2205 = vadd.f32 0.0, %v2204
      %v2206 = vpop.f32.mrb[0].mxu0
      %2207 = vmatprep.mubr.f32.mxu0 0.0
      %2208 = vmatmul.mubr.f32.gmra.mrb[0].mxu0 %v1231
      %v2209 = vpop.f32.mrb[0].mxu0
      %v2210 = vadd.f32 0.0, %v2209
      %v2211 = vpop.f32.mrb[0].mxu0
      %2212 = vmatprep.mubr.f32.mxu0 0.0
      %2213 = vmatmul.mubr.f32.gmra.mrb[0].mxu0 %v1233
      %v2214 = vpop.f32.mrb[0].mxu0
      %v2215 = vadd.f32 0.0, %v2214
      %v2216 = vpop.f32.mrb[0].mxu0
      %2217 = vmatprep.mubr.f32.mxu0 0.0
      %2218 = vmatmul.mubr.f32.gmra.mrb[0].mxu0 %v1235
      %v2219 = vpop.f32.mrb[0].mxu0
      %v2220 = vadd.f32 0.0, %v2219
      %v2221 = vpop.f32.mrb[0].mxu0
      %2222 = vmatprep.mubr.f32.mxu0 0.0
      %2223 = vmatmul.mubr.f32.gmra.mrb[0].mxu0 %v1237
      %v2224 = vpop.f32.mrb[0].mxu0
      %v2225 = vadd.f32 0.0, %v2224
      %v2226 = vpop.f32.mrb[0].mxu0
      %2227 = vmatprep.mubr.f32.mxu0 0.0
      %2228 = vmatmul.mubr.f32.gmra.mrb[0].mxu0 %v1239
      %v2229 = vpop.f32.mrb[0].mxu0
      %v2230 = vadd.f32 0.0, %v2229
      %v2231 = vpop.f32.mrb[0].mxu0
      %2232 = vmatprep.mubr.f32.mxu0 0.0
      %2233 = vmatmul.mubr.f32.gmra.mrb[0].mxu0 %v1241
      %v2234 = vpop.f32.mrb[0].mxu0
      %v2235 = vadd.f32 0.0, %v2234
      %v2236 = vpop.f32.mrb[0].mxu0
      %2237 = vmatprep.mubr.f32.mxu0 0.0
      %2238 = vmatmul.mubr.f32.gmra.mrb[0].mxu0 %v1243
      %v2239 = vpop.f32.mrb[0].mxu0
      %v2240 = vadd.f32 0.0, %v2239
      %v2241 = vpop.f32.mrb[0].mxu0
      %2242 = vmatprep.mubr.f32.mxu0 0.0
      %2243 = vmatmul.mubr.f32.gmra.mrb[0].mxu0 %v1245
      %v2244 = vpop.f32.mrb[0].mxu0
      %v2245 = vadd.f32 0.0, %v2244
      %v2246 = vpop.f32.mrb[0].mxu0
      %2247 = vmatprep.mubr.f32.mxu0 0.0
      %2248 = vmatmul.mubr.f32.gmra.mrb[0].mxu0 %v1247
      %v2249 = vpop.f32.mrb[0].mxu0
      %v2250 = vadd.f32 0.0, %v2249
      %v2251 = vpop.f32.mrb[0].mxu0
      %2252 = vmatprep.mubr.f32.mxu0 0.0
      %2253 = vmatmul.mubr.f32.gmra.mrb[0].mxu0 %v1249
      %v2254 = vpop.f32.mrb[0].mxu0
      %v2255 = vadd.f32 0.0, %v2254
      %v2256 = vpop.f32.mrb[0].mxu0
      %2257 = vmatprep.mubr.f32.mxu0 0.0
      %2258 = vmatmul.mubr.f32.gmra.mrb[0].mxu0 %v1251
      %v2259 = vpop.f32.mrb[0].mxu0
      %v2260 = vadd.f32 0.0, %v2259
      %v2261 = vpop.f32.mrb[0].mxu0
      %2262 = vmatprep.mubr.f32.mxu0 0.0
      %2263 = vmatmul.mubr.f32.gmra.mrb[0].mxu0 %v1253
      %v2264 = vpop.f32.mrb[0].mxu0
      %v2265 = vadd.f32 0.0, %v2264
      %v2266 = vpop.f32.mrb[0].mxu0
      %2267 = vmatprep.mubr.f32.mxu0 0.0
      %2268 = vmatmul.mubr.f32.gmra.mrb[0].mxu0 %v1255
      %v2269 = vpop.f32.mrb[0].mxu0
      %v2270 = vadd.f32 0.0, %v2269
      %v2271 = vpop.f32.mrb[0].mxu0
      %2272 = vmatprep.mubr.f32.mxu0 0.0
      %2273 = vmatmul.mubr.f32.gmra.mrb[0].mxu0 %v1257
      %v2274 = vpop.f32.mrb[0].mxu0
      %v2275 = vadd.f32 0.0, %v2274
      %v2276 = vpop.f32.mrb[0].mxu0
      %2277 = vmatprep.mubr.f32.mxu0 0.0
      %2278 = vmatmul.mubr.f32.gmra.mrb[0].mxu0 %v1259
      %v2279 = vpop.f32.mrb[0].mxu0
      %v2280 = vadd.f32 0.0, %v2279
      %v2281 = vpop.f32.mrb[0].mxu0
      %2282 = vmatprep.mubr.f32.mxu0 0.0
      %2283 = vmatmul.mubr.f32.gmra.mrb[0].mxu0 %v2061
      %v2284 = vpop.f32.mrb[0].mxu0
      %v2285 = vadd.f32 0.0, %v2284
      %v2286 = vpop.f32.mrb[0].mxu0
      %2287 = vmatprep.mubr.f32.mxu0 0.0
      %2288 = vmatmul.mubr.f32.gmra.mrb[0].mxu0 %v2063
      %v2289 = vpop.f32.mrb[0].mxu0
      %v2290 = vadd.f32 0.0, %v2289
      %v2291 = vpop.f32.mrb[0].mxu0
      %2292 = vdwg.mxu0
      %v2293 = vadd.f32 %v2024, %v2135
      %v2294 = vadd.f32 %v2025, %v2140
      %v2295 = vadd.f32 %v2026, %v2145
      %v2296 = vadd.f32 %v2027, %v2150
      %v2297 = vadd.f32 %v2028, %v2155
      %v2298 = vadd.f32 %v2029, %v2160
      %v2299 = vadd.f32 %v2030, %v2165
      %v2300 = vadd.f32 %v2031, %v2170
      %v2301 = vadd.f32 %v2032, %v2175
      %v2302 = vadd.f32 %v2033, %v2180
      %v2303 = vadd.f32 %v2034, %v2185
      %v2304 = vadd.f32 %v2035, %v2190
      %v2305 = vadd.f32 %v2036, %v2195
      %v2306 = vadd.f32 %v2037, %v2200
      %v2307 = vadd.f32 %v2038, %v2205
      %v2308 = vadd.f32 %v2039, %v2210
      %v2309 = vadd.f32 %v2040, %v2215
      %v2310 = vadd.f32 %v2041, %v2220
      %v2311 = vadd.f32 %v2042, %v2225
      %v2312 = vadd.f32 %v2043, %v2230
      %v2313 = vadd.f32 %v2044, %v2235
      %v2314 = vadd.f32 %v2045, %v2240
      %v2315 = vadd.f32 %v2046, %v2245
      %v2316 = vadd.f32 %v2047, %v2250
      %v2317 = vadd.f32 %v2048, %v2255
      %v2318 = vadd.f32 %v2049, %v2260
      %v2319 = vadd.f32 %v2050, %v2265
      %v2320 = vadd.f32 %v2051, %v2270
      %v2321 = vadd.f32 %v2052, %v2275
      %v2322 = vadd.f32 %v2053, %v2280
      %v2323 = vadd.f32 %v2054, %v2285
      %v2324 = vadd.f32 %v2055, %v2290
      %v2326 = vsel %vm595, %v263, 0
      %2328 = vmatprep.subr.mxu0 0.0
      %2329 = vmatpush1.msra.mxu0 %v2326
      %2330 = vmatprep.subr.mxu0 0.0
      %2331 = vmatpush1.msra.mxu0 0.0
      %2332 = vmatprep.subr.mxu0 0.0
      %2333 = vmatpush1.msra.mxu0 0.0
      %2334 = vmatprep.subr.mxu0 0.0
      %2335 = vmatpush1.msra.mxu0 0.0
      %2336 = vmatprep.subr.mxu0 0.0
      %2337 = vmatpush1.msra.mxu0 0.0
      %2338 = vmatprep.subr.mxu0 0.0
      %2339 = vmatpush1.msra.mxu0 0.0
      %2340 = vmatprep.subr.mxu0 0.0
      %2341 = vmatpush1.msra.mxu0 0.0
      %2342 = vmatprep.subr.mxu0 0.0
      %2343 = vmatpush1.msra.mxu0 0.0
      %2344 = vmatprep.subr.mxu0 0.0
      %2345 = vmatpush1.msra.mxu0 0.0
      %2346 = vmatprep.subr.mxu0 0.0
      %2347 = vmatpush1.msra.mxu0 0.0
      %2348 = vmatprep.subr.mxu0 0.0
      %2349 = vmatpush1.msra.mxu0 0.0
      %2350 = vmatprep.subr.mxu0 0.0
      %2351 = vmatpush1.msra.mxu0 0.0
      %2352 = vmatprep.subr.mxu0 0.0
      %2353 = vmatpush1.msra.mxu0 0.0
      %2354 = vmatprep.subr.mxu0 0.0
      %2355 = vmatpush1.msra.mxu0 0.0
      %2356 = vmatprep.subr.mxu0 0.0
      %2357 = vmatpush1.msra.mxu0 0.0
      %2358 = vmatprep.subr.mxu0 0.0
      %2359 = vmatpush1.msra.mxu0 0.0
      %2360 = vmatprep.subr.mxu0 0.0
      %2361 = vmatpush1.msra.mxu0 0.0
      %2362 = vmatprep.subr.mxu0 0.0
      %2363 = vmatpush1.msra.mxu0 0.0
      %2364 = vmatprep.subr.mxu0 0.0
      %2365 = vmatpush1.msra.mxu0 0.0
      %2366 = vmatprep.subr.mxu0 0.0
      %2367 = vmatpush1.msra.mxu0 0.0
      %2368 = vmatprep.subr.mxu0 0.0
      %2369 = vmatpush1.msra.mxu0 0.0
      %2370 = vmatprep.subr.mxu0 0.0
      %2371 = vmatpush1.msra.mxu0 0.0
      %2372 = vmatprep.subr.mxu0 0.0
      %2373 = vmatpush1.msra.mxu0 0.0
      %2374 = vmatprep.subr.mxu0 0.0
      %2375 = vmatpush1.msra.mxu0 0.0
      %2376 = vmatprep.subr.mxu0 0.0
      %2377 = vmatpush1.msra.mxu0 0.0
      %2378 = vmatprep.subr.mxu0 0.0
      %2379 = vmatpush1.msra.mxu0 0.0
      %2380 = vmatprep.subr.mxu0 0.0
      %2381 = vmatpush1.msra.mxu0 0.0
      %2382 = vmatprep.subr.mxu0 0.0
      %2383 = vmatpush1.msra.mxu0 0.0
      %2384 = vmatprep.subr.mxu0 0.0
      %2385 = vmatpush1.msra.mxu0 0.0
      %2386 = vmatprep.subr.mxu0 0.0
      %2387 = vmatpush1.msra.mxu0 0.0
      %2388 = vmatprep.subr.mxu0 0.0
      %2389 = vmatpush1.msra.mxu0 0.0
      %2390 = vmatprep.subr.mxu0 0.0
      %2391 = vmatpush1.msra.mxu0 0.0
      %2392 = vmatprep.mubr.f32.mxu0 0.0
      %2393 = vmatmul.mubr.f32.gmra.mrb[0].mxu0 %v832
      %v2394 = vpop.f32.mrb[0].mxu0
      %v2395 = vadd.f32 0.0, %v2394
      %v2396 = vpop.f32.mrb[0].mxu0
      %2397 = vmatprep.mubr.f32.mxu0 0.0
      %2398 = vmatmul.mubr.f32.gmra.mrb[0].mxu0 %v834
      %v2399 = vpop.f32.mrb[0].mxu0
      %v2400 = vadd.f32 0.0, %v2399
      %v2401 = vpop.f32.mrb[0].mxu0
      %2402 = vmatprep.mubr.f32.mxu0 0.0
      %2403 = vmatmul.mubr.f32.gmra.mrb[0].mxu0 %v836
      %v2404 = vpop.f32.mrb[0].mxu0
      %v2405 = vadd.f32 0.0, %v2404
      %v2406 = vpop.f32.mrb[0].mxu0
      %2407 = vmatprep.mubr.f32.mxu0 0.0
      %2408 = vmatmul.mubr.f32.gmra.mrb[0].mxu0 %v838
      %v2409 = vpop.f32.mrb[0].mxu0
      %v2410 = vadd.f32 0.0, %v2409
      %v2411 = vpop.f32.mrb[0].mxu0
      %2412 = vmatprep.mubr.f32.mxu0 0.0
      %2413 = vmatmul.mubr.f32.gmra.mrb[0].mxu0 %v840
      %v2414 = vpop.f32.mrb[0].mxu0
      %v2415 = vadd.f32 0.0, %v2414
      %v2416 = vpop.f32.mrb[0].mxu0
      %2417 = vmatprep.mubr.f32.mxu0 0.0
      %2418 = vmatmul.mubr.f32.gmra.mrb[0].mxu0 %v842
      %v2419 = vpop.f32.mrb[0].mxu0
      %v2420 = vadd.f32 0.0, %v2419
      %v2421 = vpop.f32.mrb[0].mxu0
      %2422 = vmatprep.mubr.f32.mxu0 0.0
      %2423 = vmatmul.mubr.f32.gmra.mrb[0].mxu0 %v844
      %v2424 = vpop.f32.mrb[0].mxu0
      %v2425 = vadd.f32 0.0, %v2424
      %v2426 = vpop.f32.mrb[0].mxu0
      %2427 = vmatprep.mubr.f32.mxu0 0.0
      %2428 = vmatmul.mubr.f32.gmra.mrb[0].mxu0 %v846
      %v2429 = vpop.f32.mrb[0].mxu0
      %v2430 = vadd.f32 0.0, %v2429
      %v2431 = vpop.f32.mrb[0].mxu0
      %2432 = vmatprep.mubr.f32.mxu0 0.0
      %2433 = vmatmul.mubr.f32.gmra.mrb[0].mxu0 %v848
      %v2434 = vpop.f32.mrb[0].mxu0
      %v2435 = vadd.f32 0.0, %v2434
      %v2436 = vpop.f32.mrb[0].mxu0
      %2437 = vmatprep.mubr.f32.mxu0 0.0
      %2438 = vmatmul.mubr.f32.gmra.mrb[0].mxu0 %v850
      %v2439 = vpop.f32.mrb[0].mxu0
      %v2440 = vadd.f32 0.0, %v2439
      %v2441 = vpop.f32.mrb[0].mxu0
      %2442 = vmatprep.mubr.f32.mxu0 0.0
      %2443 = vmatmul.mubr.f32.gmra.mrb[0].mxu0 %v852
      %v2444 = vpop.f32.mrb[0].mxu0
      %v2445 = vadd.f32 0.0, %v2444
      %v2446 = vpop.f32.mrb[0].mxu0
      %2447 = vmatprep.mubr.f32.mxu0 0.0
      %2448 = vmatmul.mubr.f32.gmra.mrb[0].mxu0 %v854
      %v2449 = vpop.f32.mrb[0].mxu0
      %v2450 = vadd.f32 0.0, %v2449
      %v2451 = vpop.f32.mrb[0].mxu0
      %2452 = vmatprep.mubr.f32.mxu0 0.0
      %2453 = vmatmul.mubr.f32.gmra.mrb[0].mxu0 %v856
      %v2454 = vpop.f32.mrb[0].mxu0
      %v2455 = vadd.f32 0.0, %v2454
      %v2456 = vpop.f32.mrb[0].mxu0
      %2457 = vmatprep.mubr.f32.mxu0 0.0
      %2458 = vmatmul.mubr.f32.gmra.mrb[0].mxu0 %v858
      %v2459 = vpop.f32.mrb[0].mxu0
      %v2460 = vadd.f32 0.0, %v2459
      %v2461 = vpop.f32.mrb[0].mxu0
      %2462 = vmatprep.mubr.f32.mxu0 0.0
      %2463 = vmatmul.mubr.f32.gmra.mrb[0].mxu0 %v860
      %v2464 = vpop.f32.mrb[0].mxu0
      %v2465 = vadd.f32 0.0, %v2464
      %v2466 = vpop.f32.mrb[0].mxu0
      %2467 = vmatprep.mubr.f32.mxu0 0.0
      %2468 = vmatmul.mubr.f32.gmra.mrb[0].mxu0 %v862
      %v2469 = vpop.f32.mrb[0].mxu0
      %v2470 = vadd.f32 0.0, %v2469
      %v2471 = vpop.f32.mrb[0].mxu0
      %2472 = vmatprep.mubr.f32.mxu0 0.0
      %2473 = vmatmul.mubr.f32.gmra.mrb[0].mxu0 %v864
      %v2474 = vpop.f32.mrb[0].mxu0
      %v2475 = vadd.f32 0.0, %v2474
      %v2476 = vpop.f32.mrb[0].mxu0
      %2477 = vmatprep.mubr.f32.mxu0 0.0
      %2478 = vmatmul.mubr.f32.gmra.mrb[0].mxu0 %v866
      %v2479 = vpop.f32.mrb[0].mxu0
      %v2480 = vadd.f32 0.0, %v2479
      %v2481 = vpop.f32.mrb[0].mxu0
      %2482 = vmatprep.mubr.f32.mxu0 0.0
      %2483 = vmatmul.mubr.f32.gmra.mrb[0].mxu0 %v868
      %v2484 = vpop.f32.mrb[0].mxu0
      %v2485 = vadd.f32 0.0, %v2484
      %v2486 = vpop.f32.mrb[0].mxu0
      %2487 = vmatprep.mubr.f32.mxu0 0.0
      %2488 = vmatmul.mubr.f32.gmra.mrb[0].mxu0 %v870
      %v2489 = vpop.f32.mrb[0].mxu0
      %v2490 = vadd.f32 0.0, %v2489
      %v2491 = vpop.f32.mrb[0].mxu0
      %2492 = vmatprep.mubr.f32.mxu0 0.0
      %2493 = vmatmul.mubr.f32.gmra.mrb[0].mxu0 %v872
      %v2494 = vpop.f32.mrb[0].mxu0
      %v2495 = vadd.f32 0.0, %v2494
      %v2496 = vpop.f32.mrb[0].mxu0
      %2497 = vmatprep.mubr.f32.mxu0 0.0
      %2498 = vmatmul.mubr.f32.gmra.mrb[0].mxu0 %v874
      %v2499 = vpop.f32.mrb[0].mxu0
      %v2500 = vadd.f32 0.0, %v2499
      %v2501 = vpop.f32.mrb[0].mxu0
      %2502 = vmatprep.mubr.f32.mxu0 0.0
      %2503 = vmatmul.mubr.f32.gmra.mrb[0].mxu0 %v876
      %v2504 = vpop.f32.mrb[0].mxu0
      %v2505 = vadd.f32 0.0, %v2504
      %v2506 = vpop.f32.mrb[0].mxu0
      %2507 = vmatprep.mubr.f32.mxu0 0.0
      %2508 = vmatmul.mubr.f32.gmra.mrb[0].mxu0 %v878
      %v2509 = vpop.f32.mrb[0].mxu0
      %v2510 = vadd.f32 0.0, %v2509
      %v2511 = vpop.f32.mrb[0].mxu0
      %2512 = vmatprep.mubr.f32.mxu0 0.0
      %2513 = vmatmul.mubr.f32.gmra.mrb[0].mxu0 %v880
      %v2514 = vpop.f32.mrb[0].mxu0
      %v2515 = vadd.f32 0.0, %v2514
      %v2516 = vpop.f32.mrb[0].mxu0
      %2517 = vmatprep.mubr.f32.mxu0 0.0
      %2518 = vmatmul.mubr.f32.gmra.mrb[0].mxu0 %v882
      %v2519 = vpop.f32.mrb[0].mxu0
      %v2520 = vadd.f32 0.0, %v2519
      %v2521 = vpop.f32.mrb[0].mxu0
      %2522 = vmatprep.mubr.f32.mxu0 0.0
      %2523 = vmatmul.mubr.f32.gmra.mrb[0].mxu0 %v884
      %v2524 = vpop.f32.mrb[0].mxu0
      %v2525 = vadd.f32 0.0, %v2524
      %v2526 = vpop.f32.mrb[0].mxu0
      %2527 = vmatprep.mubr.f32.mxu0 0.0
      %2528 = vmatmul.mubr.f32.gmra.mrb[0].mxu0 %v886
      %v2529 = vpop.f32.mrb[0].mxu0
      %v2530 = vadd.f32 0.0, %v2529
      %v2531 = vpop.f32.mrb[0].mxu0
      %2532 = vmatprep.mubr.f32.mxu0 0.0
      %2533 = vmatmul.mubr.f32.gmra.mrb[0].mxu0 %v1522
      %v2534 = vpop.f32.mrb[0].mxu0
      %v2535 = vadd.f32 0.0, %v2534
      %v2536 = vpop.f32.mrb[0].mxu0
      %2537 = vmatprep.mubr.f32.mxu0 0.0
      %2538 = vmatmul.mubr.f32.gmra.mrb[0].mxu0 %v1524
      %v2539 = vpop.f32.mrb[0].mxu0
      %v2540 = vadd.f32 0.0, %v2539
      %v2541 = vpop.f32.mrb[0].mxu0
      %2542 = vmatprep.mubr.f32.mxu0 0.0
      %2543 = vmatmul.mubr.f32.gmra.mrb[0].mxu0 %v824
      %v2544 = vpop.f32.mrb[0].mxu0
      %v2545 = vadd.f32 0.0, %v2544
      %v2546 = vpop.f32.mrb[0].mxu0
      %2547 = vmatprep.mubr.f32.mxu0 0.0
      %2548 = vmatmul.mubr.f32.gmra.mrb[0].mxu0 %v826
      %v2549 = vpop.f32.mrb[0].mxu0
      %v2550 = vadd.f32 0.0, %v2549
      %v2551 = vpop.f32.mrb[0].mxu0
      %2552 = vdwg.mxu0
      %v2553 = vadd.f32 %v2293, %v2395
      %v2554 = vadd.f32 %v2294, %v2400
      %v2555 = vadd.f32 %v2295, %v2405
      %v2556 = vadd.f32 %v2296, %v2410
      %v2557 = vadd.f32 %v2297, %v2415
      %v2558 = vadd.f32 %v2298, %v2420
      %v2559 = vadd.f32 %v2299, %v2425
      %v2560 = vadd.f32 %v2300, %v2430
      %v2561 = vadd.f32 %v2301, %v2435
      %v2562 = vadd.f32 %v2302, %v2440
      %v2563 = vadd.f32 %v2303, %v2445
      %v2564 = vadd.f32 %v2304, %v2450
      %v2565 = vadd.f32 %v2305, %v2455
      %v2566 = vadd.f32 %v2306, %v2460
      %v2567 = vadd.f32 %v2307, %v2465
      %v2568 = vadd.f32 %v2308, %v2470
      %v2569 = vadd.f32 %v2309, %v2475
      %v2570 = vadd.f32 %v2310, %v2480
      %v2571 = vadd.f32 %v2311, %v2485
      %v2572 = vadd.f32 %v2312, %v2490
      %v2573 = vadd.f32 %v2313, %v2495
      %v2574 = vadd.f32 %v2314, %v2500
      %v2575 = vadd.f32 %v2315, %v2505
      %v2576 = vadd.f32 %v2316, %v2510
      %v2577 = vadd.f32 %v2317, %v2515
      %v2578 = vadd.f32 %v2318, %v2520
      %v2579 = vadd.f32 %v2319, %v2525
      %v2580 = vadd.f32 %v2320, %v2530
      %v2581 = vadd.f32 %v2321, %v2535
      %v2582 = vadd.f32 %v2322, %v2540
      %v2583 = vadd.f32 %v2323, %v2545
      %v2584 = vadd.f32 %v2324, %v2550
      %v2586 = vsel %vm595, %v264, 0
      %2588 = vmatprep.subr.mxu0 0.0
      %2589 = vmatpush1.msra.mxu0 %v2586
      %2590 = vmatprep.subr.mxu0 0.0
      %2591 = vmatpush1.msra.mxu0 0.0
      %2592 = vmatprep.subr.mxu0 0.0
      %2593 = vmatpush1.msra.mxu0 0.0
      %2594 = vmatprep.subr.mxu0 0.0
      %2595 = vmatpush1.msra.mxu0 0.0
      %2596 = vmatprep.subr.mxu0 0.0
      %2597 = vmatpush1.msra.mxu0 0.0
      %2598 = vmatprep.subr.mxu0 0.0
      %2599 = vmatpush1.msra.mxu0 0.0
      %2600 = vmatprep.subr.mxu0 0.0
      %2601 = vmatpush1.msra.mxu0 0.0
      %2602 = vmatprep.subr.mxu0 0.0
      %2603 = vmatpush1.msra.mxu0 0.0
      %2604 = vmatprep.subr.mxu0 0.0
      %2605 = vmatpush1.msra.mxu0 0.0
      %2606 = vmatprep.subr.mxu0 0.0
      %2607 = vmatpush1.msra.mxu0 0.0
      %2608 = vmatprep.subr.mxu0 0.0
      %2609 = vmatpush1.msra.mxu0 0.0
      %2610 = vmatprep.subr.mxu0 0.0
      %2611 = vmatpush1.msra.mxu0 0.0
      %2612 = vmatprep.subr.mxu0 0.0
      %2613 = vmatpush1.msra.mxu0 0.0
      %2614 = vmatprep.subr.mxu0 0.0
      %2615 = vmatpush1.msra.mxu0 0.0
      %2616 = vmatprep.subr.mxu0 0.0
      %2617 = vmatpush1.msra.mxu0 0.0
      %2618 = vmatprep.subr.mxu0 0.0
      %2619 = vmatpush1.msra.mxu0 0.0
      %2620 = vmatprep.subr.mxu0 0.0
      %2621 = vmatpush1.msra.mxu0 0.0
      %2622 = vmatprep.subr.mxu0 0.0
      %2623 = vmatpush1.msra.mxu0 0.0
      %2624 = vmatprep.subr.mxu0 0.0
      %2625 = vmatpush1.msra.mxu0 0.0
      %2626 = vmatprep.subr.mxu0 0.0
      %2627 = vmatpush1.msra.mxu0 0.0
      %2628 = vmatprep.subr.mxu0 0.0
      %2629 = vmatpush1.msra.mxu0 0.0
      %2630 = vmatprep.subr.mxu0 0.0
      %2631 = vmatpush1.msra.mxu0 0.0
      %2632 = vmatprep.subr.mxu0 0.0
      %2633 = vmatpush1.msra.mxu0 0.0
      %2634 = vmatprep.subr.mxu0 0.0
      %2635 = vmatpush1.msra.mxu0 0.0
      %2636 = vmatprep.subr.mxu0 0.0
      %2637 = vmatpush1.msra.mxu0 0.0
      %2638 = vmatprep.subr.mxu0 0.0
      %2639 = vmatpush1.msra.mxu0 0.0
      %2640 = vmatprep.subr.mxu0 0.0
      %2641 = vmatpush1.msra.mxu0 0.0
      %2642 = vmatprep.subr.mxu0 0.0
      %2643 = vmatpush1.msra.mxu0 0.0
      %2644 = vmatprep.subr.mxu0 0.0
      %2645 = vmatpush1.msra.mxu0 0.0
      %2646 = vmatprep.subr.mxu0 0.0
      %2647 = vmatpush1.msra.mxu0 0.0
      %2648 = vmatprep.subr.mxu0 0.0
      %2649 = vmatpush1.msra.mxu0 0.0
      %2650 = vmatprep.subr.mxu0 0.0
      %2651 = vmatpush1.msra.mxu0 0.0
      %2652 = vmatprep.mubr.f32.mxu0 0.0
      %2653 = vmatmul.mubr.f32.gmra.mrb[0].mxu0 %v539
      %v2654 = vpop.f32.mrb[0].mxu0
      %v2655 = vadd.f32 0.0, %v2654
      %v2656 = vpop.f32.mrb[0].mxu0
      %2657 = vmatprep.mubr.f32.mxu0 0.0
      %2658 = vmatmul.mubr.f32.gmra.mrb[0].mxu0 %v541
      %v2659 = vpop.f32.mrb[0].mxu0
      %v2660 = vadd.f32 0.0, %v2659
      %v2661 = vpop.f32.mrb[0].mxu0
      %2662 = vmatprep.mubr.f32.mxu0 0.0
      %2663 = vmatmul.mubr.f32.gmra.mrb[0].mxu0 %v543
      %v2664 = vpop.f32.mrb[0].mxu0
      %v2665 = vadd.f32 0.0, %v2664
      %v2666 = vpop.f32.mrb[0].mxu0
      %2667 = vmatprep.mubr.f32.mxu0 0.0
      %2668 = vmatmul.mubr.f32.gmra.mrb[0].mxu0 %v545
      %v2669 = vpop.f32.mrb[0].mxu0
      %v2670 = vadd.f32 0.0, %v2669
      %v2671 = vpop.f32.mrb[0].mxu0
      %2672 = vmatprep.mubr.f32.mxu0 0.0
      %2673 = vmatmul.mubr.f32.gmra.mrb[0].mxu0 %v547
      %v2674 = vpop.f32.mrb[0].mxu0
      %v2675 = vadd.f32 0.0, %v2674
      %v2676 = vpop.f32.mrb[0].mxu0
      %2677 = vmatprep.mubr.f32.mxu0 0.0
      %2678 = vmatmul.mubr.f32.gmra.mrb[0].mxu0 %v549
      %v2679 = vpop.f32.mrb[0].mxu0
      %v2680 = vadd.f32 0.0, %v2679
      %v2681 = vpop.f32.mrb[0].mxu0
      %2682 = vmatprep.mubr.f32.mxu0 0.0
      %2683 = vmatmul.mubr.f32.gmra.mrb[0].mxu0 %v551
      %v2684 = vpop.f32.mrb[0].mxu0
      %v2685 = vadd.f32 0.0, %v2684
      %v2686 = vpop.f32.mrb[0].mxu0
      %2687 = vmatprep.mubr.f32.mxu0 0.0
      %2688 = vmatmul.mubr.f32.gmra.mrb[0].mxu0 %v553
      %v2689 = vpop.f32.mrb[0].mxu0
      %v2690 = vadd.f32 0.0, %v2689
      %v2691 = vpop.f32.mrb[0].mxu0
      %2692 = vmatprep.mubr.f32.mxu0 0.0
      %2693 = vmatmul.mubr.f32.gmra.mrb[0].mxu0 %v555
      %v2694 = vpop.f32.mrb[0].mxu0
      %v2695 = vadd.f32 0.0, %v2694
      %v2696 = vpop.f32.mrb[0].mxu0
      %2697 = vmatprep.mubr.f32.mxu0 0.0
      %2698 = vmatmul.mubr.f32.gmra.mrb[0].mxu0 %v557
      %v2699 = vpop.f32.mrb[0].mxu0
      %v2700 = vadd.f32 0.0, %v2699
      %v2701 = vpop.f32.mrb[0].mxu0
      %2702 = vmatprep.mubr.f32.mxu0 0.0
      %2703 = vmatmul.mubr.f32.gmra.mrb[0].mxu0 %v559
      %v2704 = vpop.f32.mrb[0].mxu0
      %v2705 = vadd.f32 0.0, %v2704
      %v2706 = vpop.f32.mrb[0].mxu0
      %2707 = vmatprep.mubr.f32.mxu0 0.0
      %2708 = vmatmul.mubr.f32.gmra.mrb[0].mxu0 %v561
      %v2709 = vpop.f32.mrb[0].mxu0
      %v2710 = vadd.f32 0.0, %v2709
      %v2711 = vpop.f32.mrb[0].mxu0
      %2712 = vmatprep.mubr.f32.mxu0 0.0
      %2713 = vmatmul.mubr.f32.gmra.mrb[0].mxu0 %v563
      %v2714 = vpop.f32.mrb[0].mxu0
      %v2715 = vadd.f32 0.0, %v2714
      %v2716 = vpop.f32.mrb[0].mxu0
      %2717 = vmatprep.mubr.f32.mxu0 0.0
      %2718 = vmatmul.mubr.f32.gmra.mrb[0].mxu0 %v565
      %v2719 = vpop.f32.mrb[0].mxu0
      %v2720 = vadd.f32 0.0, %v2719
      %v2721 = vpop.f32.mrb[0].mxu0
      %2722 = vmatprep.mubr.f32.mxu0 0.0
      %2723 = vmatmul.mubr.f32.gmra.mrb[0].mxu0 %v567
      %v2724 = vpop.f32.mrb[0].mxu0
      %v2725 = vadd.f32 0.0, %v2724
      %v2726 = vpop.f32.mrb[0].mxu0
      %2727 = vmatprep.mubr.f32.mxu0 0.0
      %2728 = vmatmul.mubr.f32.gmra.mrb[0].mxu0 %v569
      %v2729 = vpop.f32.mrb[0].mxu0
      %v2730 = vadd.f32 0.0, %v2729
      %v2731 = vpop.f32.mrb[0].mxu0
      %2732 = vmatprep.mubr.f32.mxu0 0.0
      %2733 = vmatmul.mubr.f32.gmra.mrb[0].mxu0 %v571
      %v2734 = vpop.f32.mrb[0].mxu0
      %v2735 = vadd.f32 0.0, %v2734
      %v2736 = vpop.f32.mrb[0].mxu0
      %2737 = vmatprep.mubr.f32.mxu0 0.0
      %2738 = vmatmul.mubr.f32.gmra.mrb[0].mxu0 %v573
      %v2739 = vpop.f32.mrb[0].mxu0
      %v2740 = vadd.f32 0.0, %v2739
      %v2741 = vpop.f32.mrb[0].mxu0
      %2742 = vmatprep.mubr.f32.mxu0 0.0
      %2743 = vmatmul.mubr.f32.gmra.mrb[0].mxu0 %v575
      %v2744 = vpop.f32.mrb[0].mxu0
      %v2745 = vadd.f32 0.0, %v2744
      %v2746 = vpop.f32.mrb[0].mxu0
      %2747 = vmatprep.mubr.f32.mxu0 0.0
      %2748 = vmatmul.mubr.f32.gmra.mrb[0].mxu0 %v577
      %v2749 = vpop.f32.mrb[0].mxu0
      %v2750 = vadd.f32 0.0, %v2749
      %v2751 = vpop.f32.mrb[0].mxu0
      %2752 = vmatprep.mubr.f32.mxu0 0.0
      %2753 = vmatmul.mubr.f32.gmra.mrb[0].mxu0 %v579
      %v2754 = vpop.f32.mrb[0].mxu0
      %v2755 = vadd.f32 0.0, %v2754
      %v2756 = vpop.f32.mrb[0].mxu0
      %2757 = vmatprep.mubr.f32.mxu0 0.0
      %2758 = vmatmul.mubr.f32.gmra.mrb[0].mxu0 %v581
      %v2759 = vpop.f32.mrb[0].mxu0
      %v2760 = vadd.f32 0.0, %v2759
      %v2761 = vpop.f32.mrb[0].mxu0
      %2762 = vmatprep.mubr.f32.mxu0 0.0
      %2763 = vmatmul.mubr.f32.gmra.mrb[0].mxu0 %v583
      %v2764 = vpop.f32.mrb[0].mxu0
      %v2765 = vadd.f32 0.0, %v2764
      %v2766 = vpop.f32.mrb[0].mxu0
      %2767 = vmatprep.mubr.f32.mxu0 0.0
      %2768 = vmatmul.mubr.f32.gmra.mrb[0].mxu0 %v585
      %v2769 = vpop.f32.mrb[0].mxu0
      %v2770 = vadd.f32 0.0, %v2769
      %v2771 = vpop.f32.mrb[0].mxu0
      %2772 = vmatprep.mubr.f32.mxu0 0.0
      %2773 = vmatmul.mubr.f32.gmra.mrb[0].mxu0 %v587
      %v2774 = vpop.f32.mrb[0].mxu0
      %v2775 = vadd.f32 0.0, %v2774
      %v2776 = vpop.f32.mrb[0].mxu0
      %2777 = vmatprep.mubr.f32.mxu0 0.0
      %2778 = vmatmul.mubr.f32.gmra.mrb[0].mxu0 %v589
      %v2779 = vpop.f32.mrb[0].mxu0
      %v2780 = vadd.f32 0.0, %v2779
      %v2781 = vpop.f32.mrb[0].mxu0
      %2782 = vmatprep.mubr.f32.mxu0 0.0
      %2783 = vmatmul.mubr.f32.gmra.mrb[0].mxu0 %v591
      %v2784 = vpop.f32.mrb[0].mxu0
      %v2785 = vadd.f32 0.0, %v2784
      %v2786 = vpop.f32.mrb[0].mxu0
      %2787 = vmatprep.mubr.f32.mxu0 0.0
      %2788 = vmatmul.mubr.f32.gmra.mrb[0].mxu0 %v593
      %v2789 = vpop.f32.mrb[0].mxu0
      %v2790 = vadd.f32 0.0, %v2789
      %v2791 = vpop.f32.mrb[0].mxu0
      %2792 = vmatprep.mubr.f32.mxu0 0.0
      %2793 = vmatmul.mubr.f32.gmra.mrb[0].mxu0 %v1792
      %v2794 = vpop.f32.mrb[0].mxu0
      %v2795 = vadd.f32 0.0, %v2794
      %v2796 = vpop.f32.mrb[0].mxu0
      %2797 = vmatprep.mubr.f32.mxu0 0.0
      %2798 = vmatmul.mubr.f32.gmra.mrb[0].mxu0 %v1794
      %v2799 = vpop.f32.mrb[0].mxu0
      %v2800 = vadd.f32 0.0, %v2799
      %v2801 = vpop.f32.mrb[0].mxu0
      %2802 = vmatprep.mubr.f32.mxu0 0.0
      %2803 = vmatmul.mubr.f32.gmra.mrb[0].mxu0 %v531
      %v2804 = vpop.f32.mrb[0].mxu0
      %v2805 = vadd.f32 0.0, %v2804
      %v2806 = vpop.f32.mrb[0].mxu0
      %2807 = vmatprep.mubr.f32.mxu0 0.0
      %2808 = vmatmul.mubr.f32.gmra.mrb[0].mxu0 %v533
      %v2809 = vpop.f32.mrb[0].mxu0
      %v2810 = vadd.f32 0.0, %v2809
      %v2811 = vpop.f32.mrb[0].mxu0
      %2812 = vdwg.mxu0
      %v2813 = vadd.f32 %v2553, %v2655
      %v2814 = vadd.f32 %v2554, %v2660
      %v2815 = vadd.f32 %v2555, %v2665
      %v2816 = vadd.f32 %v2556, %v2670
      %v2817 = vadd.f32 %v2557, %v2675
      %v2818 = vadd.f32 %v2558, %v2680
      %v2819 = vadd.f32 %v2559, %v2685
      %v2820 = vadd.f32 %v2560, %v2690
      %v2821 = vadd.f32 %v2561, %v2695
      %v2822 = vadd.f32 %v2562, %v2700
      %v2823 = vadd.f32 %v2563, %v2705
      %v2824 = vadd.f32 %v2564, %v2710
      %v2825 = vadd.f32 %v2565, %v2715
      %v2826 = vadd.f32 %v2566, %v2720
      %v2827 = vadd.f32 %v2567, %v2725
      %v2828 = vadd.f32 %v2568, %v2730
      %v2829 = vadd.f32 %v2569, %v2735
      %v2830 = vadd.f32 %v2570, %v2740
      %v2831 = vadd.f32 %v2571, %v2745
      %v2832 = vadd.f32 %v2572, %v2750
      %v2833 = vadd.f32 %v2573, %v2755
      %v2834 = vadd.f32 %v2574, %v2760
      %v2835 = vadd.f32 %v2575, %v2765
      %v2836 = vadd.f32 %v2576, %v2770
      %v2837 = vadd.f32 %v2577, %v2775
      %v2838 = vadd.f32 %v2578, %v2780
      %v2839 = vadd.f32 %v2579, %v2785
      %v2840 = vadd.f32 %v2580, %v2790
      %v2841 = vadd.f32 %v2581, %v2795
      %v2842 = vadd.f32 %v2582, %v2800
      %v2843 = vadd.f32 %v2583, %v2805
      %v2844 = vadd.f32 %v2584, %v2810
      %v2846 = vsel %vm595, %v265, 0
      %2848 = vmatprep.subr.mxu0 0.0
      %2849 = vmatpush1.msra.mxu0 %v2846
      %2850 = vmatprep.subr.mxu0 0.0
      %2851 = vmatpush1.msra.mxu0 0.0
      %2852 = vmatprep.subr.mxu0 0.0
      %2853 = vmatpush1.msra.mxu0 0.0
      %2854 = vmatprep.subr.mxu0 0.0
      %2855 = vmatpush1.msra.mxu0 0.0
      %2856 = vmatprep.subr.mxu0 0.0
      %2857 = vmatpush1.msra.mxu0 0.0
      %2858 = vmatprep.subr.mxu0 0.0
      %2859 = vmatpush1.msra.mxu0 0.0
      %2860 = vmatprep.subr.mxu0 0.0
      %2861 = vmatpush1.msra.mxu0 0.0
      %2862 = vmatprep.subr.mxu0 0.0
      %2863 = vmatpush1.msra.mxu0 0.0
      %2864 = vmatprep.subr.mxu0 0.0
      %2865 = vmatpush1.msra.mxu0 0.0
      %2866 = vmatprep.subr.mxu0 0.0
      %2867 = vmatpush1.msra.mxu0 0.0
      %2868 = vmatprep.subr.mxu0 0.0
      %2869 = vmatpush1.msra.mxu0 0.0
      %2870 = vmatprep.subr.mxu0 0.0
      %2871 = vmatpush1.msra.mxu0 0.0
      %2872 = vmatprep.subr.mxu0 0.0
      %2873 = vmatpush1.msra.mxu0 0.0
      %2874 = vmatprep.subr.mxu0 0.0
      %2875 = vmatpush1.msra.mxu0 0.0
      %2876 = vmatprep.subr.mxu0 0.0
      %2877 = vmatpush1.msra.mxu0 0.0
      %2878 = vmatprep.subr.mxu0 0.0
      %2879 = vmatpush1.msra.mxu0 0.0
      %2880 = vmatprep.subr.mxu0 0.0
      %2881 = vmatpush1.msra.mxu0 0.0
      %2882 = vmatprep.subr.mxu0 0.0
      %2883 = vmatpush1.msra.mxu0 0.0
      %2884 = vmatprep.subr.mxu0 0.0
      %2885 = vmatpush1.msra.mxu0 0.0
      %2886 = vmatprep.subr.mxu0 0.0
      %2887 = vmatpush1.msra.mxu0 0.0
      %2888 = vmatprep.subr.mxu0 0.0
      %2889 = vmatpush1.msra.mxu0 0.0
      %2890 = vmatprep.subr.mxu0 0.0
      %2891 = vmatpush1.msra.mxu0 0.0
      %2892 = vmatprep.subr.mxu0 0.0
      %2893 = vmatpush1.msra.mxu0 0.0
      %2894 = vmatprep.subr.mxu0 0.0
      %2895 = vmatpush1.msra.mxu0 0.0
      %2896 = vmatprep.subr.mxu0 0.0
      %2897 = vmatpush1.msra.mxu0 0.0
      %2898 = vmatprep.subr.mxu0 0.0
      %2899 = vmatpush1.msra.mxu0 0.0
      %2900 = vmatprep.subr.mxu0 0.0
      %2901 = vmatpush1.msra.mxu0 0.0
      %2902 = vmatprep.subr.mxu0 0.0
      %2903 = vmatpush1.msra.mxu0 0.0
      %2904 = vmatprep.subr.mxu0 0.0
      %2905 = vmatpush1.msra.mxu0 0.0
      %2906 = vmatprep.subr.mxu0 0.0
      %2907 = vmatpush1.msra.mxu0 0.0
      %2908 = vmatprep.subr.mxu0 0.0
      %2909 = vmatpush1.msra.mxu0 0.0
      %2910 = vmatprep.subr.mxu0 0.0
      %2911 = vmatpush1.msra.mxu0 0.0
      %2912 = vmatprep.mubr.f32.mxu0 0.0
      %2913 = vmatmul.mubr.f32.gmra.mrb[0].mxu0 %v1205
      %v2914 = vpop.f32.mrb[0].mxu0
      %v2915 = vadd.f32 0.0, %v2914
      %v2916 = vpop.f32.mrb[0].mxu0
      %2917 = vmatprep.mubr.f32.mxu0 0.0
      %2918 = vmatmul.mubr.f32.gmra.mrb[0].mxu0 %v1207
      %v2919 = vpop.f32.mrb[0].mxu0
      %v2920 = vadd.f32 0.0, %v2919
      %v2921 = vpop.f32.mrb[0].mxu0
      %2922 = vmatprep.mubr.f32.mxu0 0.0
      %2923 = vmatmul.mubr.f32.gmra.mrb[0].mxu0 %v1209
      %v2924 = vpop.f32.mrb[0].mxu0
      %v2925 = vadd.f32 0.0, %v2924
      %v2926 = vpop.f32.mrb[0].mxu0
      %2927 = vmatprep.mubr.f32.mxu0 0.0
      %2928 = vmatmul.mubr.f32.gmra.mrb[0].mxu0 %v1211
      %v2929 = vpop.f32.mrb[0].mxu0
      %v2930 = vadd.f32 0.0, %v2929
      %v2931 = vpop.f32.mrb[0].mxu0
      %2932 = vmatprep.mubr.f32.mxu0 0.0
      %2933 = vmatmul.mubr.f32.gmra.mrb[0].mxu0 %v1213
      %v2934 = vpop.f32.mrb[0].mxu0
      %v2935 = vadd.f32 0.0, %v2934
      %v2936 = vpop.f32.mrb[0].mxu0
      %2937 = vmatprep.mubr.f32.mxu0 0.0
      %2938 = vmatmul.mubr.f32.gmra.mrb[0].mxu0 %v1215
      %v2939 = vpop.f32.mrb[0].mxu0
      %v2940 = vadd.f32 0.0, %v2939
      %v2941 = vpop.f32.mrb[0].mxu0
      %2942 = vmatprep.mubr.f32.mxu0 0.0
      %2943 = vmatmul.mubr.f32.gmra.mrb[0].mxu0 %v1217
      %v2944 = vpop.f32.mrb[0].mxu0
      %v2945 = vadd.f32 0.0, %v2944
      %v2946 = vpop.f32.mrb[0].mxu0
      %2947 = vmatprep.mubr.f32.mxu0 0.0
      %2948 = vmatmul.mubr.f32.gmra.mrb[0].mxu0 %v1219
      %v2949 = vpop.f32.mrb[0].mxu0
      %v2950 = vadd.f32 0.0, %v2949
      %v2951 = vpop.f32.mrb[0].mxu0
      %2952 = vmatprep.mubr.f32.mxu0 0.0
      %2953 = vmatmul.mubr.f32.gmra.mrb[0].mxu0 %v1221
      %v2954 = vpop.f32.mrb[0].mxu0
      %v2955 = vadd.f32 0.0, %v2954
      %v2956 = vpop.f32.mrb[0].mxu0
      %2957 = vmatprep.mubr.f32.mxu0 0.0
      %2958 = vmatmul.mubr.f32.gmra.mrb[0].mxu0 %v1223
      %v2959 = vpop.f32.mrb[0].mxu0
      %v2960 = vadd.f32 0.0, %v2959
      %v2961 = vpop.f32.mrb[0].mxu0
      %2962 = vmatprep.mubr.f32.mxu0 0.0
      %2963 = vmatmul.mubr.f32.gmra.mrb[0].mxu0 %v1225
      %v2964 = vpop.f32.mrb[0].mxu0
      %v2965 = vadd.f32 0.0, %v2964
      %v2966 = vpop.f32.mrb[0].mxu0
      %2967 = vmatprep.mubr.f32.mxu0 0.0
      %2968 = vmatmul.mubr.f32.gmra.mrb[0].mxu0 %v1227
      %v2969 = vpop.f32.mrb[0].mxu0
      %v2970 = vadd.f32 0.0, %v2969
      %v2971 = vpop.f32.mrb[0].mxu0
      %2972 = vmatprep.mubr.f32.mxu0 0.0
      %2973 = vmatmul.mubr.f32.gmra.mrb[0].mxu0 %v1229
      %v2974 = vpop.f32.mrb[0].mxu0
      %v2975 = vadd.f32 0.0, %v2974
      %v2976 = vpop.f32.mrb[0].mxu0
      %2977 = vmatprep.mubr.f32.mxu0 0.0
      %2978 = vmatmul.mubr.f32.gmra.mrb[0].mxu0 %v1231
      %v2979 = vpop.f32.mrb[0].mxu0
      %v2980 = vadd.f32 0.0, %v2979
      %v2981 = vpop.f32.mrb[0].mxu0
      %2982 = vmatprep.mubr.f32.mxu0 0.0
      %2983 = vmatmul.mubr.f32.gmra.mrb[0].mxu0 %v1233
      %v2984 = vpop.f32.mrb[0].mxu0
      %v2985 = vadd.f32 0.0, %v2984
      %v2986 = vpop.f32.mrb[0].mxu0
      %2987 = vmatprep.mubr.f32.mxu0 0.0
      %2988 = vmatmul.mubr.f32.gmra.mrb[0].mxu0 %v1235
      %v2989 = vpop.f32.mrb[0].mxu0
      %v2990 = vadd.f32 0.0, %v2989
      %v2991 = vpop.f32.mrb[0].mxu0
      %2992 = vmatprep.mubr.f32.mxu0 0.0
      %2993 = vmatmul.mubr.f32.gmra.mrb[0].mxu0 %v1237
      %v2994 = vpop.f32.mrb[0].mxu0
      %v2995 = vadd.f32 0.0, %v2994
      %v2996 = vpop.f32.mrb[0].mxu0
      %2997 = vmatprep.mubr.f32.mxu0 0.0
      %2998 = vmatmul.mubr.f32.gmra.mrb[0].mxu0 %v1239
      %v2999 = vpop.f32.mrb[0].mxu0
      %v3000 = vadd.f32 0.0, %v2999
      %v3001 = vpop.f32.mrb[0].mxu0
      %3002 = vmatprep.mubr.f32.mxu0 0.0
      %3003 = vmatmul.mubr.f32.gmra.mrb[0].mxu0 %v1241
      %v3004 = vpop.f32.mrb[0].mxu0
      %v3005 = vadd.f32 0.0, %v3004
      %v3006 = vpop.f32.mrb[0].mxu0
      %3007 = vmatprep.mubr.f32.mxu0 0.0
      %3008 = vmatmul.mubr.f32.gmra.mrb[0].mxu0 %v1243
      %v3009 = vpop.f32.mrb[0].mxu0
      %v3010 = vadd.f32 0.0, %v3009
      %v3011 = vpop.f32.mrb[0].mxu0
      %3012 = vmatprep.mubr.f32.mxu0 0.0
      %3013 = vmatmul.mubr.f32.gmra.mrb[0].mxu0 %v1245
      %v3014 = vpop.f32.mrb[0].mxu0
      %v3015 = vadd.f32 0.0, %v3014
      %v3016 = vpop.f32.mrb[0].mxu0
      %3017 = vmatprep.mubr.f32.mxu0 0.0
      %3018 = vmatmul.mubr.f32.gmra.mrb[0].mxu0 %v1247
      %v3019 = vpop.f32.mrb[0].mxu0
      %v3020 = vadd.f32 0.0, %v3019
      %v3021 = vpop.f32.mrb[0].mxu0
      %3022 = vmatprep.mubr.f32.mxu0 0.0
      %3023 = vmatmul.mubr.f32.gmra.mrb[0].mxu0 %v1249
      %v3024 = vpop.f32.mrb[0].mxu0
      %v3025 = vadd.f32 0.0, %v3024
      %v3026 = vpop.f32.mrb[0].mxu0
      %3027 = vmatprep.mubr.f32.mxu0 0.0
      %3028 = vmatmul.mubr.f32.gmra.mrb[0].mxu0 %v1251
      %v3029 = vpop.f32.mrb[0].mxu0
      %v3030 = vadd.f32 0.0, %v3029
      %v3031 = vpop.f32.mrb[0].mxu0
      %3032 = vmatprep.mubr.f32.mxu0 0.0
      %3033 = vmatmul.mubr.f32.gmra.mrb[0].mxu0 %v1253
      %v3034 = vpop.f32.mrb[0].mxu0
      %v3035 = vadd.f32 0.0, %v3034
      %v3036 = vpop.f32.mrb[0].mxu0
      %3037 = vmatprep.mubr.f32.mxu0 0.0
      %3038 = vmatmul.mubr.f32.gmra.mrb[0].mxu0 %v1255
      %v3039 = vpop.f32.mrb[0].mxu0
      %v3040 = vadd.f32 0.0, %v3039
      %v3041 = vpop.f32.mrb[0].mxu0
      %3042 = vmatprep.mubr.f32.mxu0 0.0
      %3043 = vmatmul.mubr.f32.gmra.mrb[0].mxu0 %v1257
      %v3044 = vpop.f32.mrb[0].mxu0
      %v3045 = vadd.f32 0.0, %v3044
      %v3046 = vpop.f32.mrb[0].mxu0
      %3047 = vmatprep.mubr.f32.mxu0 0.0
      %3048 = vmatmul.mubr.f32.gmra.mrb[0].mxu0 %v1259
      %v3049 = vpop.f32.mrb[0].mxu0
      %v3050 = vadd.f32 0.0, %v3049
      %v3051 = vpop.f32.mrb[0].mxu0
      %3052 = vmatprep.mubr.f32.mxu0 0.0
      %3053 = vmatmul.mubr.f32.gmra.mrb[0].mxu0 %v2061
      %v3054 = vpop.f32.mrb[0].mxu0
      %v3055 = vadd.f32 0.0, %v3054
      %v3056 = vpop.f32.mrb[0].mxu0
      %3057 = vmatprep.mubr.f32.mxu0 0.0
      %3058 = vmatmul.mubr.f32.gmra.mrb[0].mxu0 %v2063
      %v3059 = vpop.f32.mrb[0].mxu0
      %v3060 = vadd.f32 0.0, %v3059
      %v3061 = vpop.f32.mrb[0].mxu0
      %3062 = vmatprep.mubr.f32.mxu0 0.0
      %3063 = vmatmul.mubr.f32.gmra.mrb[0].mxu0 %v1197
      %v3064 = vpop.f32.mrb[0].mxu0
      %v3065 = vadd.f32 0.0, %v3064
      %v3066 = vpop.f32.mrb[0].mxu0
      %3067 = vmatprep.mubr.f32.mxu0 0.0
      %3068 = vmatmul.mubr.f32.gmra.mrb[0].mxu0 %v1199
      %v3069 = vpop.f32.mrb[0].mxu0
      %v3070 = vadd.f32 0.0, %v3069
      %v3071 = vpop.f32.mrb[0].mxu0
      %3072 = vdwg.mxu0
      %v3073 = vadd.f32 %v2813, %v2915
      %v3074 = vadd.f32 %v2814, %v2920
      %v3075 = vadd.f32 %v2815, %v2925
      %v3076 = vadd.f32 %v2816, %v2930
      %v3077 = vadd.f32 %v2817, %v2935
      %v3078 = vadd.f32 %v2818, %v2940
      %v3079 = vadd.f32 %v2819, %v2945
      %v3080 = vadd.f32 %v2820, %v2950
      %v3081 = vadd.f32 %v2821, %v2955
      %v3082 = vadd.f32 %v2822, %v2960
      %v3083 = vadd.f32 %v2823, %v2965
      %v3084 = vadd.f32 %v2824, %v2970
      %v3085 = vadd.f32 %v2825, %v2975
      %v3086 = vadd.f32 %v2826, %v2980
      %v3087 = vadd.f32 %v2827, %v2985
      %v3088 = vadd.f32 %v2828, %v2990
      %v3089 = vadd.f32 %v2829, %v2995
      %v3090 = vadd.f32 %v2830, %v3000
      %v3091 = vadd.f32 %v2831, %v3005
      %v3092 = vadd.f32 %v2832, %v3010
      %v3093 = vadd.f32 %v2833, %v3015
      %v3094 = vadd.f32 %v2834, %v3020
      %v3095 = vadd.f32 %v2835, %v3025
      %v3096 = vadd.f32 %v2836, %v3030
      %v3097 = vadd.f32 %v2837, %v3035
      %v3098 = vadd.f32 %v2838, %v3040
      %v3099 = vadd.f32 %v2839, %v3045
      %v3100 = vadd.f32 %v2840, %v3050
      %v3101 = vadd.f32 %v2841, %v3055
      %v3102 = vadd.f32 %v2842, %v3060
      %v3103 = vadd.f32 %v2843, %v3065
      %v3104 = vadd.f32 %v2844, %v3070
      %v3105 = vld [vmem:[%s2] sm:$0x1]
      %v3107 = vlaneseq
      %v3108 = vshrl.u32 %v3107, 7
      %v3109 = vsub.s32 0, %v3108
      %v3110 = vrot.slane %v3105, %v3109
      %v3112 = vadd.f32 %v3073, %v3110
      %v3113 = vadd.f32 %v3074, %v3110
      %v3114 = vadd.f32 %v3075, %v3110
      %v3115 = vadd.f32 %v3076, %v3110
      %v3116 = vadd.f32 %v3077, %v3110
      %v3117 = vadd.f32 %v3078, %v3110
      %v3118 = vadd.f32 %v3079, %v3110
      %v3119 = vadd.f32 %v3080, %v3110
      %v3120 = vadd.f32 %v3081, %v3110
      %v3121 = vadd.f32 %v3082, %v3110
      %v3122 = vadd.f32 %v3083, %v3110
      %v3123 = vadd.f32 %v3084, %v3110
      %v3124 = vadd.f32 %v3085, %v3110
      %v3125 = vadd.f32 %v3086, %v3110
      %v3126 = vadd.f32 %v3087, %v3110
      %v3127 = vadd.f32 %v3088, %v3110
      %v3128 = vadd.f32 %v3089, %v3110
      %v3129 = vadd.f32 %v3090, %v3110
      %v3130 = vadd.f32 %v3091, %v3110
      %v3131 = vadd.f32 %v3092, %v3110
      %v3132 = vadd.f32 %v3093, %v3110
      %v3133 = vadd.f32 %v3094, %v3110
      %v3134 = vadd.f32 %v3095, %v3110
      %v3135 = vadd.f32 %v3096, %v3110
      %v3136 = vadd.f32 %v3097, %v3110
      %v3137 = vadd.f32 %v3098, %v3110
      %v3138 = vadd.f32 %v3099, %v3110
      %v3139 = vadd.f32 %v3100, %v3110
      %v3140 = vadd.f32 %v3101, %v3110
      %v3141 = vadd.f32 %v3102, %v3110
      %v3142 = vadd.f32 %v3103, %v3110
      %v3143 = vadd.f32 %v3104, %v3110
      %v3144 = vld [vmem:[%s3] sm:$0x1]
      %v3146 = vlaneseq
      %v3147 = vshrl.u32 %v3146, 7
      %v3148 = vsub.s32 0, %v3147
      %v3149 = vrot.slane %v3144, %v3148
      %v3151 = vmul.f32 %v3112, %v3149
      %v3152 = vmul.f32 %v3113, %v3149
      %v3153 = vmul.f32 %v3114, %v3149
      %v3154 = vmul.f32 %v3115, %v3149
      %v3155 = vmul.f32 %v3116, %v3149
      %v3156 = vmul.f32 %v3117, %v3149
      %v3157 = vmul.f32 %v3118, %v3149
      %v3158 = vmul.f32 %v3119, %v3149
      %v3159 = vmul.f32 %v3120, %v3149
      %v3160 = vmul.f32 %v3121, %v3149
      %v3161 = vmul.f32 %v3122, %v3149
      %v3162 = vmul.f32 %v3123, %v3149
      %v3163 = vmul.f32 %v3124, %v3149
      %v3164 = vmul.f32 %v3125, %v3149
      %v3165 = vmul.f32 %v3126, %v3149
      %v3166 = vmul.f32 %v3127, %v3149
      %v3167 = vmul.f32 %v3128, %v3149
      %v3168 = vmul.f32 %v3129, %v3149
      %v3169 = vmul.f32 %v3130, %v3149
      %v3170 = vmul.f32 %v3131, %v3149
      %v3171 = vmul.f32 %v3132, %v3149
      %v3172 = vmul.f32 %v3133, %v3149
      %v3173 = vmul.f32 %v3134, %v3149
      %v3174 = vmul.f32 %v3135, %v3149
      %v3175 = vmul.f32 %v3136, %v3149
      %v3176 = vmul.f32 %v3137, %v3149
      %v3177 = vmul.f32 %v3138, %v3149
      %v3178 = vmul.f32 %v3139, %v3149
      %v3179 = vmul.f32 %v3140, %v3149
      %v3180 = vmul.f32 %v3141, %v3149
      %v3181 = vmul.f32 %v3142, %v3149
      %v3182 = vmul.f32 %v3143, %v3149
      %v3183 = vld [vmem:[%s4] sm:$0x1]
      %v3185 = vlaneseq
      %v3186 = vshrl.u32 %v3185, 7
      %v3187 = vsub.s32 0, %v3186
      %v3188 = vrot.slane %v3183, %v3187
      %v3190 = vadd.f32 %v3151, %v3188
      %v3191 = vadd.f32 %v3152, %v3188
      %v3192 = vadd.f32 %v3153, %v3188
      %v3193 = vadd.f32 %v3154, %v3188
      %v3194 = vadd.f32 %v3155, %v3188
      %v3195 = vadd.f32 %v3156, %v3188
      %v3196 = vadd.f32 %v3157, %v3188
      %v3197 = vadd.f32 %v3158, %v3188
      %v3198 = vadd.f32 %v3159, %v3188
      %v3199 = vadd.f32 %v3160, %v3188
      %v3200 = vadd.f32 %v3161, %v3188
      %v3201 = vadd.f32 %v3162, %v3188
      %v3202 = vadd.f32 %v3163, %v3188
      %v3203 = vadd.f32 %v3164, %v3188
      %v3204 = vadd.f32 %v3165, %v3188
      %v3205 = vadd.f32 %v3166, %v3188
      %v3206 = vadd.f32 %v3167, %v3188
      %v3207 = vadd.f32 %v3168, %v3188
      %v3208 = vadd.f32 %v3169, %v3188
      %v3209 = vadd.f32 %v3170, %v3188
      %v3210 = vadd.f32 %v3171, %v3188
      %v3211 = vadd.f32 %v3172, %v3188
      %v3212 = vadd.f32 %v3173, %v3188
      %v3213 = vadd.f32 %v3174, %v3188
      %v3214 = vadd.f32 %v3175, %v3188
      %v3215 = vadd.f32 %v3176, %v3188
      %v3216 = vadd.f32 %v3177, %v3188
      %v3217 = vadd.f32 %v3178, %v3188
      %v3218 = vadd.f32 %v3179, %v3188
      %v3219 = vadd.f32 %v3180, %v3188
      %v3220 = vadd.f32 %v3181, %v3188
      %v3221 = vadd.f32 %v3182, %v3188
      %v3222 = vsub.f32 0.0, %v3190
      %v3223 = vsub.f32 0.0, %v3191
      %v3224 = vsub.f32 0.0, %v3192
      %v3225 = vsub.f32 0.0, %v3193
      %v3226 = vsub.f32 0.0, %v3194
      %v3227 = vsub.f32 0.0, %v3195
      %v3228 = vsub.f32 0.0, %v3196
      %v3229 = vsub.f32 0.0, %v3197
      %v3230 = vsub.f32 0.0, %v3198
      %v3231 = vsub.f32 0.0, %v3199
      %v3232 = vsub.f32 0.0, %v3200
      %v3233 = vsub.f32 0.0, %v3201
      %v3234 = vsub.f32 0.0, %v3202
      %v3235 = vsub.f32 0.0, %v3203
      %v3236 = vsub.f32 0.0, %v3204
      %v3237 = vsub.f32 0.0, %v3205
      %v3238 = vsub.f32 0.0, %v3206
      %v3239 = vsub.f32 0.0, %v3207
      %v3240 = vsub.f32 0.0, %v3208
      %v3241 = vsub.f32 0.0, %v3209
      %v3242 = vsub.f32 0.0, %v3210
      %v3243 = vsub.f32 0.0, %v3211
      %v3244 = vsub.f32 0.0, %v3212
      %v3245 = vsub.f32 0.0, %v3213
      %v3246 = vsub.f32 0.0, %v3214
      %v3247 = vsub.f32 0.0, %v3215
      %v3248 = vsub.f32 0.0, %v3216
      %v3249 = vsub.f32 0.0, %v3217
      %v3250 = vsub.f32 0.0, %v3218
      %v3251 = vsub.f32 0.0, %v3219
      %v3252 = vsub.f32 0.0, %v3220
      %v3253 = vsub.f32 0.0, %v3221
      %v3254 = vmul.f32 %v3222, 1.442695
      %v3255 = vpow.pop %v3254
      %v3256 = vmul.f32 %v3223, 1.442695
      %v3257 = vpow.pop %v3256
      %v3258 = vmul.f32 %v3224, 1.442695
      %v3259 = vpow.pop %v3258
      %v3260 = vmul.f32 %v3225, 1.442695
      %v3261 = vpow.pop %v3260
      %v3262 = vmul.f32 %v3226, 1.442695
      %v3263 = vpow.pop %v3262
      %v3264 = vmul.f32 %v3227, 1.442695
      %v3265 = vpow.pop %v3264
      %v3266 = vmul.f32 %v3228, 1.442695
      %v3267 = vpow.pop %v3266
      %v3268 = vmul.f32 %v3229, 1.442695
      %v3269 = vpow.pop %v3268
      %v3270 = vmul.f32 %v3230, 1.442695
      %v3271 = vpow.pop %v3270
      %v3272 = vmul.f32 %v3231, 1.442695
      %v3273 = vpow.pop %v3272
      %v3274 = vmul.f32 %v3232, 1.442695
      %v3275 = vpow.pop %v3274
      %v3276 = vmul.f32 %v3233, 1.442695
      %v3277 = vpow.pop %v3276
      %v3278 = vmul.f32 %v3234, 1.442695
      %v3279 = vpow.pop %v3278
      %v3280 = vmul.f32 %v3235, 1.442695
      %v3281 = vpow.pop %v3280
      %v3282 = vmul.f32 %v3236, 1.442695
      %v3283 = vpow.pop %v3282
      %v3284 = vmul.f32 %v3237, 1.442695
      %v3285 = vpow.pop %v3284
      %v3286 = vmul.f32 %v3238, 1.442695
      %v3287 = vpow.pop %v3286
      %v3288 = vmul.f32 %v3239, 1.442695
      %v3289 = vpow.pop %v3288
      %v3290 = vmul.f32 %v3240, 1.442695
      %v3291 = vpow.pop %v3290
      %v3292 = vmul.f32 %v3241, 1.442695
      %v3293 = vpow.pop %v3292
      %v3294 = vmul.f32 %v3242, 1.442695
      %v3295 = vpow.pop %v3294
      %v3296 = vmul.f32 %v3243, 1.442695
      %v3297 = vpow.pop %v3296
      %v3298 = vmul.f32 %v3244, 1.442695
      %v3299 = vpow.pop %v3298
      %v3300 = vmul.f32 %v3245, 1.442695
      %v3301 = vpow.pop %v3300
      %v3302 = vmul.f32 %v3246, 1.442695
      %v3303 = vpow.pop %v3302
      %v3304 = vmul.f32 %v3247, 1.442695
      %v3305 = vpow.pop %v3304
      %v3306 = vmul.f32 %v3248, 1.442695
      %v3307 = vpow.pop %v3306
      %v3308 = vmul.f32 %v3249, 1.442695
      %v3309 = vpow.pop %v3308
      %v3310 = vmul.f32 %v3250, 1.442695
      %v3311 = vpow.pop %v3310
      %v3312 = vmul.f32 %v3251, 1.442695
      %v3313 = vpow.pop %v3312
      %v3314 = vmul.f32 %v3252, 1.442695
      %v3315 = vpow.pop %v3314
      %v3316 = vmul.f32 %v3253, 1.442695
      %v3317 = vpow.pop %v3316
      %v3318 = vadd.f32 %v3255, 1.0
      %v3319 = vadd.f32 %v3257, 1.0
      %v3320 = vadd.f32 %v3259, 1.0
      %v3321 = vadd.f32 %v3261, 1.0
      %v3322 = vadd.f32 %v3263, 1.0
      %v3323 = vadd.f32 %v3265, 1.0
      %v3324 = vadd.f32 %v3267, 1.0
      %v3325 = vadd.f32 %v3269, 1.0
      %v3326 = vadd.f32 %v3271, 1.0
      %v3327 = vadd.f32 %v3273, 1.0
      %v3328 = vadd.f32 %v3275, 1.0
      %v3329 = vadd.f32 %v3277, 1.0
      %v3330 = vadd.f32 %v3279, 1.0
      %v3331 = vadd.f32 %v3281, 1.0
      %v3332 = vadd.f32 %v3283, 1.0
      %v3333 = vadd.f32 %v3285, 1.0
      %v3334 = vadd.f32 %v3287, 1.0
      %v3335 = vadd.f32 %v3289, 1.0
      %v3336 = vadd.f32 %v3291, 1.0
      %v3337 = vadd.f32 %v3293, 1.0
      %v3338 = vadd.f32 %v3295, 1.0
      %v3339 = vadd.f32 %v3297, 1.0
      %v3340 = vadd.f32 %v3299, 1.0
      %v3341 = vadd.f32 %v3301, 1.0
      %v3342 = vadd.f32 %v3303, 1.0
      %v3343 = vadd.f32 %v3305, 1.0
      %v3344 = vadd.f32 %v3307, 1.0
      %v3345 = vadd.f32 %v3309, 1.0
      %v3346 = vadd.f32 %v3311, 1.0
      %v3347 = vadd.f32 %v3313, 1.0
      %v3348 = vadd.f32 %v3315, 1.0
      %v3349 = vadd.f32 %v3317, 1.0
      %v3350 = vrcp.pop %v3318
      %v3351 = vrcp.pop %v3319
      %v3352 = vrcp.pop %v3320
      %v3353 = vrcp.pop %v3321
      %v3354 = vrcp.pop %v3322
      %v3355 = vrcp.pop %v3323
      %v3356 = vrcp.pop %v3324
      %v3357 = vrcp.pop %v3325
      %v3358 = vrcp.pop %v3326
      %v3359 = vrcp.pop %v3327
      %v3360 = vrcp.pop %v3328
      %v3361 = vrcp.pop %v3329
      %v3362 = vrcp.pop %v3330
      %v3363 = vrcp.pop %v3331
      %v3364 = vrcp.pop %v3332
      %v3365 = vrcp.pop %v3333
      %v3366 = vrcp.pop %v3334
      %v3367 = vrcp.pop %v3335
      %v3368 = vrcp.pop %v3336
      %v3369 = vrcp.pop %v3337
      %v3370 = vrcp.pop %v3338
      %v3371 = vrcp.pop %v3339
      %v3372 = vrcp.pop %v3340
      %v3373 = vrcp.pop %v3341
      %v3374 = vrcp.pop %v3342
      %v3375 = vrcp.pop %v3343
      %v3376 = vrcp.pop %v3344
      %v3377 = vrcp.pop %v3345
      %v3378 = vrcp.pop %v3346
      %v3379 = vrcp.pop %v3347
      %v3380 = vrcp.pop %v3348
      %v3381 = vrcp.pop %v3349
      %v3382 = vmul.f32 %v3190, %v3350
      %v3383 = vmul.f32 %v3191, %v3351
      %v3384 = vmul.f32 %v3192, %v3352
      %v3385 = vmul.f32 %v3193, %v3353
      %v3386 = vmul.f32 %v3194, %v3354
      %v3387 = vmul.f32 %v3195, %v3355
      %v3388 = vmul.f32 %v3196, %v3356
      %v3389 = vmul.f32 %v3197, %v3357
      %v3390 = vmul.f32 %v3198, %v3358
      %v3391 = vmul.f32 %v3199, %v3359
      %v3392 = vmul.f32 %v3200, %v3360
      %v3393 = vmul.f32 %v3201, %v3361
      %v3394 = vmul.f32 %v3202, %v3362
      %v3395 = vmul.f32 %v3203, %v3363
      %v3396 = vmul.f32 %v3204, %v3364
      %v3397 = vmul.f32 %v3205, %v3365
      %v3398 = vmul.f32 %v3206, %v3366
      %v3399 = vmul.f32 %v3207, %v3367
      %v3400 = vmul.f32 %v3208, %v3368
      %v3401 = vmul.f32 %v3209, %v3369
      %v3402 = vmul.f32 %v3210, %v3370
      %v3403 = vmul.f32 %v3211, %v3371
      %v3404 = vmul.f32 %v3212, %v3372
      %v3405 = vmul.f32 %v3213, %v3373
      %v3406 = vmul.f32 %v3214, %v3374
      %v3407 = vmul.f32 %v3215, %v3375
      %v3408 = vmul.f32 %v3216, %v3376
      %v3409 = vmul.f32 %v3217, %v3377
      %v3410 = vmul.f32 %v3218, %v3378
      %v3411 = vmul.f32 %v3219, %v3379
      %v3412 = vmul.f32 %v3220, %v3380
      %v3413 = vmul.f32 %v3221, %v3381
      %vm3414 = vcmask 130048
      %3415 = vst.msk [vmem:[%s224] sm:$0xff] %vm3414, %v3382
      %3416 = vst.msk [vmem:[%s224 + $0x8] sm:$0xff] %vm3414, %v3383
      %3417 = vst.msk [vmem:[%s224 + $0x20] sm:$0xff] %vm3414, %v3384
      %3418 = vst.msk [vmem:[%s224 + $0x28] sm:$0xff] %vm3414, %v3385
      %3419 = vst.msk [vmem:[%s224 + $0x40] sm:$0xff] %vm3414, %v3386
      %3420 = vst.msk [vmem:[%s224 + $0x48] sm:$0xff] %vm3414, %v3387
      %3421 = vst.msk [vmem:[%s224 + $0x60] sm:$0xff] %vm3414, %v3388
      %3422 = vst.msk [vmem:[%s224 + $0x68] sm:$0xff] %vm3414, %v3389
      %3423 = vst.msk [vmem:[%s224 + $0x80] sm:$0xff] %vm3414, %v3390
      %3424 = vst.msk [vmem:[%s224 + $0x88] sm:$0xff] %vm3414, %v3391
      %3425 = vst.msk [vmem:[%s224 + $0xa0] sm:$0xff] %vm3414, %v3392
      %3426 = vst.msk [vmem:[%s224 + $0xa8] sm:$0xff] %vm3414, %v3393
      %3427 = vst.msk [vmem:[%s224 + $0xc0] sm:$0xff] %vm3414, %v3394
      %3428 = vst.msk [vmem:[%s224 + $0xc8] sm:$0xff] %vm3414, %v3395
      %3429 = vst.msk [vmem:[%s224 + $0xe0] sm:$0xff] %vm3414, %v3396
      %3430 = vst.msk [vmem:[%s224 + $0xe8] sm:$0xff] %vm3414, %v3397
      %3431 = vst.msk [vmem:[%s224 + $0x100] sm:$0xff] %vm3414, %v3398
      %3432 = vst.msk [vmem:[%s224 + $0x108] sm:$0xff] %vm3414, %v3399
      %3433 = vst.msk [vmem:[%s224 + $0x120] sm:$0xff] %vm3414, %v3400
      %3434 = vst.msk [vmem:[%s224 + $0x128] sm:$0xff] %vm3414, %v3401
      %3435 = vst.msk [vmem:[%s224 + $0x140] sm:$0xff] %vm3414, %v3402
      %3436 = vst.msk [vmem:[%s224 + $0x148] sm:$0xff] %vm3414, %v3403
      %3437 = vst.msk [vmem:[%s224 + $0x160] sm:$0xff] %vm3414, %v3404
      %3438 = vst.msk [vmem:[%s224 + $0x168] sm:$0xff] %vm3414, %v3405
      %3439 = vst.msk [vmem:[%s224 + $0x180] sm:$0xff] %vm3414, %v3406
      %3440 = vst.msk [vmem:[%s224 + $0x188] sm:$0xff] %vm3414, %v3407
      %3441 = vst.msk [vmem:[%s224 + $0x1a0] sm:$0xff] %vm3414, %v3408
      %3442 = vst.msk [vmem:[%s224 + $0x1a8] sm:$0xff] %vm3414, %v3409
      %3443 = vst.msk [vmem:[%s224 + $0x1c0] sm:$0xff] %vm3414, %v3410
      %3444 = vst.msk [vmem:[%s224 + $0x1c8] sm:$0xff] %vm3414, %v3411
      %3445 = vst.msk [vmem:[%s224 + $0x1e0] sm:$0xff] %vm3414, %v3412
      %3446 = vst.msk [vmem:[%s224 + $0x1e8] sm:$0xff] %vm3414, %v3413
      %3479 = vrot.lane.b32.xlu0 %v3382, 112
      %v3480 = vpop.permute.xlu0 %3479
      %3481 = vrot.lane.b32.xlu0 %v3383, 112
      %v3482 = vpop.permute.xlu0 %3481
      %3483 = vrot.lane.b32.xlu0 %v3384, 112
      %v3484 = vpop.permute.xlu0 %3483
      %3485 = vrot.lane.b32.xlu0 %v3385, 112
      %v3486 = vpop.permute.xlu0 %3485
      %3487 = vrot.lane.b32.xlu0 %v3386, 112
      %v3488 = vpop.permute.xlu0 %3487
      %3489 = vrot.lane.b32.xlu0 %v3387, 112
      %v3490 = vpop.permute.xlu0 %3489
      %3491 = vrot.lane.b32.xlu0 %v3388, 112
      %v3492 = vpop.permute.xlu0 %3491
      %3493 = vrot.lane.b32.xlu0 %v3389, 112
      %v3494 = vpop.permute.xlu0 %3493
      %3495 = vrot.lane.b32.xlu0 %v3390, 112
      %v3496 = vpop.permute.xlu0 %3495
      %3497 = vrot.lane.b32.xlu0 %v3391, 112
      %v3498 = vpop.permute.xlu0 %3497
      %3499 = vrot.lane.b32.xlu0 %v3392, 112
      %v3500 = vpop.permute.xlu0 %3499
      %3501 = vrot.lane.b32.xlu0 %v3393, 112
      %v3502 = vpop.permute.xlu0 %3501
      %3503 = vrot.lane.b32.xlu0 %v3394, 112
      %v3504 = vpop.permute.xlu0 %3503
      %3505 = vrot.lane.b32.xlu0 %v3395, 112
      %v3506 = vpop.permute.xlu0 %3505
      %3507 = vrot.lane.b32.xlu0 %v3396, 112
      %v3508 = vpop.permute.xlu0 %3507
      %3509 = vrot.lane.b32.xlu0 %v3397, 112
      %v3510 = vpop.permute.xlu0 %3509
      %3511 = vrot.lane.b32.xlu0 %v3398, 112
      %v3512 = vpop.permute.xlu0 %3511
      %3513 = vrot.lane.b32.xlu0 %v3399, 112
      %v3514 = vpop.permute.xlu0 %3513
      %3515 = vrot.lane.b32.xlu0 %v3400, 112
      %v3516 = vpop.permute.xlu0 %3515
      %3517 = vrot.lane.b32.xlu0 %v3401, 112
      %v3518 = vpop.permute.xlu0 %3517
      %3519 = vrot.lane.b32.xlu0 %v3402, 112
      %v3520 = vpop.permute.xlu0 %3519
      %3521 = vrot.lane.b32.xlu0 %v3403, 112
      %v3522 = vpop.permute.xlu0 %3521
      %3523 = vrot.lane.b32.xlu0 %v3404, 112
      %v3524 = vpop.permute.xlu0 %3523
      %3525 = vrot.lane.b32.xlu0 %v3405, 112
      %v3526 = vpop.permute.xlu0 %3525
      %3527 = vrot.lane.b32.xlu0 %v3406, 112
      %v3528 = vpop.permute.xlu0 %3527
      %3529 = vrot.lane.b32.xlu0 %v3407, 112
      %v3530 = vpop.permute.xlu0 %3529
      %3531 = vrot.lane.b32.xlu0 %v3408, 112
      %v3532 = vpop.permute.xlu0 %3531
      %3533 = vrot.lane.b32.xlu0 %v3409, 112
      %v3534 = vpop.permute.xlu0 %3533
      %3535 = vrot.lane.b32.xlu0 %v3410, 112
      %v3536 = vpop.permute.xlu0 %3535
      %3537 = vrot.lane.b32.xlu0 %v3411, 112
      %v3538 = vpop.permute.xlu0 %3537
      %3539 = vrot.lane.b32.xlu0 %v3412, 112
      %v3540 = vpop.permute.xlu0 %3539
      %3541 = vrot.lane.b32.xlu0 %v3413, 112
      %v3542 = vpop.permute.xlu0 %3541
      %s3575 = scalar_lea.vmem %s224, 16
      %3576 = vst.msk [vmem:[%s3575] sm:$0xff] %vm3414, %v3480
      %3577 = vst.msk [vmem:[%s3575 + $0x8] sm:$0xff] %vm3414, %v3482
      %3578 = vst.msk [vmem:[%s3575 + $0x20] sm:$0xff] %vm3414, %v3484
      %3579 = vst.msk [vmem:[%s3575 + $0x28] sm:$0xff] %vm3414, %v3486
      %3580 = vst.msk [vmem:[%s3575 + $0x40] sm:$0xff] %vm3414, %v3488
      %3581 = vst.msk [vmem:[%s3575 + $0x48] sm:$0xff] %vm3414, %v3490
      %3582 = vst.msk [vmem:[%s3575 + $0x60] sm:$0xff] %vm3414, %v3492
      %3583 = vst.msk [vmem:[%s3575 + $0x68] sm:$0xff] %vm3414, %v3494
      %3584 = vst.msk [vmem:[%s3575 + $0x80] sm:$0xff] %vm3414, %v3496
      %3585 = vst.msk [vmem:[%s3575 + $0x88] sm:$0xff] %vm3414, %v3498
      %3586 = vst.msk [vmem:[%s3575 + $0xa0] sm:$0xff] %vm3414, %v3500
      %3587 = vst.msk [vmem:[%s3575 + $0xa8] sm:$0xff] %vm3414, %v3502
      %3588 = vst.msk [vmem:[%s3575 + $0xc0] sm:$0xff] %vm3414, %v3504
      %3589 = vst.msk [vmem:[%s3575 + $0xc8] sm:$0xff] %vm3414, %v3506
      %3590 = vst.msk [vmem:[%s3575 + $0xe0] sm:$0xff] %vm3414, %v3508
      %3591 = vst.msk [vmem:[%s3575 + $0xe8] sm:$0xff] %vm3414, %v3510
      %3592 = vst.msk [vmem:[%s3575 + $0x100] sm:$0xff] %vm3414, %v3512
      %3593 = vst.msk [vmem:[%s3575 + $0x108] sm:$0xff] %vm3414, %v3514
      %3594 = vst.msk [vmem:[%s3575 + $0x120] sm:$0xff] %vm3414, %v3516
      %3595 = vst.msk [vmem:[%s3575 + $0x128] sm:$0xff] %vm3414, %v3518
      %3596 = vst.msk [vmem:[%s3575 + $0x140] sm:$0xff] %vm3414, %v3520
      %3597 = vst.msk [vmem:[%s3575 + $0x148] sm:$0xff] %vm3414, %v3522
      %3598 = vst.msk [vmem:[%s3575 + $0x160] sm:$0xff] %vm3414, %v3524
      %3599 = vst.msk [vmem:[%s3575 + $0x168] sm:$0xff] %vm3414, %v3526
      %3600 = vst.msk [vmem:[%s3575 + $0x180] sm:$0xff] %vm3414, %v3528
      %3601 = vst.msk [vmem:[%s3575 + $0x188] sm:$0xff] %vm3414, %v3530
      %3602 = vst.msk [vmem:[%s3575 + $0x1a0] sm:$0xff] %vm3414, %v3532
      %3603 = vst.msk [vmem:[%s3575 + $0x1a8] sm:$0xff] %vm3414, %v3534
      %3604 = vst.msk [vmem:[%s3575 + $0x1c0] sm:$0xff] %vm3414, %v3536
      %3605 = vst.msk [vmem:[%s3575 + $0x1c8] sm:$0xff] %vm3414, %v3538
      %3606 = vst.msk [vmem:[%s3575 + $0x1e0] sm:$0xff] %vm3414, %v3540
      %3607 = vst.msk [vmem:[%s3575 + $0x1e8] sm:$0xff] %vm3414, %v3542
      %p3608 = scmp.lt.s32.totalorder %s16, 1
      %s3609 = scalar_select %p3608, %s16, 1
      %s3610 = smul.addr %s3609, 64
      %s3611 = smul.addr %s3610, 8
      %s3612 = scalar_lea.vmem %s5, %s3611
      // Predicated region
      $region41: #{upsample2x.3} parent=39 // pred_check
        %p3613 = pneg %p144
      $region42: #{upsample2x.3} parent=39 // pred_check_branch
        %3615 = sbr.rel (%p3613) target = $region44
      $region43: #{upsample2x.3} parent=39 // pred_region
        _
      $region44: #{upsample2x.3} parent=39 // pred_fallthru
        _
    $region40: #{upsample2x.3} parent=5 // pred_fallthru
      _
    %p3616 = scmp.le.s32.totalorder 2, %s11
    // Predicated region
    $region45: #{upsample2x.3} parent=5 // pred_check
      %p3617 = pneg %p3616
    $region46: #{upsample2x.3} parent=5 // pred_check_branch
      %3619 = sbr.rel (%p3617) target = $region48
    $region47: #{upsample2x.3} parent=5 // pred_region
      %s3620 = ssub.s32 %s11, 2
      // Predicated region
      $region49: #{upsample2x.3} parent=47 // pred_check
        %p3621 = pneg %p150
      $region50: #{upsample2x.3} parent=47 // pred_check_branch
        %3623 = sbr.rel (%p3621) target = $region52
      $region51: #{upsample2x.3} parent=47 // pred_region
        %p3624 = scmp.lt.s32.totalorder %s17, 1
        %s3625 = scalar_select %p3624, %s17, 1
        %s3626 = smul.addr %s3625, 64
        %s3627 = smul.addr %s3626, 8
        %s3628 = scalar_lea.vmem %s5, %s3627
      $region52: #{upsample2x.3} parent=47 // pred_fallthru
        _
    $region48: #{upsample2x.3} parent=5 // pred_fallthru
      _
  $region6: #{upsample2x.3} parent=0 // loop_footer
    %s15 = sadd.s32 1, %s11
  $region7: #{upsample2x.3} parent=0 // loop_footer_branch
    %10 = sbr.rel target = $region3
  $region8: #{upsample2x.3} parent=0 // loop_exit
    _

</llo_original>
